<compile_context>
chip_gen: v7x
topology: tpu7x:2x2x1
jax: 0.10.0
libtpu: 0.0.40
codegen_flags: <defaults>
</compile_context>

<pallas_src>
import jax
import jax.numpy as jnp
from jax.experimental import pallas as pl
from jax.experimental.pallas import tpu as pltpu


# ---------------------------------------------------------------------------
# Kernel
# ---------------------------------------------------------------------------
def pat_kernel(e1_ref, e2_ref,                          # (BB, S, D) f32 per modality
               fc1_wt_ref, fc1_b_ref,                   # (D, D) bf16, (1, D) f32
               fc2_row_ref,                             # (1, D) f32 (fc2 bias dropped)
               fus_wt1_ref, fus_wt2_ref, fus_b_ref,     # (D, D) bf16 x2, (1, D) f32
               cls_wt_ref, cls_b_ref,                   # (D, Lp) bf16, (1, Lp) f32
               out_ref):                                # (BB, Lp) f32
    BB, S, D = e1_ref.shape

    # --- shared attr-reduce MLP: both modalities, whole batch block, ONE matmul ---
    x = jnp.concatenate(
        [e1_ref[...].astype(jnp.bfloat16).reshape(BB * S, D),
         e2_ref[...].astype(jnp.bfloat16).reshape(BB * S, D)], axis=0)   # (2*BB*S, D)
    h = jnp.dot(x, fc1_wt_ref[...], preferred_element_type=jnp.float32)  # MXU, f32 acc
    h = jnp.maximum(h + fc1_b_ref[...], 0.0)
    # fc2 (D -> 1) as a VPU multiply + cross-lane (XLU) reduce instead of an N=1 matmul.
    a = jnp.sum(h.reshape(2, BB, S, D) * fc2_row_ref[...],
                axis=-1, keepdims=True)                                  # (2, BB, S, 1)

    # --- softmax over the sequence axis (f32).  The 1/Z normalizer is applied AFTER
    #     pooling, to the lane-dense (BB, D) result, not to the (BB, S, 1) probs.
    # TODO(synk): for S >= 64 a lane-major (2*BB, S) softmax layout avoids nearly-empty
    #             vregs in the max/sum reductions; not worth the relayout at small S.
    a = a - jnp.max(a, axis=2, keepdims=True)
    p = jnp.exp(a)                                                       # (2, BB, S, 1)
    inv_z = pl.reciprocal(jnp.sum(p, axis=2), approx=True)               # (2, BB, 1), EUP

    # --- attention-weighted pooling over S (re-read e_ref; no long-lived f32 copy) ---
    w1 = jnp.sum(e1_ref[...] * p[0], axis=1) * inv_z[0]                  # (BB, D) f32
    w2 = jnp.sum(e2_ref[...] * p[1], axis=1) * inv_z[1]

    # --- fusion Linear(2D -> D) + ReLU (concat expressed as a split matmul) ---
    fused = (jnp.dot(w1.astype(jnp.bfloat16), fus_wt1_ref[...],
                     preferred_element_type=jnp.float32)
             + jnp.dot(w2.astype(jnp.bfloat16), fus_wt2_ref[...],
                       preferred_element_type=jnp.float32)
             + fus_b_ref[...])
    fused = jnp.maximum(fused, 0.0)                                      # (BB, D) f32

    # --- classify + log_softmax.  Padded label columns carry a -1e30 f32 bias so
    #     exp()==0 exactly (keep f32: bf16 would turn -1e30 into -inf -> NaN).
    logits = jnp.dot(fused.astype(jnp.bfloat16), cls_wt_ref[...],
                     preferred_element_type=jnp.float32) + cls_b_ref[...]  # (BB, Lp)
    logits = logits - jnp.max(logits, axis=-1, keepdims=True)
    logits = logits - jnp.log(jnp.sum(jnp.exp(logits), axis=-1, keepdims=True))
    out_ref[...] = logits.astype(out_ref.dtype)


# ---------------------------------------------------------------------------
# Sizing helpers
# ---------------------------------------------------------------------------
def _round_up(x, m):
    return ((x + m - 1) // m) * m


def _vmem_limit_bytes():
    """Per-generation scoped VMEM budget: ~75% of physical, capped at 96 MiB
    (v7x: 64 MiB phys -> 48 MiB; v5e/v6e: 128 MiB phys -> 96 MiB)."""
    phys = 64 << 20
    try:
        phys = int(getattr(pltpu.get_tpu_info(), "vmem_capacity_bytes", phys))
    except Exception:
        pass
    return int(min(phys * 3 // 4, 96 << 20))


def _choose_batch_block(B, S, D, Lp, vmem_limit_bytes, weight_bytes):
    """BB gated by VMEM (not MXU rows), sublane-aligned, and capped so the
    'parallel' batch axis keeps >= 2 grid steps for v7x's two TensorCores."""
    per_row = (4 * S * D * 4      # e1,e2 input blocks, f32, double-buffered
               + 2 * Lp * 4       # (BB, Lp) f32 output block, double-buffered
               + 2 * S * D * 2    # bf16 fc1 operand (both modalities)
               + 2 * S * D * 4)   # fc1 activations h, f32
    budget = int(0.6 * vmem_limit_bytes) - weight_bytes
    bb = max(8, budget // max(per_row, 1))
    bb = min(bb, _round_up(pl.cdiv(B, 2), 8))   # keep grid splittable over 2 TCs (v7x)
    bb = min(bb, _round_up(B, 8))
    return max(8, _round_up(bb, 8))


# ---------------------------------------------------------------------------
# One-time weight preprocessing (hoisted out of the per-call path)
# ---------------------------------------------------------------------------
def prepare_params(params):
    D = params["fc1_w"].shape[0]
    L = params["classify_w"].shape[0]
    Lp = _round_up(max(L, 1), 128)             # lane-dense output -> unmasked stores
    fus_wt = params["fusion_w"].T.astype(jnp.bfloat16)                    # (2D, D)
    cls_wt = jnp.zeros((D, Lp), jnp.bfloat16).at[:, :L].set(
        params["classify_w"].T.astype(jnp.bfloat16))
    cls_b = jnp.full((1, Lp), -1e30, jnp.float32).at[:, :L].set(
        params["classify_b"].reshape(1, L).astype(jnp.float32))
    return {
        "D": D, "L": L, "Lp": Lp,
        "fc1_wt": params["fc1_w"].T.astype(jnp.bfloat16),                 # (D, D)
        "fc1_b": params["fc1_b"].reshape(1, D).astype(jnp.float32),
        "fc2_row": params["fc2_w"].reshape(1, D).astype(jnp.float32),     # fc2_b dropped
        "fus_wt1": fus_wt[:D], "fus_wt2": fus_wt[D:],
        "fus_b": params["fusion_b"].reshape(1, D).astype(jnp.float32),
        "cls_wt": cls_wt, "cls_b": cls_b,
    }


# ---------------------------------------------------------------------------
# Launcher
# ---------------------------------------------------------------------------
def _launch(e1, e2, w, *, BB, Lp, n_steps, vmem_limit, cost, single_buffer_weights):
    B_pad, S, D = e1.shape
    weight_kw = {"pipeline_mode": pl.Buffered(1)} if single_buffer_weights else {}
    full = lambda shp: pl.BlockSpec(shp, lambda b: (0,) * len(shp), **weight_kw)

    return pl.pallas_call(
        pat_kernel,
        out_shape=jax.ShapeDtypeStruct((B_pad, Lp), jnp.float32),
        grid_spec=pltpu.PrefetchScalarGridSpec(
            num_scalar_prefetch=0,
            grid=(n_steps,),
            in_specs=[
                pl.BlockSpec((BB, S, D), lambda b: (b, 0, 0)),   # encoded modality 1
                pl.BlockSpec((BB, S, D), lambda b: (b, 0, 0)),   # encoded modality 2
                full((D, D)),    # fc1 W^T
                full((1, D)),    # fc1 b
                full((1, D)),    # fc2 row
                full((D, D)),    # fusion W^T, first half
                full((D, D)),    # fusion W^T, second half
                full((1, D)),    # fusion b
                full((D, Lp)),   # classify W^T (label-padded)
                full((1, Lp)),   # classify b   (-1e30 on padded labels)
            ],
            out_specs=pl.BlockSpec((BB, Lp), lambda b: (b, 0)),
        ),
        compiler_params=pltpu.CompilerParams(
            dimension_semantics=("parallel",),
            vmem_limit_bytes=vmem_limit),
        cost_estimate=cost,
    )(e1, e2, w["fc1_wt"], w["fc1_b"], w["fc2_row"],
      w["fus_wt1"], w["fus_wt2"], w["fus_b"], w["cls_wt"], w["cls_b"])


def parallel_attention_transformer(encoded1, encoded2, prepared):
    """encoded{1,2}: [B, S, D] float32 ; returns log-softmax logits [B, L] (f32)."""
    B, S, D = encoded1.shape
    L, Lp = prepared["L"], prepared["Lp"]

    weight_keys = ("fc1_wt", "fc1_b", "fc2_row", "fus_wt1", "fus_wt2",
                   "fus_b", "cls_wt", "cls_b")
    weight_bytes = sum(int(prepared[k].size) * prepared[k].dtype.itemsize
                       for k in weight_keys)

    vmem_limit = _vmem_limit_bytes()
    BB = _choose_batch_block(B, S, D, Lp, vmem_limit, weight_bytes)
    n_steps = pl.cdiv(B, BB)
    B_pad = n_steps * BB
    if B_pad != B:   # batch padding only (zero rows -> finite garbage, sliced off)
        pad = ((0, B_pad - B), (0, 0), (0, 0))
        encoded1 = jnp.pad(encoded1, pad)
        encoded2 = jnp.pad(encoded2, pad)

    cost = pl.CostEstimate(
        flops=int(2 * (2 * B * S * D) * D + 2 * (2 * B * S * D)
                  + 2 * B * (2 * D) * D + 2 * B * D * L),
        transcendentals=int(2 * B * S + B * (L + 1)),
        bytes_accessed=int(2 * B_pad * S * D * 4 + weight_bytes + B_pad * Lp * 4),
    )

    kwargs = dict(BB=BB, Lp=Lp, n_steps=n_steps, vmem_limit=vmem_limit, cost=cost)
    try:
        out = _launch(encoded1, encoded2, prepared, single_buffer_weights=True, **kwargs)
    except Exception:
        # TODO(synk): pipeline_mode=pl.Buffered(1) unsupported on this jax build;
        #             fall back to default double-buffered weight blocks.
        out = _launch(encoded1, encoded2, prepared, single_buffer_weights=False, **kwargs)
    return out[:B, :L]


# ---------------------------------------------------------------------------
# Pure-JAX reference + synthetic weights
# ---------------------------------------------------------------------------
def reference(encoded1, encoded2, params, matmul_dtype=jnp.float32):
    """Replica of the PyTorch forward (labels=None).  matmul_dtype=bfloat16 mirrors
    the kernel's policy (bf16 only on MXU operands, f32 accumulation/elementwise)."""
    md = matmul_dtype

    def mlp(x):
        h = jnp.dot(x.astype(md), params["fc1_w"].T.astype(md),
                    preferred_element_type=jnp.float32) + params["fc1_b"]
        h = jnp.maximum(h, 0.0)
        return jnp.sum(h * params["fc2_w"][0], axis=-1, keepdims=True) + params["fc2_b"]

    a1 = jax.nn.softmax(mlp(encoded1), axis=1)
    a2 = jax.nn.softmax(mlp(encoded2), axis=1)
    w1 = (encoded1 * a1).sum(axis=1)
    w2 = (encoded2 * a2).sum(axis=1)
    cat = jnp.concatenate([w1, w2], axis=1)
    fused = jnp.maximum(
        jnp.dot(cat.astype(md), params["fusion_w"].T.astype(md),
                preferred_element_type=jnp.float32) + params["fusion_b"], 0.0)
    logits = jnp.dot(fused.astype(md), params["classify_w"].T.astype(md),
                     preferred_element_type=jnp.float32) + params["classify_b"]
    return jax.nn.log_softmax(logits, axis=-1)


def init_params(key, D, L):
    """Deterministic synthetic weights (PyTorch nn.Linear shape convention)."""
    ks = jax.random.split(key, 8)
    u = lambda k, shp, fan_in: jax.random.uniform(
        k, shp, jnp.float32, -1.0, 1.0) / jnp.sqrt(jnp.float32(fan_in))
    return {
        "fc1_w": u(ks[0], (D, D), D),        "fc1_b": u(ks[1], (D,), D),
        "fc2_w": u(ks[2], (1, D), D),        "fc2_b": u(ks[3], (1,), D),
        "fusion_w": u(ks[4], (D, 2 * D), 2 * D), "fusion_b": u(ks[5], (D,), 2 * D),
        "classify_w": u(ks[6], (L, D), D),   "classify_b": u(ks[7], (L,), D),
    }


if __name__ == "__main__":
    B, S, D, L = 64, 8, 32, 4        # batch, seq, intermediate_dims, num_labels
    key = jax.random.PRNGKey(0)
    k_e1, k_e2, k_p = jax.random.split(key, 3)

    # Stand-ins for the (undefined) text-embedding + multi-modal encoder outputs.
    encoded1 = jax.random.normal(k_e1, (B, S, D), jnp.float32)
    encoded2 = jax.random.normal(k_e2, (B, S, D), jnp.float32)
    params = init_params(k_p, D, L)
    prepared = prepare_params(params)          # one-time weight prep (hoisted)

    logits = parallel_attention_transformer(encoded1, encoded2, prepared)
    jax.block_until_ready(logits)
    assert logits.shape == (B, L)

    # (1) structural correctness vs a reference with the same bf16-MXU-operand policy
    ref_bf16 = reference(encoded1, encoded2, params, matmul_dtype=jnp.bfloat16)
    assert jnp.allclose(logits, ref_bf16, atol=2e-2, rtol=2e-2), \
        float(jnp.max(jnp.abs(logits - ref_bf16)))
    # (2) end-to-end sanity vs the full-f32 (PyTorch-semantics) reference
    ref_f32 = reference(encoded1, encoded2, params)
    assert jnp.allclose(logits, ref_f32, atol=6e-2, rtol=6e-2), \
        float(jnp.max(jnp.abs(logits - ref_f32)))

    # (3) exercise the ragged-batch (padding) path
    Br = 20
    e1r, e2r = encoded1[:Br], encoded2[:Br]
    logits_r = parallel_attention_transformer(e1r, e2r, prepared)
    jax.block_until_ready(logits_r)
    assert logits_r.shape == (Br, L)
    ref_r = reference(e1r, e2r, params)
    assert jnp.allclose(logits_r, ref_r, atol=6e-2, rtol=6e-2), \
        float(jnp.max(jnp.abs(logits_r - ref_r)))

    print("KERNEL_OK")
</pallas_src>

<mosaic_0001>
module attributes {stable_mosaic.version = 11 : i64} {
  func.func @pat_kernel(%arg0: i32, %arg1: memref<32x8x32xf32, #tpu.memory_space<vmem>>, %arg2: memref<32x8x32xf32, #tpu.memory_space<vmem>>, %arg3: memref<32x32xbf16, #tpu.memory_space<vmem>>, %arg4: memref<1x32xf32, #tpu.memory_space<vmem>>, %arg5: memref<1x32xf32, #tpu.memory_space<vmem>>, %arg6: memref<32x32xbf16, #tpu.memory_space<vmem>>, %arg7: memref<32x32xbf16, #tpu.memory_space<vmem>>, %arg8: memref<1x32xf32, #tpu.memory_space<vmem>>, %arg9: memref<32x128xbf16, #tpu.memory_space<vmem>>, %arg10: memref<1x128xf32, #tpu.memory_space<vmem>>, %arg11: memref<32x128xf32, #tpu.memory_space<vmem>>) attributes {dimension_semantics = [#tpu.dimension_semantics<parallel>], iteration_bounds = array<i64: 2>, scalar_prefetch = 0 : i64, scratch_operands = 0 : i64, tpu.core_type = #tpu.core_type<tc>, window_params = [{transform_indices = @transform_0, window_bounds = array<i64: 32, 8, 32>}, {transform_indices = @transform_1, window_bounds = array<i64: 32, 8, 32>}, {pipeline_mode = #tpu.pipeline_mode<synchronous>, transform_indices = @transform_2, window_bounds = array<i64: 32, 32>}, {pipeline_mode = #tpu.pipeline_mode<synchronous>, transform_indices = @transform_3, window_bounds = array<i64: 1, 32>}, {pipeline_mode = #tpu.pipeline_mode<synchronous>, transform_indices = @transform_4, window_bounds = array<i64: 1, 32>}, {pipeline_mode = #tpu.pipeline_mode<synchronous>, transform_indices = @transform_5, window_bounds = array<i64: 32, 32>}, {pipeline_mode = #tpu.pipeline_mode<synchronous>, transform_indices = @transform_6, window_bounds = array<i64: 32, 32>}, {pipeline_mode = #tpu.pipeline_mode<synchronous>, transform_indices = @transform_7, window_bounds = array<i64: 1, 32>}, {pipeline_mode = #tpu.pipeline_mode<synchronous>, transform_indices = @transform_8, window_bounds = array<i64: 32, 128>}, {pipeline_mode = #tpu.pipeline_mode<synchronous>, transform_indices = @transform_9, window_bounds = array<i64: 1, 128>}, {transform_indices = @transform_10, window_bounds = array<i64: 32, 128>}]} {
    %c0 = arith.constant 0 : index
    %c0_0 = arith.constant 0 : index
    %c0_1 = arith.constant 0 : index
    %0 = vector.load %arg1[%c0, %c0_0, %c0_1] : memref<32x8x32xf32, #tpu.memory_space<vmem>>, vector<32x8x32xf32>
    %1 = arith.truncf %0 : vector<32x8x32xf32> to vector<32x8x32xbf16>
    %2 = vector.shape_cast %1 : vector<32x8x32xbf16> to vector<256x32xbf16>
    %c0_2 = arith.constant 0 : index
    %c0_3 = arith.constant 0 : index
    %c0_4 = arith.constant 0 : index
    %3 = vector.load %arg2[%c0_2, %c0_3, %c0_4] : memref<32x8x32xf32, #tpu.memory_space<vmem>>, vector<32x8x32xf32>
    %4 = arith.truncf %3 : vector<32x8x32xf32> to vector<32x8x32xbf16>
    %5 = vector.shape_cast %4 : vector<32x8x32xbf16> to vector<256x32xbf16>
    %6 = tpu.concatenate %2, %5 in 0 : vector<256x32xbf16>, vector<256x32xbf16> -> vector<512x32xbf16>
    %c0_5 = arith.constant 0 : index
    %c0_6 = arith.constant 0 : index
    %7 = vector.load %arg3[%c0_5, %c0_6] : memref<32x32xbf16, #tpu.memory_space<vmem>>, vector<32x32xbf16>
    %cst = arith.constant dense<0.000000e+00> : vector<512x32xf32>
    %8 = tpu.matmul %6, %7, %cst {dimension_numbers = #tpu.dot_dimension_numbers<[1], [0], [0], [1], [0, 0, 1, 1], [], []>} : vector<512x32xbf16>, vector<32x32xbf16>, vector<512x32xf32> -> vector<512x32xf32>
    %c0_7 = arith.constant 0 : index
    %c0_8 = arith.constant 0 : index
    %9 = vector.load %arg4[%c0_7, %c0_8] : memref<1x32xf32, #tpu.memory_space<vmem>>, vector<1x32xf32>
    %10 = vector.broadcast %9 : vector<1x32xf32> to vector<512x32xf32>
    %11 = arith.addf %8, %10 : vector<512x32xf32>
    %cst_9 = arith.constant 0.000000e+00 : f32
    %12 = vector.broadcast %cst_9 : f32 to vector<512x32xf32>
    %13 = arith.maximumf %11, %12 : vector<512x32xf32>
    %14 = vector.shape_cast %13 : vector<512x32xf32> to vector<2x32x8x32xf32>
    %c0_10 = arith.constant 0 : index
    %c0_11 = arith.constant 0 : index
    %15 = vector.load %arg5[%c0_10, %c0_11] : memref<1x32xf32, #tpu.memory_space<vmem>>, vector<1x32xf32>
    %16 = vector.shape_cast %15 : vector<1x32xf32> to vector<1x1x1x32xf32>
    %17 = vector.broadcast %16 : vector<1x1x1x32xf32> to vector<2x32x8x32xf32>
    %18 = arith.mulf %14, %17 : vector<2x32x8x32xf32>
    %cst_12 = arith.constant dense<0.000000e+00> : vector<2x32x8xf32>
    %19 = vector.multi_reduction <add>, %18, %cst_12 [3] : vector<2x32x8x32xf32> to vector<2x32x8xf32>
    %20 = vector.shape_cast %19 : vector<2x32x8xf32> to vector<2x32x8x1xf32>
    %cst_13 = arith.constant dense<0xFF800000> : vector<2x32x1xf32>
    %21 = vector.multi_reduction <maximumf>, %20, %cst_13 [2] : vector<2x32x8x1xf32> to vector<2x32x1xf32>
    %22 = vector.shape_cast %21 : vector<2x32x1xf32> to vector<2x32x1x1xf32>
    %23 = vector.broadcast %22 : vector<2x32x1x1xf32> to vector<2x32x8x1xf32>
    %24 = arith.subf %20, %23 : vector<2x32x8x1xf32>
    %25 = math.exp %24 : vector<2x32x8x1xf32>
    %cst_14 = arith.constant dense<0.000000e+00> : vector<2x32x1xf32>
    %26 = vector.multi_reduction <add>, %25, %cst_14 [2] : vector<2x32x8x1xf32> to vector<2x32x1xf32>
    %27 = tpu.reciprocal %26 {approx = true} : vector<2x32x1xf32> -> vector<2x32x1xf32>
    %c0_15 = arith.constant 0 : index
    %c0_16 = arith.constant 0 : index
    %c0_17 = arith.constant 0 : index
    %28 = vector.load %arg1[%c0_15, %c0_16, %c0_17] : memref<32x8x32xf32, #tpu.memory_space<vmem>>, vector<32x8x32xf32>
    %29 = vector.extract_strided_slice %25 {offsets = [0, 0, 0, 0], sizes = [1, 32, 8, 1], strides = [1, 1, 1, 1]} : vector<2x32x8x1xf32> to vector<1x32x8x1xf32>
    %30 = vector.shape_cast %29 : vector<1x32x8x1xf32> to vector<32x8x1xf32>
    %31 = vector.broadcast %30 : vector<32x8x1xf32> to vector<32x8x32xf32>
    %32 = arith.mulf %28, %31 : vector<32x8x32xf32>
    %cst_18 = arith.constant dense<0.000000e+00> : vector<32x32xf32>
    %33 = vector.multi_reduction <add>, %32, %cst_18 [1] : vector<32x8x32xf32> to vector<32x32xf32>
    %34 = vector.extract_strided_slice %27 {offsets = [0, 0, 0], sizes = [1, 32, 1], strides = [1, 1, 1]} : vector<2x32x1xf32> to vector<1x32x1xf32>
    %35 = vector.shape_cast %34 : vector<1x32x1xf32> to vector<32x1xf32>
    %36 = vector.broadcast %35 : vector<32x1xf32> to vector<32x32xf32>
    %37 = arith.mulf %33, %36 : vector<32x32xf32>
    %c0_19 = arith.constant 0 : index
    %c0_20 = arith.constant 0 : index
    %c0_21 = arith.constant 0 : index
    %38 = vector.load %arg2[%c0_19, %c0_20, %c0_21] : memref<32x8x32xf32, #tpu.memory_space<vmem>>, vector<32x8x32xf32>
    %39 = vector.extract_strided_slice %25 {offsets = [1, 0, 0, 0], sizes = [1, 32, 8, 1], strides = [1, 1, 1, 1]} : vector<2x32x8x1xf32> to vector<1x32x8x1xf32>
    %40 = vector.shape_cast %39 : vector<1x32x8x1xf32> to vector<32x8x1xf32>
    %41 = vector.broadcast %40 : vector<32x8x1xf32> to vector<32x8x32xf32>
    %42 = arith.mulf %38, %41 : vector<32x8x32xf32>
    %cst_22 = arith.constant dense<0.000000e+00> : vector<32x32xf32>
    %43 = vector.multi_reduction <add>, %42, %cst_22 [1] : vector<32x8x32xf32> to vector<32x32xf32>
    %44 = vector.extract_strided_slice %27 {offsets = [1, 0, 0], sizes = [1, 32, 1], strides = [1, 1, 1]} : vector<2x32x1xf32> to vector<1x32x1xf32>
    %45 = vector.shape_cast %44 : vector<1x32x1xf32> to vector<32x1xf32>
    %46 = vector.broadcast %45 : vector<32x1xf32> to vector<32x32xf32>
    %47 = arith.mulf %43, %46 : vector<32x32xf32>
    %48 = arith.truncf %37 : vector<32x32xf32> to vector<32x32xbf16>
    %c0_23 = arith.constant 0 : index
    %c0_24 = arith.constant 0 : index
    %49 = vector.load %arg6[%c0_23, %c0_24] : memref<32x32xbf16, #tpu.memory_space<vmem>>, vector<32x32xbf16>
    %cst_25 = arith.constant dense<0.000000e+00> : vector<32x32xf32>
    %50 = tpu.matmul %48, %49, %cst_25 {dimension_numbers = #tpu.dot_dimension_numbers<[1], [0], [0], [1], [0, 0, 1, 1], [], []>} : vector<32x32xbf16>, vector<32x32xbf16>, vector<32x32xf32> -> vector<32x32xf32>
    %51 = arith.truncf %47 : vector<32x32xf32> to vector<32x32xbf16>
    %c0_26 = arith.constant 0 : index
    %c0_27 = arith.constant 0 : index
    %52 = vector.load %arg7[%c0_26, %c0_27] : memref<32x32xbf16, #tpu.memory_space<vmem>>, vector<32x32xbf16>
    %cst_28 = arith.constant dense<0.000000e+00> : vector<32x32xf32>
    %53 = tpu.matmul %51, %52, %cst_28 {dimension_numbers = #tpu.dot_dimension_numbers<[1], [0], [0], [1], [0, 0, 1, 1], [], []>} : vector<32x32xbf16>, vector<32x32xbf16>, vector<32x32xf32> -> vector<32x32xf32>
    %54 = arith.addf %50, %53 : vector<32x32xf32>
    %c0_29 = arith.constant 0 : index
    %c0_30 = arith.constant 0 : index
    %55 = vector.load %arg8[%c0_29, %c0_30] : memref<1x32xf32, #tpu.memory_space<vmem>>, vector<1x32xf32>
    %56 = vector.broadcast %55 : vector<1x32xf32> to vector<32x32xf32>
    %57 = arith.addf %54, %56 : vector<32x32xf32>
    %cst_31 = arith.constant 0.000000e+00 : f32
    %58 = vector.broadcast %cst_31 : f32 to vector<32x32xf32>
    %59 = arith.maximumf %57, %58 : vector<32x32xf32>
    %60 = arith.truncf %59 : vector<32x32xf32> to vector<32x32xbf16>
    %c0_32 = arith.constant 0 : index
    %c0_33 = arith.constant 0 : index
    %61 = vector.load %arg9[%c0_32, %c0_33] : memref<32x128xbf16, #tpu.memory_space<vmem>>, vector<32x128xbf16>
    %cst_34 = arith.constant dense<0.000000e+00> : vector<32x128xf32>
    %62 = tpu.matmul %60, %61, %cst_34 {dimension_numbers = #tpu.dot_dimension_numbers<[1], [0], [0], [1], [0, 0, 1, 1], [], []>} : vector<32x32xbf16>, vector<32x128xbf16>, vector<32x128xf32> -> vector<32x128xf32>
    %c0_35 = arith.constant 0 : index
    %c0_36 = arith.constant 0 : index
    %63 = vector.load %arg10[%c0_35, %c0_36] : memref<1x128xf32, #tpu.memory_space<vmem>>, vector<1x128xf32>
    %64 = vector.broadcast %63 : vector<1x128xf32> to vector<32x128xf32>
    %65 = arith.addf %62, %64 : vector<32x128xf32>
    %cst_37 = arith.constant dense<0xFF800000> : vector<32xf32>
    %66 = vector.multi_reduction <maximumf>, %65, %cst_37 [1] : vector<32x128xf32> to vector<32xf32>
    %67 = vector.shape_cast %66 : vector<32xf32> to vector<32x1xf32>
    %68 = vector.broadcast %67 : vector<32x1xf32> to vector<32x128xf32>
    %69 = arith.subf %65, %68 : vector<32x128xf32>
    %70 = math.exp %69 : vector<32x128xf32>
    %cst_38 = arith.constant dense<0.000000e+00> : vector<32xf32>
    %71 = vector.multi_reduction <add>, %70, %cst_38 [1] : vector<32x128xf32> to vector<32xf32>
    %72 = vector.shape_cast %71 : vector<32xf32> to vector<32x1xf32>
    %73 = math.log %72 : vector<32x1xf32>
    %74 = vector.broadcast %73 : vector<32x1xf32> to vector<32x128xf32>
    %75 = arith.subf %69, %74 : vector<32x128xf32>
    %c0_39 = arith.constant 0 : index
    %c0_40 = arith.constant 0 : index
    %76 = vector.load %arg11[%c0_39, %c0_40] : memref<32x128xf32, #tpu.memory_space<vmem>>, vector<32x128xf32>
    tpu.vector_store %arg11[%c0_39, %c0_40], %75 {strides = array<i32>} : memref<32x128xf32, #tpu.memory_space<vmem>>, vector<32x128xf32>,
    return
  }
  func.func @transform_0(%arg0: i32) -> (i32, i32, i32) {
    %c0_i32 = arith.constant 0 : i32
    %c0_i32_0 = arith.constant 0 : i32
    %c0_i32_1 = arith.constant 0 : i32
    return %arg0, %c0_i32, %c0_i32_0 : i32, i32, i32
  }
  func.func @transform_1(%arg0: i32) -> (i32, i32, i32) {
    %c0_i32 = arith.constant 0 : i32
    %c0_i32_0 = arith.constant 0 : i32
    %c0_i32_1 = arith.constant 0 : i32
    return %arg0, %c0_i32, %c0_i32_0 : i32, i32, i32
  }
  func.func @transform_2(%arg0: i32) -> (i32, i32) {
    %c0_i32 = arith.constant 0 : i32
    %c0_i32_0 = arith.constant 0 : i32
    %c0_i32_1 = arith.constant 0 : i32
    return %c0_i32, %c0_i32_0 : i32, i32
  }
  func.func @transform_3(%arg0: i32) -> (i32, i32) {
    %c0_i32 = arith.constant 0 : i32
    %c0_i32_0 = arith.constant 0 : i32
    %c0_i32_1 = arith.constant 0 : i32
    return %c0_i32, %c0_i32_0 : i32, i32
  }
  func.func @transform_4(%arg0: i32) -> (i32, i32) {
    %c0_i32 = arith.constant 0 : i32
    %c0_i32_0 = arith.constant 0 : i32
    %c0_i32_1 = arith.constant 0 : i32
    return %c0_i32, %c0_i32_0 : i32, i32
  }
  func.func @transform_5(%arg0: i32) -> (i32, i32) {
    %c0_i32 = arith.constant 0 : i32
    %c0_i32_0 = arith.constant 0 : i32
    %c0_i32_1 = arith.constant 0 : i32
    return %c0_i32, %c0_i32_0 : i32, i32
  }
  func.func @transform_6(%arg0: i32) -> (i32, i32) {
    %c0_i32 = arith.constant 0 : i32
    %c0_i32_0 = arith.constant 0 : i32
    %c0_i32_1 = arith.constant 0 : i32
    return %c0_i32, %c0_i32_0 : i32, i32
  }
  func.func @transform_7(%arg0: i32) -> (i32, i32) {
    %c0_i32 = arith.constant 0 : i32
    %c0_i32_0 = arith.constant 0 : i32
    %c0_i32_1 = arith.constant 0 : i32
    return %c0_i32, %c0_i32_0 : i32, i32
  }
  func.func @transform_8(%arg0: i32) -> (i32, i32) {
    %c0_i32 = arith.constant 0 : i32
    %c0_i32_0 = arith.constant 0 : i32
    %c0_i32_1 = arith.constant 0 : i32
    return %c0_i32, %c0_i32_0 : i32, i32
  }
  func.func @transform_9(%arg0: i32) -> (i32, i32) {
    %c0_i32 = arith.constant 0 : i32
    %c0_i32_0 = arith.constant 0 : i32
    %c0_i32_1 = arith.constant 0 : i32
    return %c0_i32, %c0_i32_0 : i32, i32
  }
  func.func @transform_10(%arg0: i32) -> (i32, i32) {
    %c0_i32 = arith.constant 0 : i32
    %c0_i32_0 = arith.constant 0 : i32
    return %arg0, %c0_i32 : i32, i32
  }
}

module attributes {stable_mosaic.version = 11 : i64} {
  func.func @pat_kernel(%arg0: i32, %arg1: memref<32x8x32xf32, #tpu.memory_space<vmem>>, %arg2: memref<32x8x32xf32, #tpu.memory_space<vmem>>, %arg3: memref<32x32xbf16, #tpu.memory_space<vmem>>, %arg4: memref<1x32xf32, #tpu.memory_space<vmem>>, %arg5: memref<1x32xf32, #tpu.memory_space<vmem>>, %arg6: memref<32x32xbf16, #tpu.memory_space<vmem>>, %arg7: memref<32x32xbf16, #tpu.memory_space<vmem>>, %arg8: memref<1x32xf32, #tpu.memory_space<vmem>>, %arg9: memref<32x128xbf16, #tpu.memory_space<vmem>>, %arg10: memref<1x128xf32, #tpu.memory_space<vmem>>, %arg11: memref<32x128xf32, #tpu.memory_space<vmem>>) attributes {dimension_semantics = [#tpu.dimension_semantics<parallel>], iteration_bounds = array<i64: 2>, scalar_prefetch = 0 : i64, scratch_operands = 0 : i64, tpu.core_type = #tpu.core_type<tc>, window_params = [{transform_indices = @transform_0, window_bounds = array<i64: 32, 8, 32>}, {transform_indices = @transform_1, window_bounds = array<i64: 32, 8, 32>}, {pipeline_mode = #tpu.pipeline_mode<synchronous>, transform_indices = @transform_2, window_bounds = array<i64: 32, 32>}, {pipeline_mode = #tpu.pipeline_mode<synchronous>, transform_indices = @transform_3, window_bounds = array<i64: 1, 32>}, {pipeline_mode = #tpu.pipeline_mode<synchronous>, transform_indices = @transform_4, window_bounds = array<i64: 1, 32>}, {pipeline_mode = #tpu.pipeline_mode<synchronous>, transform_indices = @transform_5, window_bounds = array<i64: 32, 32>}, {pipeline_mode = #tpu.pipeline_mode<synchronous>, transform_indices = @transform_6, window_bounds = array<i64: 32, 32>}, {pipeline_mode = #tpu.pipeline_mode<synchronous>, transform_indices = @transform_7, window_bounds = array<i64: 1, 32>}, {pipeline_mode = #tpu.pipeline_mode<synchronous>, transform_indices = @transform_8, window_bounds = array<i64: 32, 128>}, {pipeline_mode = #tpu.pipeline_mode<synchronous>, transform_indices = @transform_9, window_bounds = array<i64: 1, 128>}, {transform_indices = @transform_10, window_bounds = array<i64: 32, 128>}]} {
    %c0 = arith.constant 0 : index
    %c0_0 = arith.constant 0 : index
    %c0_1 = arith.constant 0 : index
    %0 = vector.load %arg1[%c0, %c0_0, %c0_1] : memref<32x8x32xf32, #tpu.memory_space<vmem>>, vector<32x8x32xf32>
    %1 = arith.truncf %0 : vector<32x8x32xf32> to vector<32x8x32xbf16>
    %2 = vector.shape_cast %1 : vector<32x8x32xbf16> to vector<256x32xbf16>
    %c0_2 = arith.constant 0 : index
    %c0_3 = arith.constant 0 : index
    %c0_4 = arith.constant 0 : index
    %3 = vector.load %arg2[%c0_2, %c0_3, %c0_4] : memref<32x8x32xf32, #tpu.memory_space<vmem>>, vector<32x8x32xf32>
    %4 = arith.truncf %3 : vector<32x8x32xf32> to vector<32x8x32xbf16>
    %5 = vector.shape_cast %4 : vector<32x8x32xbf16> to vector<256x32xbf16>
    %6 = tpu.concatenate %2, %5 in 0 : vector<256x32xbf16>, vector<256x32xbf16> -> vector<512x32xbf16>
    %c0_5 = arith.constant 0 : index
    %c0_6 = arith.constant 0 : index
    %7 = vector.load %arg3[%c0_5, %c0_6] : memref<32x32xbf16, #tpu.memory_space<vmem>>, vector<32x32xbf16>
    %cst = arith.constant dense<0.000000e+00> : vector<512x32xf32>
    %8 = tpu.matmul %6, %7, %cst {dimension_numbers = #tpu.dot_dimension_numbers<[1], [0], [0], [1], [0, 0, 1, 1], [], []>} : vector<512x32xbf16>, vector<32x32xbf16>, vector<512x32xf32> -> vector<512x32xf32>
    %c0_7 = arith.constant 0 : index
    %c0_8 = arith.constant 0 : index
    %9 = vector.load %arg4[%c0_7, %c0_8] : memref<1x32xf32, #tpu.memory_space<vmem>>, vector<1x32xf32>
    %10 = vector.broadcast %9 : vector<1x32xf32> to vector<512x32xf32>
    %11 = arith.addf %8, %10 : vector<512x32xf32>
    %cst_9 = arith.constant 0.000000e+00 : f32
    %12 = vector.broadcast %cst_9 : f32 to vector<512x32xf32>
    %13 = arith.maximumf %11, %12 : vector<512x32xf32>
    %14 = vector.shape_cast %13 : vector<512x32xf32> to vector<2x32x8x32xf32>
    %c0_10 = arith.constant 0 : index
    %c0_11 = arith.constant 0 : index
    %15 = vector.load %arg5[%c0_10, %c0_11] : memref<1x32xf32, #tpu.memory_space<vmem>>, vector<1x32xf32>
    %16 = vector.shape_cast %15 : vector<1x32xf32> to vector<1x1x1x32xf32>
    %17 = vector.broadcast %16 : vector<1x1x1x32xf32> to vector<2x32x8x32xf32>
    %18 = arith.mulf %14, %17 : vector<2x32x8x32xf32>
    %cst_12 = arith.constant dense<0.000000e+00> : vector<2x32x8xf32>
    %19 = vector.multi_reduction <add>, %18, %cst_12 [3] : vector<2x32x8x32xf32> to vector<2x32x8xf32>
    %20 = vector.shape_cast %19 : vector<2x32x8xf32> to vector<2x32x8x1xf32>
    %cst_13 = arith.constant dense<0xFF800000> : vector<2x32x1xf32>
    %21 = vector.multi_reduction <maximumf>, %20, %cst_13 [2] : vector<2x32x8x1xf32> to vector<2x32x1xf32>
    %22 = vector.shape_cast %21 : vector<2x32x1xf32> to vector<2x32x1x1xf32>
    %23 = vector.broadcast %22 : vector<2x32x1x1xf32> to vector<2x32x8x1xf32>
    %24 = arith.subf %20, %23 : vector<2x32x8x1xf32>
    %25 = math.exp %24 : vector<2x32x8x1xf32>
    %cst_14 = arith.constant dense<0.000000e+00> : vector<2x32x1xf32>
    %26 = vector.multi_reduction <add>, %25, %cst_14 [2] : vector<2x32x8x1xf32> to vector<2x32x1xf32>
    %27 = tpu.reciprocal %26 {approx = true} : vector<2x32x1xf32> -> vector<2x32x1xf32>
    %c0_15 = arith.constant 0 : index
    %c0_16 = arith.constant 0 : index
    %c0_17 = arith.constant 0 : index
    %28 = vector.load %arg1[%c0_15, %c0_16, %c0_17] : memref<32x8x32xf32, #tpu.memory_space<vmem>>, vector<32x8x32xf32>
    %29 = vector.extract_strided_slice %25 {offsets = [0, 0, 0, 0], sizes = [1, 32, 8, 1], strides = [1, 1, 1, 1]} : vector<2x32x8x1xf32> to vector<1x32x8x1xf32>
    %30 = vector.shape_cast %29 : vector<1x32x8x1xf32> to vector<32x8x1xf32>
    %31 = vector.broadcast %30 : vector<32x8x1xf32> to vector<32x8x32xf32>
    %32 = arith.mulf %28, %31 : vector<32x8x32xf32>
    %cst_18 = arith.constant dense<0.000000e+00> : vector<32x32xf32>
    %33 = vector.multi_reduction <add>, %32, %cst_18 [1] : vector<32x8x32xf32> to vector<32x32xf32>
    %34 = vector.extract_strided_slice %27 {offsets = [0, 0, 0], sizes = [1, 32, 1], strides = [1, 1, 1]} : vector<2x32x1xf32> to vector<1x32x1xf32>
    %35 = vector.shape_cast %34 : vector<1x32x1xf32> to vector<32x1xf32>
    %36 = vector.broadcast %35 : vector<32x1xf32> to vector<32x32xf32>
    %37 = arith.mulf %33, %36 : vector<32x32xf32>
    %c0_19 = arith.constant 0 : index
    %c0_20 = arith.constant 0 : index
    %c0_21 = arith.constant 0 : index
    %38 = vector.load %arg2[%c0_19, %c0_20, %c0_21] : memref<32x8x32xf32, #tpu.memory_space<vmem>>, vector<32x8x32xf32>
    %39 = vector.extract_strided_slice %25 {offsets = [1, 0, 0, 0], sizes = [1, 32, 8, 1], strides = [1, 1, 1, 1]} : vector<2x32x8x1xf32> to vector<1x32x8x1xf32>
    %40 = vector.shape_cast %39 : vector<1x32x8x1xf32> to vector<32x8x1xf32>
    %41 = vector.broadcast %40 : vector<32x8x1xf32> to vector<32x8x32xf32>
    %42 = arith.mulf %38, %41 : vector<32x8x32xf32>
    %cst_22 = arith.constant dense<0.000000e+00> : vector<32x32xf32>
    %43 = vector.multi_reduction <add>, %42, %cst_22 [1] : vector<32x8x32xf32> to vector<32x32xf32>
    %44 = vector.extract_strided_slice %27 {offsets = [1, 0, 0], sizes = [1, 32, 1], strides = [1, 1, 1]} : vector<2x32x1xf32> to vector<1x32x1xf32>
    %45 = vector.shape_cast %44 : vector<1x32x1xf32> to vector<32x1xf32>
    %46 = vector.broadcast %45 : vector<32x1xf32> to vector<32x32xf32>
    %47 = arith.mulf %43, %46 : vector<32x32xf32>
    %48 = arith.truncf %37 : vector<32x32xf32> to vector<32x32xbf16>
    %c0_23 = arith.constant 0 : index
    %c0_24 = arith.constant 0 : index
    %49 = vector.load %arg6[%c0_23, %c0_24] : memref<32x32xbf16, #tpu.memory_space<vmem>>, vector<32x32xbf16>
    %cst_25 = arith.constant dense<0.000000e+00> : vector<32x32xf32>
    %50 = tpu.matmul %48, %49, %cst_25 {dimension_numbers = #tpu.dot_dimension_numbers<[1], [0], [0], [1], [0, 0, 1, 1], [], []>} : vector<32x32xbf16>, vector<32x32xbf16>, vector<32x32xf32> -> vector<32x32xf32>
    %51 = arith.truncf %47 : vector<32x32xf32> to vector<32x32xbf16>
    %c0_26 = arith.constant 0 : index
    %c0_27 = arith.constant 0 : index
    %52 = vector.load %arg7[%c0_26, %c0_27] : memref<32x32xbf16, #tpu.memory_space<vmem>>, vector<32x32xbf16>
    %cst_28 = arith.constant dense<0.000000e+00> : vector<32x32xf32>
    %53 = tpu.matmul %51, %52, %cst_28 {dimension_numbers = #tpu.dot_dimension_numbers<[1], [0], [0], [1], [0, 0, 1, 1], [], []>} : vector<32x32xbf16>, vector<32x32xbf16>, vector<32x32xf32> -> vector<32x32xf32>
    %54 = arith.addf %50, %53 : vector<32x32xf32>
    %c0_29 = arith.constant 0 : index
    %c0_30 = arith.constant 0 : index
    %55 = vector.load %arg8[%c0_29, %c0_30] : memref<1x32xf32, #tpu.memory_space<vmem>>, vector<1x32xf32>
    %56 = vector.broadcast %55 : vector<1x32xf32> to vector<32x32xf32>
    %57 = arith.addf %54, %56 : vector<32x32xf32>
    %cst_31 = arith.constant 0.000000e+00 : f32
    %58 = vector.broadcast %cst_31 : f32 to vector<32x32xf32>
    %59 = arith.maximumf %57, %58 : vector<32x32xf32>
    %60 = arith.truncf %59 : vector<32x32xf32> to vector<32x32xbf16>
    %c0_32 = arith.constant 0 : index
    %c0_33 = arith.constant 0 : index
    %61 = vector.load %arg9[%c0_32, %c0_33] : memref<32x128xbf16, #tpu.memory_space<vmem>>, vector<32x128xbf16>
    %cst_34 = arith.constant dense<0.000000e+00> : vector<32x128xf32>
    %62 = tpu.matmul %60, %61, %cst_34 {dimension_numbers = #tpu.dot_dimension_numbers<[1], [0], [0], [1], [0, 0, 1, 1], [], []>} : vector<32x32xbf16>, vector<32x128xbf16>, vector<32x128xf32> -> vector<32x128xf32>
    %c0_35 = arith.constant 0 : index
    %c0_36 = arith.constant 0 : index
    %63 = vector.load %arg10[%c0_35, %c0_36] : memref<1x128xf32, #tpu.memory_space<vmem>>, vector<1x128xf32>
    %64 = vector.broadcast %63 : vector<1x128xf32> to vector<32x128xf32>
    %65 = arith.addf %62, %64 : vector<32x128xf32>
    %cst_37 = arith.constant dense<0xFF800000> : vector<32xf32>
    %66 = vector.multi_reduction <maximumf>, %65, %cst_37 [1] : vector<32x128xf32> to vector<32xf32>
    %67 = vector.shape_cast %66 : vector<32xf32> to vector<32x1xf32>
    %68 = vector.broadcast %67 : vector<32x1xf32> to vector<32x128xf32>
    %69 = arith.subf %65, %68 : vector<32x128xf32>
    %70 = math.exp %69 : vector<32x128xf32>
    %cst_38 = arith.constant dense<0.000000e+00> : vector<32xf32>
    %71 = vector.multi_reduction <add>, %70, %cst_38 [1] : vector<32x128xf32> to vector<32xf32>
    %72 = vector.shape_cast %71 : vector<32xf32> to vector<32x1xf32>
    %73 = math.log %72 : vector<32x1xf32>
    %74 = vector.broadcast %73 : vector<32x1xf32> to vector<32x128xf32>
    %75 = arith.subf %69, %74 : vector<32x128xf32>
    %c0_39 = arith.constant 0 : index
    %c0_40 = arith.constant 0 : index
    %76 = vector.load %arg11[%c0_39, %c0_40] : memref<32x128xf32, #tpu.memory_space<vmem>>, vector<32x128xf32>
    tpu.vector_store %arg11[%c0_39, %c0_40], %75 {strides = array<i32>} : memref<32x128xf32, #tpu.memory_space<vmem>>, vector<32x128xf32>,
    return
  }
  func.func @transform_0(%arg0: i32) -> (i32, i32, i32) {
    %c0_i32 = arith.constant 0 : i32
    %c0_i32_0 = arith.constant 0 : i32
    %c0_i32_1 = arith.constant 0 : i32
    return %arg0, %c0_i32, %c0_i32_0 : i32, i32, i32
  }
  func.func @transform_1(%arg0: i32) -> (i32, i32, i32) {
    %c0_i32 = arith.constant 0 : i32
    %c0_i32_0 = arith.constant 0 : i32
    %c0_i32_1 = arith.constant 0 : i32
    return %arg0, %c0_i32, %c0_i32_0 : i32, i32, i32
  }
  func.func @transform_2(%arg0: i32) -> (i32, i32) {
    %c0_i32 = arith.constant 0 : i32
    %c0_i32_0 = arith.constant 0 : i32
    %c0_i32_1 = arith.constant 0 : i32
    return %c0_i32, %c0_i32_0 : i32, i32
  }
  func.func @transform_3(%arg0: i32) -> (i32, i32) {
    %c0_i32 = arith.constant 0 : i32
    %c0_i32_0 = arith.constant 0 : i32
    %c0_i32_1 = arith.constant 0 : i32
    return %c0_i32, %c0_i32_0 : i32, i32
  }
  func.func @transform_4(%arg0: i32) -> (i32, i32) {
    %c0_i32 = arith.constant 0 : i32
    %c0_i32_0 = arith.constant 0 : i32
    %c0_i32_1 = arith.constant 0 : i32
    return %c0_i32, %c0_i32_0 : i32, i32
  }
  func.func @transform_5(%arg0: i32) -> (i32, i32) {
    %c0_i32 = arith.constant 0 : i32
    %c0_i32_0 = arith.constant 0 : i32
    %c0_i32_1 = arith.constant 0 : i32
    return %c0_i32, %c0_i32_0 : i32, i32
  }
  func.func @transform_6(%arg0: i32) -> (i32, i32) {
    %c0_i32 = arith.constant 0 : i32
    %c0_i32_0 = arith.constant 0 : i32
    %c0_i32_1 = arith.constant 0 : i32
    return %c0_i32, %c0_i32_0 : i32, i32
  }
  func.func @transform_7(%arg0: i32) -> (i32, i32) {
    %c0_i32 = arith.constant 0 : i32
    %c0_i32_0 = arith.constant 0 : i32
    %c0_i32_1 = arith.constant 0 : i32
    return %c0_i32, %c0_i32_0 : i32, i32
  }
  func.func @transform_8(%arg0: i32) -> (i32, i32) {
    %c0_i32 = arith.constant 0 : i32
    %c0_i32_0 = arith.constant 0 : i32
    %c0_i32_1 = arith.constant 0 : i32
    return %c0_i32, %c0_i32_0 : i32, i32
  }
  func.func @transform_9(%arg0: i32) -> (i32, i32) {
    %c0_i32 = arith.constant 0 : i32
    %c0_i32_0 = arith.constant 0 : i32
    %c0_i32_1 = arith.constant 0 : i32
    return %c0_i32, %c0_i32_0 : i32, i32
  }
  func.func @transform_10(%arg0: i32) -> (i32, i32) {
    %c0_i32 = arith.constant 0 : i32
    %c0_i32_0 = arith.constant 0 : i32
    return %arg0, %c0_i32 : i32, i32
  }
}

</mosaic_0001>

<llo_original>
// kernel: tpu_custom_call.1
$region0: #{tpu_custom_call.1}
  #allocation0 [shape = 'u32[]', space=smem, size = 0x4, offset = 0x4, fixed_abs, tag = 'smem constant byte address 0x4 - core index']
  #allocation1 [shape = 'u32[144,128]{1,0:T(1,128)}', space=vmem, size = 0x12000, scoped, tag = 'internal scratch']
  %s0 = inlined_call_operand.vmem [shape: f32[64,8,32], index: 0, kind: input, shape index: {}]
  %s1 = inlined_call_operand.vmem [shape: f32[64,8,32], index: 1, kind: input, shape index: {}]
  %s2 = inlined_call_operand.vmem [shape: bf16[32,32], index: 2, kind: input, shape index: {}]
  %s3 = inlined_call_operand.vmem [shape: f32[1,32], index: 3, kind: input, shape index: {}]
  %s4 = inlined_call_operand.vmem [shape: f32[1,32], index: 4, kind: input, shape index: {}]
  %s5 = inlined_call_operand.vmem [shape: bf16[32,32], index: 5, kind: input, shape index: {}]
  %s6 = inlined_call_operand.vmem [shape: bf16[32,32], index: 6, kind: input, shape index: {}]
  %s7 = inlined_call_operand.vmem [shape: f32[1,32], index: 7, kind: input, shape index: {}]
  %s8 = inlined_call_operand.vmem [shape: bf16[32,128], index: 8, kind: input, shape index: {}]
  %s9 = inlined_call_operand.vmem [shape: f32[1,128], index: 9, kind: input, shape index: {}]
  %s10 = inlined_call_operand.hbm [shape: f32[64,128], index: 10, kind: output, shape index: {}]
  %s11 = sld [smem:[#allocation0]]
  $region73: #{tpu_custom_call.1} parent=0
    _
  %s13 = ssub.s32 1, %s11
  %s14 = scalar_select 0, %s13, %s11
  $region1: #{tpu_custom_call.1} parent=0
    #allocation2 [shape = 'u8[32768]{0}', space=vmem, size = 0x8000, scoped, tag = 'output window, operand 0']
    #allocation3 [shape = 's32[2]{0}', space=sflag, size = 0x8, scoped, tag = 'scoped memory for tpu_custom_call.1']
    %15 = vsyncpa [#allocation3], 0
    %s16 = scalar_lea.sflag [#allocation3], 1
    %17 = vsyncpa %s16, 0
    loop: start=0, step=1, limit=4
    $region2: #{tpu_custom_call.1} parent=1 // loop_pre_header
      _
    $region3: #{tpu_custom_call.1} parent=1 // loop_header
      %s19 = sphi 0, %s23
      %p20 = scmp.ge.s32.totalorder %s19, 4
      %s29 = sphi 0, %s31
      %s32 = sphi 0, %s29
      %s33 = sphi 0, %s32
      %s49 = sphi 0, %s33
      %s55 = sphi 0, %s57
      %s58 = sphi 0, %s55
      %s59 = sphi 0, %s58
      %s75 = sphi 0, %s59
      %s79 = sphi 0, %s79
      %s81 = sphi 0, %s79
      %s82 = sphi 0, %s81
      %s96 = sphi 0, %s82
      %s100 = sphi 0, %s100
      %s102 = sphi 0, %s100
      %s103 = sphi 0, %s102
      %s117 = sphi 0, %s103
      %s121 = sphi 0, %s121
      %s123 = sphi 0, %s121
      %s124 = sphi 0, %s123
      %s138 = sphi 0, %s124
      %s142 = sphi 0, %s142
      %s144 = sphi 0, %s142
      %s145 = sphi 0, %s144
      %s159 = sphi 0, %s145
      %s163 = sphi 0, %s163
      %s165 = sphi 0, %s163
      %s166 = sphi 0, %s165
      %s180 = sphi 0, %s166
      %s184 = sphi 0, %s184
      %s186 = sphi 0, %s184
      %s187 = sphi 0, %s186
      %s201 = sphi 0, %s187
      %s205 = sphi 0, %s205
      %s207 = sphi 0, %s205
      %s208 = sphi 0, %s207
      %s222 = sphi 0, %s208
      %s226 = sphi 0, %s226
      %s228 = sphi 0, %s226
      %s229 = sphi 0, %s228
      %s243 = sphi 0, %s229
      %s249 = sphi 0, %s251
      %s252 = sphi 0, %s249
      %s253 = sphi 0, %s252
      %s269 = sphi 0, %s253
    $region4: #{tpu_custom_call.1} parent=1 // loop_header_branch
      %22 = sbr.rel (%p20) target = $region8
    $region5: #{tpu_custom_call.1} parent=1 // loop_body
      %s24 = ssub.s32 %s19, 1
      %s25 = ssub.s32 %s19, 2
      %s26 = sadd.s32 %s19, 1
      %s27 = ssub.s32 %s19, %s26
      %p28 = scmp.eq.s32.totalorder %s27, 0
      %s30 = sadd.s32 %s29, 1
      %s31 = scalar_select %p28, %s29, %s30
      %p34 = pneg %p28
      %p35 = scmp.eq.s32.totalorder %s19, 1
      %p36 = por %p34, %p35
      %p37 = scmp.ne.s32.totalorder %s29, %s32
      %p38 = scmp.eq.s32.totalorder %s19, 0
      %p39 = por %p37, %p38
      %p40 = scmp.ne.s32.totalorder %s29, %s32
      %p41 = scmp.eq.s32.totalorder %s24, 1
      %p42 = por %p40, %p41
      %p43 = scmp.ne.s32.totalorder %s32, %s33
      %p44 = scmp.eq.s32.totalorder %s24, 0
      %p45 = por %p43, %p44
      %p46 = scmp.ne.s32.totalorder %s32, %s33
      %p47 = scmp.eq.s32.totalorder %s25, 1
      %p48 = por %p46, %p47
      %p50 = scmp.ne.s32.totalorder %s33, %s49
      %p51 = scmp.eq.s32.totalorder %s25, 0
      %p52 = por %p50, %p51
      %s53 = ssub.s32 %s19, %s26
      %p54 = scmp.eq.s32.totalorder %s53, 0
      %s56 = sadd.s32 %s55, 1
      %s57 = scalar_select %p54, %s55, %s56
      %p60 = pneg %p54
      %p61 = scmp.eq.s32.totalorder %s19, 1
      %p62 = por %p60, %p61
      %p63 = scmp.ne.s32.totalorder %s55, %s58
      %p64 = scmp.eq.s32.totalorder %s19, 0
      %p65 = por %p63, %p64
      %p66 = scmp.ne.s32.totalorder %s55, %s58
      %p67 = scmp.eq.s32.totalorder %s24, 1
      %p68 = por %p66, %p67
      %p69 = scmp.ne.s32.totalorder %s58, %s59
      %p70 = scmp.eq.s32.totalorder %s24, 0
      %p71 = por %p69, %p70
      %p72 = scmp.ne.s32.totalorder %s58, %s59
      %p73 = scmp.eq.s32.totalorder %s25, 1
      %p74 = por %p72, %p73
      %p76 = scmp.ne.s32.totalorder %s59, %s75
      %p77 = scmp.eq.s32.totalorder %s25, 0
      %p78 = por %p76, %p77
      %s80 = sadd.s32 %s79, 1
      %p83 = scmp.eq.s32.totalorder %s19, 1
      %p84 = scmp.ne.s32.totalorder %s79, %s81
      %p85 = scmp.eq.s32.totalorder %s19, 0
      %p86 = por %p84, %p85
      %p87 = scmp.ne.s32.totalorder %s79, %s81
      %p88 = scmp.eq.s32.totalorder %s24, 1
      %p89 = por %p87, %p88
      %p90 = scmp.ne.s32.totalorder %s81, %s82
      %p91 = scmp.eq.s32.totalorder %s24, 0
      %p92 = por %p90, %p91
      %p93 = scmp.ne.s32.totalorder %s81, %s82
      %p94 = scmp.eq.s32.totalorder %s25, 1
      %p95 = por %p93, %p94
      %p97 = scmp.ne.s32.totalorder %s82, %s96
      %p98 = scmp.eq.s32.totalorder %s25, 0
      %p99 = por %p97, %p98
      %s101 = sadd.s32 %s100, 1
      %p104 = scmp.eq.s32.totalorder %s19, 1
      %p105 = scmp.ne.s32.totalorder %s100, %s102
      %p106 = scmp.eq.s32.totalorder %s19, 0
      %p107 = por %p105, %p106
      %p108 = scmp.ne.s32.totalorder %s100, %s102
      %p109 = scmp.eq.s32.totalorder %s24, 1
      %p110 = por %p108, %p109
      %p111 = scmp.ne.s32.totalorder %s102, %s103
      %p112 = scmp.eq.s32.totalorder %s24, 0
      %p113 = por %p111, %p112
      %p114 = scmp.ne.s32.totalorder %s102, %s103
      %p115 = scmp.eq.s32.totalorder %s25, 1
      %p116 = por %p114, %p115
      %p118 = scmp.ne.s32.totalorder %s103, %s117
      %p119 = scmp.eq.s32.totalorder %s25, 0
      %p120 = por %p118, %p119
      %s122 = sadd.s32 %s121, 1
      %p125 = scmp.eq.s32.totalorder %s19, 1
      %p126 = scmp.ne.s32.totalorder %s121, %s123
      %p127 = scmp.eq.s32.totalorder %s19, 0
      %p128 = por %p126, %p127
      %p129 = scmp.ne.s32.totalorder %s121, %s123
      %p130 = scmp.eq.s32.totalorder %s24, 1
      %p131 = por %p129, %p130
      %p132 = scmp.ne.s32.totalorder %s123, %s124
      %p133 = scmp.eq.s32.totalorder %s24, 0
      %p134 = por %p132, %p133
      %p135 = scmp.ne.s32.totalorder %s123, %s124
      %p136 = scmp.eq.s32.totalorder %s25, 1
      %p137 = por %p135, %p136
      %p139 = scmp.ne.s32.totalorder %s124, %s138
      %p140 = scmp.eq.s32.totalorder %s25, 0
      %p141 = por %p139, %p140
      %s143 = sadd.s32 %s142, 1
      %p146 = scmp.eq.s32.totalorder %s19, 1
      %p147 = scmp.ne.s32.totalorder %s142, %s144
      %p148 = scmp.eq.s32.totalorder %s19, 0
      %p149 = por %p147, %p148
      %p150 = scmp.ne.s32.totalorder %s142, %s144
      %p151 = scmp.eq.s32.totalorder %s24, 1
      %p152 = por %p150, %p151
      %p153 = scmp.ne.s32.totalorder %s144, %s145
      %p154 = scmp.eq.s32.totalorder %s24, 0
      %p155 = por %p153, %p154
      %p156 = scmp.ne.s32.totalorder %s144, %s145
      %p157 = scmp.eq.s32.totalorder %s25, 1
      %p158 = por %p156, %p157
      %p160 = scmp.ne.s32.totalorder %s145, %s159
      %p161 = scmp.eq.s32.totalorder %s25, 0
      %p162 = por %p160, %p161
      %s164 = sadd.s32 %s163, 1
      %p167 = scmp.eq.s32.totalorder %s19, 1
      %p168 = scmp.ne.s32.totalorder %s163, %s165
      %p169 = scmp.eq.s32.totalorder %s19, 0
      %p170 = por %p168, %p169
      %p171 = scmp.ne.s32.totalorder %s163, %s165
      %p172 = scmp.eq.s32.totalorder %s24, 1
      %p173 = por %p171, %p172
      %p174 = scmp.ne.s32.totalorder %s165, %s166
      %p175 = scmp.eq.s32.totalorder %s24, 0
      %p176 = por %p174, %p175
      %p177 = scmp.ne.s32.totalorder %s165, %s166
      %p178 = scmp.eq.s32.totalorder %s25, 1
      %p179 = por %p177, %p178
      %p181 = scmp.ne.s32.totalorder %s166, %s180
      %p182 = scmp.eq.s32.totalorder %s25, 0
      %p183 = por %p181, %p182
      %s185 = sadd.s32 %s184, 1
      %p188 = scmp.eq.s32.totalorder %s19, 1
      %p189 = scmp.ne.s32.totalorder %s184, %s186
      %p190 = scmp.eq.s32.totalorder %s19, 0
      %p191 = por %p189, %p190
      %p192 = scmp.ne.s32.totalorder %s184, %s186
      %p193 = scmp.eq.s32.totalorder %s24, 1
      %p194 = por %p192, %p193
      %p195 = scmp.ne.s32.totalorder %s186, %s187
      %p196 = scmp.eq.s32.totalorder %s24, 0
      %p197 = por %p195, %p196
      %p198 = scmp.ne.s32.totalorder %s186, %s187
      %p199 = scmp.eq.s32.totalorder %s25, 1
      %p200 = por %p198, %p199
      %p202 = scmp.ne.s32.totalorder %s187, %s201
      %p203 = scmp.eq.s32.totalorder %s25, 0
      %p204 = por %p202, %p203
      %s206 = sadd.s32 %s205, 1
      %p209 = scmp.eq.s32.totalorder %s19, 1
      %p210 = scmp.ne.s32.totalorder %s205, %s207
      %p211 = scmp.eq.s32.totalorder %s19, 0
      %p212 = por %p210, %p211
      %p213 = scmp.ne.s32.totalorder %s205, %s207
      %p214 = scmp.eq.s32.totalorder %s24, 1
      %p215 = por %p213, %p214
      %p216 = scmp.ne.s32.totalorder %s207, %s208
      %p217 = scmp.eq.s32.totalorder %s24, 0
      %p218 = por %p216, %p217
      %p219 = scmp.ne.s32.totalorder %s207, %s208
      %p220 = scmp.eq.s32.totalorder %s25, 1
      %p221 = por %p219, %p220
      %p223 = scmp.ne.s32.totalorder %s208, %s222
      %p224 = scmp.eq.s32.totalorder %s25, 0
      %p225 = por %p223, %p224
      %s227 = sadd.s32 %s226, 1
      %p230 = scmp.eq.s32.totalorder %s19, 1
      %p231 = scmp.ne.s32.totalorder %s226, %s228
      %p232 = scmp.eq.s32.totalorder %s19, 0
      %p233 = por %p231, %p232
      %p234 = scmp.ne.s32.totalorder %s226, %s228
      %p235 = scmp.eq.s32.totalorder %s24, 1
      %p236 = por %p234, %p235
      %p237 = scmp.ne.s32.totalorder %s228, %s229
      %p238 = scmp.eq.s32.totalorder %s24, 0
      %p239 = por %p237, %p238
      %p240 = scmp.ne.s32.totalorder %s228, %s229
      %p241 = scmp.eq.s32.totalorder %s25, 1
      %p242 = por %p240, %p241
      %p244 = scmp.ne.s32.totalorder %s229, %s243
      %p245 = scmp.eq.s32.totalorder %s25, 0
      %p246 = por %p244, %p245
      %s247 = ssub.s32 %s19, %s26
      %p248 = scmp.eq.s32.totalorder %s247, 0
      %s250 = sadd.s32 %s249, 1
      %s251 = scalar_select %p248, %s249, %s250
      %p254 = pneg %p248
      %p255 = scmp.eq.s32.totalorder %s19, 1
      %p256 = por %p254, %p255
      %p257 = scmp.ne.s32.totalorder %s249, %s252
      %p258 = scmp.eq.s32.totalorder %s19, 0
      %p259 = por %p257, %p258
      %p260 = scmp.ne.s32.totalorder %s249, %s252
      %p261 = scmp.eq.s32.totalorder %s24, 1
      %p262 = por %p260, %p261
      %p263 = scmp.ne.s32.totalorder %s252, %s253
      %p264 = scmp.eq.s32.totalorder %s24, 0
      %p265 = por %p263, %p264
      %p266 = scmp.ne.s32.totalorder %s252, %s253
      %p267 = scmp.eq.s32.totalorder %s25, 1
      %p268 = por %p266, %p267
      %p270 = scmp.ne.s32.totalorder %s253, %s269
      %p271 = scmp.eq.s32.totalorder %s25, 0
      %p272 = por %p270, %p271
      %p273 = scmp.le.s32.totalorder 1, %s19
      %p274 = scmp.lt.s32.totalorder %s19, 3
      %p275 = pnand %p273, %p274
      %p276 = pneg %p275
      // Predicated region
      $region9: #{tpu_custom_call.1} parent=5 // pred_check
        _
      $region10: #{tpu_custom_call.1} parent=5 // pred_check_branch
        %278 = sbr.rel (%p275) target = $region12
      $region11: #{tpu_custom_call.1} parent=5 // pred_region
        %s279 = ssub.s32 %s19, 1
        // Predicated region
        $region13: #{tpu_custom_call.1} parent=11 // pred_check
          %p280 = pneg %p92
        $region14: #{tpu_custom_call.1} parent=11 // pred_check_branch
          %282 = sbr.rel (%p280) target = $region16
        $region15: #{tpu_custom_call.1} parent=11 // pred_region
          _
        $region16: #{tpu_custom_call.1} parent=11 // pred_fallthru
          _
        // Predicated region
        $region17: #{tpu_custom_call.1} parent=11 // pred_check
          %p283 = pneg %p113
        $region18: #{tpu_custom_call.1} parent=11 // pred_check_branch
          %285 = sbr.rel (%p283) target = $region20
        $region19: #{tpu_custom_call.1} parent=11 // pred_region
          _
        $region20: #{tpu_custom_call.1} parent=11 // pred_fallthru
          _
        // Predicated region
        $region21: #{tpu_custom_call.1} parent=11 // pred_check
          %p286 = pneg %p134
        $region22: #{tpu_custom_call.1} parent=11 // pred_check_branch
          %288 = sbr.rel (%p286) target = $region24
        $region23: #{tpu_custom_call.1} parent=11 // pred_region
          _
        $region24: #{tpu_custom_call.1} parent=11 // pred_fallthru
          _
        // Predicated region
        $region25: #{tpu_custom_call.1} parent=11 // pred_check
          %p289 = pneg %p155
        $region26: #{tpu_custom_call.1} parent=11 // pred_check_branch
          %291 = sbr.rel (%p289) target = $region28
        $region27: #{tpu_custom_call.1} parent=11 // pred_region
          _
        $region28: #{tpu_custom_call.1} parent=11 // pred_fallthru
          _
        // Predicated region
        $region29: #{tpu_custom_call.1} parent=11 // pred_check
          %p292 = pneg %p176
        $region30: #{tpu_custom_call.1} parent=11 // pred_check_branch
          %294 = sbr.rel (%p292) target = $region32
        $region31: #{tpu_custom_call.1} parent=11 // pred_region
          _
        $region32: #{tpu_custom_call.1} parent=11 // pred_fallthru
          _
        // Predicated region
        $region33: #{tpu_custom_call.1} parent=11 // pred_check
          %p295 = pneg %p197
        $region34: #{tpu_custom_call.1} parent=11 // pred_check_branch
          %297 = sbr.rel (%p295) target = $region36
        $region35: #{tpu_custom_call.1} parent=11 // pred_region
          _
        $region36: #{tpu_custom_call.1} parent=11 // pred_fallthru
          _
        // Predicated region
        $region37: #{tpu_custom_call.1} parent=11 // pred_check
          %p298 = pneg %p218
        $region38: #{tpu_custom_call.1} parent=11 // pred_check_branch
          %300 = sbr.rel (%p298) target = $region40
        $region39: #{tpu_custom_call.1} parent=11 // pred_region
          _
        $region40: #{tpu_custom_call.1} parent=11 // pred_fallthru
          _
        // Predicated region
        $region41: #{tpu_custom_call.1} parent=11 // pred_check
          %p301 = pneg %p239
        $region42: #{tpu_custom_call.1} parent=11 // pred_check_branch
          %303 = sbr.rel (%p301) target = $region44
        $region43: #{tpu_custom_call.1} parent=11 // pred_region
          _
        $region44: #{tpu_custom_call.1} parent=11 // pred_fallthru
          _
      $region12: #{tpu_custom_call.1} parent=5 // pred_fallthru
        _
      %p304 = scmp.lt.s32.totalorder %s19, 2
      // Predicated region
      $region45: #{tpu_custom_call.1} parent=5 // pred_check
        %p305 = pneg %p304
      $region46: #{tpu_custom_call.1} parent=5 // pred_check_branch
        %307 = sbr.rel (%p305) target = $region48
      $region47: #{tpu_custom_call.1} parent=5 // pred_region
        // Predicated region
        $region49: #{tpu_custom_call.1} parent=47 // pred_check
          %p308 = pneg %p39
        $region50: #{tpu_custom_call.1} parent=47 // pred_check_branch
          %310 = sbr.rel (%p308) target = $region52
        $region51: #{tpu_custom_call.1} parent=47 // pred_region
          %s311 = smul.u32 32, %s19
          %p312 = scmp.lt.s32.totalorder %s311, 63
          %s313 = scalar_select %p312, %s311, 63
          %s314 = smul.addr %s313, 8
          %s315 = scalar_lea.vmem %s0, %s314
          %s316 = smul.u32 32, %s19
        $region52: #{tpu_custom_call.1} parent=47 // pred_fallthru
          _
        // Predicated region
        $region53: #{tpu_custom_call.1} parent=47 // pred_check
          %p317 = pneg %p65
        $region54: #{tpu_custom_call.1} parent=47 // pred_check_branch
          %319 = sbr.rel (%p317) target = $region56
        $region55: #{tpu_custom_call.1} parent=47 // pred_region
          %s320 = smul.u32 32, %s19
          %p321 = scmp.lt.s32.totalorder %s320, 63
          %s322 = scalar_select %p321, %s320, 63
          %s323 = smul.addr %s322, 8
          %s324 = scalar_lea.vmem %s1, %s323
          %s325 = smul.u32 32, %s19
        $region56: #{tpu_custom_call.1} parent=47 // pred_fallthru
          _
      $region48: #{tpu_custom_call.1} parent=5 // pred_fallthru
        _
      %p326 = scmp.le.s32.totalorder 1, %s19
      %p327 = scmp.lt.s32.totalorder %s19, 3
      %p328 = pnand %p326, %p327
      %p329 = pneg %p328
      // Predicated region
      $region57: #{tpu_custom_call.1} parent=5 // pred_check
        _
      $region58: #{tpu_custom_call.1} parent=5 // pred_check_branch
        %331 = sbr.rel (%p328) target = $region60
      $region59: #{tpu_custom_call.1} parent=5 // pred_region
        %s332 = ssub.s32 %s19, 1
        %s333 = smul.u32 32, %s24
        %p334 = scmp.lt.s32.totalorder %s333, 63
        %s335 = scalar_select %p334, %s333, 63
        %s336 = smul.addr %s335, 8
        %s337 = scalar_lea.vmem %s0, %s336
        %p338 = pneg %p45
        %p339 = pneg %p42
        %s340 = smul.u32 32, %s24
        %p341 = scmp.lt.s32.totalorder %s340, 63
        %s342 = scalar_select %p341, %s340, 63
        %s343 = smul.addr %s342, 8
        %s344 = scalar_lea.vmem %s1, %s343
        %p345 = pneg %p71
        %p346 = pneg %p68
        %p347 = pneg %p92
        %p348 = pneg %p89
        %p349 = pneg %p113
        %p350 = pneg %p110
        %p351 = pneg %p134
        %p352 = pneg %p131
        %p353 = pneg %p155
        %p354 = pneg %p152
        %p355 = pneg %p176
        %p356 = pneg %p173
        %p357 = pneg %p197
        %p358 = pneg %p194
        %p359 = pneg %p218
        %p360 = pneg %p215
        %p361 = pneg %p239
        %p362 = pneg %p236
        %p363 = pneg %p265
        %p364 = pneg %p262
        %s365 = sand.u32 %s252, 1
        %s366 = scalar_lea.sflag [#allocation3], %s365
        %s367 = sand.u32 %s252, 1
        %s368 = smul.addr %s367, 32
        %s369 = scalar_lea.vmem [#allocation2], %s368
        %s370 = smul.u32 32, %s24
        %p371 = scmp.lt.s32.totalorder %s370, 63
        %s372 = scalar_select %p371, %s370, 63
        %s373 = smul.addr %s372, 8
        %s374 = scalar_lea.vmem %s0, %s373
        %s375 = smul.u32 32, %s24
        %s376 = smul.u32 32, %s24
        %p377 = scmp.lt.s32.totalorder %s376, 63
        %s378 = scalar_select %p377, %s376, 63
        %s379 = smul.addr %s378, 8
        %s380 = scalar_lea.vmem %s1, %s379
        %s381 = smul.u32 32, %s24
        %s382 = smul.u32 4, %s24
        %v384 = vld [vmem:[%s374] sm:$0xff]
        %v385 = vld [vmem:[%s374 + $0x8] sm:$0xff]
        %v386 = vld [vmem:[%s374 + $0x10] sm:$0xff]
        %v387 = vld [vmem:[%s374 + $0x18] sm:$0xff]
        %v388 = vld [vmem:[%s374 + $0x20] sm:$0xff]
        %v389 = vld [vmem:[%s374 + $0x28] sm:$0xff]
        %v390 = vld [vmem:[%s374 + $0x30] sm:$0xff]
        %v391 = vld [vmem:[%s374 + $0x38] sm:$0xff]
        %v392 = vld [vmem:[%s374 + $0x40] sm:$0xff]
        %v393 = vld [vmem:[%s374 + $0x48] sm:$0xff]
        %v394 = vld [vmem:[%s374 + $0x50] sm:$0xff]
        %v395 = vld [vmem:[%s374 + $0x58] sm:$0xff]
        %v396 = vld [vmem:[%s374 + $0x60] sm:$0xff]
        %v397 = vld [vmem:[%s374 + $0x68] sm:$0xff]
        %v398 = vld [vmem:[%s374 + $0x70] sm:$0xff]
        %v399 = vld [vmem:[%s374 + $0x78] sm:$0xff]
        %v400 = vld [vmem:[%s374 + $0x80] sm:$0xff]
        %v401 = vld [vmem:[%s374 + $0x88] sm:$0xff]
        %v402 = vld [vmem:[%s374 + $0x90] sm:$0xff]
        %v403 = vld [vmem:[%s374 + $0x98] sm:$0xff]
        %v404 = vld [vmem:[%s374 + $0xa0] sm:$0xff]
        %v405 = vld [vmem:[%s374 + $0xa8] sm:$0xff]
        %v406 = vld [vmem:[%s374 + $0xb0] sm:$0xff]
        %v407 = vld [vmem:[%s374 + $0xb8] sm:$0xff]
        %v408 = vld [vmem:[%s374 + $0xc0] sm:$0xff]
        %v409 = vld [vmem:[%s374 + $0xc8] sm:$0xff]
        %v410 = vld [vmem:[%s374 + $0xd0] sm:$0xff]
        %v411 = vld [vmem:[%s374 + $0xd8] sm:$0xff]
        %v412 = vld [vmem:[%s374 + $0xe0] sm:$0xff]
        %v413 = vld [vmem:[%s374 + $0xe8] sm:$0xff]
        %v414 = vld [vmem:[%s374 + $0xf0] sm:$0xff]
        %v415 = vld [vmem:[%s374 + $0xf8] sm:$0xff]
        %v416 = vpack.c.bf16 %v384, %v384
        %v417 = vpack.c.bf16 %v385, %v385
        %v418 = vpack.c.bf16 %v386, %v386
        %v419 = vpack.c.bf16 %v387, %v387
        %v420 = vpack.c.bf16 %v388, %v388
        %v421 = vpack.c.bf16 %v389, %v389
        %v422 = vpack.c.bf16 %v390, %v390
        %v423 = vpack.c.bf16 %v391, %v391
        %v424 = vpack.c.bf16 %v392, %v392
        %v425 = vpack.c.bf16 %v393, %v393
        %v426 = vpack.c.bf16 %v394, %v394
        %v427 = vpack.c.bf16 %v395, %v395
        %v428 = vpack.c.bf16 %v396, %v396
        %v429 = vpack.c.bf16 %v397, %v397
        %v430 = vpack.c.bf16 %v398, %v398
        %v431 = vpack.c.bf16 %v399, %v399
        %v432 = vpack.c.bf16 %v400, %v400
        %v433 = vpack.c.bf16 %v401, %v401
        %v434 = vpack.c.bf16 %v402, %v402
        %v435 = vpack.c.bf16 %v403, %v403
        %v436 = vpack.c.bf16 %v404, %v404
        %v437 = vpack.c.bf16 %v405, %v405
        %v438 = vpack.c.bf16 %v406, %v406
        %v439 = vpack.c.bf16 %v407, %v407
        %v440 = vpack.c.bf16 %v408, %v408
        %v441 = vpack.c.bf16 %v409, %v409
        %v442 = vpack.c.bf16 %v410, %v410
        %v443 = vpack.c.bf16 %v411, %v411
        %v444 = vpack.c.bf16 %v412, %v412
        %v445 = vpack.c.bf16 %v413, %v413
        %v446 = vpack.c.bf16 %v414, %v414
        %v447 = vpack.c.bf16 %v415, %v415
        %v448 = vld [vmem:[%s380] sm:$0xff]
        %v449 = vld [vmem:[%s380 + $0x8] sm:$0xff]
        %v450 = vld [vmem:[%s380 + $0x10] sm:$0xff]
        %v451 = vld [vmem:[%s380 + $0x18] sm:$0xff]
        %v452 = vld [vmem:[%s380 + $0x20] sm:$0xff]
        %v453 = vld [vmem:[%s380 + $0x28] sm:$0xff]
        %v454 = vld [vmem:[%s380 + $0x30] sm:$0xff]
        %v455 = vld [vmem:[%s380 + $0x38] sm:$0xff]
        %v456 = vld [vmem:[%s380 + $0x40] sm:$0xff]
        %v457 = vld [vmem:[%s380 + $0x48] sm:$0xff]
        %v458 = vld [vmem:[%s380 + $0x50] sm:$0xff]
        %v459 = vld [vmem:[%s380 + $0x58] sm:$0xff]
        %v460 = vld [vmem:[%s380 + $0x60] sm:$0xff]
        %v461 = vld [vmem:[%s380 + $0x68] sm:$0xff]
        %v462 = vld [vmem:[%s380 + $0x70] sm:$0xff]
        %v463 = vld [vmem:[%s380 + $0x78] sm:$0xff]
        %v464 = vld [vmem:[%s380 + $0x80] sm:$0xff]
        %v465 = vld [vmem:[%s380 + $0x88] sm:$0xff]
        %v466 = vld [vmem:[%s380 + $0x90] sm:$0xff]
        %v467 = vld [vmem:[%s380 + $0x98] sm:$0xff]
        %v468 = vld [vmem:[%s380 + $0xa0] sm:$0xff]
        %v469 = vld [vmem:[%s380 + $0xa8] sm:$0xff]
        %v470 = vld [vmem:[%s380 + $0xb0] sm:$0xff]
        %v471 = vld [vmem:[%s380 + $0xb8] sm:$0xff]
        %v472 = vld [vmem:[%s380 + $0xc0] sm:$0xff]
        %v473 = vld [vmem:[%s380 + $0xc8] sm:$0xff]
        %v474 = vld [vmem:[%s380 + $0xd0] sm:$0xff]
        %v475 = vld [vmem:[%s380 + $0xd8] sm:$0xff]
        %v476 = vld [vmem:[%s380 + $0xe0] sm:$0xff]
        %v477 = vld [vmem:[%s380 + $0xe8] sm:$0xff]
        %v478 = vld [vmem:[%s380 + $0xf0] sm:$0xff]
        %v479 = vld [vmem:[%s380 + $0xf8] sm:$0xff]
        %v480 = vpack.c.bf16 %v448, %v448
        %v481 = vpack.c.bf16 %v449, %v449
        %v482 = vpack.c.bf16 %v450, %v450
        %v483 = vpack.c.bf16 %v451, %v451
        %v484 = vpack.c.bf16 %v452, %v452
        %v485 = vpack.c.bf16 %v453, %v453
        %v486 = vpack.c.bf16 %v454, %v454
        %v487 = vpack.c.bf16 %v455, %v455
        %v488 = vpack.c.bf16 %v456, %v456
        %v489 = vpack.c.bf16 %v457, %v457
        %v490 = vpack.c.bf16 %v458, %v458
        %v491 = vpack.c.bf16 %v459, %v459
        %v492 = vpack.c.bf16 %v460, %v460
        %v493 = vpack.c.bf16 %v461, %v461
        %v494 = vpack.c.bf16 %v462, %v462
        %v495 = vpack.c.bf16 %v463, %v463
        %v496 = vpack.c.bf16 %v464, %v464
        %v497 = vpack.c.bf16 %v465, %v465
        %v498 = vpack.c.bf16 %v466, %v466
        %v499 = vpack.c.bf16 %v467, %v467
        %v500 = vpack.c.bf16 %v468, %v468
        %v501 = vpack.c.bf16 %v469, %v469
        %v502 = vpack.c.bf16 %v470, %v470
        %v503 = vpack.c.bf16 %v471, %v471
        %v504 = vpack.c.bf16 %v472, %v472
        %v505 = vpack.c.bf16 %v473, %v473
        %v506 = vpack.c.bf16 %v474, %v474
        %v507 = vpack.c.bf16 %v475, %v475
        %v508 = vpack.c.bf16 %v476, %v476
        %v509 = vpack.c.bf16 %v477, %v477
        %v510 = vpack.c.bf16 %v478, %v478
        %v511 = vpack.c.bf16 %v479, %v479
        %v544 = vunpack.c.l.b16 %v416
        %v545 = vunpack.c.l.b16 %v417
        %v546 = vunpack.c.l.b16 %v418
        %v547 = vunpack.c.l.b16 %v419
        %v548 = vunpack.c.l.b16 %v420
        %v549 = vunpack.c.l.b16 %v421
        %v550 = vunpack.c.l.b16 %v422
        %v551 = vunpack.c.l.b16 %v423
        %v552 = vunpack.c.l.b16 %v424
        %v553 = vunpack.c.l.b16 %v425
        %v554 = vunpack.c.l.b16 %v426
        %v555 = vunpack.c.l.b16 %v427
        %v556 = vunpack.c.l.b16 %v428
        %v557 = vunpack.c.l.b16 %v429
        %v558 = vunpack.c.l.b16 %v430
        %v559 = vunpack.c.l.b16 %v431
        %v560 = vunpack.c.l.b16 %v432
        %v561 = vunpack.c.l.b16 %v433
        %v562 = vunpack.c.l.b16 %v434
        %v563 = vunpack.c.l.b16 %v435
        %v564 = vunpack.c.l.b16 %v436
        %v565 = vunpack.c.l.b16 %v437
        %v566 = vunpack.c.l.b16 %v438
        %v567 = vunpack.c.l.b16 %v439
        %v568 = vunpack.c.l.b16 %v440
        %v569 = vunpack.c.l.b16 %v441
        %v570 = vunpack.c.l.b16 %v442
        %v571 = vunpack.c.l.b16 %v443
        %v572 = vunpack.c.l.b16 %v444
        %v573 = vunpack.c.l.b16 %v445
        %v574 = vunpack.c.l.b16 %v446
        %v575 = vunpack.c.l.b16 %v447
        %v576 = vpack.c.b16 %v545, %v544
        %v577 = vpack.c.b16 %v547, %v546
        %v578 = vpack.c.b16 %v549, %v548
        %v579 = vpack.c.b16 %v551, %v550
        %v580 = vpack.c.b16 %v553, %v552
        %v581 = vpack.c.b16 %v555, %v554
        %v582 = vpack.c.b16 %v557, %v556
        %v583 = vpack.c.b16 %v559, %v558
        %v584 = vpack.c.b16 %v561, %v560
        %v585 = vpack.c.b16 %v563, %v562
        %v586 = vpack.c.b16 %v565, %v564
        %v587 = vpack.c.b16 %v567, %v566
        %v588 = vpack.c.b16 %v569, %v568
        %v589 = vpack.c.b16 %v571, %v570
        %v590 = vpack.c.b16 %v573, %v572
        %v591 = vpack.c.b16 %v575, %v574
        %v624 = vunpack.c.l.b16 %v480
        %v625 = vunpack.c.l.b16 %v481
        %v626 = vunpack.c.l.b16 %v482
        %v627 = vunpack.c.l.b16 %v483
        %v628 = vunpack.c.l.b16 %v484
        %v629 = vunpack.c.l.b16 %v485
        %v630 = vunpack.c.l.b16 %v486
        %v631 = vunpack.c.l.b16 %v487
        %v632 = vunpack.c.l.b16 %v488
        %v633 = vunpack.c.l.b16 %v489
        %v634 = vunpack.c.l.b16 %v490
        %v635 = vunpack.c.l.b16 %v491
        %v636 = vunpack.c.l.b16 %v492
        %v637 = vunpack.c.l.b16 %v493
        %v638 = vunpack.c.l.b16 %v494
        %v639 = vunpack.c.l.b16 %v495
        %v640 = vunpack.c.l.b16 %v496
        %v641 = vunpack.c.l.b16 %v497
        %v642 = vunpack.c.l.b16 %v498
        %v643 = vunpack.c.l.b16 %v499
        %v644 = vunpack.c.l.b16 %v500
        %v645 = vunpack.c.l.b16 %v501
        %v646 = vunpack.c.l.b16 %v502
        %v647 = vunpack.c.l.b16 %v503
        %v648 = vunpack.c.l.b16 %v504
        %v649 = vunpack.c.l.b16 %v505
        %v650 = vunpack.c.l.b16 %v506
        %v651 = vunpack.c.l.b16 %v507
        %v652 = vunpack.c.l.b16 %v508
        %v653 = vunpack.c.l.b16 %v509
        %v654 = vunpack.c.l.b16 %v510
        %v655 = vunpack.c.l.b16 %v511
        %v656 = vpack.c.b16 %v625, %v624
        %v657 = vpack.c.b16 %v627, %v626
        %v658 = vpack.c.b16 %v629, %v628
        %v659 = vpack.c.b16 %v631, %v630
        %v660 = vpack.c.b16 %v633, %v632
        %v661 = vpack.c.b16 %v635, %v634
        %v662 = vpack.c.b16 %v637, %v636
        %v663 = vpack.c.b16 %v639, %v638
        %v664 = vpack.c.b16 %v641, %v640
        %v665 = vpack.c.b16 %v643, %v642
        %v666 = vpack.c.b16 %v645, %v644
        %v667 = vpack.c.b16 %v647, %v646
        %v668 = vpack.c.b16 %v649, %v648
        %v669 = vpack.c.b16 %v651, %v650
        %v670 = vpack.c.b16 %v653, %v652
        %v671 = vpack.c.b16 %v655, %v654
        %v672 = vld [vmem:[%s2] sm:$0xf]
        %v673 = vld [vmem:[%s2 + $0x4] sm:$0xf]
        %v674 = vld [vmem:[%s2 + $0x8] sm:$0xf]
        %v675 = vld [vmem:[%s2 + $0xc] sm:$0xf]
        %v676 = vld [vmem:[%s3] sm:$0x1]
        %v678 = vlaneseq
        %v679 = vshrl.u32 %v678, 7
        %v680 = vsub.s32 0, %v679
        %v681 = vrot.slane %v676, %v680
        %v687 = vunpack.c.l.b16 %v672
        %v688 = vunpack.c.l.b16 %v673
        %v689 = vunpack.c.l.b16 %v674
        %v690 = vunpack.c.l.b16 %v675
        %v691 = vpack.c.b16 %v688, %v687
        %v692 = vpack.c.b16 %v690, %v689
        %vm695 = vcmask 261120
        %v697 = vsel %vm695, %v576, 0
        %v700 = vsel %vm695, %v577, 0
        %v703 = vsel %vm695, %v578, 0
        %v706 = vsel %vm695, %v579, 0
        %v709 = vsel %vm695, %v580, 0
        %v712 = vsel %vm695, %v581, 0
        %v715 = vsel %vm695, %v582, 0
        %v718 = vsel %vm695, %v583, 0
        %v721 = vsel %vm695, %v584, 0
        %v724 = vsel %vm695, %v585, 0
        %v727 = vsel %vm695, %v586, 0
        %v730 = vsel %vm695, %v587, 0
        %v733 = vsel %vm695, %v588, 0
        %v736 = vsel %vm695, %v589, 0
        %v739 = vsel %vm695, %v590, 0
        %v742 = vsel %vm695, %v591, 0
        %v745 = vsel %vm695, %v656, 0
        %v748 = vsel %vm695, %v657, 0
        %v751 = vsel %vm695, %v658, 0
        %v754 = vsel %vm695, %v659, 0
        %v757 = vsel %vm695, %v660, 0
        %v760 = vsel %vm695, %v661, 0
        %v763 = vsel %vm695, %v662, 0
        %v766 = vsel %vm695, %v663, 0
        %v769 = vsel %vm695, %v664, 0
        %v772 = vsel %vm695, %v665, 0
        %v775 = vsel %vm695, %v666, 0
        %v778 = vsel %vm695, %v667, 0
        %v781 = vsel %vm695, %v668, 0
        %v784 = vsel %vm695, %v669, 0
        %v787 = vsel %vm695, %v670, 0
        %v790 = vsel %vm695, %v671, 0
        %792 = vmatprep.subr.bf16.mxu0 0
        %793 = vmatpush1.bf16.msra.mxu0 %v691
        %794 = vmatprep.subr.bf16.mxu0 0
        %795 = vmatpush1.bf16.msra.mxu0 %v692
        %796 = vmatprep.subr.bf16.mxu0 0
        %797 = vmatpush1.bf16.msra.mxu0 0
        %798 = vmatprep.subr.bf16.mxu0 0
        %799 = vmatpush1.bf16.msra.mxu0 0
        %800 = vmatprep.subr.bf16.mxu0 0
        %801 = vmatpush1.bf16.msra.mxu0 0
        %802 = vmatprep.subr.bf16.mxu0 0
        %803 = vmatpush1.bf16.msra.mxu0 0
        %804 = vmatprep.subr.bf16.mxu0 0
        %805 = vmatpush1.bf16.msra.mxu0 0
        %806 = vmatprep.subr.bf16.mxu0 0
        %807 = vmatpush1.bf16.msra.mxu0 0
        %808 = vmatprep.subr.bf16.mxu0 0
        %809 = vmatpush1.bf16.msra.mxu0 0
        %810 = vmatprep.subr.bf16.mxu0 0
        %811 = vmatpush1.bf16.msra.mxu0 0
        %812 = vmatprep.subr.bf16.mxu0 0
        %813 = vmatpush1.bf16.msra.mxu0 0
        %814 = vmatprep.subr.bf16.mxu0 0
        %815 = vmatpush1.bf16.msra.mxu0 0
        %816 = vmatprep.subr.bf16.mxu0 0
        %817 = vmatpush1.bf16.msra.mxu0 0
        %818 = vmatprep.subr.bf16.mxu0 0
        %819 = vmatpush1.bf16.msra.mxu0 0
        %820 = vmatprep.subr.bf16.mxu0 0
        %821 = vmatpush1.bf16.msra.mxu0 0
        %822 = vmatprep.subr.bf16.mxu0 0
        %823 = vmatpush1.bf16.msra.mxu0 0
        %824 = vmatprep.mubr.bf16.mxu0 0
        %825 = vmatmul.mubr.bf16.gmra.mrb[0].mxu0 %v697
        %v826 = vpop.f32.mrb[0].mxu0
        %v827 = vadd.f32 %v681, %v826
        %v828 = vpop.f32.mrb[0].mxu0
        %v829 = vpop.f32.mrb[0].mxu0
        %v830 = vadd.f32 %v681, %v829
        %v831 = vpop.f32.mrb[0].mxu0
        %832 = vmatprep.mubr.bf16.mxu0 0
        %833 = vmatmul.mubr.bf16.gmra.mrb[0].mxu0 %v700
        %v834 = vpop.f32.mrb[0].mxu0
        %v835 = vadd.f32 %v681, %v834
        %v836 = vpop.f32.mrb[0].mxu0
        %v837 = vpop.f32.mrb[0].mxu0
        %v838 = vadd.f32 %v681, %v837
        %v839 = vpop.f32.mrb[0].mxu0
        %840 = vmatprep.mubr.bf16.mxu0 0
        %841 = vmatmul.mubr.bf16.gmra.mrb[0].mxu0 %v703
        %v842 = vpop.f32.mrb[0].mxu0
        %v843 = vadd.f32 %v681, %v842
        %v844 = vpop.f32.mrb[0].mxu0
        %v845 = vpop.f32.mrb[0].mxu0
        %v846 = vadd.f32 %v681, %v845
        %v847 = vpop.f32.mrb[0].mxu0
        %848 = vmatprep.mubr.bf16.mxu0 0
        %849 = vmatmul.mubr.bf16.gmra.mrb[0].mxu0 %v706
        %v850 = vpop.f32.mrb[0].mxu0
        %v851 = vadd.f32 %v681, %v850
        %v852 = vpop.f32.mrb[0].mxu0
        %v853 = vpop.f32.mrb[0].mxu0
        %v854 = vadd.f32 %v681, %v853
        %v855 = vpop.f32.mrb[0].mxu0
        %856 = vmatprep.mubr.bf16.mxu0 0
        %857 = vmatmul.mubr.bf16.gmra.mrb[0].mxu0 %v709
        %v858 = vpop.f32.mrb[0].mxu0
        %v859 = vadd.f32 %v681, %v858
        %v860 = vpop.f32.mrb[0].mxu0
        %v861 = vpop.f32.mrb[0].mxu0
        %v862 = vadd.f32 %v681, %v861
        %v863 = vpop.f32.mrb[0].mxu0
        %864 = vmatprep.mubr.bf16.mxu0 0
        %865 = vmatmul.mubr.bf16.gmra.mrb[0].mxu0 %v712
        %v866 = vpop.f32.mrb[0].mxu0
        %v867 = vadd.f32 %v681, %v866
        %v868 = vpop.f32.mrb[0].mxu0
        %v869 = vpop.f32.mrb[0].mxu0
        %v870 = vadd.f32 %v681, %v869
        %v871 = vpop.f32.mrb[0].mxu0
        %872 = vmatprep.mubr.bf16.mxu0 0
        %873 = vmatmul.mubr.bf16.gmra.mrb[0].mxu0 %v715
        %v874 = vpop.f32.mrb[0].mxu0
        %v875 = vadd.f32 %v681, %v874
        %v876 = vpop.f32.mrb[0].mxu0
        %v877 = vpop.f32.mrb[0].mxu0
        %v878 = vadd.f32 %v681, %v877
        %v879 = vpop.f32.mrb[0].mxu0
        %880 = vmatprep.mubr.bf16.mxu0 0
        %881 = vmatmul.mubr.bf16.gmra.mrb[0].mxu0 %v718
        %v882 = vpop.f32.mrb[0].mxu0
        %v883 = vadd.f32 %v681, %v882
        %v884 = vpop.f32.mrb[0].mxu0
        %v885 = vpop.f32.mrb[0].mxu0
        %v886 = vadd.f32 %v681, %v885
        %v887 = vpop.f32.mrb[0].mxu0
        %888 = vmatprep.mubr.bf16.mxu0 0
        %889 = vmatmul.mubr.bf16.gmra.mrb[0].mxu0 %v721
        %v890 = vpop.f32.mrb[0].mxu0
        %v891 = vadd.f32 %v681, %v890
        %v892 = vpop.f32.mrb[0].mxu0
        %v893 = vpop.f32.mrb[0].mxu0
        %v894 = vadd.f32 %v681, %v893
        %v895 = vpop.f32.mrb[0].mxu0
        %896 = vmatprep.mubr.bf16.mxu0 0
        %897 = vmatmul.mubr.bf16.gmra.mrb[0].mxu0 %v724
        %v898 = vpop.f32.mrb[0].mxu0
        %v899 = vadd.f32 %v681, %v898
        %v900 = vpop.f32.mrb[0].mxu0
        %v901 = vpop.f32.mrb[0].mxu0
        %v902 = vadd.f32 %v681, %v901
        %v903 = vpop.f32.mrb[0].mxu0
        %904 = vmatprep.mubr.bf16.mxu0 0
        %905 = vmatmul.mubr.bf16.gmra.mrb[0].mxu0 %v727
        %v906 = vpop.f32.mrb[0].mxu0
        %v907 = vadd.f32 %v681, %v906
        %v908 = vpop.f32.mrb[0].mxu0
        %v909 = vpop.f32.mrb[0].mxu0
        %v910 = vadd.f32 %v681, %v909
        %v911 = vpop.f32.mrb[0].mxu0
        %912 = vmatprep.mubr.bf16.mxu0 0
        %913 = vmatmul.mubr.bf16.gmra.mrb[0].mxu0 %v730
        %v914 = vpop.f32.mrb[0].mxu0
        %v915 = vadd.f32 %v681, %v914
        %v916 = vpop.f32.mrb[0].mxu0
        %v917 = vpop.f32.mrb[0].mxu0
        %v918 = vadd.f32 %v681, %v917
        %v919 = vpop.f32.mrb[0].mxu0
        %920 = vmatprep.mubr.bf16.mxu0 0
        %921 = vmatmul.mubr.bf16.gmra.mrb[0].mxu0 %v733
        %v922 = vpop.f32.mrb[0].mxu0
        %v923 = vadd.f32 %v681, %v922
        %v924 = vpop.f32.mrb[0].mxu0
        %v925 = vpop.f32.mrb[0].mxu0
        %v926 = vadd.f32 %v681, %v925
        %v927 = vpop.f32.mrb[0].mxu0
        %928 = vmatprep.mubr.bf16.mxu0 0
        %929 = vmatmul.mubr.bf16.gmra.mrb[0].mxu0 %v736
        %v930 = vpop.f32.mrb[0].mxu0
        %v931 = vadd.f32 %v681, %v930
        %v932 = vpop.f32.mrb[0].mxu0
        %v933 = vpop.f32.mrb[0].mxu0
        %v934 = vadd.f32 %v681, %v933
        %v935 = vpop.f32.mrb[0].mxu0
        %936 = vmatprep.mubr.bf16.mxu0 0
        %937 = vmatmul.mubr.bf16.gmra.mrb[0].mxu0 %v739
        %v938 = vpop.f32.mrb[0].mxu0
        %v939 = vadd.f32 %v681, %v938
        %v940 = vpop.f32.mrb[0].mxu0
        %v941 = vpop.f32.mrb[0].mxu0
        %v942 = vadd.f32 %v681, %v941
        %v943 = vpop.f32.mrb[0].mxu0
        %944 = vmatprep.mubr.bf16.mxu0 0
        %945 = vmatmul.mubr.bf16.gmra.mrb[0].mxu0 %v742
        %v946 = vpop.f32.mrb[0].mxu0
        %v947 = vadd.f32 %v681, %v946
        %v948 = vpop.f32.mrb[0].mxu0
        %v949 = vpop.f32.mrb[0].mxu0
        %v950 = vadd.f32 %v681, %v949
        %v951 = vpop.f32.mrb[0].mxu0
        %952 = vmatprep.mubr.bf16.mxu0 0
        %953 = vmatmul.mubr.bf16.gmra.mrb[0].mxu0 %v745
        %v954 = vpop.f32.mrb[0].mxu0
        %v955 = vadd.f32 %v681, %v954
        %v956 = vpop.f32.mrb[0].mxu0
        %v957 = vpop.f32.mrb[0].mxu0
        %v958 = vadd.f32 %v681, %v957
        %v959 = vpop.f32.mrb[0].mxu0
        %960 = vmatprep.mubr.bf16.mxu0 0
        %961 = vmatmul.mubr.bf16.gmra.mrb[0].mxu0 %v748
        %v962 = vpop.f32.mrb[0].mxu0
        %v963 = vadd.f32 %v681, %v962
        %v964 = vpop.f32.mrb[0].mxu0
        %v965 = vpop.f32.mrb[0].mxu0
        %v966 = vadd.f32 %v681, %v965
        %v967 = vpop.f32.mrb[0].mxu0
        %968 = vmatprep.mubr.bf16.mxu0 0
        %969 = vmatmul.mubr.bf16.gmra.mrb[0].mxu0 %v751
        %v970 = vpop.f32.mrb[0].mxu0
        %v971 = vadd.f32 %v681, %v970
        %v972 = vpop.f32.mrb[0].mxu0
        %v973 = vpop.f32.mrb[0].mxu0
        %v974 = vadd.f32 %v681, %v973
        %v975 = vpop.f32.mrb[0].mxu0
        %976 = vmatprep.mubr.bf16.mxu0 0
        %977 = vmatmul.mubr.bf16.gmra.mrb[0].mxu0 %v754
        %v978 = vpop.f32.mrb[0].mxu0
        %v979 = vadd.f32 %v681, %v978
        %v980 = vpop.f32.mrb[0].mxu0
        %v981 = vpop.f32.mrb[0].mxu0
        %v982 = vadd.f32 %v681, %v981
        %v983 = vpop.f32.mrb[0].mxu0
        %984 = vmatprep.mubr.bf16.mxu0 0
        %985 = vmatmul.mubr.bf16.gmra.mrb[0].mxu0 %v757
        %v986 = vpop.f32.mrb[0].mxu0
        %v987 = vadd.f32 %v681, %v986
        %v988 = vpop.f32.mrb[0].mxu0
        %v989 = vpop.f32.mrb[0].mxu0
        %v990 = vadd.f32 %v681, %v989
        %v991 = vpop.f32.mrb[0].mxu0
        %992 = vmatprep.mubr.bf16.mxu0 0
        %993 = vmatmul.mubr.bf16.gmra.mrb[0].mxu0 %v760
        %v994 = vpop.f32.mrb[0].mxu0
        %v995 = vadd.f32 %v681, %v994
        %v996 = vpop.f32.mrb[0].mxu0
        %v997 = vpop.f32.mrb[0].mxu0
        %v998 = vadd.f32 %v681, %v997
        %v999 = vpop.f32.mrb[0].mxu0
        %1000 = vmatprep.mubr.bf16.mxu0 0
        %1001 = vmatmul.mubr.bf16.gmra.mrb[0].mxu0 %v763
        %v1002 = vpop.f32.mrb[0].mxu0
        %v1003 = vadd.f32 %v681, %v1002
        %v1004 = vpop.f32.mrb[0].mxu0
        %v1005 = vpop.f32.mrb[0].mxu0
        %v1006 = vadd.f32 %v681, %v1005
        %v1007 = vpop.f32.mrb[0].mxu0
        %1008 = vmatprep.mubr.bf16.mxu0 0
        %1009 = vmatmul.mubr.bf16.gmra.mrb[0].mxu0 %v766
        %v1010 = vpop.f32.mrb[0].mxu0
        %v1011 = vadd.f32 %v681, %v1010
        %v1012 = vpop.f32.mrb[0].mxu0
        %v1013 = vpop.f32.mrb[0].mxu0
        %v1014 = vadd.f32 %v681, %v1013
        %v1015 = vpop.f32.mrb[0].mxu0
        %1016 = vmatprep.mubr.bf16.mxu0 0
        %1017 = vmatmul.mubr.bf16.gmra.mrb[0].mxu0 %v769
        %v1018 = vpop.f32.mrb[0].mxu0
        %v1019 = vadd.f32 %v681, %v1018
        %v1020 = vpop.f32.mrb[0].mxu0
        %v1021 = vpop.f32.mrb[0].mxu0
        %v1022 = vadd.f32 %v681, %v1021
        %v1023 = vpop.f32.mrb[0].mxu0
        %1024 = vmatprep.mubr.bf16.mxu0 0
        %1025 = vmatmul.mubr.bf16.gmra.mrb[0].mxu0 %v772
        %v1026 = vpop.f32.mrb[0].mxu0
        %v1027 = vadd.f32 %v681, %v1026
        %v1028 = vpop.f32.mrb[0].mxu0
        %v1029 = vpop.f32.mrb[0].mxu0
        %v1030 = vadd.f32 %v681, %v1029
        %v1031 = vpop.f32.mrb[0].mxu0
        %1032 = vmatprep.mubr.bf16.mxu0 0
        %1033 = vmatmul.mubr.bf16.gmra.mrb[0].mxu0 %v775
        %v1034 = vpop.f32.mrb[0].mxu0
        %v1035 = vadd.f32 %v681, %v1034
        %v1036 = vpop.f32.mrb[0].mxu0
        %v1037 = vpop.f32.mrb[0].mxu0
        %v1038 = vadd.f32 %v681, %v1037
        %v1039 = vpop.f32.mrb[0].mxu0
        %1040 = vmatprep.mubr.bf16.mxu0 0
        %1041 = vmatmul.mubr.bf16.gmra.mrb[0].mxu0 %v778
        %v1042 = vpop.f32.mrb[0].mxu0
        %v1043 = vadd.f32 %v681, %v1042
        %v1044 = vpop.f32.mrb[0].mxu0
        %v1045 = vpop.f32.mrb[0].mxu0
        %v1046 = vadd.f32 %v681, %v1045
        %v1047 = vpop.f32.mrb[0].mxu0
        %1048 = vmatprep.mubr.bf16.mxu0 0
        %1049 = vmatmul.mubr.bf16.gmra.mrb[0].mxu0 %v781
        %v1050 = vpop.f32.mrb[0].mxu0
        %v1051 = vadd.f32 %v681, %v1050
        %v1052 = vpop.f32.mrb[0].mxu0
        %v1053 = vpop.f32.mrb[0].mxu0
        %v1054 = vadd.f32 %v681, %v1053
        %v1055 = vpop.f32.mrb[0].mxu0
        %1056 = vmatprep.mubr.bf16.mxu0 0
        %1057 = vmatmul.mubr.bf16.gmra.mrb[0].mxu0 %v784
        %v1058 = vpop.f32.mrb[0].mxu0
        %v1059 = vadd.f32 %v681, %v1058
        %v1060 = vpop.f32.mrb[0].mxu0
        %v1061 = vpop.f32.mrb[0].mxu0
        %v1062 = vadd.f32 %v681, %v1061
        %v1063 = vpop.f32.mrb[0].mxu0
        %1064 = vmatprep.mubr.bf16.mxu0 0
        %1065 = vmatmul.mubr.bf16.gmra.mrb[0].mxu0 %v787
        %v1066 = vpop.f32.mrb[0].mxu0
        %v1067 = vadd.f32 %v681, %v1066
        %v1068 = vpop.f32.mrb[0].mxu0
        %v1069 = vpop.f32.mrb[0].mxu0
        %v1070 = vadd.f32 %v681, %v1069
        %v1071 = vpop.f32.mrb[0].mxu0
        %1072 = vmatprep.mubr.bf16.mxu0 0
        %1073 = vmatmul.mubr.bf16.gmra.mrb[0].mxu0 %v790
        %v1074 = vpop.f32.mrb[0].mxu0
        %v1075 = vadd.f32 %v681, %v1074
        %v1076 = vpop.f32.mrb[0].mxu0
        %v1077 = vpop.f32.mrb[0].mxu0
        %v1078 = vadd.f32 %v681, %v1077
        %v1079 = vpop.f32.mrb[0].mxu0
        %1080 = vdwg.mxu0
        %v1081 = vmax.f32 %v827, 0.0
        %v1082 = vmax.f32 %v830, 0.0
        %v1083 = vmax.f32 %v835, 0.0
        %v1084 = vmax.f32 %v838, 0.0
        %v1085 = vmax.f32 %v843, 0.0
        %v1086 = vmax.f32 %v846, 0.0
        %v1087 = vmax.f32 %v851, 0.0
        %v1088 = vmax.f32 %v854, 0.0
        %v1089 = vmax.f32 %v859, 0.0
        %v1090 = vmax.f32 %v862, 0.0
        %v1091 = vmax.f32 %v867, 0.0
        %v1092 = vmax.f32 %v870, 0.0
        %v1093 = vmax.f32 %v875, 0.0
        %v1094 = vmax.f32 %v878, 0.0
        %v1095 = vmax.f32 %v883, 0.0
        %v1096 = vmax.f32 %v886, 0.0
        %v1097 = vmax.f32 %v891, 0.0
        %v1098 = vmax.f32 %v894, 0.0
        %v1099 = vmax.f32 %v899, 0.0
        %v1100 = vmax.f32 %v902, 0.0
        %v1101 = vmax.f32 %v907, 0.0
        %v1102 = vmax.f32 %v910, 0.0
        %v1103 = vmax.f32 %v915, 0.0
        %v1104 = vmax.f32 %v918, 0.0
        %v1105 = vmax.f32 %v923, 0.0
        %v1106 = vmax.f32 %v926, 0.0
        %v1107 = vmax.f32 %v931, 0.0
        %v1108 = vmax.f32 %v934, 0.0
        %v1109 = vmax.f32 %v939, 0.0
        %v1110 = vmax.f32 %v942, 0.0
        %v1111 = vmax.f32 %v947, 0.0
        %v1112 = vmax.f32 %v950, 0.0
        %v1113 = vmax.f32 %v955, 0.0
        %v1114 = vmax.f32 %v958, 0.0
        %v1115 = vmax.f32 %v963, 0.0
        %v1116 = vmax.f32 %v966, 0.0
        %v1117 = vmax.f32 %v971, 0.0
        %v1118 = vmax.f32 %v974, 0.0
        %v1119 = vmax.f32 %v979, 0.0
        %v1120 = vmax.f32 %v982, 0.0
        %v1121 = vmax.f32 %v987, 0.0
        %v1122 = vmax.f32 %v990, 0.0
        %v1123 = vmax.f32 %v995, 0.0
        %v1124 = vmax.f32 %v998, 0.0
        %v1125 = vmax.f32 %v1003, 0.0
        %v1126 = vmax.f32 %v1006, 0.0
        %v1127 = vmax.f32 %v1011, 0.0
        %v1128 = vmax.f32 %v1014, 0.0
        %v1129 = vmax.f32 %v1019, 0.0
        %v1130 = vmax.f32 %v1022, 0.0
        %v1131 = vmax.f32 %v1027, 0.0
        %v1132 = vmax.f32 %v1030, 0.0
        %v1133 = vmax.f32 %v1035, 0.0
        %v1134 = vmax.f32 %v1038, 0.0
        %v1135 = vmax.f32 %v1043, 0.0
        %v1136 = vmax.f32 %v1046, 0.0
        %v1137 = vmax.f32 %v1051, 0.0
        %v1138 = vmax.f32 %v1054, 0.0
        %v1139 = vmax.f32 %v1059, 0.0
        %v1140 = vmax.f32 %v1062, 0.0
        %v1141 = vmax.f32 %v1067, 0.0
        %v1142 = vmax.f32 %v1070, 0.0
        %v1143 = vmax.f32 %v1075, 0.0
        %v1144 = vmax.f32 %v1078, 0.0
        %v1145 = vld [vmem:[%s4] sm:$0x1]
        %v1147 = vlaneseq
        %v1148 = vshrl.u32 %v1147, 7
        %v1149 = vsub.s32 0, %v1148
        %v1150 = vrot.slane %v1145, %v1149
        %v1152 = vmul.f32 %v1081, %v1150
        %v1153 = vmul.f32 %v1082, %v1150
        %v1154 = vmul.f32 %v1083, %v1150
        %v1155 = vmul.f32 %v1084, %v1150
        %v1156 = vmul.f32 %v1085, %v1150
        %v1157 = vmul.f32 %v1086, %v1150
        %v1158 = vmul.f32 %v1087, %v1150
        %v1159 = vmul.f32 %v1088, %v1150
        %v1160 = vmul.f32 %v1089, %v1150
        %v1161 = vmul.f32 %v1090, %v1150
        %v1162 = vmul.f32 %v1091, %v1150
        %v1163 = vmul.f32 %v1092, %v1150
        %v1164 = vmul.f32 %v1093, %v1150
        %v1165 = vmul.f32 %v1094, %v1150
        %v1166 = vmul.f32 %v1095, %v1150
        %v1167 = vmul.f32 %v1096, %v1150
        %v1168 = vmul.f32 %v1097, %v1150
        %v1169 = vmul.f32 %v1098, %v1150
        %v1170 = vmul.f32 %v1099, %v1150
        %v1171 = vmul.f32 %v1100, %v1150
        %v1172 = vmul.f32 %v1101, %v1150
        %v1173 = vmul.f32 %v1102, %v1150
        %v1174 = vmul.f32 %v1103, %v1150
        %v1175 = vmul.f32 %v1104, %v1150
        %v1176 = vmul.f32 %v1105, %v1150
        %v1177 = vmul.f32 %v1106, %v1150
        %v1178 = vmul.f32 %v1107, %v1150
        %v1179 = vmul.f32 %v1108, %v1150
        %v1180 = vmul.f32 %v1109, %v1150
        %v1181 = vmul.f32 %v1110, %v1150
        %v1182 = vmul.f32 %v1111, %v1150
        %v1183 = vmul.f32 %v1112, %v1150
        %v1184 = vmul.f32 %v1113, %v1150
        %v1185 = vmul.f32 %v1114, %v1150
        %v1186 = vmul.f32 %v1115, %v1150
        %v1187 = vmul.f32 %v1116, %v1150
        %v1188 = vmul.f32 %v1117, %v1150
        %v1189 = vmul.f32 %v1118, %v1150
        %v1190 = vmul.f32 %v1119, %v1150
        %v1191 = vmul.f32 %v1120, %v1150
        %v1192 = vmul.f32 %v1121, %v1150
        %v1193 = vmul.f32 %v1122, %v1150
        %v1194 = vmul.f32 %v1123, %v1150
        %v1195 = vmul.f32 %v1124, %v1150
        %v1196 = vmul.f32 %v1125, %v1150
        %v1197 = vmul.f32 %v1126, %v1150
        %v1198 = vmul.f32 %v1127, %v1150
        %v1199 = vmul.f32 %v1128, %v1150
        %v1200 = vmul.f32 %v1129, %v1150
        %v1201 = vmul.f32 %v1130, %v1150
        %v1202 = vmul.f32 %v1131, %v1150
        %v1203 = vmul.f32 %v1132, %v1150
        %v1204 = vmul.f32 %v1133, %v1150
        %v1205 = vmul.f32 %v1134, %v1150
        %v1206 = vmul.f32 %v1135, %v1150
        %v1207 = vmul.f32 %v1136, %v1150
        %v1208 = vmul.f32 %v1137, %v1150
        %v1209 = vmul.f32 %v1138, %v1150
        %v1210 = vmul.f32 %v1139, %v1150
        %v1211 = vmul.f32 %v1140, %v1150
        %v1212 = vmul.f32 %v1141, %v1150
        %v1213 = vmul.f32 %v1142, %v1150
        %v1214 = vmul.f32 %v1143, %v1150
        %v1215 = vmul.f32 %v1144, %v1150
        %v1216 = vsel %vm695, %v1152, 0.0
        %1217 = vadd.xlane.f32.xlu0 %v1216
        %v1218 = vpop.xlane.xlu0 %1217
        %v1219 = vsel %vm695, %v1153, 0.0
        %1220 = vadd.xlane.f32.xlu0 %v1219
        %v1221 = vpop.xlane.xlu0 %1220
        %v1222 = vsel %vm695, %v1154, 0.0
        %1223 = vadd.xlane.f32.xlu0 %v1222
        %v1224 = vpop.xlane.xlu0 %1223
        %v1225 = vsel %vm695, %v1155, 0.0
        %1226 = vadd.xlane.f32.xlu0 %v1225
        %v1227 = vpop.xlane.xlu0 %1226
        %v1228 = vsel %vm695, %v1156, 0.0
        %1229 = vadd.xlane.f32.xlu0 %v1228
        %v1230 = vpop.xlane.xlu0 %1229
        %v1231 = vsel %vm695, %v1157, 0.0
        %1232 = vadd.xlane.f32.xlu0 %v1231
        %v1233 = vpop.xlane.xlu0 %1232
        %v1234 = vsel %vm695, %v1158, 0.0
        %1235 = vadd.xlane.f32.xlu0 %v1234
        %v1236 = vpop.xlane.xlu0 %1235
        %v1237 = vsel %vm695, %v1159, 0.0
        %1238 = vadd.xlane.f32.xlu0 %v1237
        %v1239 = vpop.xlane.xlu0 %1238
        %v1240 = vsel %vm695, %v1160, 0.0
        %1241 = vadd.xlane.f32.xlu0 %v1240
        %v1242 = vpop.xlane.xlu0 %1241
        %v1243 = vsel %vm695, %v1161, 0.0
        %1244 = vadd.xlane.f32.xlu0 %v1243
        %v1245 = vpop.xlane.xlu0 %1244
        %v1246 = vsel %vm695, %v1162, 0.0
        %1247 = vadd.xlane.f32.xlu0 %v1246
        %v1248 = vpop.xlane.xlu0 %1247
        %v1249 = vsel %vm695, %v1163, 0.0
        %1250 = vadd.xlane.f32.xlu0 %v1249
        %v1251 = vpop.xlane.xlu0 %1250
        %v1252 = vsel %vm695, %v1164, 0.0
        %1253 = vadd.xlane.f32.xlu0 %v1252
        %v1254 = vpop.xlane.xlu0 %1253
        %v1255 = vsel %vm695, %v1165, 0.0
        %1256 = vadd.xlane.f32.xlu0 %v1255
        %v1257 = vpop.xlane.xlu0 %1256
        %v1258 = vsel %vm695, %v1166, 0.0
        %1259 = vadd.xlane.f32.xlu0 %v1258
        %v1260 = vpop.xlane.xlu0 %1259
        %v1261 = vsel %vm695, %v1167, 0.0
        %1262 = vadd.xlane.f32.xlu0 %v1261
        %v1263 = vpop.xlane.xlu0 %1262
        %v1264 = vsel %vm695, %v1168, 0.0
        %1265 = vadd.xlane.f32.xlu0 %v1264
        %v1266 = vpop.xlane.xlu0 %1265
        %v1267 = vsel %vm695, %v1169, 0.0
        %1268 = vadd.xlane.f32.xlu0 %v1267
        %v1269 = vpop.xlane.xlu0 %1268
        %v1270 = vsel %vm695, %v1170, 0.0
        %1271 = vadd.xlane.f32.xlu0 %v1270
        %v1272 = vpop.xlane.xlu0 %1271
        %v1273 = vsel %vm695, %v1171, 0.0
        %1274 = vadd.xlane.f32.xlu0 %v1273
        %v1275 = vpop.xlane.xlu0 %1274
        %v1276 = vsel %vm695, %v1172, 0.0
        %1277 = vadd.xlane.f32.xlu0 %v1276
        %v1278 = vpop.xlane.xlu0 %1277
        %v1279 = vsel %vm695, %v1173, 0.0
        %1280 = vadd.xlane.f32.xlu0 %v1279
        %v1281 = vpop.xlane.xlu0 %1280
        %v1282 = vsel %vm695, %v1174, 0.0
        %1283 = vadd.xlane.f32.xlu0 %v1282
        %v1284 = vpop.xlane.xlu0 %1283
        %v1285 = vsel %vm695, %v1175, 0.0
        %1286 = vadd.xlane.f32.xlu0 %v1285
        %v1287 = vpop.xlane.xlu0 %1286
        %v1288 = vsel %vm695, %v1176, 0.0
        %1289 = vadd.xlane.f32.xlu0 %v1288
        %v1290 = vpop.xlane.xlu0 %1289
        %v1291 = vsel %vm695, %v1177, 0.0
        %1292 = vadd.xlane.f32.xlu0 %v1291
        %v1293 = vpop.xlane.xlu0 %1292
        %v1294 = vsel %vm695, %v1178, 0.0
        %1295 = vadd.xlane.f32.xlu0 %v1294
        %v1296 = vpop.xlane.xlu0 %1295
        %v1297 = vsel %vm695, %v1179, 0.0
        %1298 = vadd.xlane.f32.xlu0 %v1297
        %v1299 = vpop.xlane.xlu0 %1298
        %v1300 = vsel %vm695, %v1180, 0.0
        %1301 = vadd.xlane.f32.xlu0 %v1300
        %v1302 = vpop.xlane.xlu0 %1301
        %v1303 = vsel %vm695, %v1181, 0.0
        %1304 = vadd.xlane.f32.xlu0 %v1303
        %v1305 = vpop.xlane.xlu0 %1304
        %v1306 = vsel %vm695, %v1182, 0.0
        %1307 = vadd.xlane.f32.xlu0 %v1306
        %v1308 = vpop.xlane.xlu0 %1307
        %v1309 = vsel %vm695, %v1183, 0.0
        %1310 = vadd.xlane.f32.xlu0 %v1309
        %v1311 = vpop.xlane.xlu0 %1310
        %v1312 = vsel %vm695, %v1184, 0.0
        %1313 = vadd.xlane.f32.xlu0 %v1312
        %v1314 = vpop.xlane.xlu0 %1313
        %v1315 = vsel %vm695, %v1185, 0.0
        %1316 = vadd.xlane.f32.xlu0 %v1315
        %v1317 = vpop.xlane.xlu0 %1316
        %v1318 = vsel %vm695, %v1186, 0.0
        %1319 = vadd.xlane.f32.xlu0 %v1318
        %v1320 = vpop.xlane.xlu0 %1319
        %v1321 = vsel %vm695, %v1187, 0.0
        %1322 = vadd.xlane.f32.xlu0 %v1321
        %v1323 = vpop.xlane.xlu0 %1322
        %v1324 = vsel %vm695, %v1188, 0.0
        %1325 = vadd.xlane.f32.xlu0 %v1324
        %v1326 = vpop.xlane.xlu0 %1325
        %v1327 = vsel %vm695, %v1189, 0.0
        %1328 = vadd.xlane.f32.xlu0 %v1327
        %v1329 = vpop.xlane.xlu0 %1328
        %v1330 = vsel %vm695, %v1190, 0.0
        %1331 = vadd.xlane.f32.xlu0 %v1330
        %v1332 = vpop.xlane.xlu0 %1331
        %v1333 = vsel %vm695, %v1191, 0.0
        %1334 = vadd.xlane.f32.xlu0 %v1333
        %v1335 = vpop.xlane.xlu0 %1334
        %v1336 = vsel %vm695, %v1192, 0.0
        %1337 = vadd.xlane.f32.xlu0 %v1336
        %v1338 = vpop.xlane.xlu0 %1337
        %v1339 = vsel %vm695, %v1193, 0.0
        %1340 = vadd.xlane.f32.xlu0 %v1339
        %v1341 = vpop.xlane.xlu0 %1340
        %v1342 = vsel %vm695, %v1194, 0.0
        %1343 = vadd.xlane.f32.xlu0 %v1342
        %v1344 = vpop.xlane.xlu0 %1343
        %v1345 = vsel %vm695, %v1195, 0.0
        %1346 = vadd.xlane.f32.xlu0 %v1345
        %v1347 = vpop.xlane.xlu0 %1346
        %v1348 = vsel %vm695, %v1196, 0.0
        %1349 = vadd.xlane.f32.xlu0 %v1348
        %v1350 = vpop.xlane.xlu0 %1349
        %v1351 = vsel %vm695, %v1197, 0.0
        %1352 = vadd.xlane.f32.xlu0 %v1351
        %v1353 = vpop.xlane.xlu0 %1352
        %v1354 = vsel %vm695, %v1198, 0.0
        %1355 = vadd.xlane.f32.xlu0 %v1354
        %v1356 = vpop.xlane.xlu0 %1355
        %v1357 = vsel %vm695, %v1199, 0.0
        %1358 = vadd.xlane.f32.xlu0 %v1357
        %v1359 = vpop.xlane.xlu0 %1358
        %v1360 = vsel %vm695, %v1200, 0.0
        %1361 = vadd.xlane.f32.xlu0 %v1360
        %v1362 = vpop.xlane.xlu0 %1361
        %v1363 = vsel %vm695, %v1201, 0.0
        %1364 = vadd.xlane.f32.xlu0 %v1363
        %v1365 = vpop.xlane.xlu0 %1364
        %v1366 = vsel %vm695, %v1202, 0.0
        %1367 = vadd.xlane.f32.xlu0 %v1366
        %v1368 = vpop.xlane.xlu0 %1367
        %v1369 = vsel %vm695, %v1203, 0.0
        %1370 = vadd.xlane.f32.xlu0 %v1369
        %v1371 = vpop.xlane.xlu0 %1370
        %v1372 = vsel %vm695, %v1204, 0.0
        %1373 = vadd.xlane.f32.xlu0 %v1372
        %v1374 = vpop.xlane.xlu0 %1373
        %v1375 = vsel %vm695, %v1205, 0.0
        %1376 = vadd.xlane.f32.xlu0 %v1375
        %v1377 = vpop.xlane.xlu0 %1376
        %v1378 = vsel %vm695, %v1206, 0.0
        %1379 = vadd.xlane.f32.xlu0 %v1378
        %v1380 = vpop.xlane.xlu0 %1379
        %v1381 = vsel %vm695, %v1207, 0.0
        %1382 = vadd.xlane.f32.xlu0 %v1381
        %v1383 = vpop.xlane.xlu0 %1382
        %v1384 = vsel %vm695, %v1208, 0.0
        %1385 = vadd.xlane.f32.xlu0 %v1384
        %v1386 = vpop.xlane.xlu0 %1385
        %v1387 = vsel %vm695, %v1209, 0.0
        %1388 = vadd.xlane.f32.xlu0 %v1387
        %v1389 = vpop.xlane.xlu0 %1388
        %v1390 = vsel %vm695, %v1210, 0.0
        %1391 = vadd.xlane.f32.xlu0 %v1390
        %v1392 = vpop.xlane.xlu0 %1391
        %v1393 = vsel %vm695, %v1211, 0.0
        %1394 = vadd.xlane.f32.xlu0 %v1393
        %v1395 = vpop.xlane.xlu0 %1394
        %v1396 = vsel %vm695, %v1212, 0.0
        %1397 = vadd.xlane.f32.xlu0 %v1396
        %v1398 = vpop.xlane.xlu0 %1397
        %v1399 = vsel %vm695, %v1213, 0.0
        %1400 = vadd.xlane.f32.xlu0 %v1399
        %v1401 = vpop.xlane.xlu0 %1400
        %v1402 = vsel %vm695, %v1214, 0.0
        %1403 = vadd.xlane.f32.xlu0 %v1402
        %v1404 = vpop.xlane.xlu0 %1403
        %v1405 = vsel %vm695, %v1215, 0.0
        %1406 = vadd.xlane.f32.xlu0 %v1405
        %v1407 = vpop.xlane.xlu0 %1406
        %v1408 = vrot.slane %v1218, 4
        %v1409 = vmax.f32 %v1218, %v1408
        %v1410 = vrot.slane %v1409, 2
        %v1411 = vmax.f32 %v1409, %v1410
        %v1412 = vrot.slane %v1411, 1
        %v1413 = vmax.f32 %v1411, %v1412
        %v1414 = vrot.slane %v1221, 4
        %v1415 = vmax.f32 %v1221, %v1414
        %v1416 = vrot.slane %v1415, 2
        %v1417 = vmax.f32 %v1415, %v1416
        %v1418 = vrot.slane %v1417, 1
        %v1419 = vmax.f32 %v1417, %v1418
        %v1420 = vrot.slane %v1224, 4
        %v1421 = vmax.f32 %v1224, %v1420
        %v1422 = vrot.slane %v1421, 2
        %v1423 = vmax.f32 %v1421, %v1422
        %v1424 = vrot.slane %v1423, 1
        %v1425 = vmax.f32 %v1423, %v1424
        %v1426 = vrot.slane %v1227, 4
        %v1427 = vmax.f32 %v1227, %v1426
        %v1428 = vrot.slane %v1427, 2
        %v1429 = vmax.f32 %v1427, %v1428
        %v1430 = vrot.slane %v1429, 1
        %v1431 = vmax.f32 %v1429, %v1430
        %v1432 = vrot.slane %v1230, 4
        %v1433 = vmax.f32 %v1230, %v1432
        %v1434 = vrot.slane %v1433, 2
        %v1435 = vmax.f32 %v1433, %v1434
        %v1436 = vrot.slane %v1435, 1
        %v1437 = vmax.f32 %v1435, %v1436
        %v1438 = vrot.slane %v1233, 4
        %v1439 = vmax.f32 %v1233, %v1438
        %v1440 = vrot.slane %v1439, 2
        %v1441 = vmax.f32 %v1439, %v1440
        %v1442 = vrot.slane %v1441, 1
        %v1443 = vmax.f32 %v1441, %v1442
        %v1444 = vrot.slane %v1236, 4
        %v1445 = vmax.f32 %v1236, %v1444
        %v1446 = vrot.slane %v1445, 2
        %v1447 = vmax.f32 %v1445, %v1446
        %v1448 = vrot.slane %v1447, 1
        %v1449 = vmax.f32 %v1447, %v1448
        %v1450 = vrot.slane %v1239, 4
        %v1451 = vmax.f32 %v1239, %v1450
        %v1452 = vrot.slane %v1451, 2
        %v1453 = vmax.f32 %v1451, %v1452
        %v1454 = vrot.slane %v1453, 1
        %v1455 = vmax.f32 %v1453, %v1454
        %v1456 = vrot.slane %v1242, 4
        %v1457 = vmax.f32 %v1242, %v1456
        %v1458 = vrot.slane %v1457, 2
        %v1459 = vmax.f32 %v1457, %v1458
        %v1460 = vrot.slane %v1459, 1
        %v1461 = vmax.f32 %v1459, %v1460
        %v1462 = vrot.slane %v1245, 4
        %v1463 = vmax.f32 %v1245, %v1462
        %v1464 = vrot.slane %v1463, 2
        %v1465 = vmax.f32 %v1463, %v1464
        %v1466 = vrot.slane %v1465, 1
        %v1467 = vmax.f32 %v1465, %v1466
        %v1468 = vrot.slane %v1248, 4
        %v1469 = vmax.f32 %v1248, %v1468
        %v1470 = vrot.slane %v1469, 2
        %v1471 = vmax.f32 %v1469, %v1470
        %v1472 = vrot.slane %v1471, 1
        %v1473 = vmax.f32 %v1471, %v1472
        %v1474 = vrot.slane %v1251, 4
        %v1475 = vmax.f32 %v1251, %v1474
        %v1476 = vrot.slane %v1475, 2
        %v1477 = vmax.f32 %v1475, %v1476
        %v1478 = vrot.slane %v1477, 1
        %v1479 = vmax.f32 %v1477, %v1478
        %v1480 = vrot.slane %v1254, 4
        %v1481 = vmax.f32 %v1254, %v1480
        %v1482 = vrot.slane %v1481, 2
        %v1483 = vmax.f32 %v1481, %v1482
        %v1484 = vrot.slane %v1483, 1
        %v1485 = vmax.f32 %v1483, %v1484
        %v1486 = vrot.slane %v1257, 4
        %v1487 = vmax.f32 %v1257, %v1486
        %v1488 = vrot.slane %v1487, 2
        %v1489 = vmax.f32 %v1487, %v1488
        %v1490 = vrot.slane %v1489, 1
        %v1491 = vmax.f32 %v1489, %v1490
        %v1492 = vrot.slane %v1260, 4
        %v1493 = vmax.f32 %v1260, %v1492
        %v1494 = vrot.slane %v1493, 2
        %v1495 = vmax.f32 %v1493, %v1494
        %v1496 = vrot.slane %v1495, 1
        %v1497 = vmax.f32 %v1495, %v1496
        %v1498 = vrot.slane %v1263, 4
        %v1499 = vmax.f32 %v1263, %v1498
        %v1500 = vrot.slane %v1499, 2
        %v1501 = vmax.f32 %v1499, %v1500
        %v1502 = vrot.slane %v1501, 1
        %v1503 = vmax.f32 %v1501, %v1502
        %v1504 = vrot.slane %v1266, 4
        %v1505 = vmax.f32 %v1266, %v1504
        %v1506 = vrot.slane %v1505, 2
        %v1507 = vmax.f32 %v1505, %v1506
        %v1508 = vrot.slane %v1507, 1
        %v1509 = vmax.f32 %v1507, %v1508
        %v1510 = vrot.slane %v1269, 4
        %v1511 = vmax.f32 %v1269, %v1510
        %v1512 = vrot.slane %v1511, 2
        %v1513 = vmax.f32 %v1511, %v1512
        %v1514 = vrot.slane %v1513, 1
        %v1515 = vmax.f32 %v1513, %v1514
        %v1516 = vrot.slane %v1272, 4
        %v1517 = vmax.f32 %v1272, %v1516
        %v1518 = vrot.slane %v1517, 2
        %v1519 = vmax.f32 %v1517, %v1518
        %v1520 = vrot.slane %v1519, 1
        %v1521 = vmax.f32 %v1519, %v1520
        %v1522 = vrot.slane %v1275, 4
        %v1523 = vmax.f32 %v1275, %v1522
        %v1524 = vrot.slane %v1523, 2
        %v1525 = vmax.f32 %v1523, %v1524
        %v1526 = vrot.slane %v1525, 1
        %v1527 = vmax.f32 %v1525, %v1526
        %v1528 = vrot.slane %v1278, 4
        %v1529 = vmax.f32 %v1278, %v1528
        %v1530 = vrot.slane %v1529, 2
        %v1531 = vmax.f32 %v1529, %v1530
        %v1532 = vrot.slane %v1531, 1
        %v1533 = vmax.f32 %v1531, %v1532
        %v1534 = vrot.slane %v1281, 4
        %v1535 = vmax.f32 %v1281, %v1534
        %v1536 = vrot.slane %v1535, 2
        %v1537 = vmax.f32 %v1535, %v1536
        %v1538 = vrot.slane %v1537, 1
        %v1539 = vmax.f32 %v1537, %v1538
        %v1540 = vrot.slane %v1284, 4
        %v1541 = vmax.f32 %v1284, %v1540
        %v1542 = vrot.slane %v1541, 2
        %v1543 = vmax.f32 %v1541, %v1542
        %v1544 = vrot.slane %v1543, 1
        %v1545 = vmax.f32 %v1543, %v1544
        %v1546 = vrot.slane %v1287, 4
        %v1547 = vmax.f32 %v1287, %v1546
        %v1548 = vrot.slane %v1547, 2
        %v1549 = vmax.f32 %v1547, %v1548
        %v1550 = vrot.slane %v1549, 1
        %v1551 = vmax.f32 %v1549, %v1550
        %v1552 = vrot.slane %v1290, 4
        %v1553 = vmax.f32 %v1290, %v1552
        %v1554 = vrot.slane %v1553, 2
        %v1555 = vmax.f32 %v1553, %v1554
        %v1556 = vrot.slane %v1555, 1
        %v1557 = vmax.f32 %v1555, %v1556
        %v1558 = vrot.slane %v1293, 4
        %v1559 = vmax.f32 %v1293, %v1558
        %v1560 = vrot.slane %v1559, 2
        %v1561 = vmax.f32 %v1559, %v1560
        %v1562 = vrot.slane %v1561, 1
        %v1563 = vmax.f32 %v1561, %v1562
        %v1564 = vrot.slane %v1296, 4
        %v1565 = vmax.f32 %v1296, %v1564
        %v1566 = vrot.slane %v1565, 2
        %v1567 = vmax.f32 %v1565, %v1566
        %v1568 = vrot.slane %v1567, 1
        %v1569 = vmax.f32 %v1567, %v1568
        %v1570 = vrot.slane %v1299, 4
        %v1571 = vmax.f32 %v1299, %v1570
        %v1572 = vrot.slane %v1571, 2
        %v1573 = vmax.f32 %v1571, %v1572
        %v1574 = vrot.slane %v1573, 1
        %v1575 = vmax.f32 %v1573, %v1574
        %v1576 = vrot.slane %v1302, 4
        %v1577 = vmax.f32 %v1302, %v1576
        %v1578 = vrot.slane %v1577, 2
        %v1579 = vmax.f32 %v1577, %v1578
        %v1580 = vrot.slane %v1579, 1
        %v1581 = vmax.f32 %v1579, %v1580
        %v1582 = vrot.slane %v1305, 4
        %v1583 = vmax.f32 %v1305, %v1582
        %v1584 = vrot.slane %v1583, 2
        %v1585 = vmax.f32 %v1583, %v1584
        %v1586 = vrot.slane %v1585, 1
        %v1587 = vmax.f32 %v1585, %v1586
        %v1588 = vrot.slane %v1308, 4
        %v1589 = vmax.f32 %v1308, %v1588
        %v1590 = vrot.slane %v1589, 2
        %v1591 = vmax.f32 %v1589, %v1590
        %v1592 = vrot.slane %v1591, 1
        %v1593 = vmax.f32 %v1591, %v1592
        %v1594 = vrot.slane %v1311, 4
        %v1595 = vmax.f32 %v1311, %v1594
        %v1596 = vrot.slane %v1595, 2
        %v1597 = vmax.f32 %v1595, %v1596
        %v1598 = vrot.slane %v1597, 1
        %v1599 = vmax.f32 %v1597, %v1598
        %v1600 = vrot.slane %v1314, 4
        %v1601 = vmax.f32 %v1314, %v1600
        %v1602 = vrot.slane %v1601, 2
        %v1603 = vmax.f32 %v1601, %v1602
        %v1604 = vrot.slane %v1603, 1
        %v1605 = vmax.f32 %v1603, %v1604
        %v1606 = vrot.slane %v1317, 4
        %v1607 = vmax.f32 %v1317, %v1606
        %v1608 = vrot.slane %v1607, 2
        %v1609 = vmax.f32 %v1607, %v1608
        %v1610 = vrot.slane %v1609, 1
        %v1611 = vmax.f32 %v1609, %v1610
        %v1612 = vrot.slane %v1320, 4
        %v1613 = vmax.f32 %v1320, %v1612
        %v1614 = vrot.slane %v1613, 2
        %v1615 = vmax.f32 %v1613, %v1614
        %v1616 = vrot.slane %v1615, 1
        %v1617 = vmax.f32 %v1615, %v1616
        %v1618 = vrot.slane %v1323, 4
        %v1619 = vmax.f32 %v1323, %v1618
        %v1620 = vrot.slane %v1619, 2
        %v1621 = vmax.f32 %v1619, %v1620
        %v1622 = vrot.slane %v1621, 1
        %v1623 = vmax.f32 %v1621, %v1622
        %v1624 = vrot.slane %v1326, 4
        %v1625 = vmax.f32 %v1326, %v1624
        %v1626 = vrot.slane %v1625, 2
        %v1627 = vmax.f32 %v1625, %v1626
        %v1628 = vrot.slane %v1627, 1
        %v1629 = vmax.f32 %v1627, %v1628
        %v1630 = vrot.slane %v1329, 4
        %v1631 = vmax.f32 %v1329, %v1630
        %v1632 = vrot.slane %v1631, 2
        %v1633 = vmax.f32 %v1631, %v1632
        %v1634 = vrot.slane %v1633, 1
        %v1635 = vmax.f32 %v1633, %v1634
        %v1636 = vrot.slane %v1332, 4
        %v1637 = vmax.f32 %v1332, %v1636
        %v1638 = vrot.slane %v1637, 2
        %v1639 = vmax.f32 %v1637, %v1638
        %v1640 = vrot.slane %v1639, 1
        %v1641 = vmax.f32 %v1639, %v1640
        %v1642 = vrot.slane %v1335, 4
        %v1643 = vmax.f32 %v1335, %v1642
        %v1644 = vrot.slane %v1643, 2
        %v1645 = vmax.f32 %v1643, %v1644
        %v1646 = vrot.slane %v1645, 1
        %v1647 = vmax.f32 %v1645, %v1646
        %v1648 = vrot.slane %v1338, 4
        %v1649 = vmax.f32 %v1338, %v1648
        %v1650 = vrot.slane %v1649, 2
        %v1651 = vmax.f32 %v1649, %v1650
        %v1652 = vrot.slane %v1651, 1
        %v1653 = vmax.f32 %v1651, %v1652
        %v1654 = vrot.slane %v1341, 4
        %v1655 = vmax.f32 %v1341, %v1654
        %v1656 = vrot.slane %v1655, 2
        %v1657 = vmax.f32 %v1655, %v1656
        %v1658 = vrot.slane %v1657, 1
        %v1659 = vmax.f32 %v1657, %v1658
        %v1660 = vrot.slane %v1344, 4
        %v1661 = vmax.f32 %v1344, %v1660
        %v1662 = vrot.slane %v1661, 2
        %v1663 = vmax.f32 %v1661, %v1662
        %v1664 = vrot.slane %v1663, 1
        %v1665 = vmax.f32 %v1663, %v1664
        %v1666 = vrot.slane %v1347, 4
        %v1667 = vmax.f32 %v1347, %v1666
        %v1668 = vrot.slane %v1667, 2
        %v1669 = vmax.f32 %v1667, %v1668
        %v1670 = vrot.slane %v1669, 1
        %v1671 = vmax.f32 %v1669, %v1670
        %v1672 = vrot.slane %v1350, 4
        %v1673 = vmax.f32 %v1350, %v1672
        %v1674 = vrot.slane %v1673, 2
        %v1675 = vmax.f32 %v1673, %v1674
        %v1676 = vrot.slane %v1675, 1
        %v1677 = vmax.f32 %v1675, %v1676
        %v1678 = vrot.slane %v1353, 4
        %v1679 = vmax.f32 %v1353, %v1678
        %v1680 = vrot.slane %v1679, 2
        %v1681 = vmax.f32 %v1679, %v1680
        %v1682 = vrot.slane %v1681, 1
        %v1683 = vmax.f32 %v1681, %v1682
        %v1684 = vrot.slane %v1356, 4
        %v1685 = vmax.f32 %v1356, %v1684
        %v1686 = vrot.slane %v1685, 2
        %v1687 = vmax.f32 %v1685, %v1686
        %v1688 = vrot.slane %v1687, 1
        %v1689 = vmax.f32 %v1687, %v1688
        %v1690 = vrot.slane %v1359, 4
        %v1691 = vmax.f32 %v1359, %v1690
        %v1692 = vrot.slane %v1691, 2
        %v1693 = vmax.f32 %v1691, %v1692
        %v1694 = vrot.slane %v1693, 1
        %v1695 = vmax.f32 %v1693, %v1694
        %v1696 = vrot.slane %v1362, 4
        %v1697 = vmax.f32 %v1362, %v1696
        %v1698 = vrot.slane %v1697, 2
        %v1699 = vmax.f32 %v1697, %v1698
        %v1700 = vrot.slane %v1699, 1
        %v1701 = vmax.f32 %v1699, %v1700
        %v1702 = vrot.slane %v1365, 4
        %v1703 = vmax.f32 %v1365, %v1702
        %v1704 = vrot.slane %v1703, 2
        %v1705 = vmax.f32 %v1703, %v1704
        %v1706 = vrot.slane %v1705, 1
        %v1707 = vmax.f32 %v1705, %v1706
        %v1708 = vrot.slane %v1368, 4
        %v1709 = vmax.f32 %v1368, %v1708
        %v1710 = vrot.slane %v1709, 2
        %v1711 = vmax.f32 %v1709, %v1710
        %v1712 = vrot.slane %v1711, 1
        %v1713 = vmax.f32 %v1711, %v1712
        %v1714 = vrot.slane %v1371, 4
        %v1715 = vmax.f32 %v1371, %v1714
        %v1716 = vrot.slane %v1715, 2
        %v1717 = vmax.f32 %v1715, %v1716
        %v1718 = vrot.slane %v1717, 1
        %v1719 = vmax.f32 %v1717, %v1718
        %v1720 = vrot.slane %v1374, 4
        %v1721 = vmax.f32 %v1374, %v1720
        %v1722 = vrot.slane %v1721, 2
        %v1723 = vmax.f32 %v1721, %v1722
        %v1724 = vrot.slane %v1723, 1
        %v1725 = vmax.f32 %v1723, %v1724
        %v1726 = vrot.slane %v1377, 4
        %v1727 = vmax.f32 %v1377, %v1726
        %v1728 = vrot.slane %v1727, 2
        %v1729 = vmax.f32 %v1727, %v1728
        %v1730 = vrot.slane %v1729, 1
        %v1731 = vmax.f32 %v1729, %v1730
        %v1732 = vrot.slane %v1380, 4
        %v1733 = vmax.f32 %v1380, %v1732
        %v1734 = vrot.slane %v1733, 2
        %v1735 = vmax.f32 %v1733, %v1734
        %v1736 = vrot.slane %v1735, 1
        %v1737 = vmax.f32 %v1735, %v1736
        %v1738 = vrot.slane %v1383, 4
        %v1739 = vmax.f32 %v1383, %v1738
        %v1740 = vrot.slane %v1739, 2
        %v1741 = vmax.f32 %v1739, %v1740
        %v1742 = vrot.slane %v1741, 1
        %v1743 = vmax.f32 %v1741, %v1742
        %v1744 = vrot.slane %v1386, 4
        %v1745 = vmax.f32 %v1386, %v1744
        %v1746 = vrot.slane %v1745, 2
        %v1747 = vmax.f32 %v1745, %v1746
        %v1748 = vrot.slane %v1747, 1
        %v1749 = vmax.f32 %v1747, %v1748
        %v1750 = vrot.slane %v1389, 4
        %v1751 = vmax.f32 %v1389, %v1750
        %v1752 = vrot.slane %v1751, 2
        %v1753 = vmax.f32 %v1751, %v1752
        %v1754 = vrot.slane %v1753, 1
        %v1755 = vmax.f32 %v1753, %v1754
        %v1756 = vrot.slane %v1392, 4
        %v1757 = vmax.f32 %v1392, %v1756
        %v1758 = vrot.slane %v1757, 2
        %v1759 = vmax.f32 %v1757, %v1758
        %v1760 = vrot.slane %v1759, 1
        %v1761 = vmax.f32 %v1759, %v1760
        %v1762 = vrot.slane %v1395, 4
        %v1763 = vmax.f32 %v1395, %v1762
        %v1764 = vrot.slane %v1763, 2
        %v1765 = vmax.f32 %v1763, %v1764
        %v1766 = vrot.slane %v1765, 1
        %v1767 = vmax.f32 %v1765, %v1766
        %v1768 = vrot.slane %v1398, 4
        %v1769 = vmax.f32 %v1398, %v1768
        %v1770 = vrot.slane %v1769, 2
        %v1771 = vmax.f32 %v1769, %v1770
        %v1772 = vrot.slane %v1771, 1
        %v1773 = vmax.f32 %v1771, %v1772
        %v1774 = vrot.slane %v1401, 4
        %v1775 = vmax.f32 %v1401, %v1774
        %v1776 = vrot.slane %v1775, 2
        %v1777 = vmax.f32 %v1775, %v1776
        %v1778 = vrot.slane %v1777, 1
        %v1779 = vmax.f32 %v1777, %v1778
        %v1780 = vrot.slane %v1404, 4
        %v1781 = vmax.f32 %v1404, %v1780
        %v1782 = vrot.slane %v1781, 2
        %v1783 = vmax.f32 %v1781, %v1782
        %v1784 = vrot.slane %v1783, 1
        %v1785 = vmax.f32 %v1783, %v1784
        %v1786 = vrot.slane %v1407, 4
        %v1787 = vmax.f32 %v1407, %v1786
        %v1788 = vrot.slane %v1787, 2
        %v1789 = vmax.f32 %v1787, %v1788
        %v1790 = vrot.slane %v1789, 1
        %v1791 = vmax.f32 %v1789, %v1790
        %v1792 = vsub.f32 %v1218, %v1413
        %v1793 = vsub.f32 %v1221, %v1419
        %v1794 = vsub.f32 %v1224, %v1425
        %v1795 = vsub.f32 %v1227, %v1431
        %v1796 = vsub.f32 %v1230, %v1437
        %v1797 = vsub.f32 %v1233, %v1443
        %v1798 = vsub.f32 %v1236, %v1449
        %v1799 = vsub.f32 %v1239, %v1455
        %v1800 = vsub.f32 %v1242, %v1461
        %v1801 = vsub.f32 %v1245, %v1467
        %v1802 = vsub.f32 %v1248, %v1473
        %v1803 = vsub.f32 %v1251, %v1479
        %v1804 = vsub.f32 %v1254, %v1485
        %v1805 = vsub.f32 %v1257, %v1491
        %v1806 = vsub.f32 %v1260, %v1497
        %v1807 = vsub.f32 %v1263, %v1503
        %v1808 = vsub.f32 %v1266, %v1509
        %v1809 = vsub.f32 %v1269, %v1515
        %v1810 = vsub.f32 %v1272, %v1521
        %v1811 = vsub.f32 %v1275, %v1527
        %v1812 = vsub.f32 %v1278, %v1533
        %v1813 = vsub.f32 %v1281, %v1539
        %v1814 = vsub.f32 %v1284, %v1545
        %v1815 = vsub.f32 %v1287, %v1551
        %v1816 = vsub.f32 %v1290, %v1557
        %v1817 = vsub.f32 %v1293, %v1563
        %v1818 = vsub.f32 %v1296, %v1569
        %v1819 = vsub.f32 %v1299, %v1575
        %v1820 = vsub.f32 %v1302, %v1581
        %v1821 = vsub.f32 %v1305, %v1587
        %v1822 = vsub.f32 %v1308, %v1593
        %v1823 = vsub.f32 %v1311, %v1599
        %v1824 = vsub.f32 %v1314, %v1605
        %v1825 = vsub.f32 %v1317, %v1611
        %v1826 = vsub.f32 %v1320, %v1617
        %v1827 = vsub.f32 %v1323, %v1623
        %v1828 = vsub.f32 %v1326, %v1629
        %v1829 = vsub.f32 %v1329, %v1635
        %v1830 = vsub.f32 %v1332, %v1641
        %v1831 = vsub.f32 %v1335, %v1647
        %v1832 = vsub.f32 %v1338, %v1653
        %v1833 = vsub.f32 %v1341, %v1659
        %v1834 = vsub.f32 %v1344, %v1665
        %v1835 = vsub.f32 %v1347, %v1671
        %v1836 = vsub.f32 %v1350, %v1677
        %v1837 = vsub.f32 %v1353, %v1683
        %v1838 = vsub.f32 %v1356, %v1689
        %v1839 = vsub.f32 %v1359, %v1695
        %v1840 = vsub.f32 %v1362, %v1701
        %v1841 = vsub.f32 %v1365, %v1707
        %v1842 = vsub.f32 %v1368, %v1713
        %v1843 = vsub.f32 %v1371, %v1719
        %v1844 = vsub.f32 %v1374, %v1725
        %v1845 = vsub.f32 %v1377, %v1731
        %v1846 = vsub.f32 %v1380, %v1737
        %v1847 = vsub.f32 %v1383, %v1743
        %v1848 = vsub.f32 %v1386, %v1749
        %v1849 = vsub.f32 %v1389, %v1755
        %v1850 = vsub.f32 %v1392, %v1761
        %v1851 = vsub.f32 %v1395, %v1767
        %v1852 = vsub.f32 %v1398, %v1773
        %v1853 = vsub.f32 %v1401, %v1779
        %v1854 = vsub.f32 %v1404, %v1785
        %v1855 = vsub.f32 %v1407, %v1791
        %v1856 = vmul.f32 %v1792, 1.442695
        %v1857 = vpow.pop %v1856
        %v1858 = vmul.f32 %v1793, 1.442695
        %v1859 = vpow.pop %v1858
        %v1860 = vmul.f32 %v1794, 1.442695
        %v1861 = vpow.pop %v1860
        %v1862 = vmul.f32 %v1795, 1.442695
        %v1863 = vpow.pop %v1862
        %v1864 = vmul.f32 %v1796, 1.442695
        %v1865 = vpow.pop %v1864
        %v1866 = vmul.f32 %v1797, 1.442695
        %v1867 = vpow.pop %v1866
        %v1868 = vmul.f32 %v1798, 1.442695
        %v1869 = vpow.pop %v1868
        %v1870 = vmul.f32 %v1799, 1.442695
        %v1871 = vpow.pop %v1870
        %v1872 = vmul.f32 %v1800, 1.442695
        %v1873 = vpow.pop %v1872
        %v1874 = vmul.f32 %v1801, 1.442695
        %v1875 = vpow.pop %v1874
        %v1876 = vmul.f32 %v1802, 1.442695
        %v1877 = vpow.pop %v1876
        %v1878 = vmul.f32 %v1803, 1.442695
        %v1879 = vpow.pop %v1878
        %v1880 = vmul.f32 %v1804, 1.442695
        %v1881 = vpow.pop %v1880
        %v1882 = vmul.f32 %v1805, 1.442695
        %v1883 = vpow.pop %v1882
        %v1884 = vmul.f32 %v1806, 1.442695
        %v1885 = vpow.pop %v1884
        %v1886 = vmul.f32 %v1807, 1.442695
        %v1887 = vpow.pop %v1886
        %v1888 = vmul.f32 %v1808, 1.442695
        %v1889 = vpow.pop %v1888
        %v1890 = vmul.f32 %v1809, 1.442695
        %v1891 = vpow.pop %v1890
        %v1892 = vmul.f32 %v1810, 1.442695
        %v1893 = vpow.pop %v1892
        %v1894 = vmul.f32 %v1811, 1.442695
        %v1895 = vpow.pop %v1894
        %v1896 = vmul.f32 %v1812, 1.442695
        %v1897 = vpow.pop %v1896
        %v1898 = vmul.f32 %v1813, 1.442695
        %v1899 = vpow.pop %v1898
        %v1900 = vmul.f32 %v1814, 1.442695
        %v1901 = vpow.pop %v1900
        %v1902 = vmul.f32 %v1815, 1.442695
        %v1903 = vpow.pop %v1902
        %v1904 = vmul.f32 %v1816, 1.442695
        %v1905 = vpow.pop %v1904
        %v1906 = vmul.f32 %v1817, 1.442695
        %v1907 = vpow.pop %v1906
        %v1908 = vmul.f32 %v1818, 1.442695
        %v1909 = vpow.pop %v1908
        %v1910 = vmul.f32 %v1819, 1.442695
        %v1911 = vpow.pop %v1910
        %v1912 = vmul.f32 %v1820, 1.442695
        %v1913 = vpow.pop %v1912
        %v1914 = vmul.f32 %v1821, 1.442695
        %v1915 = vpow.pop %v1914
        %v1916 = vmul.f32 %v1822, 1.442695
        %v1917 = vpow.pop %v1916
        %v1918 = vmul.f32 %v1823, 1.442695
        %v1919 = vpow.pop %v1918
        %v1920 = vmul.f32 %v1824, 1.442695
        %v1921 = vpow.pop %v1920
        %v1922 = vmul.f32 %v1825, 1.442695
        %v1923 = vpow.pop %v1922
        %v1924 = vmul.f32 %v1826, 1.442695
        %v1925 = vpow.pop %v1924
        %v1926 = vmul.f32 %v1827, 1.442695
        %v1927 = vpow.pop %v1926
        %v1928 = vmul.f32 %v1828, 1.442695
        %v1929 = vpow.pop %v1928
        %v1930 = vmul.f32 %v1829, 1.442695
        %v1931 = vpow.pop %v1930
        %v1932 = vmul.f32 %v1830, 1.442695
        %v1933 = vpow.pop %v1932
        %v1934 = vmul.f32 %v1831, 1.442695
        %v1935 = vpow.pop %v1934
        %v1936 = vmul.f32 %v1832, 1.442695
        %v1937 = vpow.pop %v1936
        %v1938 = vmul.f32 %v1833, 1.442695
        %v1939 = vpow.pop %v1938
        %v1940 = vmul.f32 %v1834, 1.442695
        %v1941 = vpow.pop %v1940
        %v1942 = vmul.f32 %v1835, 1.442695
        %v1943 = vpow.pop %v1942
        %v1944 = vmul.f32 %v1836, 1.442695
        %v1945 = vpow.pop %v1944
        %v1946 = vmul.f32 %v1837, 1.442695
        %v1947 = vpow.pop %v1946
        %v1948 = vmul.f32 %v1838, 1.442695
        %v1949 = vpow.pop %v1948
        %v1950 = vmul.f32 %v1839, 1.442695
        %v1951 = vpow.pop %v1950
        %v1952 = vmul.f32 %v1840, 1.442695
        %v1953 = vpow.pop %v1952
        %v1954 = vmul.f32 %v1841, 1.442695
        %v1955 = vpow.pop %v1954
        %v1956 = vmul.f32 %v1842, 1.442695
        %v1957 = vpow.pop %v1956
        %v1958 = vmul.f32 %v1843, 1.442695
        %v1959 = vpow.pop %v1958
        %v1960 = vmul.f32 %v1844, 1.442695
        %v1961 = vpow.pop %v1960
        %v1962 = vmul.f32 %v1845, 1.442695
        %v1963 = vpow.pop %v1962
        %v1964 = vmul.f32 %v1846, 1.442695
        %v1965 = vpow.pop %v1964
        %v1966 = vmul.f32 %v1847, 1.442695
        %v1967 = vpow.pop %v1966
        %v1968 = vmul.f32 %v1848, 1.442695
        %v1969 = vpow.pop %v1968
        %v1970 = vmul.f32 %v1849, 1.442695
        %v1971 = vpow.pop %v1970
        %v1972 = vmul.f32 %v1850, 1.442695
        %v1973 = vpow.pop %v1972
        %v1974 = vmul.f32 %v1851, 1.442695
        %v1975 = vpow.pop %v1974
        %v1976 = vmul.f32 %v1852, 1.442695
        %v1977 = vpow.pop %v1976
        %v1978 = vmul.f32 %v1853, 1.442695
        %v1979 = vpow.pop %v1978
        %v1980 = vmul.f32 %v1854, 1.442695
        %v1981 = vpow.pop %v1980
        %v1982 = vmul.f32 %v1855, 1.442695
        %v1983 = vpow.pop %v1982
        %v1984 = vrot.slane %v1857, 4
        %v1985 = vadd.f32 %v1857, %v1984
        %v1986 = vrot.slane %v1985, 2
        %v1987 = vadd.f32 %v1985, %v1986
        %v1988 = vrot.slane %v1987, 1
        %v1989 = vadd.f32 %v1987, %v1988
        %v1990 = vrot.slane %v1859, 4
        %v1991 = vadd.f32 %v1859, %v1990
        %v1992 = vrot.slane %v1991, 2
        %v1993 = vadd.f32 %v1991, %v1992
        %v1994 = vrot.slane %v1993, 1
        %v1995 = vadd.f32 %v1993, %v1994
        %v1996 = vrot.slane %v1861, 4
        %v1997 = vadd.f32 %v1861, %v1996
        %v1998 = vrot.slane %v1997, 2
        %v1999 = vadd.f32 %v1997, %v1998
        %v2000 = vrot.slane %v1999, 1
        %v2001 = vadd.f32 %v1999, %v2000
        %v2002 = vrot.slane %v1863, 4
        %v2003 = vadd.f32 %v1863, %v2002
        %v2004 = vrot.slane %v2003, 2
        %v2005 = vadd.f32 %v2003, %v2004
        %v2006 = vrot.slane %v2005, 1
        %v2007 = vadd.f32 %v2005, %v2006
        %v2008 = vrot.slane %v1865, 4
        %v2009 = vadd.f32 %v1865, %v2008
        %v2010 = vrot.slane %v2009, 2
        %v2011 = vadd.f32 %v2009, %v2010
        %v2012 = vrot.slane %v2011, 1
        %v2013 = vadd.f32 %v2011, %v2012
        %v2014 = vrot.slane %v1867, 4
        %v2015 = vadd.f32 %v1867, %v2014
        %v2016 = vrot.slane %v2015, 2
        %v2017 = vadd.f32 %v2015, %v2016
        %v2018 = vrot.slane %v2017, 1
        %v2019 = vadd.f32 %v2017, %v2018
        %v2020 = vrot.slane %v1869, 4
        %v2021 = vadd.f32 %v1869, %v2020
        %v2022 = vrot.slane %v2021, 2
        %v2023 = vadd.f32 %v2021, %v2022
        %v2024 = vrot.slane %v2023, 1
        %v2025 = vadd.f32 %v2023, %v2024
        %v2026 = vrot.slane %v1871, 4
        %v2027 = vadd.f32 %v1871, %v2026
        %v2028 = vrot.slane %v2027, 2
        %v2029 = vadd.f32 %v2027, %v2028
        %v2030 = vrot.slane %v2029, 1
        %v2031 = vadd.f32 %v2029, %v2030
        %v2032 = vrot.slane %v1873, 4
        %v2033 = vadd.f32 %v1873, %v2032
        %v2034 = vrot.slane %v2033, 2
        %v2035 = vadd.f32 %v2033, %v2034
        %v2036 = vrot.slane %v2035, 1
        %v2037 = vadd.f32 %v2035, %v2036
        %v2038 = vrot.slane %v1875, 4
        %v2039 = vadd.f32 %v1875, %v2038
        %v2040 = vrot.slane %v2039, 2
        %v2041 = vadd.f32 %v2039, %v2040
        %v2042 = vrot.slane %v2041, 1
        %v2043 = vadd.f32 %v2041, %v2042
        %v2044 = vrot.slane %v1877, 4
        %v2045 = vadd.f32 %v1877, %v2044
        %v2046 = vrot.slane %v2045, 2
        %v2047 = vadd.f32 %v2045, %v2046
        %v2048 = vrot.slane %v2047, 1
        %v2049 = vadd.f32 %v2047, %v2048
        %v2050 = vrot.slane %v1879, 4
        %v2051 = vadd.f32 %v1879, %v2050
        %v2052 = vrot.slane %v2051, 2
        %v2053 = vadd.f32 %v2051, %v2052
        %v2054 = vrot.slane %v2053, 1
        %v2055 = vadd.f32 %v2053, %v2054
        %v2056 = vrot.slane %v1881, 4
        %v2057 = vadd.f32 %v1881, %v2056
        %v2058 = vrot.slane %v2057, 2
        %v2059 = vadd.f32 %v2057, %v2058
        %v2060 = vrot.slane %v2059, 1
        %v2061 = vadd.f32 %v2059, %v2060
        %v2062 = vrot.slane %v1883, 4
        %v2063 = vadd.f32 %v1883, %v2062
        %v2064 = vrot.slane %v2063, 2
        %v2065 = vadd.f32 %v2063, %v2064
        %v2066 = vrot.slane %v2065, 1
        %v2067 = vadd.f32 %v2065, %v2066
        %v2068 = vrot.slane %v1885, 4
        %v2069 = vadd.f32 %v1885, %v2068
        %v2070 = vrot.slane %v2069, 2
        %v2071 = vadd.f32 %v2069, %v2070
        %v2072 = vrot.slane %v2071, 1
        %v2073 = vadd.f32 %v2071, %v2072
        %v2074 = vrot.slane %v1887, 4
        %v2075 = vadd.f32 %v1887, %v2074
        %v2076 = vrot.slane %v2075, 2
        %v2077 = vadd.f32 %v2075, %v2076
        %v2078 = vrot.slane %v2077, 1
        %v2079 = vadd.f32 %v2077, %v2078
        %v2080 = vrot.slane %v1889, 4
        %v2081 = vadd.f32 %v1889, %v2080
        %v2082 = vrot.slane %v2081, 2
        %v2083 = vadd.f32 %v2081, %v2082
        %v2084 = vrot.slane %v2083, 1
        %v2085 = vadd.f32 %v2083, %v2084
        %v2086 = vrot.slane %v1891, 4
        %v2087 = vadd.f32 %v1891, %v2086
        %v2088 = vrot.slane %v2087, 2
        %v2089 = vadd.f32 %v2087, %v2088
        %v2090 = vrot.slane %v2089, 1
        %v2091 = vadd.f32 %v2089, %v2090
        %v2092 = vrot.slane %v1893, 4
        %v2093 = vadd.f32 %v1893, %v2092
        %v2094 = vrot.slane %v2093, 2
        %v2095 = vadd.f32 %v2093, %v2094
        %v2096 = vrot.slane %v2095, 1
        %v2097 = vadd.f32 %v2095, %v2096
        %v2098 = vrot.slane %v1895, 4
        %v2099 = vadd.f32 %v1895, %v2098
        %v2100 = vrot.slane %v2099, 2
        %v2101 = vadd.f32 %v2099, %v2100
        %v2102 = vrot.slane %v2101, 1
        %v2103 = vadd.f32 %v2101, %v2102
        %v2104 = vrot.slane %v1897, 4
        %v2105 = vadd.f32 %v1897, %v2104
        %v2106 = vrot.slane %v2105, 2
        %v2107 = vadd.f32 %v2105, %v2106
        %v2108 = vrot.slane %v2107, 1
        %v2109 = vadd.f32 %v2107, %v2108
        %v2110 = vrot.slane %v1899, 4
        %v2111 = vadd.f32 %v1899, %v2110
        %v2112 = vrot.slane %v2111, 2
        %v2113 = vadd.f32 %v2111, %v2112
        %v2114 = vrot.slane %v2113, 1
        %v2115 = vadd.f32 %v2113, %v2114
        %v2116 = vrot.slane %v1901, 4
        %v2117 = vadd.f32 %v1901, %v2116
        %v2118 = vrot.slane %v2117, 2
        %v2119 = vadd.f32 %v2117, %v2118
        %v2120 = vrot.slane %v2119, 1
        %v2121 = vadd.f32 %v2119, %v2120
        %v2122 = vrot.slane %v1903, 4
        %v2123 = vadd.f32 %v1903, %v2122
        %v2124 = vrot.slane %v2123, 2
        %v2125 = vadd.f32 %v2123, %v2124
        %v2126 = vrot.slane %v2125, 1
        %v2127 = vadd.f32 %v2125, %v2126
        %v2128 = vrot.slane %v1905, 4
        %v2129 = vadd.f32 %v1905, %v2128
        %v2130 = vrot.slane %v2129, 2
        %v2131 = vadd.f32 %v2129, %v2130
        %v2132 = vrot.slane %v2131, 1
        %v2133 = vadd.f32 %v2131, %v2132
        %v2134 = vrot.slane %v1907, 4
        %v2135 = vadd.f32 %v1907, %v2134
        %v2136 = vrot.slane %v2135, 2
        %v2137 = vadd.f32 %v2135, %v2136
        %v2138 = vrot.slane %v2137, 1
        %v2139 = vadd.f32 %v2137, %v2138
        %v2140 = vrot.slane %v1909, 4
        %v2141 = vadd.f32 %v1909, %v2140
        %v2142 = vrot.slane %v2141, 2
        %v2143 = vadd.f32 %v2141, %v2142
        %v2144 = vrot.slane %v2143, 1
        %v2145 = vadd.f32 %v2143, %v2144
        %v2146 = vrot.slane %v1911, 4
        %v2147 = vadd.f32 %v1911, %v2146
        %v2148 = vrot.slane %v2147, 2
        %v2149 = vadd.f32 %v2147, %v2148
        %v2150 = vrot.slane %v2149, 1
        %v2151 = vadd.f32 %v2149, %v2150
        %v2152 = vrot.slane %v1913, 4
        %v2153 = vadd.f32 %v1913, %v2152
        %v2154 = vrot.slane %v2153, 2
        %v2155 = vadd.f32 %v2153, %v2154
        %v2156 = vrot.slane %v2155, 1
        %v2157 = vadd.f32 %v2155, %v2156
        %v2158 = vrot.slane %v1915, 4
        %v2159 = vadd.f32 %v1915, %v2158
        %v2160 = vrot.slane %v2159, 2
        %v2161 = vadd.f32 %v2159, %v2160
        %v2162 = vrot.slane %v2161, 1
        %v2163 = vadd.f32 %v2161, %v2162
        %v2164 = vrot.slane %v1917, 4
        %v2165 = vadd.f32 %v1917, %v2164
        %v2166 = vrot.slane %v2165, 2
        %v2167 = vadd.f32 %v2165, %v2166
        %v2168 = vrot.slane %v2167, 1
        %v2169 = vadd.f32 %v2167, %v2168
        %v2170 = vrot.slane %v1919, 4
        %v2171 = vadd.f32 %v1919, %v2170
        %v2172 = vrot.slane %v2171, 2
        %v2173 = vadd.f32 %v2171, %v2172
        %v2174 = vrot.slane %v2173, 1
        %v2175 = vadd.f32 %v2173, %v2174
        %v2176 = vrot.slane %v1921, 4
        %v2177 = vadd.f32 %v1921, %v2176
        %v2178 = vrot.slane %v2177, 2
        %v2179 = vadd.f32 %v2177, %v2178
        %v2180 = vrot.slane %v2179, 1
        %v2181 = vadd.f32 %v2179, %v2180
        %v2182 = vrot.slane %v1923, 4
        %v2183 = vadd.f32 %v1923, %v2182
        %v2184 = vrot.slane %v2183, 2
        %v2185 = vadd.f32 %v2183, %v2184
        %v2186 = vrot.slane %v2185, 1
        %v2187 = vadd.f32 %v2185, %v2186
        %v2188 = vrot.slane %v1925, 4
        %v2189 = vadd.f32 %v1925, %v2188
        %v2190 = vrot.slane %v2189, 2
        %v2191 = vadd.f32 %v2189, %v2190
        %v2192 = vrot.slane %v2191, 1
        %v2193 = vadd.f32 %v2191, %v2192
        %v2194 = vrot.slane %v1927, 4
        %v2195 = vadd.f32 %v1927, %v2194
        %v2196 = vrot.slane %v2195, 2
        %v2197 = vadd.f32 %v2195, %v2196
        %v2198 = vrot.slane %v2197, 1
        %v2199 = vadd.f32 %v2197, %v2198
        %v2200 = vrot.slane %v1929, 4
        %v2201 = vadd.f32 %v1929, %v2200
        %v2202 = vrot.slane %v2201, 2
        %v2203 = vadd.f32 %v2201, %v2202
        %v2204 = vrot.slane %v2203, 1
        %v2205 = vadd.f32 %v2203, %v2204
        %v2206 = vrot.slane %v1931, 4
        %v2207 = vadd.f32 %v1931, %v2206
        %v2208 = vrot.slane %v2207, 2
        %v2209 = vadd.f32 %v2207, %v2208
        %v2210 = vrot.slane %v2209, 1
        %v2211 = vadd.f32 %v2209, %v2210
        %v2212 = vrot.slane %v1933, 4
        %v2213 = vadd.f32 %v1933, %v2212
        %v2214 = vrot.slane %v2213, 2
        %v2215 = vadd.f32 %v2213, %v2214
        %v2216 = vrot.slane %v2215, 1
        %v2217 = vadd.f32 %v2215, %v2216
        %v2218 = vrot.slane %v1935, 4
        %v2219 = vadd.f32 %v1935, %v2218
        %v2220 = vrot.slane %v2219, 2
        %v2221 = vadd.f32 %v2219, %v2220
        %v2222 = vrot.slane %v2221, 1
        %v2223 = vadd.f32 %v2221, %v2222
        %v2224 = vrot.slane %v1937, 4
        %v2225 = vadd.f32 %v1937, %v2224
        %v2226 = vrot.slane %v2225, 2
        %v2227 = vadd.f32 %v2225, %v2226
        %v2228 = vrot.slane %v2227, 1
        %v2229 = vadd.f32 %v2227, %v2228
        %v2230 = vrot.slane %v1939, 4
        %v2231 = vadd.f32 %v1939, %v2230
        %v2232 = vrot.slane %v2231, 2
        %v2233 = vadd.f32 %v2231, %v2232
        %v2234 = vrot.slane %v2233, 1
        %v2235 = vadd.f32 %v2233, %v2234
        %v2236 = vrot.slane %v1941, 4
        %v2237 = vadd.f32 %v1941, %v2236
        %v2238 = vrot.slane %v2237, 2
        %v2239 = vadd.f32 %v2237, %v2238
        %v2240 = vrot.slane %v2239, 1
        %v2241 = vadd.f32 %v2239, %v2240
        %v2242 = vrot.slane %v1943, 4
        %v2243 = vadd.f32 %v1943, %v2242
        %v2244 = vrot.slane %v2243, 2
        %v2245 = vadd.f32 %v2243, %v2244
        %v2246 = vrot.slane %v2245, 1
        %v2247 = vadd.f32 %v2245, %v2246
        %v2248 = vrot.slane %v1945, 4
        %v2249 = vadd.f32 %v1945, %v2248
        %v2250 = vrot.slane %v2249, 2
        %v2251 = vadd.f32 %v2249, %v2250
        %v2252 = vrot.slane %v2251, 1
        %v2253 = vadd.f32 %v2251, %v2252
        %v2254 = vrot.slane %v1947, 4
        %v2255 = vadd.f32 %v1947, %v2254
        %v2256 = vrot.slane %v2255, 2
        %v2257 = vadd.f32 %v2255, %v2256
        %v2258 = vrot.slane %v2257, 1
        %v2259 = vadd.f32 %v2257, %v2258
        %v2260 = vrot.slane %v1949, 4
        %v2261 = vadd.f32 %v1949, %v2260
        %v2262 = vrot.slane %v2261, 2
        %v2263 = vadd.f32 %v2261, %v2262
        %v2264 = vrot.slane %v2263, 1
        %v2265 = vadd.f32 %v2263, %v2264
        %v2266 = vrot.slane %v1951, 4
        %v2267 = vadd.f32 %v1951, %v2266
        %v2268 = vrot.slane %v2267, 2
        %v2269 = vadd.f32 %v2267, %v2268
        %v2270 = vrot.slane %v2269, 1
        %v2271 = vadd.f32 %v2269, %v2270
        %v2272 = vrot.slane %v1953, 4
        %v2273 = vadd.f32 %v1953, %v2272
        %v2274 = vrot.slane %v2273, 2
        %v2275 = vadd.f32 %v2273, %v2274
        %v2276 = vrot.slane %v2275, 1
        %v2277 = vadd.f32 %v2275, %v2276
        %v2278 = vrot.slane %v1955, 4
        %v2279 = vadd.f32 %v1955, %v2278
        %v2280 = vrot.slane %v2279, 2
        %v2281 = vadd.f32 %v2279, %v2280
        %v2282 = vrot.slane %v2281, 1
        %v2283 = vadd.f32 %v2281, %v2282
        %v2284 = vrot.slane %v1957, 4
        %v2285 = vadd.f32 %v1957, %v2284
        %v2286 = vrot.slane %v2285, 2
        %v2287 = vadd.f32 %v2285, %v2286
        %v2288 = vrot.slane %v2287, 1
        %v2289 = vadd.f32 %v2287, %v2288
        %v2290 = vrot.slane %v1959, 4
        %v2291 = vadd.f32 %v1959, %v2290
        %v2292 = vrot.slane %v2291, 2
        %v2293 = vadd.f32 %v2291, %v2292
        %v2294 = vrot.slane %v2293, 1
        %v2295 = vadd.f32 %v2293, %v2294
        %v2296 = vrot.slane %v1961, 4
        %v2297 = vadd.f32 %v1961, %v2296
        %v2298 = vrot.slane %v2297, 2
        %v2299 = vadd.f32 %v2297, %v2298
        %v2300 = vrot.slane %v2299, 1
        %v2301 = vadd.f32 %v2299, %v2300
        %v2302 = vrot.slane %v1963, 4
        %v2303 = vadd.f32 %v1963, %v2302
        %v2304 = vrot.slane %v2303, 2
        %v2305 = vadd.f32 %v2303, %v2304
        %v2306 = vrot.slane %v2305, 1
        %v2307 = vadd.f32 %v2305, %v2306
        %v2308 = vrot.slane %v1965, 4
        %v2309 = vadd.f32 %v1965, %v2308
        %v2310 = vrot.slane %v2309, 2
        %v2311 = vadd.f32 %v2309, %v2310
        %v2312 = vrot.slane %v2311, 1
        %v2313 = vadd.f32 %v2311, %v2312
        %v2314 = vrot.slane %v1967, 4
        %v2315 = vadd.f32 %v1967, %v2314
        %v2316 = vrot.slane %v2315, 2
        %v2317 = vadd.f32 %v2315, %v2316
        %v2318 = vrot.slane %v2317, 1
        %v2319 = vadd.f32 %v2317, %v2318
        %v2320 = vrot.slane %v1969, 4
        %v2321 = vadd.f32 %v1969, %v2320
        %v2322 = vrot.slane %v2321, 2
        %v2323 = vadd.f32 %v2321, %v2322
        %v2324 = vrot.slane %v2323, 1
        %v2325 = vadd.f32 %v2323, %v2324
        %v2326 = vrot.slane %v1971, 4
        %v2327 = vadd.f32 %v1971, %v2326
        %v2328 = vrot.slane %v2327, 2
        %v2329 = vadd.f32 %v2327, %v2328
        %v2330 = vrot.slane %v2329, 1
        %v2331 = vadd.f32 %v2329, %v2330
        %v2332 = vrot.slane %v1973, 4
        %v2333 = vadd.f32 %v1973, %v2332
        %v2334 = vrot.slane %v2333, 2
        %v2335 = vadd.f32 %v2333, %v2334
        %v2336 = vrot.slane %v2335, 1
        %v2337 = vadd.f32 %v2335, %v2336
        %v2338 = vrot.slane %v1975, 4
        %v2339 = vadd.f32 %v1975, %v2338
        %v2340 = vrot.slane %v2339, 2
        %v2341 = vadd.f32 %v2339, %v2340
        %v2342 = vrot.slane %v2341, 1
        %v2343 = vadd.f32 %v2341, %v2342
        %v2344 = vrot.slane %v1977, 4
        %v2345 = vadd.f32 %v1977, %v2344
        %v2346 = vrot.slane %v2345, 2
        %v2347 = vadd.f32 %v2345, %v2346
        %v2348 = vrot.slane %v2347, 1
        %v2349 = vadd.f32 %v2347, %v2348
        %v2350 = vrot.slane %v1979, 4
        %v2351 = vadd.f32 %v1979, %v2350
        %v2352 = vrot.slane %v2351, 2
        %v2353 = vadd.f32 %v2351, %v2352
        %v2354 = vrot.slane %v2353, 1
        %v2355 = vadd.f32 %v2353, %v2354
        %v2356 = vrot.slane %v1981, 4
        %v2357 = vadd.f32 %v1981, %v2356
        %v2358 = vrot.slane %v2357, 2
        %v2359 = vadd.f32 %v2357, %v2358
        %v2360 = vrot.slane %v2359, 1
        %v2361 = vadd.f32 %v2359, %v2360
        %v2362 = vrot.slane %v1983, 4
        %v2363 = vadd.f32 %v1983, %v2362
        %v2364 = vrot.slane %v2363, 2
        %v2365 = vadd.f32 %v2363, %v2364
        %v2366 = vrot.slane %v2365, 1
        %v2367 = vadd.f32 %v2365, %v2366
        %v2368 = vrcp.pop %v1989
        %v2369 = vrcp.pop %v1995
        %v2370 = vrcp.pop %v2001
        %v2371 = vrcp.pop %v2007
        %v2372 = vrcp.pop %v2013
        %v2373 = vrcp.pop %v2019
        %v2374 = vrcp.pop %v2025
        %v2375 = vrcp.pop %v2031
        %v2376 = vrcp.pop %v2037
        %v2377 = vrcp.pop %v2043
        %v2378 = vrcp.pop %v2049
        %v2379 = vrcp.pop %v2055
        %v2380 = vrcp.pop %v2061
        %v2381 = vrcp.pop %v2067
        %v2382 = vrcp.pop %v2073
        %v2383 = vrcp.pop %v2079
        %v2384 = vrcp.pop %v2085
        %v2385 = vrcp.pop %v2091
        %v2386 = vrcp.pop %v2097
        %v2387 = vrcp.pop %v2103
        %v2388 = vrcp.pop %v2109
        %v2389 = vrcp.pop %v2115
        %v2390 = vrcp.pop %v2121
        %v2391 = vrcp.pop %v2127
        %v2392 = vrcp.pop %v2133
        %v2393 = vrcp.pop %v2139
        %v2394 = vrcp.pop %v2145
        %v2395 = vrcp.pop %v2151
        %v2396 = vrcp.pop %v2157
        %v2397 = vrcp.pop %v2163
        %v2398 = vrcp.pop %v2169
        %v2399 = vrcp.pop %v2175
        %v2400 = vrcp.pop %v2181
        %v2401 = vrcp.pop %v2187
        %v2402 = vrcp.pop %v2193
        %v2403 = vrcp.pop %v2199
        %v2404 = vrcp.pop %v2205
        %v2405 = vrcp.pop %v2211
        %v2406 = vrcp.pop %v2217
        %v2407 = vrcp.pop %v2223
        %v2408 = vrcp.pop %v2229
        %v2409 = vrcp.pop %v2235
        %v2410 = vrcp.pop %v2241
        %v2411 = vrcp.pop %v2247
        %v2412 = vrcp.pop %v2253
        %v2413 = vrcp.pop %v2259
        %v2414 = vrcp.pop %v2265
        %v2415 = vrcp.pop %v2271
        %v2416 = vrcp.pop %v2277
        %v2417 = vrcp.pop %v2283
        %v2418 = vrcp.pop %v2289
        %v2419 = vrcp.pop %v2295
        %v2420 = vrcp.pop %v2301
        %v2421 = vrcp.pop %v2307
        %v2422 = vrcp.pop %v2313
        %v2423 = vrcp.pop %v2319
        %v2424 = vrcp.pop %v2325
        %v2425 = vrcp.pop %v2331
        %v2426 = vrcp.pop %v2337
        %v2427 = vrcp.pop %v2343
        %v2428 = vrcp.pop %v2349
        %v2429 = vrcp.pop %v2355
        %v2430 = vrcp.pop %v2361
        %v2431 = vrcp.pop %v2367
        %v2432 = vmul.f32 %v384, %v1857
        %v2433 = vmul.f32 %v385, %v1859
        %v2434 = vmul.f32 %v386, %v1861
        %v2435 = vmul.f32 %v387, %v1863
        %v2436 = vmul.f32 %v388, %v1865
        %v2437 = vmul.f32 %v389, %v1867
        %v2438 = vmul.f32 %v390, %v1869
        %v2439 = vmul.f32 %v391, %v1871
        %v2440 = vmul.f32 %v392, %v1873
        %v2441 = vmul.f32 %v393, %v1875
        %v2442 = vmul.f32 %v394, %v1877
        %v2443 = vmul.f32 %v395, %v1879
        %v2444 = vmul.f32 %v396, %v1881
        %v2445 = vmul.f32 %v397, %v1883
        %v2446 = vmul.f32 %v398, %v1885
        %v2447 = vmul.f32 %v399, %v1887
        %v2448 = vmul.f32 %v400, %v1889
        %v2449 = vmul.f32 %v401, %v1891
        %v2450 = vmul.f32 %v402, %v1893
        %v2451 = vmul.f32 %v403, %v1895
        %v2452 = vmul.f32 %v404, %v1897
        %v2453 = vmul.f32 %v405, %v1899
        %v2454 = vmul.f32 %v406, %v1901
        %v2455 = vmul.f32 %v407, %v1903
        %v2456 = vmul.f32 %v408, %v1905
        %v2457 = vmul.f32 %v409, %v1907
        %v2458 = vmul.f32 %v410, %v1909
        %v2459 = vmul.f32 %v411, %v1911
        %v2460 = vmul.f32 %v412, %v1913
        %v2461 = vmul.f32 %v413, %v1915
        %v2462 = vmul.f32 %v414, %v1917
        %v2463 = vmul.f32 %v415, %v1919
        %v2464 = vsel %vm695, %v2432, 0.0
        %v2465 = vrot.slane %v2464, 4
        %v2466 = vadd.f32 %v2464, %v2465
        %v2467 = vrot.slane %v2466, 2
        %v2468 = vadd.f32 %v2466, %v2467
        %v2469 = vrot.slane %v2468, 1
        %v2470 = vadd.f32 %v2468, %v2469
        %v2471 = vsel %vm695, %v2433, 0.0
        %v2472 = vrot.slane %v2471, 4
        %v2473 = vadd.f32 %v2471, %v2472
        %v2474 = vrot.slane %v2473, 2
        %v2475 = vadd.f32 %v2473, %v2474
        %v2476 = vrot.slane %v2475, 1
        %v2477 = vadd.f32 %v2475, %v2476
        %v2478 = vsel %vm695, %v2434, 0.0
        %v2479 = vrot.slane %v2478, 4
        %v2480 = vadd.f32 %v2478, %v2479
        %v2481 = vrot.slane %v2480, 2
        %v2482 = vadd.f32 %v2480, %v2481
        %v2483 = vrot.slane %v2482, 1
        %v2484 = vadd.f32 %v2482, %v2483
        %v2485 = vsel %vm695, %v2435, 0.0
        %v2486 = vrot.slane %v2485, 4
        %v2487 = vadd.f32 %v2485, %v2486
        %v2488 = vrot.slane %v2487, 2
        %v2489 = vadd.f32 %v2487, %v2488
        %v2490 = vrot.slane %v2489, 1
        %v2491 = vadd.f32 %v2489, %v2490
        %v2492 = vsel %vm695, %v2436, 0.0
        %v2493 = vrot.slane %v2492, 4
        %v2494 = vadd.f32 %v2492, %v2493
        %v2495 = vrot.slane %v2494, 2
        %v2496 = vadd.f32 %v2494, %v2495
        %v2497 = vrot.slane %v2496, 1
        %v2498 = vadd.f32 %v2496, %v2497
        %v2499 = vsel %vm695, %v2437, 0.0
        %v2500 = vrot.slane %v2499, 4
        %v2501 = vadd.f32 %v2499, %v2500
        %v2502 = vrot.slane %v2501, 2
        %v2503 = vadd.f32 %v2501, %v2502
        %v2504 = vrot.slane %v2503, 1
        %v2505 = vadd.f32 %v2503, %v2504
        %v2506 = vsel %vm695, %v2438, 0.0
        %v2507 = vrot.slane %v2506, 4
        %v2508 = vadd.f32 %v2506, %v2507
        %v2509 = vrot.slane %v2508, 2
        %v2510 = vadd.f32 %v2508, %v2509
        %v2511 = vrot.slane %v2510, 1
        %v2512 = vadd.f32 %v2510, %v2511
        %v2513 = vsel %vm695, %v2439, 0.0
        %v2514 = vrot.slane %v2513, 4
        %v2515 = vadd.f32 %v2513, %v2514
        %v2516 = vrot.slane %v2515, 2
        %v2517 = vadd.f32 %v2515, %v2516
        %v2518 = vrot.slane %v2517, 1
        %v2519 = vadd.f32 %v2517, %v2518
        %v2520 = vsel %vm695, %v2440, 0.0
        %v2521 = vrot.slane %v2520, 4
        %v2522 = vadd.f32 %v2520, %v2521
        %v2523 = vrot.slane %v2522, 2
        %v2524 = vadd.f32 %v2522, %v2523
        %v2525 = vrot.slane %v2524, 1
        %v2526 = vadd.f32 %v2524, %v2525
        %v2527 = vsel %vm695, %v2441, 0.0
        %v2528 = vrot.slane %v2527, 4
        %v2529 = vadd.f32 %v2527, %v2528
        %v2530 = vrot.slane %v2529, 2
        %v2531 = vadd.f32 %v2529, %v2530
        %v2532 = vrot.slane %v2531, 1
        %v2533 = vadd.f32 %v2531, %v2532
        %v2534 = vsel %vm695, %v2442, 0.0
        %v2535 = vrot.slane %v2534, 4
        %v2536 = vadd.f32 %v2534, %v2535
        %v2537 = vrot.slane %v2536, 2
        %v2538 = vadd.f32 %v2536, %v2537
        %v2539 = vrot.slane %v2538, 1
        %v2540 = vadd.f32 %v2538, %v2539
        %v2541 = vsel %vm695, %v2443, 0.0
        %v2542 = vrot.slane %v2541, 4
        %v2543 = vadd.f32 %v2541, %v2542
        %v2544 = vrot.slane %v2543, 2
        %v2545 = vadd.f32 %v2543, %v2544
        %v2546 = vrot.slane %v2545, 1
        %v2547 = vadd.f32 %v2545, %v2546
        %v2548 = vsel %vm695, %v2444, 0.0
        %v2549 = vrot.slane %v2548, 4
        %v2550 = vadd.f32 %v2548, %v2549
        %v2551 = vrot.slane %v2550, 2
        %v2552 = vadd.f32 %v2550, %v2551
        %v2553 = vrot.slane %v2552, 1
        %v2554 = vadd.f32 %v2552, %v2553
        %v2555 = vsel %vm695, %v2445, 0.0
        %v2556 = vrot.slane %v2555, 4
        %v2557 = vadd.f32 %v2555, %v2556
        %v2558 = vrot.slane %v2557, 2
        %v2559 = vadd.f32 %v2557, %v2558
        %v2560 = vrot.slane %v2559, 1
        %v2561 = vadd.f32 %v2559, %v2560
        %v2562 = vsel %vm695, %v2446, 0.0
        %v2563 = vrot.slane %v2562, 4
        %v2564 = vadd.f32 %v2562, %v2563
        %v2565 = vrot.slane %v2564, 2
        %v2566 = vadd.f32 %v2564, %v2565
        %v2567 = vrot.slane %v2566, 1
        %v2568 = vadd.f32 %v2566, %v2567
        %v2569 = vsel %vm695, %v2447, 0.0
        %v2570 = vrot.slane %v2569, 4
        %v2571 = vadd.f32 %v2569, %v2570
        %v2572 = vrot.slane %v2571, 2
        %v2573 = vadd.f32 %v2571, %v2572
        %v2574 = vrot.slane %v2573, 1
        %v2575 = vadd.f32 %v2573, %v2574
        %v2576 = vsel %vm695, %v2448, 0.0
        %v2577 = vrot.slane %v2576, 4
        %v2578 = vadd.f32 %v2576, %v2577
        %v2579 = vrot.slane %v2578, 2
        %v2580 = vadd.f32 %v2578, %v2579
        %v2581 = vrot.slane %v2580, 1
        %v2582 = vadd.f32 %v2580, %v2581
        %v2583 = vsel %vm695, %v2449, 0.0
        %v2584 = vrot.slane %v2583, 4
        %v2585 = vadd.f32 %v2583, %v2584
        %v2586 = vrot.slane %v2585, 2
        %v2587 = vadd.f32 %v2585, %v2586
        %v2588 = vrot.slane %v2587, 1
        %v2589 = vadd.f32 %v2587, %v2588
        %v2590 = vsel %vm695, %v2450, 0.0
        %v2591 = vrot.slane %v2590, 4
        %v2592 = vadd.f32 %v2590, %v2591
        %v2593 = vrot.slane %v2592, 2
        %v2594 = vadd.f32 %v2592, %v2593
        %v2595 = vrot.slane %v2594, 1
        %v2596 = vadd.f32 %v2594, %v2595
        %v2597 = vsel %vm695, %v2451, 0.0
        %v2598 = vrot.slane %v2597, 4
        %v2599 = vadd.f32 %v2597, %v2598
        %v2600 = vrot.slane %v2599, 2
        %v2601 = vadd.f32 %v2599, %v2600
        %v2602 = vrot.slane %v2601, 1
        %v2603 = vadd.f32 %v2601, %v2602
        %v2604 = vsel %vm695, %v2452, 0.0
        %v2605 = vrot.slane %v2604, 4
        %v2606 = vadd.f32 %v2604, %v2605
        %v2607 = vrot.slane %v2606, 2
        %v2608 = vadd.f32 %v2606, %v2607
        %v2609 = vrot.slane %v2608, 1
        %v2610 = vadd.f32 %v2608, %v2609
        %v2611 = vsel %vm695, %v2453, 0.0
        %v2612 = vrot.slane %v2611, 4
        %v2613 = vadd.f32 %v2611, %v2612
        %v2614 = vrot.slane %v2613, 2
        %v2615 = vadd.f32 %v2613, %v2614
        %v2616 = vrot.slane %v2615, 1
        %v2617 = vadd.f32 %v2615, %v2616
        %v2618 = vsel %vm695, %v2454, 0.0
        %v2619 = vrot.slane %v2618, 4
        %v2620 = vadd.f32 %v2618, %v2619
        %v2621 = vrot.slane %v2620, 2
        %v2622 = vadd.f32 %v2620, %v2621
        %v2623 = vrot.slane %v2622, 1
        %v2624 = vadd.f32 %v2622, %v2623
        %v2625 = vsel %vm695, %v2455, 0.0
        %v2626 = vrot.slane %v2625, 4
        %v2627 = vadd.f32 %v2625, %v2626
        %v2628 = vrot.slane %v2627, 2
        %v2629 = vadd.f32 %v2627, %v2628
        %v2630 = vrot.slane %v2629, 1
        %v2631 = vadd.f32 %v2629, %v2630
        %v2632 = vsel %vm695, %v2456, 0.0
        %v2633 = vrot.slane %v2632, 4
        %v2634 = vadd.f32 %v2632, %v2633
        %v2635 = vrot.slane %v2634, 2
        %v2636 = vadd.f32 %v2634, %v2635
        %v2637 = vrot.slane %v2636, 1
        %v2638 = vadd.f32 %v2636, %v2637
        %v2639 = vsel %vm695, %v2457, 0.0
        %v2640 = vrot.slane %v2639, 4
        %v2641 = vadd.f32 %v2639, %v2640
        %v2642 = vrot.slane %v2641, 2
        %v2643 = vadd.f32 %v2641, %v2642
        %v2644 = vrot.slane %v2643, 1
        %v2645 = vadd.f32 %v2643, %v2644
        %v2646 = vsel %vm695, %v2458, 0.0
        %v2647 = vrot.slane %v2646, 4
        %v2648 = vadd.f32 %v2646, %v2647
        %v2649 = vrot.slane %v2648, 2
        %v2650 = vadd.f32 %v2648, %v2649
        %v2651 = vrot.slane %v2650, 1
        %v2652 = vadd.f32 %v2650, %v2651
        %v2653 = vsel %vm695, %v2459, 0.0
        %v2654 = vrot.slane %v2653, 4
        %v2655 = vadd.f32 %v2653, %v2654
        %v2656 = vrot.slane %v2655, 2
        %v2657 = vadd.f32 %v2655, %v2656
        %v2658 = vrot.slane %v2657, 1
        %v2659 = vadd.f32 %v2657, %v2658
        %v2660 = vsel %vm695, %v2460, 0.0
        %v2661 = vrot.slane %v2660, 4
        %v2662 = vadd.f32 %v2660, %v2661
        %v2663 = vrot.slane %v2662, 2
        %v2664 = vadd.f32 %v2662, %v2663
        %v2665 = vrot.slane %v2664, 1
        %v2666 = vadd.f32 %v2664, %v2665
        %v2667 = vsel %vm695, %v2461, 0.0
        %v2668 = vrot.slane %v2667, 4
        %v2669 = vadd.f32 %v2667, %v2668
        %v2670 = vrot.slane %v2669, 2
        %v2671 = vadd.f32 %v2669, %v2670
        %v2672 = vrot.slane %v2671, 1
        %v2673 = vadd.f32 %v2671, %v2672
        %v2674 = vsel %vm695, %v2462, 0.0
        %v2675 = vrot.slane %v2674, 4
        %v2676 = vadd.f32 %v2674, %v2675
        %v2677 = vrot.slane %v2676, 2
        %v2678 = vadd.f32 %v2676, %v2677
        %v2679 = vrot.slane %v2678, 1
        %v2680 = vadd.f32 %v2678, %v2679
        %v2681 = vsel %vm695, %v2463, 0.0
        %v2682 = vrot.slane %v2681, 4
        %v2683 = vadd.f32 %v2681, %v2682
        %v2684 = vrot.slane %v2683, 2
        %v2685 = vadd.f32 %v2683, %v2684
        %v2686 = vrot.slane %v2685, 1
        %v2687 = vadd.f32 %v2685, %v2686
        %v2688 = vmul.f32 %v2470, %v2368
        %v2689 = vmul.f32 %v2477, %v2369
        %v2690 = vmul.f32 %v2484, %v2370
        %v2691 = vmul.f32 %v2491, %v2371
        %v2692 = vmul.f32 %v2498, %v2372
        %v2693 = vmul.f32 %v2505, %v2373
        %v2694 = vmul.f32 %v2512, %v2374
        %v2695 = vmul.f32 %v2519, %v2375
        %v2696 = vmul.f32 %v2526, %v2376
        %v2697 = vmul.f32 %v2533, %v2377
        %v2698 = vmul.f32 %v2540, %v2378
        %v2699 = vmul.f32 %v2547, %v2379
        %v2700 = vmul.f32 %v2554, %v2380
        %v2701 = vmul.f32 %v2561, %v2381
        %v2702 = vmul.f32 %v2568, %v2382
        %v2703 = vmul.f32 %v2575, %v2383
        %v2704 = vmul.f32 %v2582, %v2384
        %v2705 = vmul.f32 %v2589, %v2385
        %v2706 = vmul.f32 %v2596, %v2386
        %v2707 = vmul.f32 %v2603, %v2387
        %v2708 = vmul.f32 %v2610, %v2388
        %v2709 = vmul.f32 %v2617, %v2389
        %v2710 = vmul.f32 %v2624, %v2390
        %v2711 = vmul.f32 %v2631, %v2391
        %v2712 = vmul.f32 %v2638, %v2392
        %v2713 = vmul.f32 %v2645, %v2393
        %v2714 = vmul.f32 %v2652, %v2394
        %v2715 = vmul.f32 %v2659, %v2395
        %v2716 = vmul.f32 %v2666, %v2396
        %v2717 = vmul.f32 %v2673, %v2397
        %v2718 = vmul.f32 %v2680, %v2398
        %v2719 = vmul.f32 %v2687, %v2399
        %v2720 = vmul.f32 %v448, %v1921
        %v2721 = vmul.f32 %v449, %v1923
        %v2722 = vmul.f32 %v450, %v1925
        %v2723 = vmul.f32 %v451, %v1927
        %v2724 = vmul.f32 %v452, %v1929
        %v2725 = vmul.f32 %v453, %v1931
        %v2726 = vmul.f32 %v454, %v1933
        %v2727 = vmul.f32 %v455, %v1935
        %v2728 = vmul.f32 %v456, %v1937
        %v2729 = vmul.f32 %v457, %v1939
        %v2730 = vmul.f32 %v458, %v1941
        %v2731 = vmul.f32 %v459, %v1943
        %v2732 = vmul.f32 %v460, %v1945
        %v2733 = vmul.f32 %v461, %v1947
        %v2734 = vmul.f32 %v462, %v1949
        %v2735 = vmul.f32 %v463, %v1951
        %v2736 = vmul.f32 %v464, %v1953
        %v2737 = vmul.f32 %v465, %v1955
        %v2738 = vmul.f32 %v466, %v1957
        %v2739 = vmul.f32 %v467, %v1959
        %v2740 = vmul.f32 %v468, %v1961
        %v2741 = vmul.f32 %v469, %v1963
        %v2742 = vmul.f32 %v470, %v1965
        %v2743 = vmul.f32 %v471, %v1967
        %v2744 = vmul.f32 %v472, %v1969
        %v2745 = vmul.f32 %v473, %v1971
        %v2746 = vmul.f32 %v474, %v1973
        %v2747 = vmul.f32 %v475, %v1975
        %v2748 = vmul.f32 %v476, %v1977
        %v2749 = vmul.f32 %v477, %v1979
        %v2750 = vmul.f32 %v478, %v1981
        %v2751 = vmul.f32 %v479, %v1983
        %v2752 = vsel %vm695, %v2720, 0.0
        %v2753 = vrot.slane %v2752, 4
        %v2754 = vadd.f32 %v2752, %v2753
        %v2755 = vrot.slane %v2754, 2
        %v2756 = vadd.f32 %v2754, %v2755
        %v2757 = vrot.slane %v2756, 1
        %v2758 = vadd.f32 %v2756, %v2757
        %v2759 = vsel %vm695, %v2721, 0.0
        %v2760 = vrot.slane %v2759, 4
        %v2761 = vadd.f32 %v2759, %v2760
        %v2762 = vrot.slane %v2761, 2
        %v2763 = vadd.f32 %v2761, %v2762
        %v2764 = vrot.slane %v2763, 1
        %v2765 = vadd.f32 %v2763, %v2764
        %v2766 = vsel %vm695, %v2722, 0.0
        %v2767 = vrot.slane %v2766, 4
        %v2768 = vadd.f32 %v2766, %v2767
        %v2769 = vrot.slane %v2768, 2
        %v2770 = vadd.f32 %v2768, %v2769
        %v2771 = vrot.slane %v2770, 1
        %v2772 = vadd.f32 %v2770, %v2771
        %v2773 = vsel %vm695, %v2723, 0.0
        %v2774 = vrot.slane %v2773, 4
        %v2775 = vadd.f32 %v2773, %v2774
        %v2776 = vrot.slane %v2775, 2
        %v2777 = vadd.f32 %v2775, %v2776
        %v2778 = vrot.slane %v2777, 1
        %v2779 = vadd.f32 %v2777, %v2778
        %v2780 = vsel %vm695, %v2724, 0.0
        %v2781 = vrot.slane %v2780, 4
        %v2782 = vadd.f32 %v2780, %v2781
        %v2783 = vrot.slane %v2782, 2
        %v2784 = vadd.f32 %v2782, %v2783
        %v2785 = vrot.slane %v2784, 1
        %v2786 = vadd.f32 %v2784, %v2785
        %v2787 = vsel %vm695, %v2725, 0.0
        %v2788 = vrot.slane %v2787, 4
        %v2789 = vadd.f32 %v2787, %v2788
        %v2790 = vrot.slane %v2789, 2
        %v2791 = vadd.f32 %v2789, %v2790
        %v2792 = vrot.slane %v2791, 1
        %v2793 = vadd.f32 %v2791, %v2792
        %v2794 = vsel %vm695, %v2726, 0.0
        %v2795 = vrot.slane %v2794, 4
        %v2796 = vadd.f32 %v2794, %v2795
        %v2797 = vrot.slane %v2796, 2
        %v2798 = vadd.f32 %v2796, %v2797
        %v2799 = vrot.slane %v2798, 1
        %v2800 = vadd.f32 %v2798, %v2799
        %v2801 = vsel %vm695, %v2727, 0.0
        %v2802 = vrot.slane %v2801, 4
        %v2803 = vadd.f32 %v2801, %v2802
        %v2804 = vrot.slane %v2803, 2
        %v2805 = vadd.f32 %v2803, %v2804
        %v2806 = vrot.slane %v2805, 1
        %v2807 = vadd.f32 %v2805, %v2806
        %v2808 = vsel %vm695, %v2728, 0.0
        %v2809 = vrot.slane %v2808, 4
        %v2810 = vadd.f32 %v2808, %v2809
        %v2811 = vrot.slane %v2810, 2
        %v2812 = vadd.f32 %v2810, %v2811
        %v2813 = vrot.slane %v2812, 1
        %v2814 = vadd.f32 %v2812, %v2813
        %v2815 = vsel %vm695, %v2729, 0.0
        %v2816 = vrot.slane %v2815, 4
        %v2817 = vadd.f32 %v2815, %v2816
        %v2818 = vrot.slane %v2817, 2
        %v2819 = vadd.f32 %v2817, %v2818
        %v2820 = vrot.slane %v2819, 1
        %v2821 = vadd.f32 %v2819, %v2820
        %v2822 = vsel %vm695, %v2730, 0.0
        %v2823 = vrot.slane %v2822, 4
        %v2824 = vadd.f32 %v2822, %v2823
        %v2825 = vrot.slane %v2824, 2
        %v2826 = vadd.f32 %v2824, %v2825
        %v2827 = vrot.slane %v2826, 1
        %v2828 = vadd.f32 %v2826, %v2827
        %v2829 = vsel %vm695, %v2731, 0.0
        %v2830 = vrot.slane %v2829, 4
        %v2831 = vadd.f32 %v2829, %v2830
        %v2832 = vrot.slane %v2831, 2
        %v2833 = vadd.f32 %v2831, %v2832
        %v2834 = vrot.slane %v2833, 1
        %v2835 = vadd.f32 %v2833, %v2834
        %v2836 = vsel %vm695, %v2732, 0.0
        %v2837 = vrot.slane %v2836, 4
        %v2838 = vadd.f32 %v2836, %v2837
        %v2839 = vrot.slane %v2838, 2
        %v2840 = vadd.f32 %v2838, %v2839
        %v2841 = vrot.slane %v2840, 1
        %v2842 = vadd.f32 %v2840, %v2841
        %v2843 = vsel %vm695, %v2733, 0.0
        %v2844 = vrot.slane %v2843, 4
        %v2845 = vadd.f32 %v2843, %v2844
        %v2846 = vrot.slane %v2845, 2
        %v2847 = vadd.f32 %v2845, %v2846
        %v2848 = vrot.slane %v2847, 1
        %v2849 = vadd.f32 %v2847, %v2848
        %v2850 = vsel %vm695, %v2734, 0.0
        %v2851 = vrot.slane %v2850, 4
        %v2852 = vadd.f32 %v2850, %v2851
        %v2853 = vrot.slane %v2852, 2
        %v2854 = vadd.f32 %v2852, %v2853
        %v2855 = vrot.slane %v2854, 1
        %v2856 = vadd.f32 %v2854, %v2855
        %v2857 = vsel %vm695, %v2735, 0.0
        %v2858 = vrot.slane %v2857, 4
        %v2859 = vadd.f32 %v2857, %v2858
        %v2860 = vrot.slane %v2859, 2
        %v2861 = vadd.f32 %v2859, %v2860
        %v2862 = vrot.slane %v2861, 1
        %v2863 = vadd.f32 %v2861, %v2862
        %v2864 = vsel %vm695, %v2736, 0.0
        %v2865 = vrot.slane %v2864, 4
        %v2866 = vadd.f32 %v2864, %v2865
        %v2867 = vrot.slane %v2866, 2
        %v2868 = vadd.f32 %v2866, %v2867
        %v2869 = vrot.slane %v2868, 1
        %v2870 = vadd.f32 %v2868, %v2869
        %v2871 = vsel %vm695, %v2737, 0.0
        %v2872 = vrot.slane %v2871, 4
        %v2873 = vadd.f32 %v2871, %v2872
        %v2874 = vrot.slane %v2873, 2
        %v2875 = vadd.f32 %v2873, %v2874
        %v2876 = vrot.slane %v2875, 1
        %v2877 = vadd.f32 %v2875, %v2876
        %v2878 = vsel %vm695, %v2738, 0.0
        %v2879 = vrot.slane %v2878, 4
        %v2880 = vadd.f32 %v2878, %v2879
        %v2881 = vrot.slane %v2880, 2
        %v2882 = vadd.f32 %v2880, %v2881
        %v2883 = vrot.slane %v2882, 1
        %v2884 = vadd.f32 %v2882, %v2883
        %v2885 = vsel %vm695, %v2739, 0.0
        %v2886 = vrot.slane %v2885, 4
        %v2887 = vadd.f32 %v2885, %v2886
        %v2888 = vrot.slane %v2887, 2
        %v2889 = vadd.f32 %v2887, %v2888
        %v2890 = vrot.slane %v2889, 1
        %v2891 = vadd.f32 %v2889, %v2890
        %v2892 = vsel %vm695, %v2740, 0.0
        %v2893 = vrot.slane %v2892, 4
        %v2894 = vadd.f32 %v2892, %v2893
        %v2895 = vrot.slane %v2894, 2
        %v2896 = vadd.f32 %v2894, %v2895
        %v2897 = vrot.slane %v2896, 1
        %v2898 = vadd.f32 %v2896, %v2897
        %v2899 = vsel %vm695, %v2741, 0.0
        %v2900 = vrot.slane %v2899, 4
        %v2901 = vadd.f32 %v2899, %v2900
        %v2902 = vrot.slane %v2901, 2
        %v2903 = vadd.f32 %v2901, %v2902
        %v2904 = vrot.slane %v2903, 1
        %v2905 = vadd.f32 %v2903, %v2904
        %v2906 = vsel %vm695, %v2742, 0.0
        %v2907 = vrot.slane %v2906, 4
        %v2908 = vadd.f32 %v2906, %v2907
        %v2909 = vrot.slane %v2908, 2
        %v2910 = vadd.f32 %v2908, %v2909
        %v2911 = vrot.slane %v2910, 1
        %v2912 = vadd.f32 %v2910, %v2911
        %v2913 = vsel %vm695, %v2743, 0.0
        %v2914 = vrot.slane %v2913, 4
        %v2915 = vadd.f32 %v2913, %v2914
        %v2916 = vrot.slane %v2915, 2
        %v2917 = vadd.f32 %v2915, %v2916
        %v2918 = vrot.slane %v2917, 1
        %v2919 = vadd.f32 %v2917, %v2918
        %v2920 = vsel %vm695, %v2744, 0.0
        %v2921 = vrot.slane %v2920, 4
        %v2922 = vadd.f32 %v2920, %v2921
        %v2923 = vrot.slane %v2922, 2
        %v2924 = vadd.f32 %v2922, %v2923
        %v2925 = vrot.slane %v2924, 1
        %v2926 = vadd.f32 %v2924, %v2925
        %v2927 = vsel %vm695, %v2745, 0.0
        %v2928 = vrot.slane %v2927, 4
        %v2929 = vadd.f32 %v2927, %v2928
        %v2930 = vrot.slane %v2929, 2
        %v2931 = vadd.f32 %v2929, %v2930
        %v2932 = vrot.slane %v2931, 1
        %v2933 = vadd.f32 %v2931, %v2932
        %v2934 = vsel %vm695, %v2746, 0.0
        %v2935 = vrot.slane %v2934, 4
        %v2936 = vadd.f32 %v2934, %v2935
        %v2937 = vrot.slane %v2936, 2
        %v2938 = vadd.f32 %v2936, %v2937
        %v2939 = vrot.slane %v2938, 1
        %v2940 = vadd.f32 %v2938, %v2939
        %v2941 = vsel %vm695, %v2747, 0.0
        %v2942 = vrot.slane %v2941, 4
        %v2943 = vadd.f32 %v2941, %v2942
        %v2944 = vrot.slane %v2943, 2
        %v2945 = vadd.f32 %v2943, %v2944
        %v2946 = vrot.slane %v2945, 1
        %v2947 = vadd.f32 %v2945, %v2946
        %v2948 = vsel %vm695, %v2748, 0.0
        %v2949 = vrot.slane %v2948, 4
        %v2950 = vadd.f32 %v2948, %v2949
        %v2951 = vrot.slane %v2950, 2
        %v2952 = vadd.f32 %v2950, %v2951
        %v2953 = vrot.slane %v2952, 1
        %v2954 = vadd.f32 %v2952, %v2953
        %v2955 = vsel %vm695, %v2749, 0.0
        %v2956 = vrot.slane %v2955, 4
        %v2957 = vadd.f32 %v2955, %v2956
        %v2958 = vrot.slane %v2957, 2
        %v2959 = vadd.f32 %v2957, %v2958
        %v2960 = vrot.slane %v2959, 1
        %v2961 = vadd.f32 %v2959, %v2960
        %v2962 = vsel %vm695, %v2750, 0.0
        %v2963 = vrot.slane %v2962, 4
        %v2964 = vadd.f32 %v2962, %v2963
        %v2965 = vrot.slane %v2964, 2
        %v2966 = vadd.f32 %v2964, %v2965
        %v2967 = vrot.slane %v2966, 1
        %v2968 = vadd.f32 %v2966, %v2967
        %v2969 = vsel %vm695, %v2751, 0.0
        %v2970 = vrot.slane %v2969, 4
        %v2971 = vadd.f32 %v2969, %v2970
        %v2972 = vrot.slane %v2971, 2
        %v2973 = vadd.f32 %v2971, %v2972
        %v2974 = vrot.slane %v2973, 1
        %v2975 = vadd.f32 %v2973, %v2974
        %v2976 = vmul.f32 %v2758, %v2400
        %v2977 = vmul.f32 %v2765, %v2401
        %v2978 = vmul.f32 %v2772, %v2402
        %v2979 = vmul.f32 %v2779, %v2403
        %v2980 = vmul.f32 %v2786, %v2404
        %v2981 = vmul.f32 %v2793, %v2405
        %v2982 = vmul.f32 %v2800, %v2406
        %v2983 = vmul.f32 %v2807, %v2407
        %v2984 = vmul.f32 %v2814, %v2408
        %v2985 = vmul.f32 %v2821, %v2409
        %v2986 = vmul.f32 %v2828, %v2410
        %v2987 = vmul.f32 %v2835, %v2411
        %v2988 = vmul.f32 %v2842, %v2412
        %v2989 = vmul.f32 %v2849, %v2413
        %v2990 = vmul.f32 %v2856, %v2414
        %v2991 = vmul.f32 %v2863, %v2415
        %v2992 = vmul.f32 %v2870, %v2416
        %v2993 = vmul.f32 %v2877, %v2417
        %v2994 = vmul.f32 %v2884, %v2418
        %v2995 = vmul.f32 %v2891, %v2419
        %v2996 = vmul.f32 %v2898, %v2420
        %v2997 = vmul.f32 %v2905, %v2421
        %v2998 = vmul.f32 %v2912, %v2422
        %v2999 = vmul.f32 %v2919, %v2423
        %v3000 = vmul.f32 %v2926, %v2424
        %v3001 = vmul.f32 %v2933, %v2425
        %v3002 = vmul.f32 %v2940, %v2426
        %v3003 = vmul.f32 %v2947, %v2427
        %v3004 = vmul.f32 %v2954, %v2428
        %v3005 = vmul.f32 %v2961, %v2429
        %v3006 = vmul.f32 %v2968, %v2430
        %v3007 = vmul.f32 %v2975, %v2431
        %v3008 = vpack.c.bf16 %v2688, %v2688
        %v3009 = vpack.c.bf16 %v2689, %v2689
        %v3010 = vpack.c.bf16 %v2690, %v2690
        %v3011 = vpack.c.bf16 %v2691, %v2691
        %v3012 = vpack.c.bf16 %v2692, %v2692
        %v3013 = vpack.c.bf16 %v2693, %v2693
        %v3014 = vpack.c.bf16 %v2694, %v2694
        %v3015 = vpack.c.bf16 %v2695, %v2695
        %v3016 = vpack.c.bf16 %v2696, %v2696
        %v3017 = vpack.c.bf16 %v2697, %v2697
        %v3018 = vpack.c.bf16 %v2698, %v2698
        %v3019 = vpack.c.bf16 %v2699, %v2699
        %v3020 = vpack.c.bf16 %v2700, %v2700
        %v3021 = vpack.c.bf16 %v2701, %v2701
        %v3022 = vpack.c.bf16 %v2702, %v2702
        %v3023 = vpack.c.bf16 %v2703, %v2703
        %v3024 = vpack.c.bf16 %v2704, %v2704
        %v3025 = vpack.c.bf16 %v2705, %v2705
        %v3026 = vpack.c.bf16 %v2706, %v2706
        %v3027 = vpack.c.bf16 %v2707, %v2707
        %v3028 = vpack.c.bf16 %v2708, %v2708
        %v3029 = vpack.c.bf16 %v2709, %v2709
        %v3030 = vpack.c.bf16 %v2710, %v2710
        %v3031 = vpack.c.bf16 %v2711, %v2711
        %v3032 = vpack.c.bf16 %v2712, %v2712
        %v3033 = vpack.c.bf16 %v2713, %v2713
        %v3034 = vpack.c.bf16 %v2714, %v2714
        %v3035 = vpack.c.bf16 %v2715, %v2715
        %v3036 = vpack.c.bf16 %v2716, %v2716
        %v3037 = vpack.c.bf16 %v2717, %v2717
        %v3038 = vpack.c.bf16 %v2718, %v2718
        %v3039 = vpack.c.bf16 %v2719, %v2719
        %v3040 = vld [vmem:[%s5] sm:$0xf]
        %v3041 = vld [vmem:[%s5 + $0x4] sm:$0xf]
        %v3042 = vld [vmem:[%s5 + $0x8] sm:$0xf]
        %v3043 = vld [vmem:[%s5 + $0xc] sm:$0xf]
        %v3044 = vpack.c.bf16 %v2976, %v2976
        %v3045 = vpack.c.bf16 %v2977, %v2977
        %v3046 = vpack.c.bf16 %v2978, %v2978
        %v3047 = vpack.c.bf16 %v2979, %v2979
        %v3048 = vpack.c.bf16 %v2980, %v2980
        %v3049 = vpack.c.bf16 %v2981, %v2981
        %v3050 = vpack.c.bf16 %v2982, %v2982
        %v3051 = vpack.c.bf16 %v2983, %v2983
        %v3052 = vpack.c.bf16 %v2984, %v2984
        %v3053 = vpack.c.bf16 %v2985, %v2985
        %v3054 = vpack.c.bf16 %v2986, %v2986
        %v3055 = vpack.c.bf16 %v2987, %v2987
        %v3056 = vpack.c.bf16 %v2988, %v2988
        %v3057 = vpack.c.bf16 %v2989, %v2989
        %v3058 = vpack.c.bf16 %v2990, %v2990
        %v3059 = vpack.c.bf16 %v2991, %v2991
        %v3060 = vpack.c.bf16 %v2992, %v2992
        %v3061 = vpack.c.bf16 %v2993, %v2993
        %v3062 = vpack.c.bf16 %v2994, %v2994
        %v3063 = vpack.c.bf16 %v2995, %v2995
        %v3064 = vpack.c.bf16 %v2996, %v2996
        %v3065 = vpack.c.bf16 %v2997, %v2997
        %v3066 = vpack.c.bf16 %v2998, %v2998
        %v3067 = vpack.c.bf16 %v2999, %v2999
        %v3068 = vpack.c.bf16 %v3000, %v3000
        %v3069 = vpack.c.bf16 %v3001, %v3001
        %v3070 = vpack.c.bf16 %v3002, %v3002
        %v3071 = vpack.c.bf16 %v3003, %v3003
        %v3072 = vpack.c.bf16 %v3004, %v3004
        %v3073 = vpack.c.bf16 %v3005, %v3005
        %v3074 = vpack.c.bf16 %v3006, %v3006
        %v3075 = vpack.c.bf16 %v3007, %v3007
        %v3076 = vld [vmem:[%s6] sm:$0xf]
        %v3077 = vld [vmem:[%s6 + $0x4] sm:$0xf]
        %v3078 = vld [vmem:[%s6 + $0x8] sm:$0xf]
        %v3079 = vld [vmem:[%s6 + $0xc] sm:$0xf]
        %v3112 = vunpack.c.l.b16 %v3044
        %v3113 = vunpack.c.l.b16 %v3045
        %v3114 = vunpack.c.l.b16 %v3046
        %v3115 = vunpack.c.l.b16 %v3047
        %v3116 = vunpack.c.l.b16 %v3048
        %v3117 = vunpack.c.l.b16 %v3049
        %v3118 = vunpack.c.l.b16 %v3050
        %v3119 = vunpack.c.l.b16 %v3051
        %v3120 = vunpack.c.l.b16 %v3052
        %v3121 = vunpack.c.l.b16 %v3053
        %v3122 = vunpack.c.l.b16 %v3054
        %v3123 = vunpack.c.l.b16 %v3055
        %v3124 = vunpack.c.l.b16 %v3056
        %v3125 = vunpack.c.l.b16 %v3057
        %v3126 = vunpack.c.l.b16 %v3058
        %v3127 = vunpack.c.l.b16 %v3059
        %v3128 = vunpack.c.l.b16 %v3060
        %v3129 = vunpack.c.l.b16 %v3061
        %v3130 = vunpack.c.l.b16 %v3062
        %v3131 = vunpack.c.l.b16 %v3063
        %v3132 = vunpack.c.l.b16 %v3064
        %v3133 = vunpack.c.l.b16 %v3065
        %v3134 = vunpack.c.l.b16 %v3066
        %v3135 = vunpack.c.l.b16 %v3067
        %v3136 = vunpack.c.l.b16 %v3068
        %v3137 = vunpack.c.l.b16 %v3069
        %v3138 = vunpack.c.l.b16 %v3070
        %v3139 = vunpack.c.l.b16 %v3071
        %v3140 = vunpack.c.l.b16 %v3072
        %v3141 = vunpack.c.l.b16 %v3073
        %v3142 = vunpack.c.l.b16 %v3074
        %v3143 = vunpack.c.l.b16 %v3075
        %vm3144 = vcmask 1041409
        %v3145 = vsel %vm3144, %v3113, %v3112
        %vm3146 = vcmask 1042434
        %v3147 = vsel %vm3146, %v3114, %v3145
        %vm3148 = vcmask 1043459
        %v3149 = vsel %vm3148, %v3115, %v3147
        %vm3150 = vcmask 1044484
        %v3151 = vsel %vm3150, %v3116, %v3149
        %vm3152 = vcmask 1045509
        %v3153 = vsel %vm3152, %v3117, %v3151
        %vm3154 = vcmask 1046534
        %v3155 = vsel %vm3154, %v3118, %v3153
        %vm3156 = vcmask 1047559
        %v3157 = vsel %vm3156, %v3119, %v3155
        %v3158 = vsel %vm3144, %v3121, %v3120
        %v3159 = vsel %vm3146, %v3122, %v3158
        %v3160 = vsel %vm3148, %v3123, %v3159
        %v3161 = vsel %vm3150, %v3124, %v3160
        %v3162 = vsel %vm3152, %v3125, %v3161
        %v3163 = vsel %vm3154, %v3126, %v3162
        %v3164 = vsel %vm3156, %v3127, %v3163
        %v3165 = vsel %vm3144, %v3129, %v3128
        %v3166 = vsel %vm3146, %v3130, %v3165
        %v3167 = vsel %vm3148, %v3131, %v3166
        %v3168 = vsel %vm3150, %v3132, %v3167
        %v3169 = vsel %vm3152, %v3133, %v3168
        %v3170 = vsel %vm3154, %v3134, %v3169
        %v3171 = vsel %vm3156, %v3135, %v3170
        %v3172 = vsel %vm3144, %v3137, %v3136
        %v3173 = vsel %vm3146, %v3138, %v3172
        %v3174 = vsel %vm3148, %v3139, %v3173
        %v3175 = vsel %vm3150, %v3140, %v3174
        %v3176 = vsel %vm3152, %v3141, %v3175
        %v3177 = vsel %vm3154, %v3142, %v3176
        %v3178 = vsel %vm3156, %v3143, %v3177
        %v3179 = vpack.c.b16 %v3164, %v3157
        %v3180 = vpack.c.b16 %v3178, %v3171
        %v3185 = vunpack.c.l.b16 %v3076
        %v3186 = vunpack.c.l.b16 %v3077
        %v3187 = vunpack.c.l.b16 %v3078
        %v3188 = vunpack.c.l.b16 %v3079
        %v3189 = vpack.c.b16 %v3186, %v3185
        %v3190 = vpack.c.b16 %v3188, %v3187
        %v3194 = vsel %vm695, %v3179, 0
        %v3197 = vsel %vm695, %v3180, 0
        %3199 = vmatprep.subr.bf16.mxu0 0
        %3200 = vmatpush1.bf16.msra.mxu0 %v3189
        %3201 = vmatprep.subr.bf16.mxu0 0
        %3202 = vmatpush1.bf16.msra.mxu0 %v3190
        %3203 = vmatprep.subr.bf16.mxu0 0
        %3204 = vmatpush1.bf16.msra.mxu0 0
        %3205 = vmatprep.subr.bf16.mxu0 0
        %3206 = vmatpush1.bf16.msra.mxu0 0
        %3207 = vmatprep.subr.bf16.mxu0 0
        %3208 = vmatpush1.bf16.msra.mxu0 0
        %3209 = vmatprep.subr.bf16.mxu0 0
        %3210 = vmatpush1.bf16.msra.mxu0 0
        %3211 = vmatprep.subr.bf16.mxu0 0
        %3212 = vmatpush1.bf16.msra.mxu0 0
        %3213 = vmatprep.subr.bf16.mxu0 0
        %3214 = vmatpush1.bf16.msra.mxu0 0
        %3215 = vmatprep.subr.bf16.mxu0 0
        %3216 = vmatpush1.bf16.msra.mxu0 0
        %3217 = vmatprep.subr.bf16.mxu0 0
        %3218 = vmatpush1.bf16.msra.mxu0 0
        %3219 = vmatprep.subr.bf16.mxu0 0
        %3220 = vmatpush1.bf16.msra.mxu0 0
        %3221 = vmatprep.subr.bf16.mxu0 0
        %3222 = vmatpush1.bf16.msra.mxu0 0
        %3223 = vmatprep.subr.bf16.mxu0 0
        %3224 = vmatpush1.bf16.msra.mxu0 0
        %3225 = vmatprep.subr.bf16.mxu0 0
        %3226 = vmatpush1.bf16.msra.mxu0 0
        %3227 = vmatprep.subr.bf16.mxu0 0
        %3228 = vmatpush1.bf16.msra.mxu0 0
        %3229 = vmatprep.subr.bf16.mxu0 0
        %3230 = vmatpush1.bf16.msra.mxu0 0
        %3231 = vmatprep.mubr.bf16.mxu0 0
        %3232 = vmatmul.mubr.bf16.gmra.mrb[0].mxu0 %v3194
        %v3233 = vpop.f32.mrb[0].mxu0
        %v3234 = vadd.f32 0.0, %v3233
        %v3235 = vpop.f32.mrb[0].mxu0
        %v3236 = vpop.f32.mrb[0].mxu0
        %v3237 = vadd.f32 0.0, %v3236
        %v3238 = vpop.f32.mrb[0].mxu0
        %3239 = vmatprep.mubr.bf16.mxu0 0
        %3240 = vmatmul.mubr.bf16.gmra.mrb[0].mxu0 %v3197
        %v3241 = vpop.f32.mrb[0].mxu0
        %v3242 = vadd.f32 0.0, %v3241
        %v3243 = vpop.f32.mrb[0].mxu0
        %v3244 = vpop.f32.mrb[0].mxu0
        %v3245 = vadd.f32 0.0, %v3244
        %v3246 = vpop.f32.mrb[0].mxu0
        %3247 = vdwg.mxu0
        %v3280 = vunpack.c.l.b16 %v3008
        %v3281 = vunpack.c.l.b16 %v3009
        %v3282 = vunpack.c.l.b16 %v3010
        %v3283 = vunpack.c.l.b16 %v3011
        %v3284 = vunpack.c.l.b16 %v3012
        %v3285 = vunpack.c.l.b16 %v3013
        %v3286 = vunpack.c.l.b16 %v3014
        %v3287 = vunpack.c.l.b16 %v3015
        %v3288 = vunpack.c.l.b16 %v3016
        %v3289 = vunpack.c.l.b16 %v3017
        %v3290 = vunpack.c.l.b16 %v3018
        %v3291 = vunpack.c.l.b16 %v3019
        %v3292 = vunpack.c.l.b16 %v3020
        %v3293 = vunpack.c.l.b16 %v3021
        %v3294 = vunpack.c.l.b16 %v3022
        %v3295 = vunpack.c.l.b16 %v3023
        %v3296 = vunpack.c.l.b16 %v3024
        %v3297 = vunpack.c.l.b16 %v3025
        %v3298 = vunpack.c.l.b16 %v3026
        %v3299 = vunpack.c.l.b16 %v3027
        %v3300 = vunpack.c.l.b16 %v3028
        %v3301 = vunpack.c.l.b16 %v3029
        %v3302 = vunpack.c.l.b16 %v3030
        %v3303 = vunpack.c.l.b16 %v3031
        %v3304 = vunpack.c.l.b16 %v3032
        %v3305 = vunpack.c.l.b16 %v3033
        %v3306 = vunpack.c.l.b16 %v3034
        %v3307 = vunpack.c.l.b16 %v3035
        %v3308 = vunpack.c.l.b16 %v3036
        %v3309 = vunpack.c.l.b16 %v3037
        %v3310 = vunpack.c.l.b16 %v3038
        %v3311 = vunpack.c.l.b16 %v3039
        %v3312 = vsel %vm3144, %v3281, %v3280
        %v3313 = vsel %vm3146, %v3282, %v3312
        %v3314 = vsel %vm3148, %v3283, %v3313
        %v3315 = vsel %vm3150, %v3284, %v3314
        %v3316 = vsel %vm3152, %v3285, %v3315
        %v3317 = vsel %vm3154, %v3286, %v3316
        %v3318 = vsel %vm3156, %v3287, %v3317
        %v3319 = vsel %vm3144, %v3289, %v3288
        %v3320 = vsel %vm3146, %v3290, %v3319
        %v3321 = vsel %vm3148, %v3291, %v3320
        %v3322 = vsel %vm3150, %v3292, %v3321
        %v3323 = vsel %vm3152, %v3293, %v3322
        %v3324 = vsel %vm3154, %v3294, %v3323
        %v3325 = vsel %vm3156, %v3295, %v3324
        %v3326 = vsel %vm3144, %v3297, %v3296
        %v3327 = vsel %vm3146, %v3298, %v3326
        %v3328 = vsel %vm3148, %v3299, %v3327
        %v3329 = vsel %vm3150, %v3300, %v3328
        %v3330 = vsel %vm3152, %v3301, %v3329
        %v3331 = vsel %vm3154, %v3302, %v3330
        %v3332 = vsel %vm3156, %v3303, %v3331
        %v3333 = vsel %vm3144, %v3305, %v3304
        %v3334 = vsel %vm3146, %v3306, %v3333
        %v3335 = vsel %vm3148, %v3307, %v3334
        %v3336 = vsel %vm3150, %v3308, %v3335
        %v3337 = vsel %vm3152, %v3309, %v3336
        %v3338 = vsel %vm3154, %v3310, %v3337
        %v3339 = vsel %vm3156, %v3311, %v3338
        %v3340 = vpack.c.b16 %v3325, %v3318
        %v3341 = vpack.c.b16 %v3339, %v3332
        %v3346 = vunpack.c.l.b16 %v3040
        %v3347 = vunpack.c.l.b16 %v3041
        %v3348 = vunpack.c.l.b16 %v3042
        %v3349 = vunpack.c.l.b16 %v3043
        %v3350 = vpack.c.b16 %v3347, %v3346
        %v3351 = vpack.c.b16 %v3349, %v3348
        %v3355 = vsel %vm695, %v3340, 0
        %v3358 = vsel %vm695, %v3341, 0
        %3360 = vmatprep.subr.bf16.mxu0 0
        %3361 = vmatpush1.bf16.msra.mxu0 %v3350
        %3362 = vmatprep.subr.bf16.mxu0 0
        %3363 = vmatpush1.bf16.msra.mxu0 %v3351
        %3364 = vmatprep.subr.bf16.mxu0 0
        %3365 = vmatpush1.bf16.msra.mxu0 0
        %3366 = vmatprep.subr.bf16.mxu0 0
        %3367 = vmatpush1.bf16.msra.mxu0 0
        %3368 = vmatprep.subr.bf16.mxu0 0
        %3369 = vmatpush1.bf16.msra.mxu0 0
        %3370 = vmatprep.subr.bf16.mxu0 0
        %3371 = vmatpush1.bf16.msra.mxu0 0
        %3372 = vmatprep.subr.bf16.mxu0 0
        %3373 = vmatpush1.bf16.msra.mxu0 0
        %3374 = vmatprep.subr.bf16.mxu0 0
        %3375 = vmatpush1.bf16.msra.mxu0 0
        %3376 = vmatprep.subr.bf16.mxu0 0
        %3377 = vmatpush1.bf16.msra.mxu0 0
        %3378 = vmatprep.subr.bf16.mxu0 0
        %3379 = vmatpush1.bf16.msra.mxu0 0
        %3380 = vmatprep.subr.bf16.mxu0 0
        %3381 = vmatpush1.bf16.msra.mxu0 0
        %3382 = vmatprep.subr.bf16.mxu0 0
        %3383 = vmatpush1.bf16.msra.mxu0 0
        %3384 = vmatprep.subr.bf16.mxu0 0
        %3385 = vmatpush1.bf16.msra.mxu0 0
        %3386 = vmatprep.subr.bf16.mxu0 0
        %3387 = vmatpush1.bf16.msra.mxu0 0
        %3388 = vmatprep.subr.bf16.mxu0 0
        %3389 = vmatpush1.bf16.msra.mxu0 0
        %3390 = vmatprep.subr.bf16.mxu0 0
        %3391 = vmatpush1.bf16.msra.mxu0 0
        %3392 = vmatprep.mubr.bf16.mxu0 0
        %3393 = vmatmul.mubr.bf16.gmra.mrb[0].mxu0 %v3355
        %v3394 = vpop.f32.mrb[0].mxu0
        %v3395 = vadd.f32 %v3234, %v3394
        %v3396 = vpop.f32.mrb[0].mxu0
        %v3397 = vpop.f32.mrb[0].mxu0
        %v3398 = vadd.f32 %v3237, %v3397
        %v3399 = vpop.f32.mrb[0].mxu0
        %3400 = vmatprep.mubr.bf16.mxu0 0
        %3401 = vmatmul.mubr.bf16.gmra.mrb[0].mxu0 %v3358
        %v3402 = vpop.f32.mrb[0].mxu0
        %v3403 = vadd.f32 %v3242, %v3402
        %v3404 = vpop.f32.mrb[0].mxu0
        %v3405 = vpop.f32.mrb[0].mxu0
        %v3406 = vadd.f32 %v3245, %v3405
        %v3407 = vpop.f32.mrb[0].mxu0
        %3408 = vdwg.mxu0
        %v3409 = vld [vmem:[%s7] sm:$0x1]
        %v3411 = vlaneseq
        %v3412 = vshrl.u32 %v3411, 7
        %v3413 = vsub.s32 0, %v3412
        %v3414 = vrot.slane %v3409, %v3413
        %v3416 = vadd.f32 %v3395, %v3414
        %v3417 = vadd.f32 %v3398, %v3414
        %v3418 = vadd.f32 %v3403, %v3414
        %v3419 = vadd.f32 %v3406, %v3414
        %v3420 = vmax.f32 %v3416, 0.0
        %v3421 = vmax.f32 %v3417, 0.0
        %v3422 = vmax.f32 %v3418, 0.0
        %v3423 = vmax.f32 %v3419, 0.0
        %v3424 = vpack.c.bf16 %v3421, %v3420
        %v3425 = vpack.c.bf16 %v3423, %v3422
        %v3426 = vld [vmem:[%s8] sm:$0xf]
        %v3427 = vld [vmem:[%s8 + $0x4] sm:$0xf]
        %v3428 = vld [vmem:[%s8 + $0x8] sm:$0xf]
        %v3429 = vld [vmem:[%s8 + $0xc] sm:$0xf]
        %v3430 = vld [vmem:[%s9] sm:$0x1]
        %v3432 = vlaneseq
        %v3433 = vshrl.u32 %v3432, 7
        %v3434 = vsub.s32 0, %v3433
        %v3435 = vrot.slane %v3430, %v3434
        %v3441 = vunpack.c.l.b16 %v3426
        %v3442 = vunpack.c.l.b16 %v3427
        %v3443 = vunpack.c.l.b16 %v3428
        %v3444 = vunpack.c.l.b16 %v3429
        %v3445 = vpack.c.b16 %v3442, %v3441
        %v3446 = vpack.c.b16 %v3444, %v3443
        %v3450 = vsel %vm695, %v3424, 0
        %v3453 = vsel %vm695, %v3425, 0
        %3455 = vmatprep.subr.bf16.mxu0 0
        %3456 = vmatpush1.bf16.msra.mxu0 %v3445
        %3457 = vmatprep.subr.bf16.mxu0 0
        %3458 = vmatpush1.bf16.msra.mxu0 %v3446
        %3459 = vmatprep.subr.bf16.mxu0 0
        %3460 = vmatpush1.bf16.msra.mxu0 0
        %3461 = vmatprep.subr.bf16.mxu0 0
        %3462 = vmatpush1.bf16.msra.mxu0 0
        %3463 = vmatprep.subr.bf16.mxu0 0
        %3464 = vmatpush1.bf16.msra.mxu0 0
        %3465 = vmatprep.subr.bf16.mxu0 0
        %3466 = vmatpush1.bf16.msra.mxu0 0
        %3467 = vmatprep.subr.bf16.mxu0 0
        %3468 = vmatpush1.bf16.msra.mxu0 0
        %3469 = vmatprep.subr.bf16.mxu0 0
        %3470 = vmatpush1.bf16.msra.mxu0 0
        %3471 = vmatprep.subr.bf16.mxu0 0
        %3472 = vmatpush1.bf16.msra.mxu0 0
        %3473 = vmatprep.subr.bf16.mxu0 0
        %3474 = vmatpush1.bf16.msra.mxu0 0
        %3475 = vmatprep.subr.bf16.mxu0 0
        %3476 = vmatpush1.bf16.msra.mxu0 0
        %3477 = vmatprep.subr.bf16.mxu0 0
        %3478 = vmatpush1.bf16.msra.mxu0 0
        %3479 = vmatprep.subr.bf16.mxu0 0
        %3480 = vmatpush1.bf16.msra.mxu0 0
        %3481 = vmatprep.subr.bf16.mxu0 0
        %3482 = vmatpush1.bf16.msra.mxu0 0
        %3483 = vmatprep.subr.bf16.mxu0 0
        %3484 = vmatpush1.bf16.msra.mxu0 0
        %3485 = vmatprep.subr.bf16.mxu0 0
        %3486 = vmatpush1.bf16.msra.mxu0 0
        %3487 = vmatprep.mubr.bf16.mxu0 0
        %3488 = vmatmul.mubr.bf16.gmra.mrb[0].mxu0 %v3450
        %v3489 = vpop.f32.mrb[0].mxu0
        %v3490 = vadd.f32 %v3435, %v3489
        %v3491 = vpop.f32.mrb[0].mxu0
        %v3492 = vpop.f32.mrb[0].mxu0
        %v3493 = vadd.f32 %v3435, %v3492
        %v3494 = vpop.f32.mrb[0].mxu0
        %3495 = vmatprep.mubr.bf16.mxu0 0
        %3496 = vmatmul.mubr.bf16.gmra.mrb[0].mxu0 %v3453
        %v3497 = vpop.f32.mrb[0].mxu0
        %v3498 = vadd.f32 %v3435, %v3497
        %v3499 = vpop.f32.mrb[0].mxu0
        %v3500 = vpop.f32.mrb[0].mxu0
        %v3501 = vadd.f32 %v3435, %v3500
        %v3502 = vpop.f32.mrb[0].mxu0
        %3503 = vdwg.mxu0
        %3504 = vmax.xlane.f32.xlu0 %v3490
        %v3505 = vpop.xlane.xlu0 %3504
        %3506 = vmax.xlane.f32.xlu0 %v3493
        %v3507 = vpop.xlane.xlu0 %3506
        %3508 = vmax.xlane.f32.xlu0 %v3498
        %v3509 = vpop.xlane.xlu0 %3508
        %3510 = vmax.xlane.f32.xlu0 %v3501
        %v3511 = vpop.xlane.xlu0 %3510
        %v3512 = vsub.f32 %v3490, %v3505
        %v3513 = vsub.f32 %v3493, %v3507
        %v3514 = vsub.f32 %v3498, %v3509
        %v3515 = vsub.f32 %v3501, %v3511
        %v3516 = vmul.f32 %v3512, 1.442695
        %v3517 = vpow.pop %v3516
        %v3518 = vmul.f32 %v3513, 1.442695
        %v3519 = vpow.pop %v3518
        %v3520 = vmul.f32 %v3514, 1.442695
        %v3521 = vpow.pop %v3520
        %v3522 = vmul.f32 %v3515, 1.442695
        %v3523 = vpow.pop %v3522
        %3524 = vadd.xlane.f32.xlu0 %v3517
        %v3525 = vpop.xlane.xlu0 %3524
        %3526 = vadd.xlane.f32.xlu0 %v3519
        %v3527 = vpop.xlane.xlu0 %3526
        %3528 = vadd.xlane.f32.xlu0 %v3521
        %v3529 = vpop.xlane.xlu0 %3528
        %3530 = vadd.xlane.f32.xlu0 %v3523
        %v3531 = vpop.xlane.xlu0 %3530
        %v3532 = vlog2.pop %v3525
        %v3533 = vmul.f32 %v3532, 0.6931472
        %v3534 = vlog2.pop %v3527
        %v3535 = vmul.f32 %v3534, 0.6931472
        %v3536 = vlog2.pop %v3529
        %v3537 = vmul.f32 %v3536, 0.6931472
        %v3538 = vlog2.pop %v3531
        %v3539 = vmul.f32 %v3538, 0.6931472
        %v3540 = vsub.f32 %v3512, %v3533
        %v3541 = vsub.f32 %v3513, %v3535
        %v3542 = vsub.f32 %v3514, %v3537
        %v3543 = vsub.f32 %v3515, %v3539
        %3544 = vst [vmem:[%s369] sm:$0xff] %v3540
        %3545 = vst [vmem:[%s369 + $0x8] sm:$0xff] %v3541
        %3546 = vst [vmem:[%s369 + $0x10] sm:$0xff] %v3542
        %3547 = vst [vmem:[%s369 + $0x18] sm:$0xff] %v3543
        %s3548 = sand.u32 %s252, 1
        %s3549 = scalar_lea.sflag [#allocation3], %s3548
        %s3550 = sand.u32 %s252, 1
        %s3551 = smul.addr %s3550, 32
        %s3552 = scalar_lea.vmem [#allocation2], %s3551
        // Predicated region
        $region61: #{tpu_custom_call.1} parent=59 // pred_check
          %p3553 = pneg %p262
        $region62: #{tpu_custom_call.1} parent=59 // pred_check_branch
          %3555 = sbr.rel (%p3553) target = $region64
        $region63: #{tpu_custom_call.1} parent=59 // pred_region
          %s3556 = smul.u32 4, %s24
          %s3558 = ssub.s32 512, 512
          %3559 = vsyncadd %s3549, %s3558
          %s3560 = smul.addr %s3556, 128
          %s3561 = scalar_lea.hbm %s10, %s3560
          %s3562 = sshll.u32 %s3552, 4
          %s3563 = int_to_ptr.vmem [resolvable:$true] %s3562
          %3568 = dma.vmem_to_hbm [thread:$0]  %s3563, 512, %s3561, %s3549, 128, 128, 8
        $region64: #{tpu_custom_call.1} parent=59 // pred_fallthru
          _
      $region60: #{tpu_custom_call.1} parent=5 // pred_fallthru
        _
      %p3569 = scmp.le.s32.totalorder 2, %s19
      // Predicated region
      $region65: #{tpu_custom_call.1} parent=5 // pred_check
        %p3570 = pneg %p3569
      $region66: #{tpu_custom_call.1} parent=5 // pred_check_branch
        %3572 = sbr.rel (%p3570) target = $region68
      $region67: #{tpu_custom_call.1} parent=5 // pred_region
        %s3573 = ssub.s32 %s19, 2
        // Predicated region
        $region69: #{tpu_custom_call.1} parent=67 // pred_check
          %p3574 = pneg %p268
        $region70: #{tpu_custom_call.1} parent=67 // pred_check_branch
          %3576 = sbr.rel (%p3574) target = $region72
        $region71: #{tpu_custom_call.1} parent=67 // pred_region
          %s3577 = sand.u32 %s253, 1
          %s3578 = scalar_lea.sflag [#allocation3], %s3577
          %s3579 = sand.u32 %s253, 1
          %s3580 = smul.addr %s3579, 32
          %s3581 = scalar_lea.vmem [#allocation2], %s3580
          %3582 = dma.done %s3578, 512
        $region72: #{tpu_custom_call.1} parent=67 // pred_fallthru
          _
      $region68: #{tpu_custom_call.1} parent=5 // pred_fallthru
        _
    $region6: #{tpu_custom_call.1} parent=1 // loop_footer
      %s23 = sadd.s32 1, %s19
    $region7: #{tpu_custom_call.1} parent=1 // loop_footer_branch
      %18 = sbr.rel target = $region3
    $region8: #{tpu_custom_call.1} parent=1 // loop_exit
      _
    %3583 = vsyncpa [#allocation3], 1
    %s3584 = scalar_lea.sflag [#allocation3], 1
    %3585 = vsyncpa %s3584, 1

// kernel: tpu_custom_call.1
$region0: #{tpu_custom_call.1}
  #allocation0 [shape = 'u32[]', space=smem, size = 0x4, offset = 0x4, fixed_abs, tag = 'smem constant byte address 0x4 - core index']
  #allocation1 [shape = 'u32[144,128]{1,0:T(1,128)}', space=vmem, size = 0x12000, scoped, tag = 'internal scratch']
  %s0 = inlined_call_operand.vmem [shape: f32[64,8,32], index: 0, kind: input, shape index: {}]
  %s1 = inlined_call_operand.vmem [shape: f32[64,8,32], index: 1, kind: input, shape index: {}]
  %s2 = inlined_call_operand.vmem [shape: bf16[32,32], index: 2, kind: input, shape index: {}]
  %s3 = inlined_call_operand.vmem [shape: f32[1,32], index: 3, kind: input, shape index: {}]
  %s4 = inlined_call_operand.vmem [shape: f32[1,32], index: 4, kind: input, shape index: {}]
  %s5 = inlined_call_operand.vmem [shape: bf16[32,32], index: 5, kind: input, shape index: {}]
  %s6 = inlined_call_operand.vmem [shape: bf16[32,32], index: 6, kind: input, shape index: {}]
  %s7 = inlined_call_operand.vmem [shape: f32[1,32], index: 7, kind: input, shape index: {}]
  %s8 = inlined_call_operand.vmem [shape: bf16[32,128], index: 8, kind: input, shape index: {}]
  %s9 = inlined_call_operand.vmem [shape: f32[1,128], index: 9, kind: input, shape index: {}]
  %s10 = inlined_call_operand.hbm [shape: f32[64,128], index: 10, kind: output, shape index: {}]
  %s11 = sld [smem:[#allocation0]]
  $region73: #{tpu_custom_call.1} parent=0
    _
  %s13 = ssub.s32 1, %s11
  %s14 = scalar_select 0, %s13, %s11
  $region1: #{tpu_custom_call.1} parent=0
    #allocation2 [shape = 'u8[32768]{0}', space=vmem, size = 0x8000, scoped, tag = 'output window, operand 0']
    #allocation3 [shape = 's32[2]{0}', space=sflag, size = 0x8, scoped, tag = 'scoped memory for tpu_custom_call.1']
    %15 = vsyncpa [#allocation3], 0
    %s16 = scalar_lea.sflag [#allocation3], 1
    %17 = vsyncpa %s16, 0
    loop: start=0, step=1, limit=4
    $region2: #{tpu_custom_call.1} parent=1 // loop_pre_header
      _
    $region3: #{tpu_custom_call.1} parent=1 // loop_header
      %s19 = sphi 0, %s23
      %p20 = scmp.ge.s32.totalorder %s19, 4
      %s29 = sphi 0, %s31
      %s32 = sphi 0, %s29
      %s33 = sphi 0, %s32
      %s49 = sphi 0, %s33
      %s55 = sphi 0, %s57
      %s58 = sphi 0, %s55
      %s59 = sphi 0, %s58
      %s75 = sphi 0, %s59
      %s79 = sphi 0, %s79
      %s81 = sphi 0, %s79
      %s82 = sphi 0, %s81
      %s96 = sphi 0, %s82
      %s100 = sphi 0, %s100
      %s102 = sphi 0, %s100
      %s103 = sphi 0, %s102
      %s117 = sphi 0, %s103
      %s121 = sphi 0, %s121
      %s123 = sphi 0, %s121
      %s124 = sphi 0, %s123
      %s138 = sphi 0, %s124
      %s142 = sphi 0, %s142
      %s144 = sphi 0, %s142
      %s145 = sphi 0, %s144
      %s159 = sphi 0, %s145
      %s163 = sphi 0, %s163
      %s165 = sphi 0, %s163
      %s166 = sphi 0, %s165
      %s180 = sphi 0, %s166
      %s184 = sphi 0, %s184
      %s186 = sphi 0, %s184
      %s187 = sphi 0, %s186
      %s201 = sphi 0, %s187
      %s205 = sphi 0, %s205
      %s207 = sphi 0, %s205
      %s208 = sphi 0, %s207
      %s222 = sphi 0, %s208
      %s226 = sphi 0, %s226
      %s228 = sphi 0, %s226
      %s229 = sphi 0, %s228
      %s243 = sphi 0, %s229
      %s249 = sphi 0, %s251
      %s252 = sphi 0, %s249
      %s253 = sphi 0, %s252
      %s269 = sphi 0, %s253
    $region4: #{tpu_custom_call.1} parent=1 // loop_header_branch
      %22 = sbr.rel (%p20) target = $region8
    $region5: #{tpu_custom_call.1} parent=1 // loop_body
      %s24 = ssub.s32 %s19, 1
      %s25 = ssub.s32 %s19, 2
      %s26 = sadd.s32 %s19, 1
      %s27 = ssub.s32 %s19, %s26
      %p28 = scmp.eq.s32.totalorder %s27, 0
      %s30 = sadd.s32 %s29, 1
      %s31 = scalar_select %p28, %s29, %s30
      %p34 = pneg %p28
      %p35 = scmp.eq.s32.totalorder %s19, 1
      %p36 = por %p34, %p35
      %p37 = scmp.ne.s32.totalorder %s29, %s32
      %p38 = scmp.eq.s32.totalorder %s19, 0
      %p39 = por %p37, %p38
      %p40 = scmp.ne.s32.totalorder %s29, %s32
      %p41 = scmp.eq.s32.totalorder %s24, 1
      %p42 = por %p40, %p41
      %p43 = scmp.ne.s32.totalorder %s32, %s33
      %p44 = scmp.eq.s32.totalorder %s24, 0
      %p45 = por %p43, %p44
      %p46 = scmp.ne.s32.totalorder %s32, %s33
      %p47 = scmp.eq.s32.totalorder %s25, 1
      %p48 = por %p46, %p47
      %p50 = scmp.ne.s32.totalorder %s33, %s49
      %p51 = scmp.eq.s32.totalorder %s25, 0
      %p52 = por %p50, %p51
      %s53 = ssub.s32 %s19, %s26
      %p54 = scmp.eq.s32.totalorder %s53, 0
      %s56 = sadd.s32 %s55, 1
      %s57 = scalar_select %p54, %s55, %s56
      %p60 = pneg %p54
      %p61 = scmp.eq.s32.totalorder %s19, 1
      %p62 = por %p60, %p61
      %p63 = scmp.ne.s32.totalorder %s55, %s58
      %p64 = scmp.eq.s32.totalorder %s19, 0
      %p65 = por %p63, %p64
      %p66 = scmp.ne.s32.totalorder %s55, %s58
      %p67 = scmp.eq.s32.totalorder %s24, 1
      %p68 = por %p66, %p67
      %p69 = scmp.ne.s32.totalorder %s58, %s59
      %p70 = scmp.eq.s32.totalorder %s24, 0
      %p71 = por %p69, %p70
      %p72 = scmp.ne.s32.totalorder %s58, %s59
      %p73 = scmp.eq.s32.totalorder %s25, 1
      %p74 = por %p72, %p73
      %p76 = scmp.ne.s32.totalorder %s59, %s75
      %p77 = scmp.eq.s32.totalorder %s25, 0
      %p78 = por %p76, %p77
      %s80 = sadd.s32 %s79, 1
      %p83 = scmp.eq.s32.totalorder %s19, 1
      %p84 = scmp.ne.s32.totalorder %s79, %s81
      %p85 = scmp.eq.s32.totalorder %s19, 0
      %p86 = por %p84, %p85
      %p87 = scmp.ne.s32.totalorder %s79, %s81
      %p88 = scmp.eq.s32.totalorder %s24, 1
      %p89 = por %p87, %p88
      %p90 = scmp.ne.s32.totalorder %s81, %s82
      %p91 = scmp.eq.s32.totalorder %s24, 0
      %p92 = por %p90, %p91
      %p93 = scmp.ne.s32.totalorder %s81, %s82
      %p94 = scmp.eq.s32.totalorder %s25, 1
      %p95 = por %p93, %p94
      %p97 = scmp.ne.s32.totalorder %s82, %s96
      %p98 = scmp.eq.s32.totalorder %s25, 0
      %p99 = por %p97, %p98
      %s101 = sadd.s32 %s100, 1
      %p104 = scmp.eq.s32.totalorder %s19, 1
      %p105 = scmp.ne.s32.totalorder %s100, %s102
      %p106 = scmp.eq.s32.totalorder %s19, 0
      %p107 = por %p105, %p106
      %p108 = scmp.ne.s32.totalorder %s100, %s102
      %p109 = scmp.eq.s32.totalorder %s24, 1
      %p110 = por %p108, %p109
      %p111 = scmp.ne.s32.totalorder %s102, %s103
      %p112 = scmp.eq.s32.totalorder %s24, 0
      %p113 = por %p111, %p112
      %p114 = scmp.ne.s32.totalorder %s102, %s103
      %p115 = scmp.eq.s32.totalorder %s25, 1
      %p116 = por %p114, %p115
      %p118 = scmp.ne.s32.totalorder %s103, %s117
      %p119 = scmp.eq.s32.totalorder %s25, 0
      %p120 = por %p118, %p119
      %s122 = sadd.s32 %s121, 1
      %p125 = scmp.eq.s32.totalorder %s19, 1
      %p126 = scmp.ne.s32.totalorder %s121, %s123
      %p127 = scmp.eq.s32.totalorder %s19, 0
      %p128 = por %p126, %p127
      %p129 = scmp.ne.s32.totalorder %s121, %s123
      %p130 = scmp.eq.s32.totalorder %s24, 1
      %p131 = por %p129, %p130
      %p132 = scmp.ne.s32.totalorder %s123, %s124
      %p133 = scmp.eq.s32.totalorder %s24, 0
      %p134 = por %p132, %p133
      %p135 = scmp.ne.s32.totalorder %s123, %s124
      %p136 = scmp.eq.s32.totalorder %s25, 1
      %p137 = por %p135, %p136
      %p139 = scmp.ne.s32.totalorder %s124, %s138
      %p140 = scmp.eq.s32.totalorder %s25, 0
      %p141 = por %p139, %p140
      %s143 = sadd.s32 %s142, 1
      %p146 = scmp.eq.s32.totalorder %s19, 1
      %p147 = scmp.ne.s32.totalorder %s142, %s144
      %p148 = scmp.eq.s32.totalorder %s19, 0
      %p149 = por %p147, %p148
      %p150 = scmp.ne.s32.totalorder %s142, %s144
      %p151 = scmp.eq.s32.totalorder %s24, 1
      %p152 = por %p150, %p151
      %p153 = scmp.ne.s32.totalorder %s144, %s145
      %p154 = scmp.eq.s32.totalorder %s24, 0
      %p155 = por %p153, %p154
      %p156 = scmp.ne.s32.totalorder %s144, %s145
      %p157 = scmp.eq.s32.totalorder %s25, 1
      %p158 = por %p156, %p157
      %p160 = scmp.ne.s32.totalorder %s145, %s159
      %p161 = scmp.eq.s32.totalorder %s25, 0
      %p162 = por %p160, %p161
      %s164 = sadd.s32 %s163, 1
      %p167 = scmp.eq.s32.totalorder %s19, 1
      %p168 = scmp.ne.s32.totalorder %s163, %s165
      %p169 = scmp.eq.s32.totalorder %s19, 0
      %p170 = por %p168, %p169
      %p171 = scmp.ne.s32.totalorder %s163, %s165
      %p172 = scmp.eq.s32.totalorder %s24, 1
      %p173 = por %p171, %p172
      %p174 = scmp.ne.s32.totalorder %s165, %s166
      %p175 = scmp.eq.s32.totalorder %s24, 0
      %p176 = por %p174, %p175
      %p177 = scmp.ne.s32.totalorder %s165, %s166
      %p178 = scmp.eq.s32.totalorder %s25, 1
      %p179 = por %p177, %p178
      %p181 = scmp.ne.s32.totalorder %s166, %s180
      %p182 = scmp.eq.s32.totalorder %s25, 0
      %p183 = por %p181, %p182
      %s185 = sadd.s32 %s184, 1
      %p188 = scmp.eq.s32.totalorder %s19, 1
      %p189 = scmp.ne.s32.totalorder %s184, %s186
      %p190 = scmp.eq.s32.totalorder %s19, 0
      %p191 = por %p189, %p190
      %p192 = scmp.ne.s32.totalorder %s184, %s186
      %p193 = scmp.eq.s32.totalorder %s24, 1
      %p194 = por %p192, %p193
      %p195 = scmp.ne.s32.totalorder %s186, %s187
      %p196 = scmp.eq.s32.totalorder %s24, 0
      %p197 = por %p195, %p196
      %p198 = scmp.ne.s32.totalorder %s186, %s187
      %p199 = scmp.eq.s32.totalorder %s25, 1
      %p200 = por %p198, %p199
      %p202 = scmp.ne.s32.totalorder %s187, %s201
      %p203 = scmp.eq.s32.totalorder %s25, 0
      %p204 = por %p202, %p203
      %s206 = sadd.s32 %s205, 1
      %p209 = scmp.eq.s32.totalorder %s19, 1
      %p210 = scmp.ne.s32.totalorder %s205, %s207
      %p211 = scmp.eq.s32.totalorder %s19, 0
      %p212 = por %p210, %p211
      %p213 = scmp.ne.s32.totalorder %s205, %s207
      %p214 = scmp.eq.s32.totalorder %s24, 1
      %p215 = por %p213, %p214
      %p216 = scmp.ne.s32.totalorder %s207, %s208
      %p217 = scmp.eq.s32.totalorder %s24, 0
      %p218 = por %p216, %p217
      %p219 = scmp.ne.s32.totalorder %s207, %s208
      %p220 = scmp.eq.s32.totalorder %s25, 1
      %p221 = por %p219, %p220
      %p223 = scmp.ne.s32.totalorder %s208, %s222
      %p224 = scmp.eq.s32.totalorder %s25, 0
      %p225 = por %p223, %p224
      %s227 = sadd.s32 %s226, 1
      %p230 = scmp.eq.s32.totalorder %s19, 1
      %p231 = scmp.ne.s32.totalorder %s226, %s228
      %p232 = scmp.eq.s32.totalorder %s19, 0
      %p233 = por %p231, %p232
      %p234 = scmp.ne.s32.totalorder %s226, %s228
      %p235 = scmp.eq.s32.totalorder %s24, 1
      %p236 = por %p234, %p235
      %p237 = scmp.ne.s32.totalorder %s228, %s229
      %p238 = scmp.eq.s32.totalorder %s24, 0
      %p239 = por %p237, %p238
      %p240 = scmp.ne.s32.totalorder %s228, %s229
      %p241 = scmp.eq.s32.totalorder %s25, 1
      %p242 = por %p240, %p241
      %p244 = scmp.ne.s32.totalorder %s229, %s243
      %p245 = scmp.eq.s32.totalorder %s25, 0
      %p246 = por %p244, %p245
      %s247 = ssub.s32 %s19, %s26
      %p248 = scmp.eq.s32.totalorder %s247, 0
      %s250 = sadd.s32 %s249, 1
      %s251 = scalar_select %p248, %s249, %s250
      %p254 = pneg %p248
      %p255 = scmp.eq.s32.totalorder %s19, 1
      %p256 = por %p254, %p255
      %p257 = scmp.ne.s32.totalorder %s249, %s252
      %p258 = scmp.eq.s32.totalorder %s19, 0
      %p259 = por %p257, %p258
      %p260 = scmp.ne.s32.totalorder %s249, %s252
      %p261 = scmp.eq.s32.totalorder %s24, 1
      %p262 = por %p260, %p261
      %p263 = scmp.ne.s32.totalorder %s252, %s253
      %p264 = scmp.eq.s32.totalorder %s24, 0
      %p265 = por %p263, %p264
      %p266 = scmp.ne.s32.totalorder %s252, %s253
      %p267 = scmp.eq.s32.totalorder %s25, 1
      %p268 = por %p266, %p267
      %p270 = scmp.ne.s32.totalorder %s253, %s269
      %p271 = scmp.eq.s32.totalorder %s25, 0
      %p272 = por %p270, %p271
      %p273 = scmp.le.s32.totalorder 1, %s19
      %p274 = scmp.lt.s32.totalorder %s19, 3
      %p275 = pnand %p273, %p274
      %p276 = pneg %p275
      // Predicated region
      $region9: #{tpu_custom_call.1} parent=5 // pred_check
        _
      $region10: #{tpu_custom_call.1} parent=5 // pred_check_branch
        %278 = sbr.rel (%p275) target = $region12
      $region11: #{tpu_custom_call.1} parent=5 // pred_region
        %s279 = ssub.s32 %s19, 1
        // Predicated region
        $region13: #{tpu_custom_call.1} parent=11 // pred_check
          %p280 = pneg %p92
        $region14: #{tpu_custom_call.1} parent=11 // pred_check_branch
          %282 = sbr.rel (%p280) target = $region16
        $region15: #{tpu_custom_call.1} parent=11 // pred_region
          _
        $region16: #{tpu_custom_call.1} parent=11 // pred_fallthru
          _
        // Predicated region
        $region17: #{tpu_custom_call.1} parent=11 // pred_check
          %p283 = pneg %p113
        $region18: #{tpu_custom_call.1} parent=11 // pred_check_branch
          %285 = sbr.rel (%p283) target = $region20
        $region19: #{tpu_custom_call.1} parent=11 // pred_region
          _
        $region20: #{tpu_custom_call.1} parent=11 // pred_fallthru
          _
        // Predicated region
        $region21: #{tpu_custom_call.1} parent=11 // pred_check
          %p286 = pneg %p134
        $region22: #{tpu_custom_call.1} parent=11 // pred_check_branch
          %288 = sbr.rel (%p286) target = $region24
        $region23: #{tpu_custom_call.1} parent=11 // pred_region
          _
        $region24: #{tpu_custom_call.1} parent=11 // pred_fallthru
          _
        // Predicated region
        $region25: #{tpu_custom_call.1} parent=11 // pred_check
          %p289 = pneg %p155
        $region26: #{tpu_custom_call.1} parent=11 // pred_check_branch
          %291 = sbr.rel (%p289) target = $region28
        $region27: #{tpu_custom_call.1} parent=11 // pred_region
          _
        $region28: #{tpu_custom_call.1} parent=11 // pred_fallthru
          _
        // Predicated region
        $region29: #{tpu_custom_call.1} parent=11 // pred_check
          %p292 = pneg %p176
        $region30: #{tpu_custom_call.1} parent=11 // pred_check_branch
          %294 = sbr.rel (%p292) target = $region32
        $region31: #{tpu_custom_call.1} parent=11 // pred_region
          _
        $region32: #{tpu_custom_call.1} parent=11 // pred_fallthru
          _
        // Predicated region
        $region33: #{tpu_custom_call.1} parent=11 // pred_check
          %p295 = pneg %p197
        $region34: #{tpu_custom_call.1} parent=11 // pred_check_branch
          %297 = sbr.rel (%p295) target = $region36
        $region35: #{tpu_custom_call.1} parent=11 // pred_region
          _
        $region36: #{tpu_custom_call.1} parent=11 // pred_fallthru
          _
        // Predicated region
        $region37: #{tpu_custom_call.1} parent=11 // pred_check
          %p298 = pneg %p218
        $region38: #{tpu_custom_call.1} parent=11 // pred_check_branch
          %300 = sbr.rel (%p298) target = $region40
        $region39: #{tpu_custom_call.1} parent=11 // pred_region
          _
        $region40: #{tpu_custom_call.1} parent=11 // pred_fallthru
          _
        // Predicated region
        $region41: #{tpu_custom_call.1} parent=11 // pred_check
          %p301 = pneg %p239
        $region42: #{tpu_custom_call.1} parent=11 // pred_check_branch
          %303 = sbr.rel (%p301) target = $region44
        $region43: #{tpu_custom_call.1} parent=11 // pred_region
          _
        $region44: #{tpu_custom_call.1} parent=11 // pred_fallthru
          _
      $region12: #{tpu_custom_call.1} parent=5 // pred_fallthru
        _
      %p304 = scmp.lt.s32.totalorder %s19, 2
      // Predicated region
      $region45: #{tpu_custom_call.1} parent=5 // pred_check
        %p305 = pneg %p304
      $region46: #{tpu_custom_call.1} parent=5 // pred_check_branch
        %307 = sbr.rel (%p305) target = $region48
      $region47: #{tpu_custom_call.1} parent=5 // pred_region
        // Predicated region
        $region49: #{tpu_custom_call.1} parent=47 // pred_check
          %p308 = pneg %p39
        $region50: #{tpu_custom_call.1} parent=47 // pred_check_branch
          %310 = sbr.rel (%p308) target = $region52
        $region51: #{tpu_custom_call.1} parent=47 // pred_region
          %s311 = smul.u32 32, %s19
          %p312 = scmp.lt.s32.totalorder %s311, 63
          %s313 = scalar_select %p312, %s311, 63
          %s314 = smul.addr %s313, 8
          %s315 = scalar_lea.vmem %s0, %s314
          %s316 = smul.u32 32, %s19
        $region52: #{tpu_custom_call.1} parent=47 // pred_fallthru
          _
        // Predicated region
        $region53: #{tpu_custom_call.1} parent=47 // pred_check
          %p317 = pneg %p65
        $region54: #{tpu_custom_call.1} parent=47 // pred_check_branch
          %319 = sbr.rel (%p317) target = $region56
        $region55: #{tpu_custom_call.1} parent=47 // pred_region
          %s320 = smul.u32 32, %s19
          %p321 = scmp.lt.s32.totalorder %s320, 63
          %s322 = scalar_select %p321, %s320, 63
          %s323 = smul.addr %s322, 8
          %s324 = scalar_lea.vmem %s1, %s323
          %s325 = smul.u32 32, %s19
        $region56: #{tpu_custom_call.1} parent=47 // pred_fallthru
          _
      $region48: #{tpu_custom_call.1} parent=5 // pred_fallthru
        _
      %p326 = scmp.le.s32.totalorder 1, %s19
      %p327 = scmp.lt.s32.totalorder %s19, 3
      %p328 = pnand %p326, %p327
      %p329 = pneg %p328
      // Predicated region
      $region57: #{tpu_custom_call.1} parent=5 // pred_check
        _
      $region58: #{tpu_custom_call.1} parent=5 // pred_check_branch
        %331 = sbr.rel (%p328) target = $region60
      $region59: #{tpu_custom_call.1} parent=5 // pred_region
        %s332 = ssub.s32 %s19, 1
        %s333 = smul.u32 32, %s24
        %p334 = scmp.lt.s32.totalorder %s333, 63
        %s335 = scalar_select %p334, %s333, 63
        %s336 = smul.addr %s335, 8
        %s337 = scalar_lea.vmem %s0, %s336
        %p338 = pneg %p45
        %p339 = pneg %p42
        %s340 = smul.u32 32, %s24
        %p341 = scmp.lt.s32.totalorder %s340, 63
        %s342 = scalar_select %p341, %s340, 63
        %s343 = smul.addr %s342, 8
        %s344 = scalar_lea.vmem %s1, %s343
        %p345 = pneg %p71
        %p346 = pneg %p68
        %p347 = pneg %p92
        %p348 = pneg %p89
        %p349 = pneg %p113
        %p350 = pneg %p110
        %p351 = pneg %p134
        %p352 = pneg %p131
        %p353 = pneg %p155
        %p354 = pneg %p152
        %p355 = pneg %p176
        %p356 = pneg %p173
        %p357 = pneg %p197
        %p358 = pneg %p194
        %p359 = pneg %p218
        %p360 = pneg %p215
        %p361 = pneg %p239
        %p362 = pneg %p236
        %p363 = pneg %p265
        %p364 = pneg %p262
        %s365 = sand.u32 %s252, 1
        %s366 = scalar_lea.sflag [#allocation3], %s365
        %s367 = sand.u32 %s252, 1
        %s368 = smul.addr %s367, 32
        %s369 = scalar_lea.vmem [#allocation2], %s368
        %s370 = smul.u32 32, %s24
        %p371 = scmp.lt.s32.totalorder %s370, 63
        %s372 = scalar_select %p371, %s370, 63
        %s373 = smul.addr %s372, 8
        %s374 = scalar_lea.vmem %s0, %s373
        %s375 = smul.u32 32, %s24
        %s376 = smul.u32 32, %s24
        %p377 = scmp.lt.s32.totalorder %s376, 63
        %s378 = scalar_select %p377, %s376, 63
        %s379 = smul.addr %s378, 8
        %s380 = scalar_lea.vmem %s1, %s379
        %s381 = smul.u32 32, %s24
        %s382 = smul.u32 4, %s24
        %v384 = vld [vmem:[%s374] sm:$0xff]
        %v385 = vld [vmem:[%s374 + $0x8] sm:$0xff]
        %v386 = vld [vmem:[%s374 + $0x10] sm:$0xff]
        %v387 = vld [vmem:[%s374 + $0x18] sm:$0xff]
        %v388 = vld [vmem:[%s374 + $0x20] sm:$0xff]
        %v389 = vld [vmem:[%s374 + $0x28] sm:$0xff]
        %v390 = vld [vmem:[%s374 + $0x30] sm:$0xff]
        %v391 = vld [vmem:[%s374 + $0x38] sm:$0xff]
        %v392 = vld [vmem:[%s374 + $0x40] sm:$0xff]
        %v393 = vld [vmem:[%s374 + $0x48] sm:$0xff]
        %v394 = vld [vmem:[%s374 + $0x50] sm:$0xff]
        %v395 = vld [vmem:[%s374 + $0x58] sm:$0xff]
        %v396 = vld [vmem:[%s374 + $0x60] sm:$0xff]
        %v397 = vld [vmem:[%s374 + $0x68] sm:$0xff]
        %v398 = vld [vmem:[%s374 + $0x70] sm:$0xff]
        %v399 = vld [vmem:[%s374 + $0x78] sm:$0xff]
        %v400 = vld [vmem:[%s374 + $0x80] sm:$0xff]
        %v401 = vld [vmem:[%s374 + $0x88] sm:$0xff]
        %v402 = vld [vmem:[%s374 + $0x90] sm:$0xff]
        %v403 = vld [vmem:[%s374 + $0x98] sm:$0xff]
        %v404 = vld [vmem:[%s374 + $0xa0] sm:$0xff]
        %v405 = vld [vmem:[%s374 + $0xa8] sm:$0xff]
        %v406 = vld [vmem:[%s374 + $0xb0] sm:$0xff]
        %v407 = vld [vmem:[%s374 + $0xb8] sm:$0xff]
        %v408 = vld [vmem:[%s374 + $0xc0] sm:$0xff]
        %v409 = vld [vmem:[%s374 + $0xc8] sm:$0xff]
        %v410 = vld [vmem:[%s374 + $0xd0] sm:$0xff]
        %v411 = vld [vmem:[%s374 + $0xd8] sm:$0xff]
        %v412 = vld [vmem:[%s374 + $0xe0] sm:$0xff]
        %v413 = vld [vmem:[%s374 + $0xe8] sm:$0xff]
        %v414 = vld [vmem:[%s374 + $0xf0] sm:$0xff]
        %v415 = vld [vmem:[%s374 + $0xf8] sm:$0xff]
        %v416 = vpack.c.bf16 %v384, %v384
        %v417 = vpack.c.bf16 %v385, %v385
        %v418 = vpack.c.bf16 %v386, %v386
        %v419 = vpack.c.bf16 %v387, %v387
        %v420 = vpack.c.bf16 %v388, %v388
        %v421 = vpack.c.bf16 %v389, %v389
        %v422 = vpack.c.bf16 %v390, %v390
        %v423 = vpack.c.bf16 %v391, %v391
        %v424 = vpack.c.bf16 %v392, %v392
        %v425 = vpack.c.bf16 %v393, %v393
        %v426 = vpack.c.bf16 %v394, %v394
        %v427 = vpack.c.bf16 %v395, %v395
        %v428 = vpack.c.bf16 %v396, %v396
        %v429 = vpack.c.bf16 %v397, %v397
        %v430 = vpack.c.bf16 %v398, %v398
        %v431 = vpack.c.bf16 %v399, %v399
        %v432 = vpack.c.bf16 %v400, %v400
        %v433 = vpack.c.bf16 %v401, %v401
        %v434 = vpack.c.bf16 %v402, %v402
        %v435 = vpack.c.bf16 %v403, %v403
        %v436 = vpack.c.bf16 %v404, %v404
        %v437 = vpack.c.bf16 %v405, %v405
        %v438 = vpack.c.bf16 %v406, %v406
        %v439 = vpack.c.bf16 %v407, %v407
        %v440 = vpack.c.bf16 %v408, %v408
        %v441 = vpack.c.bf16 %v409, %v409
        %v442 = vpack.c.bf16 %v410, %v410
        %v443 = vpack.c.bf16 %v411, %v411
        %v444 = vpack.c.bf16 %v412, %v412
        %v445 = vpack.c.bf16 %v413, %v413
        %v446 = vpack.c.bf16 %v414, %v414
        %v447 = vpack.c.bf16 %v415, %v415
        %v448 = vld [vmem:[%s380] sm:$0xff]
        %v449 = vld [vmem:[%s380 + $0x8] sm:$0xff]
        %v450 = vld [vmem:[%s380 + $0x10] sm:$0xff]
        %v451 = vld [vmem:[%s380 + $0x18] sm:$0xff]
        %v452 = vld [vmem:[%s380 + $0x20] sm:$0xff]
        %v453 = vld [vmem:[%s380 + $0x28] sm:$0xff]
        %v454 = vld [vmem:[%s380 + $0x30] sm:$0xff]
        %v455 = vld [vmem:[%s380 + $0x38] sm:$0xff]
        %v456 = vld [vmem:[%s380 + $0x40] sm:$0xff]
        %v457 = vld [vmem:[%s380 + $0x48] sm:$0xff]
        %v458 = vld [vmem:[%s380 + $0x50] sm:$0xff]
        %v459 = vld [vmem:[%s380 + $0x58] sm:$0xff]
        %v460 = vld [vmem:[%s380 + $0x60] sm:$0xff]
        %v461 = vld [vmem:[%s380 + $0x68] sm:$0xff]
        %v462 = vld [vmem:[%s380 + $0x70] sm:$0xff]
        %v463 = vld [vmem:[%s380 + $0x78] sm:$0xff]
        %v464 = vld [vmem:[%s380 + $0x80] sm:$0xff]
        %v465 = vld [vmem:[%s380 + $0x88] sm:$0xff]
        %v466 = vld [vmem:[%s380 + $0x90] sm:$0xff]
        %v467 = vld [vmem:[%s380 + $0x98] sm:$0xff]
        %v468 = vld [vmem:[%s380 + $0xa0] sm:$0xff]
        %v469 = vld [vmem:[%s380 + $0xa8] sm:$0xff]
        %v470 = vld [vmem:[%s380 + $0xb0] sm:$0xff]
        %v471 = vld [vmem:[%s380 + $0xb8] sm:$0xff]
        %v472 = vld [vmem:[%s380 + $0xc0] sm:$0xff]
        %v473 = vld [vmem:[%s380 + $0xc8] sm:$0xff]
        %v474 = vld [vmem:[%s380 + $0xd0] sm:$0xff]
        %v475 = vld [vmem:[%s380 + $0xd8] sm:$0xff]
        %v476 = vld [vmem:[%s380 + $0xe0] sm:$0xff]
        %v477 = vld [vmem:[%s380 + $0xe8] sm:$0xff]
        %v478 = vld [vmem:[%s380 + $0xf0] sm:$0xff]
        %v479 = vld [vmem:[%s380 + $0xf8] sm:$0xff]
        %v480 = vpack.c.bf16 %v448, %v448
        %v481 = vpack.c.bf16 %v449, %v449
        %v482 = vpack.c.bf16 %v450, %v450
        %v483 = vpack.c.bf16 %v451, %v451
        %v484 = vpack.c.bf16 %v452, %v452
        %v485 = vpack.c.bf16 %v453, %v453
        %v486 = vpack.c.bf16 %v454, %v454
        %v487 = vpack.c.bf16 %v455, %v455
        %v488 = vpack.c.bf16 %v456, %v456
        %v489 = vpack.c.bf16 %v457, %v457
        %v490 = vpack.c.bf16 %v458, %v458
        %v491 = vpack.c.bf16 %v459, %v459
        %v492 = vpack.c.bf16 %v460, %v460
        %v493 = vpack.c.bf16 %v461, %v461
        %v494 = vpack.c.bf16 %v462, %v462
        %v495 = vpack.c.bf16 %v463, %v463
        %v496 = vpack.c.bf16 %v464, %v464
        %v497 = vpack.c.bf16 %v465, %v465
        %v498 = vpack.c.bf16 %v466, %v466
        %v499 = vpack.c.bf16 %v467, %v467
        %v500 = vpack.c.bf16 %v468, %v468
        %v501 = vpack.c.bf16 %v469, %v469
        %v502 = vpack.c.bf16 %v470, %v470
        %v503 = vpack.c.bf16 %v471, %v471
        %v504 = vpack.c.bf16 %v472, %v472
        %v505 = vpack.c.bf16 %v473, %v473
        %v506 = vpack.c.bf16 %v474, %v474
        %v507 = vpack.c.bf16 %v475, %v475
        %v508 = vpack.c.bf16 %v476, %v476
        %v509 = vpack.c.bf16 %v477, %v477
        %v510 = vpack.c.bf16 %v478, %v478
        %v511 = vpack.c.bf16 %v479, %v479
        %v544 = vunpack.c.l.b16 %v416
        %v545 = vunpack.c.l.b16 %v417
        %v546 = vunpack.c.l.b16 %v418
        %v547 = vunpack.c.l.b16 %v419
        %v548 = vunpack.c.l.b16 %v420
        %v549 = vunpack.c.l.b16 %v421
        %v550 = vunpack.c.l.b16 %v422
        %v551 = vunpack.c.l.b16 %v423
        %v552 = vunpack.c.l.b16 %v424
        %v553 = vunpack.c.l.b16 %v425
        %v554 = vunpack.c.l.b16 %v426
        %v555 = vunpack.c.l.b16 %v427
        %v556 = vunpack.c.l.b16 %v428
        %v557 = vunpack.c.l.b16 %v429
        %v558 = vunpack.c.l.b16 %v430
        %v559 = vunpack.c.l.b16 %v431
        %v560 = vunpack.c.l.b16 %v432
        %v561 = vunpack.c.l.b16 %v433
        %v562 = vunpack.c.l.b16 %v434
        %v563 = vunpack.c.l.b16 %v435
        %v564 = vunpack.c.l.b16 %v436
        %v565 = vunpack.c.l.b16 %v437
        %v566 = vunpack.c.l.b16 %v438
        %v567 = vunpack.c.l.b16 %v439
        %v568 = vunpack.c.l.b16 %v440
        %v569 = vunpack.c.l.b16 %v441
        %v570 = vunpack.c.l.b16 %v442
        %v571 = vunpack.c.l.b16 %v443
        %v572 = vunpack.c.l.b16 %v444
        %v573 = vunpack.c.l.b16 %v445
        %v574 = vunpack.c.l.b16 %v446
        %v575 = vunpack.c.l.b16 %v447
        %v576 = vpack.c.b16 %v545, %v544
        %v577 = vpack.c.b16 %v547, %v546
        %v578 = vpack.c.b16 %v549, %v548
        %v579 = vpack.c.b16 %v551, %v550
        %v580 = vpack.c.b16 %v553, %v552
        %v581 = vpack.c.b16 %v555, %v554
        %v582 = vpack.c.b16 %v557, %v556
        %v583 = vpack.c.b16 %v559, %v558
        %v584 = vpack.c.b16 %v561, %v560
        %v585 = vpack.c.b16 %v563, %v562
        %v586 = vpack.c.b16 %v565, %v564
        %v587 = vpack.c.b16 %v567, %v566
        %v588 = vpack.c.b16 %v569, %v568
        %v589 = vpack.c.b16 %v571, %v570
        %v590 = vpack.c.b16 %v573, %v572
        %v591 = vpack.c.b16 %v575, %v574
        %v624 = vunpack.c.l.b16 %v480
        %v625 = vunpack.c.l.b16 %v481
        %v626 = vunpack.c.l.b16 %v482
        %v627 = vunpack.c.l.b16 %v483
        %v628 = vunpack.c.l.b16 %v484
        %v629 = vunpack.c.l.b16 %v485
        %v630 = vunpack.c.l.b16 %v486
        %v631 = vunpack.c.l.b16 %v487
        %v632 = vunpack.c.l.b16 %v488
        %v633 = vunpack.c.l.b16 %v489
        %v634 = vunpack.c.l.b16 %v490
        %v635 = vunpack.c.l.b16 %v491
        %v636 = vunpack.c.l.b16 %v492
        %v637 = vunpack.c.l.b16 %v493
        %v638 = vunpack.c.l.b16 %v494
        %v639 = vunpack.c.l.b16 %v495
        %v640 = vunpack.c.l.b16 %v496
        %v641 = vunpack.c.l.b16 %v497
        %v642 = vunpack.c.l.b16 %v498
        %v643 = vunpack.c.l.b16 %v499
        %v644 = vunpack.c.l.b16 %v500
        %v645 = vunpack.c.l.b16 %v501
        %v646 = vunpack.c.l.b16 %v502
        %v647 = vunpack.c.l.b16 %v503
        %v648 = vunpack.c.l.b16 %v504
        %v649 = vunpack.c.l.b16 %v505
        %v650 = vunpack.c.l.b16 %v506
        %v651 = vunpack.c.l.b16 %v507
        %v652 = vunpack.c.l.b16 %v508
        %v653 = vunpack.c.l.b16 %v509
        %v654 = vunpack.c.l.b16 %v510
        %v655 = vunpack.c.l.b16 %v511
        %v656 = vpack.c.b16 %v625, %v624
        %v657 = vpack.c.b16 %v627, %v626
        %v658 = vpack.c.b16 %v629, %v628
        %v659 = vpack.c.b16 %v631, %v630
        %v660 = vpack.c.b16 %v633, %v632
        %v661 = vpack.c.b16 %v635, %v634
        %v662 = vpack.c.b16 %v637, %v636
        %v663 = vpack.c.b16 %v639, %v638
        %v664 = vpack.c.b16 %v641, %v640
        %v665 = vpack.c.b16 %v643, %v642
        %v666 = vpack.c.b16 %v645, %v644
        %v667 = vpack.c.b16 %v647, %v646
        %v668 = vpack.c.b16 %v649, %v648
        %v669 = vpack.c.b16 %v651, %v650
        %v670 = vpack.c.b16 %v653, %v652
        %v671 = vpack.c.b16 %v655, %v654
        %v672 = vld [vmem:[%s2] sm:$0xf]
        %v673 = vld [vmem:[%s2 + $0x4] sm:$0xf]
        %v674 = vld [vmem:[%s2 + $0x8] sm:$0xf]
        %v675 = vld [vmem:[%s2 + $0xc] sm:$0xf]
        %v676 = vld [vmem:[%s3] sm:$0x1]
        %v678 = vlaneseq
        %v679 = vshrl.u32 %v678, 7
        %v680 = vsub.s32 0, %v679
        %v681 = vrot.slane %v676, %v680
        %v687 = vunpack.c.l.b16 %v672
        %v688 = vunpack.c.l.b16 %v673
        %v689 = vunpack.c.l.b16 %v674
        %v690 = vunpack.c.l.b16 %v675
        %v691 = vpack.c.b16 %v688, %v687
        %v692 = vpack.c.b16 %v690, %v689
        %vm695 = vcmask 261120
        %v697 = vsel %vm695, %v576, 0
        %v700 = vsel %vm695, %v577, 0
        %v703 = vsel %vm695, %v578, 0
        %v706 = vsel %vm695, %v579, 0
        %v709 = vsel %vm695, %v580, 0
        %v712 = vsel %vm695, %v581, 0
        %v715 = vsel %vm695, %v582, 0
        %v718 = vsel %vm695, %v583, 0
        %v721 = vsel %vm695, %v584, 0
        %v724 = vsel %vm695, %v585, 0
        %v727 = vsel %vm695, %v586, 0
        %v730 = vsel %vm695, %v587, 0
        %v733 = vsel %vm695, %v588, 0
        %v736 = vsel %vm695, %v589, 0
        %v739 = vsel %vm695, %v590, 0
        %v742 = vsel %vm695, %v591, 0
        %v745 = vsel %vm695, %v656, 0
        %v748 = vsel %vm695, %v657, 0
        %v751 = vsel %vm695, %v658, 0
        %v754 = vsel %vm695, %v659, 0
        %v757 = vsel %vm695, %v660, 0
        %v760 = vsel %vm695, %v661, 0
        %v763 = vsel %vm695, %v662, 0
        %v766 = vsel %vm695, %v663, 0
        %v769 = vsel %vm695, %v664, 0
        %v772 = vsel %vm695, %v665, 0
        %v775 = vsel %vm695, %v666, 0
        %v778 = vsel %vm695, %v667, 0
        %v781 = vsel %vm695, %v668, 0
        %v784 = vsel %vm695, %v669, 0
        %v787 = vsel %vm695, %v670, 0
        %v790 = vsel %vm695, %v671, 0
        %792 = vmatprep.subr.bf16.mxu0 0
        %793 = vmatpush1.bf16.msra.mxu0 %v691
        %794 = vmatprep.subr.bf16.mxu0 0
        %795 = vmatpush1.bf16.msra.mxu0 %v692
        %796 = vmatprep.subr.bf16.mxu0 0
        %797 = vmatpush1.bf16.msra.mxu0 0
        %798 = vmatprep.subr.bf16.mxu0 0
        %799 = vmatpush1.bf16.msra.mxu0 0
        %800 = vmatprep.subr.bf16.mxu0 0
        %801 = vmatpush1.bf16.msra.mxu0 0
        %802 = vmatprep.subr.bf16.mxu0 0
        %803 = vmatpush1.bf16.msra.mxu0 0
        %804 = vmatprep.subr.bf16.mxu0 0
        %805 = vmatpush1.bf16.msra.mxu0 0
        %806 = vmatprep.subr.bf16.mxu0 0
        %807 = vmatpush1.bf16.msra.mxu0 0
        %808 = vmatprep.subr.bf16.mxu0 0
        %809 = vmatpush1.bf16.msra.mxu0 0
        %810 = vmatprep.subr.bf16.mxu0 0
        %811 = vmatpush1.bf16.msra.mxu0 0
        %812 = vmatprep.subr.bf16.mxu0 0
        %813 = vmatpush1.bf16.msra.mxu0 0
        %814 = vmatprep.subr.bf16.mxu0 0
        %815 = vmatpush1.bf16.msra.mxu0 0
        %816 = vmatprep.subr.bf16.mxu0 0
        %817 = vmatpush1.bf16.msra.mxu0 0
        %818 = vmatprep.subr.bf16.mxu0 0
        %819 = vmatpush1.bf16.msra.mxu0 0
        %820 = vmatprep.subr.bf16.mxu0 0
        %821 = vmatpush1.bf16.msra.mxu0 0
        %822 = vmatprep.subr.bf16.mxu0 0
        %823 = vmatpush1.bf16.msra.mxu0 0
        %824 = vmatprep.mubr.bf16.mxu0 0
        %825 = vmatmul.mubr.bf16.gmra.mrb[0].mxu0 %v697
        %v826 = vpop.f32.mrb[0].mxu0
        %v827 = vadd.f32 %v681, %v826
        %v828 = vpop.f32.mrb[0].mxu0
        %v829 = vpop.f32.mrb[0].mxu0
        %v830 = vadd.f32 %v681, %v829
        %v831 = vpop.f32.mrb[0].mxu0
        %832 = vmatprep.mubr.bf16.mxu0 0
        %833 = vmatmul.mubr.bf16.gmra.mrb[0].mxu0 %v700
        %v834 = vpop.f32.mrb[0].mxu0
        %v835 = vadd.f32 %v681, %v834
        %v836 = vpop.f32.mrb[0].mxu0
        %v837 = vpop.f32.mrb[0].mxu0
        %v838 = vadd.f32 %v681, %v837
        %v839 = vpop.f32.mrb[0].mxu0
        %840 = vmatprep.mubr.bf16.mxu0 0
        %841 = vmatmul.mubr.bf16.gmra.mrb[0].mxu0 %v703
        %v842 = vpop.f32.mrb[0].mxu0
        %v843 = vadd.f32 %v681, %v842
        %v844 = vpop.f32.mrb[0].mxu0
        %v845 = vpop.f32.mrb[0].mxu0
        %v846 = vadd.f32 %v681, %v845
        %v847 = vpop.f32.mrb[0].mxu0
        %848 = vmatprep.mubr.bf16.mxu0 0
        %849 = vmatmul.mubr.bf16.gmra.mrb[0].mxu0 %v706
        %v850 = vpop.f32.mrb[0].mxu0
        %v851 = vadd.f32 %v681, %v850
        %v852 = vpop.f32.mrb[0].mxu0
        %v853 = vpop.f32.mrb[0].mxu0
        %v854 = vadd.f32 %v681, %v853
        %v855 = vpop.f32.mrb[0].mxu0
        %856 = vmatprep.mubr.bf16.mxu0 0
        %857 = vmatmul.mubr.bf16.gmra.mrb[0].mxu0 %v709
        %v858 = vpop.f32.mrb[0].mxu0
        %v859 = vadd.f32 %v681, %v858
        %v860 = vpop.f32.mrb[0].mxu0
        %v861 = vpop.f32.mrb[0].mxu0
        %v862 = vadd.f32 %v681, %v861
        %v863 = vpop.f32.mrb[0].mxu0
        %864 = vmatprep.mubr.bf16.mxu0 0
        %865 = vmatmul.mubr.bf16.gmra.mrb[0].mxu0 %v712
        %v866 = vpop.f32.mrb[0].mxu0
        %v867 = vadd.f32 %v681, %v866
        %v868 = vpop.f32.mrb[0].mxu0
        %v869 = vpop.f32.mrb[0].mxu0
        %v870 = vadd.f32 %v681, %v869
        %v871 = vpop.f32.mrb[0].mxu0
        %872 = vmatprep.mubr.bf16.mxu0 0
        %873 = vmatmul.mubr.bf16.gmra.mrb[0].mxu0 %v715
        %v874 = vpop.f32.mrb[0].mxu0
        %v875 = vadd.f32 %v681, %v874
        %v876 = vpop.f32.mrb[0].mxu0
        %v877 = vpop.f32.mrb[0].mxu0
        %v878 = vadd.f32 %v681, %v877
        %v879 = vpop.f32.mrb[0].mxu0
        %880 = vmatprep.mubr.bf16.mxu0 0
        %881 = vmatmul.mubr.bf16.gmra.mrb[0].mxu0 %v718
        %v882 = vpop.f32.mrb[0].mxu0
        %v883 = vadd.f32 %v681, %v882
        %v884 = vpop.f32.mrb[0].mxu0
        %v885 = vpop.f32.mrb[0].mxu0
        %v886 = vadd.f32 %v681, %v885
        %v887 = vpop.f32.mrb[0].mxu0
        %888 = vmatprep.mubr.bf16.mxu0 0
        %889 = vmatmul.mubr.bf16.gmra.mrb[0].mxu0 %v721
        %v890 = vpop.f32.mrb[0].mxu0
        %v891 = vadd.f32 %v681, %v890
        %v892 = vpop.f32.mrb[0].mxu0
        %v893 = vpop.f32.mrb[0].mxu0
        %v894 = vadd.f32 %v681, %v893
        %v895 = vpop.f32.mrb[0].mxu0
        %896 = vmatprep.mubr.bf16.mxu0 0
        %897 = vmatmul.mubr.bf16.gmra.mrb[0].mxu0 %v724
        %v898 = vpop.f32.mrb[0].mxu0
        %v899 = vadd.f32 %v681, %v898
        %v900 = vpop.f32.mrb[0].mxu0
        %v901 = vpop.f32.mrb[0].mxu0
        %v902 = vadd.f32 %v681, %v901
        %v903 = vpop.f32.mrb[0].mxu0
        %904 = vmatprep.mubr.bf16.mxu0 0
        %905 = vmatmul.mubr.bf16.gmra.mrb[0].mxu0 %v727
        %v906 = vpop.f32.mrb[0].mxu0
        %v907 = vadd.f32 %v681, %v906
        %v908 = vpop.f32.mrb[0].mxu0
        %v909 = vpop.f32.mrb[0].mxu0
        %v910 = vadd.f32 %v681, %v909
        %v911 = vpop.f32.mrb[0].mxu0
        %912 = vmatprep.mubr.bf16.mxu0 0
        %913 = vmatmul.mubr.bf16.gmra.mrb[0].mxu0 %v730
        %v914 = vpop.f32.mrb[0].mxu0
        %v915 = vadd.f32 %v681, %v914
        %v916 = vpop.f32.mrb[0].mxu0
        %v917 = vpop.f32.mrb[0].mxu0
        %v918 = vadd.f32 %v681, %v917
        %v919 = vpop.f32.mrb[0].mxu0
        %920 = vmatprep.mubr.bf16.mxu0 0
        %921 = vmatmul.mubr.bf16.gmra.mrb[0].mxu0 %v733
        %v922 = vpop.f32.mrb[0].mxu0
        %v923 = vadd.f32 %v681, %v922
        %v924 = vpop.f32.mrb[0].mxu0
        %v925 = vpop.f32.mrb[0].mxu0
        %v926 = vadd.f32 %v681, %v925
        %v927 = vpop.f32.mrb[0].mxu0
        %928 = vmatprep.mubr.bf16.mxu0 0
        %929 = vmatmul.mubr.bf16.gmra.mrb[0].mxu0 %v736
        %v930 = vpop.f32.mrb[0].mxu0
        %v931 = vadd.f32 %v681, %v930
        %v932 = vpop.f32.mrb[0].mxu0
        %v933 = vpop.f32.mrb[0].mxu0
        %v934 = vadd.f32 %v681, %v933
        %v935 = vpop.f32.mrb[0].mxu0
        %936 = vmatprep.mubr.bf16.mxu0 0
        %937 = vmatmul.mubr.bf16.gmra.mrb[0].mxu0 %v739
        %v938 = vpop.f32.mrb[0].mxu0
        %v939 = vadd.f32 %v681, %v938
        %v940 = vpop.f32.mrb[0].mxu0
        %v941 = vpop.f32.mrb[0].mxu0
        %v942 = vadd.f32 %v681, %v941
        %v943 = vpop.f32.mrb[0].mxu0
        %944 = vmatprep.mubr.bf16.mxu0 0
        %945 = vmatmul.mubr.bf16.gmra.mrb[0].mxu0 %v742
        %v946 = vpop.f32.mrb[0].mxu0
        %v947 = vadd.f32 %v681, %v946
        %v948 = vpop.f32.mrb[0].mxu0
        %v949 = vpop.f32.mrb[0].mxu0
        %v950 = vadd.f32 %v681, %v949
        %v951 = vpop.f32.mrb[0].mxu0
        %952 = vmatprep.mubr.bf16.mxu0 0
        %953 = vmatmul.mubr.bf16.gmra.mrb[0].mxu0 %v745
        %v954 = vpop.f32.mrb[0].mxu0
        %v955 = vadd.f32 %v681, %v954
        %v956 = vpop.f32.mrb[0].mxu0
        %v957 = vpop.f32.mrb[0].mxu0
        %v958 = vadd.f32 %v681, %v957
        %v959 = vpop.f32.mrb[0].mxu0
        %960 = vmatprep.mubr.bf16.mxu0 0
        %961 = vmatmul.mubr.bf16.gmra.mrb[0].mxu0 %v748
        %v962 = vpop.f32.mrb[0].mxu0
        %v963 = vadd.f32 %v681, %v962
        %v964 = vpop.f32.mrb[0].mxu0
        %v965 = vpop.f32.mrb[0].mxu0
        %v966 = vadd.f32 %v681, %v965
        %v967 = vpop.f32.mrb[0].mxu0
        %968 = vmatprep.mubr.bf16.mxu0 0
        %969 = vmatmul.mubr.bf16.gmra.mrb[0].mxu0 %v751
        %v970 = vpop.f32.mrb[0].mxu0
        %v971 = vadd.f32 %v681, %v970
        %v972 = vpop.f32.mrb[0].mxu0
        %v973 = vpop.f32.mrb[0].mxu0
        %v974 = vadd.f32 %v681, %v973
        %v975 = vpop.f32.mrb[0].mxu0
        %976 = vmatprep.mubr.bf16.mxu0 0
        %977 = vmatmul.mubr.bf16.gmra.mrb[0].mxu0 %v754
        %v978 = vpop.f32.mrb[0].mxu0
        %v979 = vadd.f32 %v681, %v978
        %v980 = vpop.f32.mrb[0].mxu0
        %v981 = vpop.f32.mrb[0].mxu0
        %v982 = vadd.f32 %v681, %v981
        %v983 = vpop.f32.mrb[0].mxu0
        %984 = vmatprep.mubr.bf16.mxu0 0
        %985 = vmatmul.mubr.bf16.gmra.mrb[0].mxu0 %v757
        %v986 = vpop.f32.mrb[0].mxu0
        %v987 = vadd.f32 %v681, %v986
        %v988 = vpop.f32.mrb[0].mxu0
        %v989 = vpop.f32.mrb[0].mxu0
        %v990 = vadd.f32 %v681, %v989
        %v991 = vpop.f32.mrb[0].mxu0
        %992 = vmatprep.mubr.bf16.mxu0 0
        %993 = vmatmul.mubr.bf16.gmra.mrb[0].mxu0 %v760
        %v994 = vpop.f32.mrb[0].mxu0
        %v995 = vadd.f32 %v681, %v994
        %v996 = vpop.f32.mrb[0].mxu0
        %v997 = vpop.f32.mrb[0].mxu0
        %v998 = vadd.f32 %v681, %v997
        %v999 = vpop.f32.mrb[0].mxu0
        %1000 = vmatprep.mubr.bf16.mxu0 0
        %1001 = vmatmul.mubr.bf16.gmra.mrb[0].mxu0 %v763
        %v1002 = vpop.f32.mrb[0].mxu0
        %v1003 = vadd.f32 %v681, %v1002
        %v1004 = vpop.f32.mrb[0].mxu0
        %v1005 = vpop.f32.mrb[0].mxu0
        %v1006 = vadd.f32 %v681, %v1005
        %v1007 = vpop.f32.mrb[0].mxu0
        %1008 = vmatprep.mubr.bf16.mxu0 0
        %1009 = vmatmul.mubr.bf16.gmra.mrb[0].mxu0 %v766
        %v1010 = vpop.f32.mrb[0].mxu0
        %v1011 = vadd.f32 %v681, %v1010
        %v1012 = vpop.f32.mrb[0].mxu0
        %v1013 = vpop.f32.mrb[0].mxu0
        %v1014 = vadd.f32 %v681, %v1013
        %v1015 = vpop.f32.mrb[0].mxu0
        %1016 = vmatprep.mubr.bf16.mxu0 0
        %1017 = vmatmul.mubr.bf16.gmra.mrb[0].mxu0 %v769
        %v1018 = vpop.f32.mrb[0].mxu0
        %v1019 = vadd.f32 %v681, %v1018
        %v1020 = vpop.f32.mrb[0].mxu0
        %v1021 = vpop.f32.mrb[0].mxu0
        %v1022 = vadd.f32 %v681, %v1021
        %v1023 = vpop.f32.mrb[0].mxu0
        %1024 = vmatprep.mubr.bf16.mxu0 0
        %1025 = vmatmul.mubr.bf16.gmra.mrb[0].mxu0 %v772
        %v1026 = vpop.f32.mrb[0].mxu0
        %v1027 = vadd.f32 %v681, %v1026
        %v1028 = vpop.f32.mrb[0].mxu0
        %v1029 = vpop.f32.mrb[0].mxu0
        %v1030 = vadd.f32 %v681, %v1029
        %v1031 = vpop.f32.mrb[0].mxu0
        %1032 = vmatprep.mubr.bf16.mxu0 0
        %1033 = vmatmul.mubr.bf16.gmra.mrb[0].mxu0 %v775
        %v1034 = vpop.f32.mrb[0].mxu0
        %v1035 = vadd.f32 %v681, %v1034
        %v1036 = vpop.f32.mrb[0].mxu0
        %v1037 = vpop.f32.mrb[0].mxu0
        %v1038 = vadd.f32 %v681, %v1037
        %v1039 = vpop.f32.mrb[0].mxu0
        %1040 = vmatprep.mubr.bf16.mxu0 0
        %1041 = vmatmul.mubr.bf16.gmra.mrb[0].mxu0 %v778
        %v1042 = vpop.f32.mrb[0].mxu0
        %v1043 = vadd.f32 %v681, %v1042
        %v1044 = vpop.f32.mrb[0].mxu0
        %v1045 = vpop.f32.mrb[0].mxu0
        %v1046 = vadd.f32 %v681, %v1045
        %v1047 = vpop.f32.mrb[0].mxu0
        %1048 = vmatprep.mubr.bf16.mxu0 0
        %1049 = vmatmul.mubr.bf16.gmra.mrb[0].mxu0 %v781
        %v1050 = vpop.f32.mrb[0].mxu0
        %v1051 = vadd.f32 %v681, %v1050
        %v1052 = vpop.f32.mrb[0].mxu0
        %v1053 = vpop.f32.mrb[0].mxu0
        %v1054 = vadd.f32 %v681, %v1053
        %v1055 = vpop.f32.mrb[0].mxu0
        %1056 = vmatprep.mubr.bf16.mxu0 0
        %1057 = vmatmul.mubr.bf16.gmra.mrb[0].mxu0 %v784
        %v1058 = vpop.f32.mrb[0].mxu0
        %v1059 = vadd.f32 %v681, %v1058
        %v1060 = vpop.f32.mrb[0].mxu0
        %v1061 = vpop.f32.mrb[0].mxu0
        %v1062 = vadd.f32 %v681, %v1061
        %v1063 = vpop.f32.mrb[0].mxu0
        %1064 = vmatprep.mubr.bf16.mxu0 0
        %1065 = vmatmul.mubr.bf16.gmra.mrb[0].mxu0 %v787
        %v1066 = vpop.f32.mrb[0].mxu0
        %v1067 = vadd.f32 %v681, %v1066
        %v1068 = vpop.f32.mrb[0].mxu0
        %v1069 = vpop.f32.mrb[0].mxu0
        %v1070 = vadd.f32 %v681, %v1069
        %v1071 = vpop.f32.mrb[0].mxu0
        %1072 = vmatprep.mubr.bf16.mxu0 0
        %1073 = vmatmul.mubr.bf16.gmra.mrb[0].mxu0 %v790
        %v1074 = vpop.f32.mrb[0].mxu0
        %v1075 = vadd.f32 %v681, %v1074
        %v1076 = vpop.f32.mrb[0].mxu0
        %v1077 = vpop.f32.mrb[0].mxu0
        %v1078 = vadd.f32 %v681, %v1077
        %v1079 = vpop.f32.mrb[0].mxu0
        %1080 = vdwg.mxu0
        %v1081 = vmax.f32 %v827, 0.0
        %v1082 = vmax.f32 %v830, 0.0
        %v1083 = vmax.f32 %v835, 0.0
        %v1084 = vmax.f32 %v838, 0.0
        %v1085 = vmax.f32 %v843, 0.0
        %v1086 = vmax.f32 %v846, 0.0
        %v1087 = vmax.f32 %v851, 0.0
        %v1088 = vmax.f32 %v854, 0.0
        %v1089 = vmax.f32 %v859, 0.0
        %v1090 = vmax.f32 %v862, 0.0
        %v1091 = vmax.f32 %v867, 0.0
        %v1092 = vmax.f32 %v870, 0.0
        %v1093 = vmax.f32 %v875, 0.0
        %v1094 = vmax.f32 %v878, 0.0
        %v1095 = vmax.f32 %v883, 0.0
        %v1096 = vmax.f32 %v886, 0.0
        %v1097 = vmax.f32 %v891, 0.0
        %v1098 = vmax.f32 %v894, 0.0
        %v1099 = vmax.f32 %v899, 0.0
        %v1100 = vmax.f32 %v902, 0.0
        %v1101 = vmax.f32 %v907, 0.0
        %v1102 = vmax.f32 %v910, 0.0
        %v1103 = vmax.f32 %v915, 0.0
        %v1104 = vmax.f32 %v918, 0.0
        %v1105 = vmax.f32 %v923, 0.0
        %v1106 = vmax.f32 %v926, 0.0
        %v1107 = vmax.f32 %v931, 0.0
        %v1108 = vmax.f32 %v934, 0.0
        %v1109 = vmax.f32 %v939, 0.0
        %v1110 = vmax.f32 %v942, 0.0
        %v1111 = vmax.f32 %v947, 0.0
        %v1112 = vmax.f32 %v950, 0.0
        %v1113 = vmax.f32 %v955, 0.0
        %v1114 = vmax.f32 %v958, 0.0
        %v1115 = vmax.f32 %v963, 0.0
        %v1116 = vmax.f32 %v966, 0.0
        %v1117 = vmax.f32 %v971, 0.0
        %v1118 = vmax.f32 %v974, 0.0
        %v1119 = vmax.f32 %v979, 0.0
        %v1120 = vmax.f32 %v982, 0.0
        %v1121 = vmax.f32 %v987, 0.0
        %v1122 = vmax.f32 %v990, 0.0
        %v1123 = vmax.f32 %v995, 0.0
        %v1124 = vmax.f32 %v998, 0.0
        %v1125 = vmax.f32 %v1003, 0.0
        %v1126 = vmax.f32 %v1006, 0.0
        %v1127 = vmax.f32 %v1011, 0.0
        %v1128 = vmax.f32 %v1014, 0.0
        %v1129 = vmax.f32 %v1019, 0.0
        %v1130 = vmax.f32 %v1022, 0.0
        %v1131 = vmax.f32 %v1027, 0.0
        %v1132 = vmax.f32 %v1030, 0.0
        %v1133 = vmax.f32 %v1035, 0.0
        %v1134 = vmax.f32 %v1038, 0.0
        %v1135 = vmax.f32 %v1043, 0.0
        %v1136 = vmax.f32 %v1046, 0.0
        %v1137 = vmax.f32 %v1051, 0.0
        %v1138 = vmax.f32 %v1054, 0.0
        %v1139 = vmax.f32 %v1059, 0.0
        %v1140 = vmax.f32 %v1062, 0.0
        %v1141 = vmax.f32 %v1067, 0.0
        %v1142 = vmax.f32 %v1070, 0.0
        %v1143 = vmax.f32 %v1075, 0.0
        %v1144 = vmax.f32 %v1078, 0.0
        %v1145 = vld [vmem:[%s4] sm:$0x1]
        %v1147 = vlaneseq
        %v1148 = vshrl.u32 %v1147, 7
        %v1149 = vsub.s32 0, %v1148
        %v1150 = vrot.slane %v1145, %v1149
        %v1152 = vmul.f32 %v1081, %v1150
        %v1153 = vmul.f32 %v1082, %v1150
        %v1154 = vmul.f32 %v1083, %v1150
        %v1155 = vmul.f32 %v1084, %v1150
        %v1156 = vmul.f32 %v1085, %v1150
        %v1157 = vmul.f32 %v1086, %v1150
        %v1158 = vmul.f32 %v1087, %v1150
        %v1159 = vmul.f32 %v1088, %v1150
        %v1160 = vmul.f32 %v1089, %v1150
        %v1161 = vmul.f32 %v1090, %v1150
        %v1162 = vmul.f32 %v1091, %v1150
        %v1163 = vmul.f32 %v1092, %v1150
        %v1164 = vmul.f32 %v1093, %v1150
        %v1165 = vmul.f32 %v1094, %v1150
        %v1166 = vmul.f32 %v1095, %v1150
        %v1167 = vmul.f32 %v1096, %v1150
        %v1168 = vmul.f32 %v1097, %v1150
        %v1169 = vmul.f32 %v1098, %v1150
        %v1170 = vmul.f32 %v1099, %v1150
        %v1171 = vmul.f32 %v1100, %v1150
        %v1172 = vmul.f32 %v1101, %v1150
        %v1173 = vmul.f32 %v1102, %v1150
        %v1174 = vmul.f32 %v1103, %v1150
        %v1175 = vmul.f32 %v1104, %v1150
        %v1176 = vmul.f32 %v1105, %v1150
        %v1177 = vmul.f32 %v1106, %v1150
        %v1178 = vmul.f32 %v1107, %v1150
        %v1179 = vmul.f32 %v1108, %v1150
        %v1180 = vmul.f32 %v1109, %v1150
        %v1181 = vmul.f32 %v1110, %v1150
        %v1182 = vmul.f32 %v1111, %v1150
        %v1183 = vmul.f32 %v1112, %v1150
        %v1184 = vmul.f32 %v1113, %v1150
        %v1185 = vmul.f32 %v1114, %v1150
        %v1186 = vmul.f32 %v1115, %v1150
        %v1187 = vmul.f32 %v1116, %v1150
        %v1188 = vmul.f32 %v1117, %v1150
        %v1189 = vmul.f32 %v1118, %v1150
        %v1190 = vmul.f32 %v1119, %v1150
        %v1191 = vmul.f32 %v1120, %v1150
        %v1192 = vmul.f32 %v1121, %v1150
        %v1193 = vmul.f32 %v1122, %v1150
        %v1194 = vmul.f32 %v1123, %v1150
        %v1195 = vmul.f32 %v1124, %v1150
        %v1196 = vmul.f32 %v1125, %v1150
        %v1197 = vmul.f32 %v1126, %v1150
        %v1198 = vmul.f32 %v1127, %v1150
        %v1199 = vmul.f32 %v1128, %v1150
        %v1200 = vmul.f32 %v1129, %v1150
        %v1201 = vmul.f32 %v1130, %v1150
        %v1202 = vmul.f32 %v1131, %v1150
        %v1203 = vmul.f32 %v1132, %v1150
        %v1204 = vmul.f32 %v1133, %v1150
        %v1205 = vmul.f32 %v1134, %v1150
        %v1206 = vmul.f32 %v1135, %v1150
        %v1207 = vmul.f32 %v1136, %v1150
        %v1208 = vmul.f32 %v1137, %v1150
        %v1209 = vmul.f32 %v1138, %v1150
        %v1210 = vmul.f32 %v1139, %v1150
        %v1211 = vmul.f32 %v1140, %v1150
        %v1212 = vmul.f32 %v1141, %v1150
        %v1213 = vmul.f32 %v1142, %v1150
        %v1214 = vmul.f32 %v1143, %v1150
        %v1215 = vmul.f32 %v1144, %v1150
        %v1216 = vsel %vm695, %v1152, 0.0
        %1217 = vadd.xlane.f32.xlu0 %v1216
        %v1218 = vpop.xlane.xlu0 %1217
        %v1219 = vsel %vm695, %v1153, 0.0
        %1220 = vadd.xlane.f32.xlu0 %v1219
        %v1221 = vpop.xlane.xlu0 %1220
        %v1222 = vsel %vm695, %v1154, 0.0
        %1223 = vadd.xlane.f32.xlu0 %v1222
        %v1224 = vpop.xlane.xlu0 %1223
        %v1225 = vsel %vm695, %v1155, 0.0
        %1226 = vadd.xlane.f32.xlu0 %v1225
        %v1227 = vpop.xlane.xlu0 %1226
        %v1228 = vsel %vm695, %v1156, 0.0
        %1229 = vadd.xlane.f32.xlu0 %v1228
        %v1230 = vpop.xlane.xlu0 %1229
        %v1231 = vsel %vm695, %v1157, 0.0
        %1232 = vadd.xlane.f32.xlu0 %v1231
        %v1233 = vpop.xlane.xlu0 %1232
        %v1234 = vsel %vm695, %v1158, 0.0
        %1235 = vadd.xlane.f32.xlu0 %v1234
        %v1236 = vpop.xlane.xlu0 %1235
        %v1237 = vsel %vm695, %v1159, 0.0
        %1238 = vadd.xlane.f32.xlu0 %v1237
        %v1239 = vpop.xlane.xlu0 %1238
        %v1240 = vsel %vm695, %v1160, 0.0
        %1241 = vadd.xlane.f32.xlu0 %v1240
        %v1242 = vpop.xlane.xlu0 %1241
        %v1243 = vsel %vm695, %v1161, 0.0
        %1244 = vadd.xlane.f32.xlu0 %v1243
        %v1245 = vpop.xlane.xlu0 %1244
        %v1246 = vsel %vm695, %v1162, 0.0
        %1247 = vadd.xlane.f32.xlu0 %v1246
        %v1248 = vpop.xlane.xlu0 %1247
        %v1249 = vsel %vm695, %v1163, 0.0
        %1250 = vadd.xlane.f32.xlu0 %v1249
        %v1251 = vpop.xlane.xlu0 %1250
        %v1252 = vsel %vm695, %v1164, 0.0
        %1253 = vadd.xlane.f32.xlu0 %v1252
        %v1254 = vpop.xlane.xlu0 %1253
        %v1255 = vsel %vm695, %v1165, 0.0
        %1256 = vadd.xlane.f32.xlu0 %v1255
        %v1257 = vpop.xlane.xlu0 %1256
        %v1258 = vsel %vm695, %v1166, 0.0
        %1259 = vadd.xlane.f32.xlu0 %v1258
        %v1260 = vpop.xlane.xlu0 %1259
        %v1261 = vsel %vm695, %v1167, 0.0
        %1262 = vadd.xlane.f32.xlu0 %v1261
        %v1263 = vpop.xlane.xlu0 %1262
        %v1264 = vsel %vm695, %v1168, 0.0
        %1265 = vadd.xlane.f32.xlu0 %v1264
        %v1266 = vpop.xlane.xlu0 %1265
        %v1267 = vsel %vm695, %v1169, 0.0
        %1268 = vadd.xlane.f32.xlu0 %v1267
        %v1269 = vpop.xlane.xlu0 %1268
        %v1270 = vsel %vm695, %v1170, 0.0
        %1271 = vadd.xlane.f32.xlu0 %v1270
        %v1272 = vpop.xlane.xlu0 %1271
        %v1273 = vsel %vm695, %v1171, 0.0
        %1274 = vadd.xlane.f32.xlu0 %v1273
        %v1275 = vpop.xlane.xlu0 %1274
        %v1276 = vsel %vm695, %v1172, 0.0
        %1277 = vadd.xlane.f32.xlu0 %v1276
        %v1278 = vpop.xlane.xlu0 %1277
        %v1279 = vsel %vm695, %v1173, 0.0
        %1280 = vadd.xlane.f32.xlu0 %v1279
        %v1281 = vpop.xlane.xlu0 %1280
        %v1282 = vsel %vm695, %v1174, 0.0
        %1283 = vadd.xlane.f32.xlu0 %v1282
        %v1284 = vpop.xlane.xlu0 %1283
        %v1285 = vsel %vm695, %v1175, 0.0
        %1286 = vadd.xlane.f32.xlu0 %v1285
        %v1287 = vpop.xlane.xlu0 %1286
        %v1288 = vsel %vm695, %v1176, 0.0
        %1289 = vadd.xlane.f32.xlu0 %v1288
        %v1290 = vpop.xlane.xlu0 %1289
        %v1291 = vsel %vm695, %v1177, 0.0
        %1292 = vadd.xlane.f32.xlu0 %v1291
        %v1293 = vpop.xlane.xlu0 %1292
        %v1294 = vsel %vm695, %v1178, 0.0
        %1295 = vadd.xlane.f32.xlu0 %v1294
        %v1296 = vpop.xlane.xlu0 %1295
        %v1297 = vsel %vm695, %v1179, 0.0
        %1298 = vadd.xlane.f32.xlu0 %v1297
        %v1299 = vpop.xlane.xlu0 %1298
        %v1300 = vsel %vm695, %v1180, 0.0
        %1301 = vadd.xlane.f32.xlu0 %v1300
        %v1302 = vpop.xlane.xlu0 %1301
        %v1303 = vsel %vm695, %v1181, 0.0
        %1304 = vadd.xlane.f32.xlu0 %v1303
        %v1305 = vpop.xlane.xlu0 %1304
        %v1306 = vsel %vm695, %v1182, 0.0
        %1307 = vadd.xlane.f32.xlu0 %v1306
        %v1308 = vpop.xlane.xlu0 %1307
        %v1309 = vsel %vm695, %v1183, 0.0
        %1310 = vadd.xlane.f32.xlu0 %v1309
        %v1311 = vpop.xlane.xlu0 %1310
        %v1312 = vsel %vm695, %v1184, 0.0
        %1313 = vadd.xlane.f32.xlu0 %v1312
        %v1314 = vpop.xlane.xlu0 %1313
        %v1315 = vsel %vm695, %v1185, 0.0
        %1316 = vadd.xlane.f32.xlu0 %v1315
        %v1317 = vpop.xlane.xlu0 %1316
        %v1318 = vsel %vm695, %v1186, 0.0
        %1319 = vadd.xlane.f32.xlu0 %v1318
        %v1320 = vpop.xlane.xlu0 %1319
        %v1321 = vsel %vm695, %v1187, 0.0
        %1322 = vadd.xlane.f32.xlu0 %v1321
        %v1323 = vpop.xlane.xlu0 %1322
        %v1324 = vsel %vm695, %v1188, 0.0
        %1325 = vadd.xlane.f32.xlu0 %v1324
        %v1326 = vpop.xlane.xlu0 %1325
        %v1327 = vsel %vm695, %v1189, 0.0
        %1328 = vadd.xlane.f32.xlu0 %v1327
        %v1329 = vpop.xlane.xlu0 %1328
        %v1330 = vsel %vm695, %v1190, 0.0
        %1331 = vadd.xlane.f32.xlu0 %v1330
        %v1332 = vpop.xlane.xlu0 %1331
        %v1333 = vsel %vm695, %v1191, 0.0
        %1334 = vadd.xlane.f32.xlu0 %v1333
        %v1335 = vpop.xlane.xlu0 %1334
        %v1336 = vsel %vm695, %v1192, 0.0
        %1337 = vadd.xlane.f32.xlu0 %v1336
        %v1338 = vpop.xlane.xlu0 %1337
        %v1339 = vsel %vm695, %v1193, 0.0
        %1340 = vadd.xlane.f32.xlu0 %v1339
        %v1341 = vpop.xlane.xlu0 %1340
        %v1342 = vsel %vm695, %v1194, 0.0
        %1343 = vadd.xlane.f32.xlu0 %v1342
        %v1344 = vpop.xlane.xlu0 %1343
        %v1345 = vsel %vm695, %v1195, 0.0
        %1346 = vadd.xlane.f32.xlu0 %v1345
        %v1347 = vpop.xlane.xlu0 %1346
        %v1348 = vsel %vm695, %v1196, 0.0
        %1349 = vadd.xlane.f32.xlu0 %v1348
        %v1350 = vpop.xlane.xlu0 %1349
        %v1351 = vsel %vm695, %v1197, 0.0
        %1352 = vadd.xlane.f32.xlu0 %v1351
        %v1353 = vpop.xlane.xlu0 %1352
        %v1354 = vsel %vm695, %v1198, 0.0
        %1355 = vadd.xlane.f32.xlu0 %v1354
        %v1356 = vpop.xlane.xlu0 %1355
        %v1357 = vsel %vm695, %v1199, 0.0
        %1358 = vadd.xlane.f32.xlu0 %v1357
        %v1359 = vpop.xlane.xlu0 %1358
        %v1360 = vsel %vm695, %v1200, 0.0
        %1361 = vadd.xlane.f32.xlu0 %v1360
        %v1362 = vpop.xlane.xlu0 %1361
        %v1363 = vsel %vm695, %v1201, 0.0
        %1364 = vadd.xlane.f32.xlu0 %v1363
        %v1365 = vpop.xlane.xlu0 %1364
        %v1366 = vsel %vm695, %v1202, 0.0
        %1367 = vadd.xlane.f32.xlu0 %v1366
        %v1368 = vpop.xlane.xlu0 %1367
        %v1369 = vsel %vm695, %v1203, 0.0
        %1370 = vadd.xlane.f32.xlu0 %v1369
        %v1371 = vpop.xlane.xlu0 %1370
        %v1372 = vsel %vm695, %v1204, 0.0
        %1373 = vadd.xlane.f32.xlu0 %v1372
        %v1374 = vpop.xlane.xlu0 %1373
        %v1375 = vsel %vm695, %v1205, 0.0
        %1376 = vadd.xlane.f32.xlu0 %v1375
        %v1377 = vpop.xlane.xlu0 %1376
        %v1378 = vsel %vm695, %v1206, 0.0
        %1379 = vadd.xlane.f32.xlu0 %v1378
        %v1380 = vpop.xlane.xlu0 %1379
        %v1381 = vsel %vm695, %v1207, 0.0
        %1382 = vadd.xlane.f32.xlu0 %v1381
        %v1383 = vpop.xlane.xlu0 %1382
        %v1384 = vsel %vm695, %v1208, 0.0
        %1385 = vadd.xlane.f32.xlu0 %v1384
        %v1386 = vpop.xlane.xlu0 %1385
        %v1387 = vsel %vm695, %v1209, 0.0
        %1388 = vadd.xlane.f32.xlu0 %v1387
        %v1389 = vpop.xlane.xlu0 %1388
        %v1390 = vsel %vm695, %v1210, 0.0
        %1391 = vadd.xlane.f32.xlu0 %v1390
        %v1392 = vpop.xlane.xlu0 %1391
        %v1393 = vsel %vm695, %v1211, 0.0
        %1394 = vadd.xlane.f32.xlu0 %v1393
        %v1395 = vpop.xlane.xlu0 %1394
        %v1396 = vsel %vm695, %v1212, 0.0
        %1397 = vadd.xlane.f32.xlu0 %v1396
        %v1398 = vpop.xlane.xlu0 %1397
        %v1399 = vsel %vm695, %v1213, 0.0
        %1400 = vadd.xlane.f32.xlu0 %v1399
        %v1401 = vpop.xlane.xlu0 %1400
        %v1402 = vsel %vm695, %v1214, 0.0
        %1403 = vadd.xlane.f32.xlu0 %v1402
        %v1404 = vpop.xlane.xlu0 %1403
        %v1405 = vsel %vm695, %v1215, 0.0
        %1406 = vadd.xlane.f32.xlu0 %v1405
        %v1407 = vpop.xlane.xlu0 %1406
        %v1408 = vrot.slane %v1218, 4
        %v1409 = vmax.f32 %v1218, %v1408
        %v1410 = vrot.slane %v1409, 2
        %v1411 = vmax.f32 %v1409, %v1410
        %v1412 = vrot.slane %v1411, 1
        %v1413 = vmax.f32 %v1411, %v1412
        %v1414 = vrot.slane %v1221, 4
        %v1415 = vmax.f32 %v1221, %v1414
        %v1416 = vrot.slane %v1415, 2
        %v1417 = vmax.f32 %v1415, %v1416
        %v1418 = vrot.slane %v1417, 1
        %v1419 = vmax.f32 %v1417, %v1418
        %v1420 = vrot.slane %v1224, 4
        %v1421 = vmax.f32 %v1224, %v1420
        %v1422 = vrot.slane %v1421, 2
        %v1423 = vmax.f32 %v1421, %v1422
        %v1424 = vrot.slane %v1423, 1
        %v1425 = vmax.f32 %v1423, %v1424
        %v1426 = vrot.slane %v1227, 4
        %v1427 = vmax.f32 %v1227, %v1426
        %v1428 = vrot.slane %v1427, 2
        %v1429 = vmax.f32 %v1427, %v1428
        %v1430 = vrot.slane %v1429, 1
        %v1431 = vmax.f32 %v1429, %v1430
        %v1432 = vrot.slane %v1230, 4
        %v1433 = vmax.f32 %v1230, %v1432
        %v1434 = vrot.slane %v1433, 2
        %v1435 = vmax.f32 %v1433, %v1434
        %v1436 = vrot.slane %v1435, 1
        %v1437 = vmax.f32 %v1435, %v1436
        %v1438 = vrot.slane %v1233, 4
        %v1439 = vmax.f32 %v1233, %v1438
        %v1440 = vrot.slane %v1439, 2
        %v1441 = vmax.f32 %v1439, %v1440
        %v1442 = vrot.slane %v1441, 1
        %v1443 = vmax.f32 %v1441, %v1442
        %v1444 = vrot.slane %v1236, 4
        %v1445 = vmax.f32 %v1236, %v1444
        %v1446 = vrot.slane %v1445, 2
        %v1447 = vmax.f32 %v1445, %v1446
        %v1448 = vrot.slane %v1447, 1
        %v1449 = vmax.f32 %v1447, %v1448
        %v1450 = vrot.slane %v1239, 4
        %v1451 = vmax.f32 %v1239, %v1450
        %v1452 = vrot.slane %v1451, 2
        %v1453 = vmax.f32 %v1451, %v1452
        %v1454 = vrot.slane %v1453, 1
        %v1455 = vmax.f32 %v1453, %v1454
        %v1456 = vrot.slane %v1242, 4
        %v1457 = vmax.f32 %v1242, %v1456
        %v1458 = vrot.slane %v1457, 2
        %v1459 = vmax.f32 %v1457, %v1458
        %v1460 = vrot.slane %v1459, 1
        %v1461 = vmax.f32 %v1459, %v1460
        %v1462 = vrot.slane %v1245, 4
        %v1463 = vmax.f32 %v1245, %v1462
        %v1464 = vrot.slane %v1463, 2
        %v1465 = vmax.f32 %v1463, %v1464
        %v1466 = vrot.slane %v1465, 1
        %v1467 = vmax.f32 %v1465, %v1466
        %v1468 = vrot.slane %v1248, 4
        %v1469 = vmax.f32 %v1248, %v1468
        %v1470 = vrot.slane %v1469, 2
        %v1471 = vmax.f32 %v1469, %v1470
        %v1472 = vrot.slane %v1471, 1
        %v1473 = vmax.f32 %v1471, %v1472
        %v1474 = vrot.slane %v1251, 4
        %v1475 = vmax.f32 %v1251, %v1474
        %v1476 = vrot.slane %v1475, 2
        %v1477 = vmax.f32 %v1475, %v1476
        %v1478 = vrot.slane %v1477, 1
        %v1479 = vmax.f32 %v1477, %v1478
        %v1480 = vrot.slane %v1254, 4
        %v1481 = vmax.f32 %v1254, %v1480
        %v1482 = vrot.slane %v1481, 2
        %v1483 = vmax.f32 %v1481, %v1482
        %v1484 = vrot.slane %v1483, 1
        %v1485 = vmax.f32 %v1483, %v1484
        %v1486 = vrot.slane %v1257, 4
        %v1487 = vmax.f32 %v1257, %v1486
        %v1488 = vrot.slane %v1487, 2
        %v1489 = vmax.f32 %v1487, %v1488
        %v1490 = vrot.slane %v1489, 1
        %v1491 = vmax.f32 %v1489, %v1490
        %v1492 = vrot.slane %v1260, 4
        %v1493 = vmax.f32 %v1260, %v1492
        %v1494 = vrot.slane %v1493, 2
        %v1495 = vmax.f32 %v1493, %v1494
        %v1496 = vrot.slane %v1495, 1
        %v1497 = vmax.f32 %v1495, %v1496
        %v1498 = vrot.slane %v1263, 4
        %v1499 = vmax.f32 %v1263, %v1498
        %v1500 = vrot.slane %v1499, 2
        %v1501 = vmax.f32 %v1499, %v1500
        %v1502 = vrot.slane %v1501, 1
        %v1503 = vmax.f32 %v1501, %v1502
        %v1504 = vrot.slane %v1266, 4
        %v1505 = vmax.f32 %v1266, %v1504
        %v1506 = vrot.slane %v1505, 2
        %v1507 = vmax.f32 %v1505, %v1506
        %v1508 = vrot.slane %v1507, 1
        %v1509 = vmax.f32 %v1507, %v1508
        %v1510 = vrot.slane %v1269, 4
        %v1511 = vmax.f32 %v1269, %v1510
        %v1512 = vrot.slane %v1511, 2
        %v1513 = vmax.f32 %v1511, %v1512
        %v1514 = vrot.slane %v1513, 1
        %v1515 = vmax.f32 %v1513, %v1514
        %v1516 = vrot.slane %v1272, 4
        %v1517 = vmax.f32 %v1272, %v1516
        %v1518 = vrot.slane %v1517, 2
        %v1519 = vmax.f32 %v1517, %v1518
        %v1520 = vrot.slane %v1519, 1
        %v1521 = vmax.f32 %v1519, %v1520
        %v1522 = vrot.slane %v1275, 4
        %v1523 = vmax.f32 %v1275, %v1522
        %v1524 = vrot.slane %v1523, 2
        %v1525 = vmax.f32 %v1523, %v1524
        %v1526 = vrot.slane %v1525, 1
        %v1527 = vmax.f32 %v1525, %v1526
        %v1528 = vrot.slane %v1278, 4
        %v1529 = vmax.f32 %v1278, %v1528
        %v1530 = vrot.slane %v1529, 2
        %v1531 = vmax.f32 %v1529, %v1530
        %v1532 = vrot.slane %v1531, 1
        %v1533 = vmax.f32 %v1531, %v1532
        %v1534 = vrot.slane %v1281, 4
        %v1535 = vmax.f32 %v1281, %v1534
        %v1536 = vrot.slane %v1535, 2
        %v1537 = vmax.f32 %v1535, %v1536
        %v1538 = vrot.slane %v1537, 1
        %v1539 = vmax.f32 %v1537, %v1538
        %v1540 = vrot.slane %v1284, 4
        %v1541 = vmax.f32 %v1284, %v1540
        %v1542 = vrot.slane %v1541, 2
        %v1543 = vmax.f32 %v1541, %v1542
        %v1544 = vrot.slane %v1543, 1
        %v1545 = vmax.f32 %v1543, %v1544
        %v1546 = vrot.slane %v1287, 4
        %v1547 = vmax.f32 %v1287, %v1546
        %v1548 = vrot.slane %v1547, 2
        %v1549 = vmax.f32 %v1547, %v1548
        %v1550 = vrot.slane %v1549, 1
        %v1551 = vmax.f32 %v1549, %v1550
        %v1552 = vrot.slane %v1290, 4
        %v1553 = vmax.f32 %v1290, %v1552
        %v1554 = vrot.slane %v1553, 2
        %v1555 = vmax.f32 %v1553, %v1554
        %v1556 = vrot.slane %v1555, 1
        %v1557 = vmax.f32 %v1555, %v1556
        %v1558 = vrot.slane %v1293, 4
        %v1559 = vmax.f32 %v1293, %v1558
        %v1560 = vrot.slane %v1559, 2
        %v1561 = vmax.f32 %v1559, %v1560
        %v1562 = vrot.slane %v1561, 1
        %v1563 = vmax.f32 %v1561, %v1562
        %v1564 = vrot.slane %v1296, 4
        %v1565 = vmax.f32 %v1296, %v1564
        %v1566 = vrot.slane %v1565, 2
        %v1567 = vmax.f32 %v1565, %v1566
        %v1568 = vrot.slane %v1567, 1
        %v1569 = vmax.f32 %v1567, %v1568
        %v1570 = vrot.slane %v1299, 4
        %v1571 = vmax.f32 %v1299, %v1570
        %v1572 = vrot.slane %v1571, 2
        %v1573 = vmax.f32 %v1571, %v1572
        %v1574 = vrot.slane %v1573, 1
        %v1575 = vmax.f32 %v1573, %v1574
        %v1576 = vrot.slane %v1302, 4
        %v1577 = vmax.f32 %v1302, %v1576
        %v1578 = vrot.slane %v1577, 2
        %v1579 = vmax.f32 %v1577, %v1578
        %v1580 = vrot.slane %v1579, 1
        %v1581 = vmax.f32 %v1579, %v1580
        %v1582 = vrot.slane %v1305, 4
        %v1583 = vmax.f32 %v1305, %v1582
        %v1584 = vrot.slane %v1583, 2
        %v1585 = vmax.f32 %v1583, %v1584
        %v1586 = vrot.slane %v1585, 1
        %v1587 = vmax.f32 %v1585, %v1586
        %v1588 = vrot.slane %v1308, 4
        %v1589 = vmax.f32 %v1308, %v1588
        %v1590 = vrot.slane %v1589, 2
        %v1591 = vmax.f32 %v1589, %v1590
        %v1592 = vrot.slane %v1591, 1
        %v1593 = vmax.f32 %v1591, %v1592
        %v1594 = vrot.slane %v1311, 4
        %v1595 = vmax.f32 %v1311, %v1594
        %v1596 = vrot.slane %v1595, 2
        %v1597 = vmax.f32 %v1595, %v1596
        %v1598 = vrot.slane %v1597, 1
        %v1599 = vmax.f32 %v1597, %v1598
        %v1600 = vrot.slane %v1314, 4
        %v1601 = vmax.f32 %v1314, %v1600
        %v1602 = vrot.slane %v1601, 2
        %v1603 = vmax.f32 %v1601, %v1602
        %v1604 = vrot.slane %v1603, 1
        %v1605 = vmax.f32 %v1603, %v1604
        %v1606 = vrot.slane %v1317, 4
        %v1607 = vmax.f32 %v1317, %v1606
        %v1608 = vrot.slane %v1607, 2
        %v1609 = vmax.f32 %v1607, %v1608
        %v1610 = vrot.slane %v1609, 1
        %v1611 = vmax.f32 %v1609, %v1610
        %v1612 = vrot.slane %v1320, 4
        %v1613 = vmax.f32 %v1320, %v1612
        %v1614 = vrot.slane %v1613, 2
        %v1615 = vmax.f32 %v1613, %v1614
        %v1616 = vrot.slane %v1615, 1
        %v1617 = vmax.f32 %v1615, %v1616
        %v1618 = vrot.slane %v1323, 4
        %v1619 = vmax.f32 %v1323, %v1618
        %v1620 = vrot.slane %v1619, 2
        %v1621 = vmax.f32 %v1619, %v1620
        %v1622 = vrot.slane %v1621, 1
        %v1623 = vmax.f32 %v1621, %v1622
        %v1624 = vrot.slane %v1326, 4
        %v1625 = vmax.f32 %v1326, %v1624
        %v1626 = vrot.slane %v1625, 2
        %v1627 = vmax.f32 %v1625, %v1626
        %v1628 = vrot.slane %v1627, 1
        %v1629 = vmax.f32 %v1627, %v1628
        %v1630 = vrot.slane %v1329, 4
        %v1631 = vmax.f32 %v1329, %v1630
        %v1632 = vrot.slane %v1631, 2
        %v1633 = vmax.f32 %v1631, %v1632
        %v1634 = vrot.slane %v1633, 1
        %v1635 = vmax.f32 %v1633, %v1634
        %v1636 = vrot.slane %v1332, 4
        %v1637 = vmax.f32 %v1332, %v1636
        %v1638 = vrot.slane %v1637, 2
        %v1639 = vmax.f32 %v1637, %v1638
        %v1640 = vrot.slane %v1639, 1
        %v1641 = vmax.f32 %v1639, %v1640
        %v1642 = vrot.slane %v1335, 4
        %v1643 = vmax.f32 %v1335, %v1642
        %v1644 = vrot.slane %v1643, 2
        %v1645 = vmax.f32 %v1643, %v1644
        %v1646 = vrot.slane %v1645, 1
        %v1647 = vmax.f32 %v1645, %v1646
        %v1648 = vrot.slane %v1338, 4
        %v1649 = vmax.f32 %v1338, %v1648
        %v1650 = vrot.slane %v1649, 2
        %v1651 = vmax.f32 %v1649, %v1650
        %v1652 = vrot.slane %v1651, 1
        %v1653 = vmax.f32 %v1651, %v1652
        %v1654 = vrot.slane %v1341, 4
        %v1655 = vmax.f32 %v1341, %v1654
        %v1656 = vrot.slane %v1655, 2
        %v1657 = vmax.f32 %v1655, %v1656
        %v1658 = vrot.slane %v1657, 1
        %v1659 = vmax.f32 %v1657, %v1658
        %v1660 = vrot.slane %v1344, 4
        %v1661 = vmax.f32 %v1344, %v1660
        %v1662 = vrot.slane %v1661, 2
        %v1663 = vmax.f32 %v1661, %v1662
        %v1664 = vrot.slane %v1663, 1
        %v1665 = vmax.f32 %v1663, %v1664
        %v1666 = vrot.slane %v1347, 4
        %v1667 = vmax.f32 %v1347, %v1666
        %v1668 = vrot.slane %v1667, 2
        %v1669 = vmax.f32 %v1667, %v1668
        %v1670 = vrot.slane %v1669, 1
        %v1671 = vmax.f32 %v1669, %v1670
        %v1672 = vrot.slane %v1350, 4
        %v1673 = vmax.f32 %v1350, %v1672
        %v1674 = vrot.slane %v1673, 2
        %v1675 = vmax.f32 %v1673, %v1674
        %v1676 = vrot.slane %v1675, 1
        %v1677 = vmax.f32 %v1675, %v1676
        %v1678 = vrot.slane %v1353, 4
        %v1679 = vmax.f32 %v1353, %v1678
        %v1680 = vrot.slane %v1679, 2
        %v1681 = vmax.f32 %v1679, %v1680
        %v1682 = vrot.slane %v1681, 1
        %v1683 = vmax.f32 %v1681, %v1682
        %v1684 = vrot.slane %v1356, 4
        %v1685 = vmax.f32 %v1356, %v1684
        %v1686 = vrot.slane %v1685, 2
        %v1687 = vmax.f32 %v1685, %v1686
        %v1688 = vrot.slane %v1687, 1
        %v1689 = vmax.f32 %v1687, %v1688
        %v1690 = vrot.slane %v1359, 4
        %v1691 = vmax.f32 %v1359, %v1690
        %v1692 = vrot.slane %v1691, 2
        %v1693 = vmax.f32 %v1691, %v1692
        %v1694 = vrot.slane %v1693, 1
        %v1695 = vmax.f32 %v1693, %v1694
        %v1696 = vrot.slane %v1362, 4
        %v1697 = vmax.f32 %v1362, %v1696
        %v1698 = vrot.slane %v1697, 2
        %v1699 = vmax.f32 %v1697, %v1698
        %v1700 = vrot.slane %v1699, 1
        %v1701 = vmax.f32 %v1699, %v1700
        %v1702 = vrot.slane %v1365, 4
        %v1703 = vmax.f32 %v1365, %v1702
        %v1704 = vrot.slane %v1703, 2
        %v1705 = vmax.f32 %v1703, %v1704
        %v1706 = vrot.slane %v1705, 1
        %v1707 = vmax.f32 %v1705, %v1706
        %v1708 = vrot.slane %v1368, 4
        %v1709 = vmax.f32 %v1368, %v1708
        %v1710 = vrot.slane %v1709, 2
        %v1711 = vmax.f32 %v1709, %v1710
        %v1712 = vrot.slane %v1711, 1
        %v1713 = vmax.f32 %v1711, %v1712
        %v1714 = vrot.slane %v1371, 4
        %v1715 = vmax.f32 %v1371, %v1714
        %v1716 = vrot.slane %v1715, 2
        %v1717 = vmax.f32 %v1715, %v1716
        %v1718 = vrot.slane %v1717, 1
        %v1719 = vmax.f32 %v1717, %v1718
        %v1720 = vrot.slane %v1374, 4
        %v1721 = vmax.f32 %v1374, %v1720
        %v1722 = vrot.slane %v1721, 2
        %v1723 = vmax.f32 %v1721, %v1722
        %v1724 = vrot.slane %v1723, 1
        %v1725 = vmax.f32 %v1723, %v1724
        %v1726 = vrot.slane %v1377, 4
        %v1727 = vmax.f32 %v1377, %v1726
        %v1728 = vrot.slane %v1727, 2
        %v1729 = vmax.f32 %v1727, %v1728
        %v1730 = vrot.slane %v1729, 1
        %v1731 = vmax.f32 %v1729, %v1730
        %v1732 = vrot.slane %v1380, 4
        %v1733 = vmax.f32 %v1380, %v1732
        %v1734 = vrot.slane %v1733, 2
        %v1735 = vmax.f32 %v1733, %v1734
        %v1736 = vrot.slane %v1735, 1
        %v1737 = vmax.f32 %v1735, %v1736
        %v1738 = vrot.slane %v1383, 4
        %v1739 = vmax.f32 %v1383, %v1738
        %v1740 = vrot.slane %v1739, 2
        %v1741 = vmax.f32 %v1739, %v1740
        %v1742 = vrot.slane %v1741, 1
        %v1743 = vmax.f32 %v1741, %v1742
        %v1744 = vrot.slane %v1386, 4
        %v1745 = vmax.f32 %v1386, %v1744
        %v1746 = vrot.slane %v1745, 2
        %v1747 = vmax.f32 %v1745, %v1746
        %v1748 = vrot.slane %v1747, 1
        %v1749 = vmax.f32 %v1747, %v1748
        %v1750 = vrot.slane %v1389, 4
        %v1751 = vmax.f32 %v1389, %v1750
        %v1752 = vrot.slane %v1751, 2
        %v1753 = vmax.f32 %v1751, %v1752
        %v1754 = vrot.slane %v1753, 1
        %v1755 = vmax.f32 %v1753, %v1754
        %v1756 = vrot.slane %v1392, 4
        %v1757 = vmax.f32 %v1392, %v1756
        %v1758 = vrot.slane %v1757, 2
        %v1759 = vmax.f32 %v1757, %v1758
        %v1760 = vrot.slane %v1759, 1
        %v1761 = vmax.f32 %v1759, %v1760
        %v1762 = vrot.slane %v1395, 4
        %v1763 = vmax.f32 %v1395, %v1762
        %v1764 = vrot.slane %v1763, 2
        %v1765 = vmax.f32 %v1763, %v1764
        %v1766 = vrot.slane %v1765, 1
        %v1767 = vmax.f32 %v1765, %v1766
        %v1768 = vrot.slane %v1398, 4
        %v1769 = vmax.f32 %v1398, %v1768
        %v1770 = vrot.slane %v1769, 2
        %v1771 = vmax.f32 %v1769, %v1770
        %v1772 = vrot.slane %v1771, 1
        %v1773 = vmax.f32 %v1771, %v1772
        %v1774 = vrot.slane %v1401, 4
        %v1775 = vmax.f32 %v1401, %v1774
        %v1776 = vrot.slane %v1775, 2
        %v1777 = vmax.f32 %v1775, %v1776
        %v1778 = vrot.slane %v1777, 1
        %v1779 = vmax.f32 %v1777, %v1778
        %v1780 = vrot.slane %v1404, 4
        %v1781 = vmax.f32 %v1404, %v1780
        %v1782 = vrot.slane %v1781, 2
        %v1783 = vmax.f32 %v1781, %v1782
        %v1784 = vrot.slane %v1783, 1
        %v1785 = vmax.f32 %v1783, %v1784
        %v1786 = vrot.slane %v1407, 4
        %v1787 = vmax.f32 %v1407, %v1786
        %v1788 = vrot.slane %v1787, 2
        %v1789 = vmax.f32 %v1787, %v1788
        %v1790 = vrot.slane %v1789, 1
        %v1791 = vmax.f32 %v1789, %v1790
        %v1792 = vsub.f32 %v1218, %v1413
        %v1793 = vsub.f32 %v1221, %v1419
        %v1794 = vsub.f32 %v1224, %v1425
        %v1795 = vsub.f32 %v1227, %v1431
        %v1796 = vsub.f32 %v1230, %v1437
        %v1797 = vsub.f32 %v1233, %v1443
        %v1798 = vsub.f32 %v1236, %v1449
        %v1799 = vsub.f32 %v1239, %v1455
        %v1800 = vsub.f32 %v1242, %v1461
        %v1801 = vsub.f32 %v1245, %v1467
        %v1802 = vsub.f32 %v1248, %v1473
        %v1803 = vsub.f32 %v1251, %v1479
        %v1804 = vsub.f32 %v1254, %v1485
        %v1805 = vsub.f32 %v1257, %v1491
        %v1806 = vsub.f32 %v1260, %v1497
        %v1807 = vsub.f32 %v1263, %v1503
        %v1808 = vsub.f32 %v1266, %v1509
        %v1809 = vsub.f32 %v1269, %v1515
        %v1810 = vsub.f32 %v1272, %v1521
        %v1811 = vsub.f32 %v1275, %v1527
        %v1812 = vsub.f32 %v1278, %v1533
        %v1813 = vsub.f32 %v1281, %v1539
        %v1814 = vsub.f32 %v1284, %v1545
        %v1815 = vsub.f32 %v1287, %v1551
        %v1816 = vsub.f32 %v1290, %v1557
        %v1817 = vsub.f32 %v1293, %v1563
        %v1818 = vsub.f32 %v1296, %v1569
        %v1819 = vsub.f32 %v1299, %v1575
        %v1820 = vsub.f32 %v1302, %v1581
        %v1821 = vsub.f32 %v1305, %v1587
        %v1822 = vsub.f32 %v1308, %v1593
        %v1823 = vsub.f32 %v1311, %v1599
        %v1824 = vsub.f32 %v1314, %v1605
        %v1825 = vsub.f32 %v1317, %v1611
        %v1826 = vsub.f32 %v1320, %v1617
        %v1827 = vsub.f32 %v1323, %v1623
        %v1828 = vsub.f32 %v1326, %v1629
        %v1829 = vsub.f32 %v1329, %v1635
        %v1830 = vsub.f32 %v1332, %v1641
        %v1831 = vsub.f32 %v1335, %v1647
        %v1832 = vsub.f32 %v1338, %v1653
        %v1833 = vsub.f32 %v1341, %v1659
        %v1834 = vsub.f32 %v1344, %v1665
        %v1835 = vsub.f32 %v1347, %v1671
        %v1836 = vsub.f32 %v1350, %v1677
        %v1837 = vsub.f32 %v1353, %v1683
        %v1838 = vsub.f32 %v1356, %v1689
        %v1839 = vsub.f32 %v1359, %v1695
        %v1840 = vsub.f32 %v1362, %v1701
        %v1841 = vsub.f32 %v1365, %v1707
        %v1842 = vsub.f32 %v1368, %v1713
        %v1843 = vsub.f32 %v1371, %v1719
        %v1844 = vsub.f32 %v1374, %v1725
        %v1845 = vsub.f32 %v1377, %v1731
        %v1846 = vsub.f32 %v1380, %v1737
        %v1847 = vsub.f32 %v1383, %v1743
        %v1848 = vsub.f32 %v1386, %v1749
        %v1849 = vsub.f32 %v1389, %v1755
        %v1850 = vsub.f32 %v1392, %v1761
        %v1851 = vsub.f32 %v1395, %v1767
        %v1852 = vsub.f32 %v1398, %v1773
        %v1853 = vsub.f32 %v1401, %v1779
        %v1854 = vsub.f32 %v1404, %v1785
        %v1855 = vsub.f32 %v1407, %v1791
        %v1856 = vmul.f32 %v1792, 1.442695
        %v1857 = vpow.pop %v1856
        %v1858 = vmul.f32 %v1793, 1.442695
        %v1859 = vpow.pop %v1858
        %v1860 = vmul.f32 %v1794, 1.442695
        %v1861 = vpow.pop %v1860
        %v1862 = vmul.f32 %v1795, 1.442695
        %v1863 = vpow.pop %v1862
        %v1864 = vmul.f32 %v1796, 1.442695
        %v1865 = vpow.pop %v1864
        %v1866 = vmul.f32 %v1797, 1.442695
        %v1867 = vpow.pop %v1866
        %v1868 = vmul.f32 %v1798, 1.442695
        %v1869 = vpow.pop %v1868
        %v1870 = vmul.f32 %v1799, 1.442695
        %v1871 = vpow.pop %v1870
        %v1872 = vmul.f32 %v1800, 1.442695
        %v1873 = vpow.pop %v1872
        %v1874 = vmul.f32 %v1801, 1.442695
        %v1875 = vpow.pop %v1874
        %v1876 = vmul.f32 %v1802, 1.442695
        %v1877 = vpow.pop %v1876
        %v1878 = vmul.f32 %v1803, 1.442695
        %v1879 = vpow.pop %v1878
        %v1880 = vmul.f32 %v1804, 1.442695
        %v1881 = vpow.pop %v1880
        %v1882 = vmul.f32 %v1805, 1.442695
        %v1883 = vpow.pop %v1882
        %v1884 = vmul.f32 %v1806, 1.442695
        %v1885 = vpow.pop %v1884
        %v1886 = vmul.f32 %v1807, 1.442695
        %v1887 = vpow.pop %v1886
        %v1888 = vmul.f32 %v1808, 1.442695
        %v1889 = vpow.pop %v1888
        %v1890 = vmul.f32 %v1809, 1.442695
        %v1891 = vpow.pop %v1890
        %v1892 = vmul.f32 %v1810, 1.442695
        %v1893 = vpow.pop %v1892
        %v1894 = vmul.f32 %v1811, 1.442695
        %v1895 = vpow.pop %v1894
        %v1896 = vmul.f32 %v1812, 1.442695
        %v1897 = vpow.pop %v1896
        %v1898 = vmul.f32 %v1813, 1.442695
        %v1899 = vpow.pop %v1898
        %v1900 = vmul.f32 %v1814, 1.442695
        %v1901 = vpow.pop %v1900
        %v1902 = vmul.f32 %v1815, 1.442695
        %v1903 = vpow.pop %v1902
        %v1904 = vmul.f32 %v1816, 1.442695
        %v1905 = vpow.pop %v1904
        %v1906 = vmul.f32 %v1817, 1.442695
        %v1907 = vpow.pop %v1906
        %v1908 = vmul.f32 %v1818, 1.442695
        %v1909 = vpow.pop %v1908
        %v1910 = vmul.f32 %v1819, 1.442695
        %v1911 = vpow.pop %v1910
        %v1912 = vmul.f32 %v1820, 1.442695
        %v1913 = vpow.pop %v1912
        %v1914 = vmul.f32 %v1821, 1.442695
        %v1915 = vpow.pop %v1914
        %v1916 = vmul.f32 %v1822, 1.442695
        %v1917 = vpow.pop %v1916
        %v1918 = vmul.f32 %v1823, 1.442695
        %v1919 = vpow.pop %v1918
        %v1920 = vmul.f32 %v1824, 1.442695
        %v1921 = vpow.pop %v1920
        %v1922 = vmul.f32 %v1825, 1.442695
        %v1923 = vpow.pop %v1922
        %v1924 = vmul.f32 %v1826, 1.442695
        %v1925 = vpow.pop %v1924
        %v1926 = vmul.f32 %v1827, 1.442695
        %v1927 = vpow.pop %v1926
        %v1928 = vmul.f32 %v1828, 1.442695
        %v1929 = vpow.pop %v1928
        %v1930 = vmul.f32 %v1829, 1.442695
        %v1931 = vpow.pop %v1930
        %v1932 = vmul.f32 %v1830, 1.442695
        %v1933 = vpow.pop %v1932
        %v1934 = vmul.f32 %v1831, 1.442695
        %v1935 = vpow.pop %v1934
        %v1936 = vmul.f32 %v1832, 1.442695
        %v1937 = vpow.pop %v1936
        %v1938 = vmul.f32 %v1833, 1.442695
        %v1939 = vpow.pop %v1938
        %v1940 = vmul.f32 %v1834, 1.442695
        %v1941 = vpow.pop %v1940
        %v1942 = vmul.f32 %v1835, 1.442695
        %v1943 = vpow.pop %v1942
        %v1944 = vmul.f32 %v1836, 1.442695
        %v1945 = vpow.pop %v1944
        %v1946 = vmul.f32 %v1837, 1.442695
        %v1947 = vpow.pop %v1946
        %v1948 = vmul.f32 %v1838, 1.442695
        %v1949 = vpow.pop %v1948
        %v1950 = vmul.f32 %v1839, 1.442695
        %v1951 = vpow.pop %v1950
        %v1952 = vmul.f32 %v1840, 1.442695
        %v1953 = vpow.pop %v1952
        %v1954 = vmul.f32 %v1841, 1.442695
        %v1955 = vpow.pop %v1954
        %v1956 = vmul.f32 %v1842, 1.442695
        %v1957 = vpow.pop %v1956
        %v1958 = vmul.f32 %v1843, 1.442695
        %v1959 = vpow.pop %v1958
        %v1960 = vmul.f32 %v1844, 1.442695
        %v1961 = vpow.pop %v1960
        %v1962 = vmul.f32 %v1845, 1.442695
        %v1963 = vpow.pop %v1962
        %v1964 = vmul.f32 %v1846, 1.442695
        %v1965 = vpow.pop %v1964
        %v1966 = vmul.f32 %v1847, 1.442695
        %v1967 = vpow.pop %v1966
        %v1968 = vmul.f32 %v1848, 1.442695
        %v1969 = vpow.pop %v1968
        %v1970 = vmul.f32 %v1849, 1.442695
        %v1971 = vpow.pop %v1970
        %v1972 = vmul.f32 %v1850, 1.442695
        %v1973 = vpow.pop %v1972
        %v1974 = vmul.f32 %v1851, 1.442695
        %v1975 = vpow.pop %v1974
        %v1976 = vmul.f32 %v1852, 1.442695
        %v1977 = vpow.pop %v1976
        %v1978 = vmul.f32 %v1853, 1.442695
        %v1979 = vpow.pop %v1978
        %v1980 = vmul.f32 %v1854, 1.442695
        %v1981 = vpow.pop %v1980
        %v1982 = vmul.f32 %v1855, 1.442695
        %v1983 = vpow.pop %v1982
        %v1984 = vrot.slane %v1857, 4
        %v1985 = vadd.f32 %v1857, %v1984
        %v1986 = vrot.slane %v1985, 2
        %v1987 = vadd.f32 %v1985, %v1986
        %v1988 = vrot.slane %v1987, 1
        %v1989 = vadd.f32 %v1987, %v1988
        %v1990 = vrot.slane %v1859, 4
        %v1991 = vadd.f32 %v1859, %v1990
        %v1992 = vrot.slane %v1991, 2
        %v1993 = vadd.f32 %v1991, %v1992
        %v1994 = vrot.slane %v1993, 1
        %v1995 = vadd.f32 %v1993, %v1994
        %v1996 = vrot.slane %v1861, 4
        %v1997 = vadd.f32 %v1861, %v1996
        %v1998 = vrot.slane %v1997, 2
        %v1999 = vadd.f32 %v1997, %v1998
        %v2000 = vrot.slane %v1999, 1
        %v2001 = vadd.f32 %v1999, %v2000
        %v2002 = vrot.slane %v1863, 4
        %v2003 = vadd.f32 %v1863, %v2002
        %v2004 = vrot.slane %v2003, 2
        %v2005 = vadd.f32 %v2003, %v2004
        %v2006 = vrot.slane %v2005, 1
        %v2007 = vadd.f32 %v2005, %v2006
        %v2008 = vrot.slane %v1865, 4
        %v2009 = vadd.f32 %v1865, %v2008
        %v2010 = vrot.slane %v2009, 2
        %v2011 = vadd.f32 %v2009, %v2010
        %v2012 = vrot.slane %v2011, 1
        %v2013 = vadd.f32 %v2011, %v2012
        %v2014 = vrot.slane %v1867, 4
        %v2015 = vadd.f32 %v1867, %v2014
        %v2016 = vrot.slane %v2015, 2
        %v2017 = vadd.f32 %v2015, %v2016
        %v2018 = vrot.slane %v2017, 1
        %v2019 = vadd.f32 %v2017, %v2018
        %v2020 = vrot.slane %v1869, 4
        %v2021 = vadd.f32 %v1869, %v2020
        %v2022 = vrot.slane %v2021, 2
        %v2023 = vadd.f32 %v2021, %v2022
        %v2024 = vrot.slane %v2023, 1
        %v2025 = vadd.f32 %v2023, %v2024
        %v2026 = vrot.slane %v1871, 4
        %v2027 = vadd.f32 %v1871, %v2026
        %v2028 = vrot.slane %v2027, 2
        %v2029 = vadd.f32 %v2027, %v2028
        %v2030 = vrot.slane %v2029, 1
        %v2031 = vadd.f32 %v2029, %v2030
        %v2032 = vrot.slane %v1873, 4
        %v2033 = vadd.f32 %v1873, %v2032
        %v2034 = vrot.slane %v2033, 2
        %v2035 = vadd.f32 %v2033, %v2034
        %v2036 = vrot.slane %v2035, 1
        %v2037 = vadd.f32 %v2035, %v2036
        %v2038 = vrot.slane %v1875, 4
        %v2039 = vadd.f32 %v1875, %v2038
        %v2040 = vrot.slane %v2039, 2
        %v2041 = vadd.f32 %v2039, %v2040
        %v2042 = vrot.slane %v2041, 1
        %v2043 = vadd.f32 %v2041, %v2042
        %v2044 = vrot.slane %v1877, 4
        %v2045 = vadd.f32 %v1877, %v2044
        %v2046 = vrot.slane %v2045, 2
        %v2047 = vadd.f32 %v2045, %v2046
        %v2048 = vrot.slane %v2047, 1
        %v2049 = vadd.f32 %v2047, %v2048
        %v2050 = vrot.slane %v1879, 4
        %v2051 = vadd.f32 %v1879, %v2050
        %v2052 = vrot.slane %v2051, 2
        %v2053 = vadd.f32 %v2051, %v2052
        %v2054 = vrot.slane %v2053, 1
        %v2055 = vadd.f32 %v2053, %v2054
        %v2056 = vrot.slane %v1881, 4
        %v2057 = vadd.f32 %v1881, %v2056
        %v2058 = vrot.slane %v2057, 2
        %v2059 = vadd.f32 %v2057, %v2058
        %v2060 = vrot.slane %v2059, 1
        %v2061 = vadd.f32 %v2059, %v2060
        %v2062 = vrot.slane %v1883, 4
        %v2063 = vadd.f32 %v1883, %v2062
        %v2064 = vrot.slane %v2063, 2
        %v2065 = vadd.f32 %v2063, %v2064
        %v2066 = vrot.slane %v2065, 1
        %v2067 = vadd.f32 %v2065, %v2066
        %v2068 = vrot.slane %v1885, 4
        %v2069 = vadd.f32 %v1885, %v2068
        %v2070 = vrot.slane %v2069, 2
        %v2071 = vadd.f32 %v2069, %v2070
        %v2072 = vrot.slane %v2071, 1
        %v2073 = vadd.f32 %v2071, %v2072
        %v2074 = vrot.slane %v1887, 4
        %v2075 = vadd.f32 %v1887, %v2074
        %v2076 = vrot.slane %v2075, 2
        %v2077 = vadd.f32 %v2075, %v2076
        %v2078 = vrot.slane %v2077, 1
        %v2079 = vadd.f32 %v2077, %v2078
        %v2080 = vrot.slane %v1889, 4
        %v2081 = vadd.f32 %v1889, %v2080
        %v2082 = vrot.slane %v2081, 2
        %v2083 = vadd.f32 %v2081, %v2082
        %v2084 = vrot.slane %v2083, 1
        %v2085 = vadd.f32 %v2083, %v2084
        %v2086 = vrot.slane %v1891, 4
        %v2087 = vadd.f32 %v1891, %v2086
        %v2088 = vrot.slane %v2087, 2
        %v2089 = vadd.f32 %v2087, %v2088
        %v2090 = vrot.slane %v2089, 1
        %v2091 = vadd.f32 %v2089, %v2090
        %v2092 = vrot.slane %v1893, 4
        %v2093 = vadd.f32 %v1893, %v2092
        %v2094 = vrot.slane %v2093, 2
        %v2095 = vadd.f32 %v2093, %v2094
        %v2096 = vrot.slane %v2095, 1
        %v2097 = vadd.f32 %v2095, %v2096
        %v2098 = vrot.slane %v1895, 4
        %v2099 = vadd.f32 %v1895, %v2098
        %v2100 = vrot.slane %v2099, 2
        %v2101 = vadd.f32 %v2099, %v2100
        %v2102 = vrot.slane %v2101, 1
        %v2103 = vadd.f32 %v2101, %v2102
        %v2104 = vrot.slane %v1897, 4
        %v2105 = vadd.f32 %v1897, %v2104
        %v2106 = vrot.slane %v2105, 2
        %v2107 = vadd.f32 %v2105, %v2106
        %v2108 = vrot.slane %v2107, 1
        %v2109 = vadd.f32 %v2107, %v2108
        %v2110 = vrot.slane %v1899, 4
        %v2111 = vadd.f32 %v1899, %v2110
        %v2112 = vrot.slane %v2111, 2
        %v2113 = vadd.f32 %v2111, %v2112
        %v2114 = vrot.slane %v2113, 1
        %v2115 = vadd.f32 %v2113, %v2114
        %v2116 = vrot.slane %v1901, 4
        %v2117 = vadd.f32 %v1901, %v2116
        %v2118 = vrot.slane %v2117, 2
        %v2119 = vadd.f32 %v2117, %v2118
        %v2120 = vrot.slane %v2119, 1
        %v2121 = vadd.f32 %v2119, %v2120
        %v2122 = vrot.slane %v1903, 4
        %v2123 = vadd.f32 %v1903, %v2122
        %v2124 = vrot.slane %v2123, 2
        %v2125 = vadd.f32 %v2123, %v2124
        %v2126 = vrot.slane %v2125, 1
        %v2127 = vadd.f32 %v2125, %v2126
        %v2128 = vrot.slane %v1905, 4
        %v2129 = vadd.f32 %v1905, %v2128
        %v2130 = vrot.slane %v2129, 2
        %v2131 = vadd.f32 %v2129, %v2130
        %v2132 = vrot.slane %v2131, 1
        %v2133 = vadd.f32 %v2131, %v2132
        %v2134 = vrot.slane %v1907, 4
        %v2135 = vadd.f32 %v1907, %v2134
        %v2136 = vrot.slane %v2135, 2
        %v2137 = vadd.f32 %v2135, %v2136
        %v2138 = vrot.slane %v2137, 1
        %v2139 = vadd.f32 %v2137, %v2138
        %v2140 = vrot.slane %v1909, 4
        %v2141 = vadd.f32 %v1909, %v2140
        %v2142 = vrot.slane %v2141, 2
        %v2143 = vadd.f32 %v2141, %v2142
        %v2144 = vrot.slane %v2143, 1
        %v2145 = vadd.f32 %v2143, %v2144
        %v2146 = vrot.slane %v1911, 4
        %v2147 = vadd.f32 %v1911, %v2146
        %v2148 = vrot.slane %v2147, 2
        %v2149 = vadd.f32 %v2147, %v2148
        %v2150 = vrot.slane %v2149, 1
        %v2151 = vadd.f32 %v2149, %v2150
        %v2152 = vrot.slane %v1913, 4
        %v2153 = vadd.f32 %v1913, %v2152
        %v2154 = vrot.slane %v2153, 2
        %v2155 = vadd.f32 %v2153, %v2154
        %v2156 = vrot.slane %v2155, 1
        %v2157 = vadd.f32 %v2155, %v2156
        %v2158 = vrot.slane %v1915, 4
        %v2159 = vadd.f32 %v1915, %v2158
        %v2160 = vrot.slane %v2159, 2
        %v2161 = vadd.f32 %v2159, %v2160
        %v2162 = vrot.slane %v2161, 1
        %v2163 = vadd.f32 %v2161, %v2162
        %v2164 = vrot.slane %v1917, 4
        %v2165 = vadd.f32 %v1917, %v2164
        %v2166 = vrot.slane %v2165, 2
        %v2167 = vadd.f32 %v2165, %v2166
        %v2168 = vrot.slane %v2167, 1
        %v2169 = vadd.f32 %v2167, %v2168
        %v2170 = vrot.slane %v1919, 4
        %v2171 = vadd.f32 %v1919, %v2170
        %v2172 = vrot.slane %v2171, 2
        %v2173 = vadd.f32 %v2171, %v2172
        %v2174 = vrot.slane %v2173, 1
        %v2175 = vadd.f32 %v2173, %v2174
        %v2176 = vrot.slane %v1921, 4
        %v2177 = vadd.f32 %v1921, %v2176
        %v2178 = vrot.slane %v2177, 2
        %v2179 = vadd.f32 %v2177, %v2178
        %v2180 = vrot.slane %v2179, 1
        %v2181 = vadd.f32 %v2179, %v2180
        %v2182 = vrot.slane %v1923, 4
        %v2183 = vadd.f32 %v1923, %v2182
        %v2184 = vrot.slane %v2183, 2
        %v2185 = vadd.f32 %v2183, %v2184
        %v2186 = vrot.slane %v2185, 1
        %v2187 = vadd.f32 %v2185, %v2186
        %v2188 = vrot.slane %v1925, 4
        %v2189 = vadd.f32 %v1925, %v2188
        %v2190 = vrot.slane %v2189, 2
        %v2191 = vadd.f32 %v2189, %v2190
        %v2192 = vrot.slane %v2191, 1
        %v2193 = vadd.f32 %v2191, %v2192
        %v2194 = vrot.slane %v1927, 4
        %v2195 = vadd.f32 %v1927, %v2194
        %v2196 = vrot.slane %v2195, 2
        %v2197 = vadd.f32 %v2195, %v2196
        %v2198 = vrot.slane %v2197, 1
        %v2199 = vadd.f32 %v2197, %v2198
        %v2200 = vrot.slane %v1929, 4
        %v2201 = vadd.f32 %v1929, %v2200
        %v2202 = vrot.slane %v2201, 2
        %v2203 = vadd.f32 %v2201, %v2202
        %v2204 = vrot.slane %v2203, 1
        %v2205 = vadd.f32 %v2203, %v2204
        %v2206 = vrot.slane %v1931, 4
        %v2207 = vadd.f32 %v1931, %v2206
        %v2208 = vrot.slane %v2207, 2
        %v2209 = vadd.f32 %v2207, %v2208
        %v2210 = vrot.slane %v2209, 1
        %v2211 = vadd.f32 %v2209, %v2210
        %v2212 = vrot.slane %v1933, 4
        %v2213 = vadd.f32 %v1933, %v2212
        %v2214 = vrot.slane %v2213, 2
        %v2215 = vadd.f32 %v2213, %v2214
        %v2216 = vrot.slane %v2215, 1
        %v2217 = vadd.f32 %v2215, %v2216
        %v2218 = vrot.slane %v1935, 4
        %v2219 = vadd.f32 %v1935, %v2218
        %v2220 = vrot.slane %v2219, 2
        %v2221 = vadd.f32 %v2219, %v2220
        %v2222 = vrot.slane %v2221, 1
        %v2223 = vadd.f32 %v2221, %v2222
        %v2224 = vrot.slane %v1937, 4
        %v2225 = vadd.f32 %v1937, %v2224
        %v2226 = vrot.slane %v2225, 2
        %v2227 = vadd.f32 %v2225, %v2226
        %v2228 = vrot.slane %v2227, 1
        %v2229 = vadd.f32 %v2227, %v2228
        %v2230 = vrot.slane %v1939, 4
        %v2231 = vadd.f32 %v1939, %v2230
        %v2232 = vrot.slane %v2231, 2
        %v2233 = vadd.f32 %v2231, %v2232
        %v2234 = vrot.slane %v2233, 1
        %v2235 = vadd.f32 %v2233, %v2234
        %v2236 = vrot.slane %v1941, 4
        %v2237 = vadd.f32 %v1941, %v2236
        %v2238 = vrot.slane %v2237, 2
        %v2239 = vadd.f32 %v2237, %v2238
        %v2240 = vrot.slane %v2239, 1
        %v2241 = vadd.f32 %v2239, %v2240
        %v2242 = vrot.slane %v1943, 4
        %v2243 = vadd.f32 %v1943, %v2242
        %v2244 = vrot.slane %v2243, 2
        %v2245 = vadd.f32 %v2243, %v2244
        %v2246 = vrot.slane %v2245, 1
        %v2247 = vadd.f32 %v2245, %v2246
        %v2248 = vrot.slane %v1945, 4
        %v2249 = vadd.f32 %v1945, %v2248
        %v2250 = vrot.slane %v2249, 2
        %v2251 = vadd.f32 %v2249, %v2250
        %v2252 = vrot.slane %v2251, 1
        %v2253 = vadd.f32 %v2251, %v2252
        %v2254 = vrot.slane %v1947, 4
        %v2255 = vadd.f32 %v1947, %v2254
        %v2256 = vrot.slane %v2255, 2
        %v2257 = vadd.f32 %v2255, %v2256
        %v2258 = vrot.slane %v2257, 1
        %v2259 = vadd.f32 %v2257, %v2258
        %v2260 = vrot.slane %v1949, 4
        %v2261 = vadd.f32 %v1949, %v2260
        %v2262 = vrot.slane %v2261, 2
        %v2263 = vadd.f32 %v2261, %v2262
        %v2264 = vrot.slane %v2263, 1
        %v2265 = vadd.f32 %v2263, %v2264
        %v2266 = vrot.slane %v1951, 4
        %v2267 = vadd.f32 %v1951, %v2266
        %v2268 = vrot.slane %v2267, 2
        %v2269 = vadd.f32 %v2267, %v2268
        %v2270 = vrot.slane %v2269, 1
        %v2271 = vadd.f32 %v2269, %v2270
        %v2272 = vrot.slane %v1953, 4
        %v2273 = vadd.f32 %v1953, %v2272
        %v2274 = vrot.slane %v2273, 2
        %v2275 = vadd.f32 %v2273, %v2274
        %v2276 = vrot.slane %v2275, 1
        %v2277 = vadd.f32 %v2275, %v2276
        %v2278 = vrot.slane %v1955, 4
        %v2279 = vadd.f32 %v1955, %v2278
        %v2280 = vrot.slane %v2279, 2
        %v2281 = vadd.f32 %v2279, %v2280
        %v2282 = vrot.slane %v2281, 1
        %v2283 = vadd.f32 %v2281, %v2282
        %v2284 = vrot.slane %v1957, 4
        %v2285 = vadd.f32 %v1957, %v2284
        %v2286 = vrot.slane %v2285, 2
        %v2287 = vadd.f32 %v2285, %v2286
        %v2288 = vrot.slane %v2287, 1
        %v2289 = vadd.f32 %v2287, %v2288
        %v2290 = vrot.slane %v1959, 4
        %v2291 = vadd.f32 %v1959, %v2290
        %v2292 = vrot.slane %v2291, 2
        %v2293 = vadd.f32 %v2291, %v2292
        %v2294 = vrot.slane %v2293, 1
        %v2295 = vadd.f32 %v2293, %v2294
        %v2296 = vrot.slane %v1961, 4
        %v2297 = vadd.f32 %v1961, %v2296
        %v2298 = vrot.slane %v2297, 2
        %v2299 = vadd.f32 %v2297, %v2298
        %v2300 = vrot.slane %v2299, 1
        %v2301 = vadd.f32 %v2299, %v2300
        %v2302 = vrot.slane %v1963, 4
        %v2303 = vadd.f32 %v1963, %v2302
        %v2304 = vrot.slane %v2303, 2
        %v2305 = vadd.f32 %v2303, %v2304
        %v2306 = vrot.slane %v2305, 1
        %v2307 = vadd.f32 %v2305, %v2306
        %v2308 = vrot.slane %v1965, 4
        %v2309 = vadd.f32 %v1965, %v2308
        %v2310 = vrot.slane %v2309, 2
        %v2311 = vadd.f32 %v2309, %v2310
        %v2312 = vrot.slane %v2311, 1
        %v2313 = vadd.f32 %v2311, %v2312
        %v2314 = vrot.slane %v1967, 4
        %v2315 = vadd.f32 %v1967, %v2314
        %v2316 = vrot.slane %v2315, 2
        %v2317 = vadd.f32 %v2315, %v2316
        %v2318 = vrot.slane %v2317, 1
        %v2319 = vadd.f32 %v2317, %v2318
        %v2320 = vrot.slane %v1969, 4
        %v2321 = vadd.f32 %v1969, %v2320
        %v2322 = vrot.slane %v2321, 2
        %v2323 = vadd.f32 %v2321, %v2322
        %v2324 = vrot.slane %v2323, 1
        %v2325 = vadd.f32 %v2323, %v2324
        %v2326 = vrot.slane %v1971, 4
        %v2327 = vadd.f32 %v1971, %v2326
        %v2328 = vrot.slane %v2327, 2
        %v2329 = vadd.f32 %v2327, %v2328
        %v2330 = vrot.slane %v2329, 1
        %v2331 = vadd.f32 %v2329, %v2330
        %v2332 = vrot.slane %v1973, 4
        %v2333 = vadd.f32 %v1973, %v2332
        %v2334 = vrot.slane %v2333, 2
        %v2335 = vadd.f32 %v2333, %v2334
        %v2336 = vrot.slane %v2335, 1
        %v2337 = vadd.f32 %v2335, %v2336
        %v2338 = vrot.slane %v1975, 4
        %v2339 = vadd.f32 %v1975, %v2338
        %v2340 = vrot.slane %v2339, 2
        %v2341 = vadd.f32 %v2339, %v2340
        %v2342 = vrot.slane %v2341, 1
        %v2343 = vadd.f32 %v2341, %v2342
        %v2344 = vrot.slane %v1977, 4
        %v2345 = vadd.f32 %v1977, %v2344
        %v2346 = vrot.slane %v2345, 2
        %v2347 = vadd.f32 %v2345, %v2346
        %v2348 = vrot.slane %v2347, 1
        %v2349 = vadd.f32 %v2347, %v2348
        %v2350 = vrot.slane %v1979, 4
        %v2351 = vadd.f32 %v1979, %v2350
        %v2352 = vrot.slane %v2351, 2
        %v2353 = vadd.f32 %v2351, %v2352
        %v2354 = vrot.slane %v2353, 1
        %v2355 = vadd.f32 %v2353, %v2354
        %v2356 = vrot.slane %v1981, 4
        %v2357 = vadd.f32 %v1981, %v2356
        %v2358 = vrot.slane %v2357, 2
        %v2359 = vadd.f32 %v2357, %v2358
        %v2360 = vrot.slane %v2359, 1
        %v2361 = vadd.f32 %v2359, %v2360
        %v2362 = vrot.slane %v1983, 4
        %v2363 = vadd.f32 %v1983, %v2362
        %v2364 = vrot.slane %v2363, 2
        %v2365 = vadd.f32 %v2363, %v2364
        %v2366 = vrot.slane %v2365, 1
        %v2367 = vadd.f32 %v2365, %v2366
        %v2368 = vrcp.pop %v1989
        %v2369 = vrcp.pop %v1995
        %v2370 = vrcp.pop %v2001
        %v2371 = vrcp.pop %v2007
        %v2372 = vrcp.pop %v2013
        %v2373 = vrcp.pop %v2019
        %v2374 = vrcp.pop %v2025
        %v2375 = vrcp.pop %v2031
        %v2376 = vrcp.pop %v2037
        %v2377 = vrcp.pop %v2043
        %v2378 = vrcp.pop %v2049
        %v2379 = vrcp.pop %v2055
        %v2380 = vrcp.pop %v2061
        %v2381 = vrcp.pop %v2067
        %v2382 = vrcp.pop %v2073
        %v2383 = vrcp.pop %v2079
        %v2384 = vrcp.pop %v2085
        %v2385 = vrcp.pop %v2091
        %v2386 = vrcp.pop %v2097
        %v2387 = vrcp.pop %v2103
        %v2388 = vrcp.pop %v2109
        %v2389 = vrcp.pop %v2115
        %v2390 = vrcp.pop %v2121
        %v2391 = vrcp.pop %v2127
        %v2392 = vrcp.pop %v2133
        %v2393 = vrcp.pop %v2139
        %v2394 = vrcp.pop %v2145
        %v2395 = vrcp.pop %v2151
        %v2396 = vrcp.pop %v2157
        %v2397 = vrcp.pop %v2163
        %v2398 = vrcp.pop %v2169
        %v2399 = vrcp.pop %v2175
        %v2400 = vrcp.pop %v2181
        %v2401 = vrcp.pop %v2187
        %v2402 = vrcp.pop %v2193
        %v2403 = vrcp.pop %v2199
        %v2404 = vrcp.pop %v2205
        %v2405 = vrcp.pop %v2211
        %v2406 = vrcp.pop %v2217
        %v2407 = vrcp.pop %v2223
        %v2408 = vrcp.pop %v2229
        %v2409 = vrcp.pop %v2235
        %v2410 = vrcp.pop %v2241
        %v2411 = vrcp.pop %v2247
        %v2412 = vrcp.pop %v2253
        %v2413 = vrcp.pop %v2259
        %v2414 = vrcp.pop %v2265
        %v2415 = vrcp.pop %v2271
        %v2416 = vrcp.pop %v2277
        %v2417 = vrcp.pop %v2283
        %v2418 = vrcp.pop %v2289
        %v2419 = vrcp.pop %v2295
        %v2420 = vrcp.pop %v2301
        %v2421 = vrcp.pop %v2307
        %v2422 = vrcp.pop %v2313
        %v2423 = vrcp.pop %v2319
        %v2424 = vrcp.pop %v2325
        %v2425 = vrcp.pop %v2331
        %v2426 = vrcp.pop %v2337
        %v2427 = vrcp.pop %v2343
        %v2428 = vrcp.pop %v2349
        %v2429 = vrcp.pop %v2355
        %v2430 = vrcp.pop %v2361
        %v2431 = vrcp.pop %v2367
        %v2432 = vmul.f32 %v384, %v1857
        %v2433 = vmul.f32 %v385, %v1859
        %v2434 = vmul.f32 %v386, %v1861
        %v2435 = vmul.f32 %v387, %v1863
        %v2436 = vmul.f32 %v388, %v1865
        %v2437 = vmul.f32 %v389, %v1867
        %v2438 = vmul.f32 %v390, %v1869
        %v2439 = vmul.f32 %v391, %v1871
        %v2440 = vmul.f32 %v392, %v1873
        %v2441 = vmul.f32 %v393, %v1875
        %v2442 = vmul.f32 %v394, %v1877
        %v2443 = vmul.f32 %v395, %v1879
        %v2444 = vmul.f32 %v396, %v1881
        %v2445 = vmul.f32 %v397, %v1883
        %v2446 = vmul.f32 %v398, %v1885
        %v2447 = vmul.f32 %v399, %v1887
        %v2448 = vmul.f32 %v400, %v1889
        %v2449 = vmul.f32 %v401, %v1891
        %v2450 = vmul.f32 %v402, %v1893
        %v2451 = vmul.f32 %v403, %v1895
        %v2452 = vmul.f32 %v404, %v1897
        %v2453 = vmul.f32 %v405, %v1899
        %v2454 = vmul.f32 %v406, %v1901
        %v2455 = vmul.f32 %v407, %v1903
        %v2456 = vmul.f32 %v408, %v1905
        %v2457 = vmul.f32 %v409, %v1907
        %v2458 = vmul.f32 %v410, %v1909
        %v2459 = vmul.f32 %v411, %v1911
        %v2460 = vmul.f32 %v412, %v1913
        %v2461 = vmul.f32 %v413, %v1915
        %v2462 = vmul.f32 %v414, %v1917
        %v2463 = vmul.f32 %v415, %v1919
        %v2464 = vsel %vm695, %v2432, 0.0
        %v2465 = vrot.slane %v2464, 4
        %v2466 = vadd.f32 %v2464, %v2465
        %v2467 = vrot.slane %v2466, 2
        %v2468 = vadd.f32 %v2466, %v2467
        %v2469 = vrot.slane %v2468, 1
        %v2470 = vadd.f32 %v2468, %v2469
        %v2471 = vsel %vm695, %v2433, 0.0
        %v2472 = vrot.slane %v2471, 4
        %v2473 = vadd.f32 %v2471, %v2472
        %v2474 = vrot.slane %v2473, 2
        %v2475 = vadd.f32 %v2473, %v2474
        %v2476 = vrot.slane %v2475, 1
        %v2477 = vadd.f32 %v2475, %v2476
        %v2478 = vsel %vm695, %v2434, 0.0
        %v2479 = vrot.slane %v2478, 4
        %v2480 = vadd.f32 %v2478, %v2479
        %v2481 = vrot.slane %v2480, 2
        %v2482 = vadd.f32 %v2480, %v2481
        %v2483 = vrot.slane %v2482, 1
        %v2484 = vadd.f32 %v2482, %v2483
        %v2485 = vsel %vm695, %v2435, 0.0
        %v2486 = vrot.slane %v2485, 4
        %v2487 = vadd.f32 %v2485, %v2486
        %v2488 = vrot.slane %v2487, 2
        %v2489 = vadd.f32 %v2487, %v2488
        %v2490 = vrot.slane %v2489, 1
        %v2491 = vadd.f32 %v2489, %v2490
        %v2492 = vsel %vm695, %v2436, 0.0
        %v2493 = vrot.slane %v2492, 4
        %v2494 = vadd.f32 %v2492, %v2493
        %v2495 = vrot.slane %v2494, 2
        %v2496 = vadd.f32 %v2494, %v2495
        %v2497 = vrot.slane %v2496, 1
        %v2498 = vadd.f32 %v2496, %v2497
        %v2499 = vsel %vm695, %v2437, 0.0
        %v2500 = vrot.slane %v2499, 4
        %v2501 = vadd.f32 %v2499, %v2500
        %v2502 = vrot.slane %v2501, 2
        %v2503 = vadd.f32 %v2501, %v2502
        %v2504 = vrot.slane %v2503, 1
        %v2505 = vadd.f32 %v2503, %v2504
        %v2506 = vsel %vm695, %v2438, 0.0
        %v2507 = vrot.slane %v2506, 4
        %v2508 = vadd.f32 %v2506, %v2507
        %v2509 = vrot.slane %v2508, 2
        %v2510 = vadd.f32 %v2508, %v2509
        %v2511 = vrot.slane %v2510, 1
        %v2512 = vadd.f32 %v2510, %v2511
        %v2513 = vsel %vm695, %v2439, 0.0
        %v2514 = vrot.slane %v2513, 4
        %v2515 = vadd.f32 %v2513, %v2514
        %v2516 = vrot.slane %v2515, 2
        %v2517 = vadd.f32 %v2515, %v2516
        %v2518 = vrot.slane %v2517, 1
        %v2519 = vadd.f32 %v2517, %v2518
        %v2520 = vsel %vm695, %v2440, 0.0
        %v2521 = vrot.slane %v2520, 4
        %v2522 = vadd.f32 %v2520, %v2521
        %v2523 = vrot.slane %v2522, 2
        %v2524 = vadd.f32 %v2522, %v2523
        %v2525 = vrot.slane %v2524, 1
        %v2526 = vadd.f32 %v2524, %v2525
        %v2527 = vsel %vm695, %v2441, 0.0
        %v2528 = vrot.slane %v2527, 4
        %v2529 = vadd.f32 %v2527, %v2528
        %v2530 = vrot.slane %v2529, 2
        %v2531 = vadd.f32 %v2529, %v2530
        %v2532 = vrot.slane %v2531, 1
        %v2533 = vadd.f32 %v2531, %v2532
        %v2534 = vsel %vm695, %v2442, 0.0
        %v2535 = vrot.slane %v2534, 4
        %v2536 = vadd.f32 %v2534, %v2535
        %v2537 = vrot.slane %v2536, 2
        %v2538 = vadd.f32 %v2536, %v2537
        %v2539 = vrot.slane %v2538, 1
        %v2540 = vadd.f32 %v2538, %v2539
        %v2541 = vsel %vm695, %v2443, 0.0
        %v2542 = vrot.slane %v2541, 4
        %v2543 = vadd.f32 %v2541, %v2542
        %v2544 = vrot.slane %v2543, 2
        %v2545 = vadd.f32 %v2543, %v2544
        %v2546 = vrot.slane %v2545, 1
        %v2547 = vadd.f32 %v2545, %v2546
        %v2548 = vsel %vm695, %v2444, 0.0
        %v2549 = vrot.slane %v2548, 4
        %v2550 = vadd.f32 %v2548, %v2549
        %v2551 = vrot.slane %v2550, 2
        %v2552 = vadd.f32 %v2550, %v2551
        %v2553 = vrot.slane %v2552, 1
        %v2554 = vadd.f32 %v2552, %v2553
        %v2555 = vsel %vm695, %v2445, 0.0
        %v2556 = vrot.slane %v2555, 4
        %v2557 = vadd.f32 %v2555, %v2556
        %v2558 = vrot.slane %v2557, 2
        %v2559 = vadd.f32 %v2557, %v2558
        %v2560 = vrot.slane %v2559, 1
        %v2561 = vadd.f32 %v2559, %v2560
        %v2562 = vsel %vm695, %v2446, 0.0
        %v2563 = vrot.slane %v2562, 4
        %v2564 = vadd.f32 %v2562, %v2563
        %v2565 = vrot.slane %v2564, 2
        %v2566 = vadd.f32 %v2564, %v2565
        %v2567 = vrot.slane %v2566, 1
        %v2568 = vadd.f32 %v2566, %v2567
        %v2569 = vsel %vm695, %v2447, 0.0
        %v2570 = vrot.slane %v2569, 4
        %v2571 = vadd.f32 %v2569, %v2570
        %v2572 = vrot.slane %v2571, 2
        %v2573 = vadd.f32 %v2571, %v2572
        %v2574 = vrot.slane %v2573, 1
        %v2575 = vadd.f32 %v2573, %v2574
        %v2576 = vsel %vm695, %v2448, 0.0
        %v2577 = vrot.slane %v2576, 4
        %v2578 = vadd.f32 %v2576, %v2577
        %v2579 = vrot.slane %v2578, 2
        %v2580 = vadd.f32 %v2578, %v2579
        %v2581 = vrot.slane %v2580, 1
        %v2582 = vadd.f32 %v2580, %v2581
        %v2583 = vsel %vm695, %v2449, 0.0
        %v2584 = vrot.slane %v2583, 4
        %v2585 = vadd.f32 %v2583, %v2584
        %v2586 = vrot.slane %v2585, 2
        %v2587 = vadd.f32 %v2585, %v2586
        %v2588 = vrot.slane %v2587, 1
        %v2589 = vadd.f32 %v2587, %v2588
        %v2590 = vsel %vm695, %v2450, 0.0
        %v2591 = vrot.slane %v2590, 4
        %v2592 = vadd.f32 %v2590, %v2591
        %v2593 = vrot.slane %v2592, 2
        %v2594 = vadd.f32 %v2592, %v2593
        %v2595 = vrot.slane %v2594, 1
        %v2596 = vadd.f32 %v2594, %v2595
        %v2597 = vsel %vm695, %v2451, 0.0
        %v2598 = vrot.slane %v2597, 4
        %v2599 = vadd.f32 %v2597, %v2598
        %v2600 = vrot.slane %v2599, 2
        %v2601 = vadd.f32 %v2599, %v2600
        %v2602 = vrot.slane %v2601, 1
        %v2603 = vadd.f32 %v2601, %v2602
        %v2604 = vsel %vm695, %v2452, 0.0
        %v2605 = vrot.slane %v2604, 4
        %v2606 = vadd.f32 %v2604, %v2605
        %v2607 = vrot.slane %v2606, 2
        %v2608 = vadd.f32 %v2606, %v2607
        %v2609 = vrot.slane %v2608, 1
        %v2610 = vadd.f32 %v2608, %v2609
        %v2611 = vsel %vm695, %v2453, 0.0
        %v2612 = vrot.slane %v2611, 4
        %v2613 = vadd.f32 %v2611, %v2612
        %v2614 = vrot.slane %v2613, 2
        %v2615 = vadd.f32 %v2613, %v2614
        %v2616 = vrot.slane %v2615, 1
        %v2617 = vadd.f32 %v2615, %v2616
        %v2618 = vsel %vm695, %v2454, 0.0
        %v2619 = vrot.slane %v2618, 4
        %v2620 = vadd.f32 %v2618, %v2619
        %v2621 = vrot.slane %v2620, 2
        %v2622 = vadd.f32 %v2620, %v2621
        %v2623 = vrot.slane %v2622, 1
        %v2624 = vadd.f32 %v2622, %v2623
        %v2625 = vsel %vm695, %v2455, 0.0
        %v2626 = vrot.slane %v2625, 4
        %v2627 = vadd.f32 %v2625, %v2626
        %v2628 = vrot.slane %v2627, 2
        %v2629 = vadd.f32 %v2627, %v2628
        %v2630 = vrot.slane %v2629, 1
        %v2631 = vadd.f32 %v2629, %v2630
        %v2632 = vsel %vm695, %v2456, 0.0
        %v2633 = vrot.slane %v2632, 4
        %v2634 = vadd.f32 %v2632, %v2633
        %v2635 = vrot.slane %v2634, 2
        %v2636 = vadd.f32 %v2634, %v2635
        %v2637 = vrot.slane %v2636, 1
        %v2638 = vadd.f32 %v2636, %v2637
        %v2639 = vsel %vm695, %v2457, 0.0
        %v2640 = vrot.slane %v2639, 4
        %v2641 = vadd.f32 %v2639, %v2640
        %v2642 = vrot.slane %v2641, 2
        %v2643 = vadd.f32 %v2641, %v2642
        %v2644 = vrot.slane %v2643, 1
        %v2645 = vadd.f32 %v2643, %v2644
        %v2646 = vsel %vm695, %v2458, 0.0
        %v2647 = vrot.slane %v2646, 4
        %v2648 = vadd.f32 %v2646, %v2647
        %v2649 = vrot.slane %v2648, 2
        %v2650 = vadd.f32 %v2648, %v2649
        %v2651 = vrot.slane %v2650, 1
        %v2652 = vadd.f32 %v2650, %v2651
        %v2653 = vsel %vm695, %v2459, 0.0
        %v2654 = vrot.slane %v2653, 4
        %v2655 = vadd.f32 %v2653, %v2654
        %v2656 = vrot.slane %v2655, 2
        %v2657 = vadd.f32 %v2655, %v2656
        %v2658 = vrot.slane %v2657, 1
        %v2659 = vadd.f32 %v2657, %v2658
        %v2660 = vsel %vm695, %v2460, 0.0
        %v2661 = vrot.slane %v2660, 4
        %v2662 = vadd.f32 %v2660, %v2661
        %v2663 = vrot.slane %v2662, 2
        %v2664 = vadd.f32 %v2662, %v2663
        %v2665 = vrot.slane %v2664, 1
        %v2666 = vadd.f32 %v2664, %v2665
        %v2667 = vsel %vm695, %v2461, 0.0
        %v2668 = vrot.slane %v2667, 4
        %v2669 = vadd.f32 %v2667, %v2668
        %v2670 = vrot.slane %v2669, 2
        %v2671 = vadd.f32 %v2669, %v2670
        %v2672 = vrot.slane %v2671, 1
        %v2673 = vadd.f32 %v2671, %v2672
        %v2674 = vsel %vm695, %v2462, 0.0
        %v2675 = vrot.slane %v2674, 4
        %v2676 = vadd.f32 %v2674, %v2675
        %v2677 = vrot.slane %v2676, 2
        %v2678 = vadd.f32 %v2676, %v2677
        %v2679 = vrot.slane %v2678, 1
        %v2680 = vadd.f32 %v2678, %v2679
        %v2681 = vsel %vm695, %v2463, 0.0
        %v2682 = vrot.slane %v2681, 4
        %v2683 = vadd.f32 %v2681, %v2682
        %v2684 = vrot.slane %v2683, 2
        %v2685 = vadd.f32 %v2683, %v2684
        %v2686 = vrot.slane %v2685, 1
        %v2687 = vadd.f32 %v2685, %v2686
        %v2688 = vmul.f32 %v2470, %v2368
        %v2689 = vmul.f32 %v2477, %v2369
        %v2690 = vmul.f32 %v2484, %v2370
        %v2691 = vmul.f32 %v2491, %v2371
        %v2692 = vmul.f32 %v2498, %v2372
        %v2693 = vmul.f32 %v2505, %v2373
        %v2694 = vmul.f32 %v2512, %v2374
        %v2695 = vmul.f32 %v2519, %v2375
        %v2696 = vmul.f32 %v2526, %v2376
        %v2697 = vmul.f32 %v2533, %v2377
        %v2698 = vmul.f32 %v2540, %v2378
        %v2699 = vmul.f32 %v2547, %v2379
        %v2700 = vmul.f32 %v2554, %v2380
        %v2701 = vmul.f32 %v2561, %v2381
        %v2702 = vmul.f32 %v2568, %v2382
        %v2703 = vmul.f32 %v2575, %v2383
        %v2704 = vmul.f32 %v2582, %v2384
        %v2705 = vmul.f32 %v2589, %v2385
        %v2706 = vmul.f32 %v2596, %v2386
        %v2707 = vmul.f32 %v2603, %v2387
        %v2708 = vmul.f32 %v2610, %v2388
        %v2709 = vmul.f32 %v2617, %v2389
        %v2710 = vmul.f32 %v2624, %v2390
        %v2711 = vmul.f32 %v2631, %v2391
        %v2712 = vmul.f32 %v2638, %v2392
        %v2713 = vmul.f32 %v2645, %v2393
        %v2714 = vmul.f32 %v2652, %v2394
        %v2715 = vmul.f32 %v2659, %v2395
        %v2716 = vmul.f32 %v2666, %v2396
        %v2717 = vmul.f32 %v2673, %v2397
        %v2718 = vmul.f32 %v2680, %v2398
        %v2719 = vmul.f32 %v2687, %v2399
        %v2720 = vmul.f32 %v448, %v1921
        %v2721 = vmul.f32 %v449, %v1923
        %v2722 = vmul.f32 %v450, %v1925
        %v2723 = vmul.f32 %v451, %v1927
        %v2724 = vmul.f32 %v452, %v1929
        %v2725 = vmul.f32 %v453, %v1931
        %v2726 = vmul.f32 %v454, %v1933
        %v2727 = vmul.f32 %v455, %v1935
        %v2728 = vmul.f32 %v456, %v1937
        %v2729 = vmul.f32 %v457, %v1939
        %v2730 = vmul.f32 %v458, %v1941
        %v2731 = vmul.f32 %v459, %v1943
        %v2732 = vmul.f32 %v460, %v1945
        %v2733 = vmul.f32 %v461, %v1947
        %v2734 = vmul.f32 %v462, %v1949
        %v2735 = vmul.f32 %v463, %v1951
        %v2736 = vmul.f32 %v464, %v1953
        %v2737 = vmul.f32 %v465, %v1955
        %v2738 = vmul.f32 %v466, %v1957
        %v2739 = vmul.f32 %v467, %v1959
        %v2740 = vmul.f32 %v468, %v1961
        %v2741 = vmul.f32 %v469, %v1963
        %v2742 = vmul.f32 %v470, %v1965
        %v2743 = vmul.f32 %v471, %v1967
        %v2744 = vmul.f32 %v472, %v1969
        %v2745 = vmul.f32 %v473, %v1971
        %v2746 = vmul.f32 %v474, %v1973
        %v2747 = vmul.f32 %v475, %v1975
        %v2748 = vmul.f32 %v476, %v1977
        %v2749 = vmul.f32 %v477, %v1979
        %v2750 = vmul.f32 %v478, %v1981
        %v2751 = vmul.f32 %v479, %v1983
        %v2752 = vsel %vm695, %v2720, 0.0
        %v2753 = vrot.slane %v2752, 4
        %v2754 = vadd.f32 %v2752, %v2753
        %v2755 = vrot.slane %v2754, 2
        %v2756 = vadd.f32 %v2754, %v2755
        %v2757 = vrot.slane %v2756, 1
        %v2758 = vadd.f32 %v2756, %v2757
        %v2759 = vsel %vm695, %v2721, 0.0
        %v2760 = vrot.slane %v2759, 4
        %v2761 = vadd.f32 %v2759, %v2760
        %v2762 = vrot.slane %v2761, 2
        %v2763 = vadd.f32 %v2761, %v2762
        %v2764 = vrot.slane %v2763, 1
        %v2765 = vadd.f32 %v2763, %v2764
        %v2766 = vsel %vm695, %v2722, 0.0
        %v2767 = vrot.slane %v2766, 4
        %v2768 = vadd.f32 %v2766, %v2767
        %v2769 = vrot.slane %v2768, 2
        %v2770 = vadd.f32 %v2768, %v2769
        %v2771 = vrot.slane %v2770, 1
        %v2772 = vadd.f32 %v2770, %v2771
        %v2773 = vsel %vm695, %v2723, 0.0
        %v2774 = vrot.slane %v2773, 4
        %v2775 = vadd.f32 %v2773, %v2774
        %v2776 = vrot.slane %v2775, 2
        %v2777 = vadd.f32 %v2775, %v2776
        %v2778 = vrot.slane %v2777, 1
        %v2779 = vadd.f32 %v2777, %v2778
        %v2780 = vsel %vm695, %v2724, 0.0
        %v2781 = vrot.slane %v2780, 4
        %v2782 = vadd.f32 %v2780, %v2781
        %v2783 = vrot.slane %v2782, 2
        %v2784 = vadd.f32 %v2782, %v2783
        %v2785 = vrot.slane %v2784, 1
        %v2786 = vadd.f32 %v2784, %v2785
        %v2787 = vsel %vm695, %v2725, 0.0
        %v2788 = vrot.slane %v2787, 4
        %v2789 = vadd.f32 %v2787, %v2788
        %v2790 = vrot.slane %v2789, 2
        %v2791 = vadd.f32 %v2789, %v2790
        %v2792 = vrot.slane %v2791, 1
        %v2793 = vadd.f32 %v2791, %v2792
        %v2794 = vsel %vm695, %v2726, 0.0
        %v2795 = vrot.slane %v2794, 4
        %v2796 = vadd.f32 %v2794, %v2795
        %v2797 = vrot.slane %v2796, 2
        %v2798 = vadd.f32 %v2796, %v2797
        %v2799 = vrot.slane %v2798, 1
        %v2800 = vadd.f32 %v2798, %v2799
        %v2801 = vsel %vm695, %v2727, 0.0
        %v2802 = vrot.slane %v2801, 4
        %v2803 = vadd.f32 %v2801, %v2802
        %v2804 = vrot.slane %v2803, 2
        %v2805 = vadd.f32 %v2803, %v2804
        %v2806 = vrot.slane %v2805, 1
        %v2807 = vadd.f32 %v2805, %v2806
        %v2808 = vsel %vm695, %v2728, 0.0
        %v2809 = vrot.slane %v2808, 4
        %v2810 = vadd.f32 %v2808, %v2809
        %v2811 = vrot.slane %v2810, 2
        %v2812 = vadd.f32 %v2810, %v2811
        %v2813 = vrot.slane %v2812, 1
        %v2814 = vadd.f32 %v2812, %v2813
        %v2815 = vsel %vm695, %v2729, 0.0
        %v2816 = vrot.slane %v2815, 4
        %v2817 = vadd.f32 %v2815, %v2816
        %v2818 = vrot.slane %v2817, 2
        %v2819 = vadd.f32 %v2817, %v2818
        %v2820 = vrot.slane %v2819, 1
        %v2821 = vadd.f32 %v2819, %v2820
        %v2822 = vsel %vm695, %v2730, 0.0
        %v2823 = vrot.slane %v2822, 4
        %v2824 = vadd.f32 %v2822, %v2823
        %v2825 = vrot.slane %v2824, 2
        %v2826 = vadd.f32 %v2824, %v2825
        %v2827 = vrot.slane %v2826, 1
        %v2828 = vadd.f32 %v2826, %v2827
        %v2829 = vsel %vm695, %v2731, 0.0
        %v2830 = vrot.slane %v2829, 4
        %v2831 = vadd.f32 %v2829, %v2830
        %v2832 = vrot.slane %v2831, 2
        %v2833 = vadd.f32 %v2831, %v2832
        %v2834 = vrot.slane %v2833, 1
        %v2835 = vadd.f32 %v2833, %v2834
        %v2836 = vsel %vm695, %v2732, 0.0
        %v2837 = vrot.slane %v2836, 4
        %v2838 = vadd.f32 %v2836, %v2837
        %v2839 = vrot.slane %v2838, 2
        %v2840 = vadd.f32 %v2838, %v2839
        %v2841 = vrot.slane %v2840, 1
        %v2842 = vadd.f32 %v2840, %v2841
        %v2843 = vsel %vm695, %v2733, 0.0
        %v2844 = vrot.slane %v2843, 4
        %v2845 = vadd.f32 %v2843, %v2844
        %v2846 = vrot.slane %v2845, 2
        %v2847 = vadd.f32 %v2845, %v2846
        %v2848 = vrot.slane %v2847, 1
        %v2849 = vadd.f32 %v2847, %v2848
        %v2850 = vsel %vm695, %v2734, 0.0
        %v2851 = vrot.slane %v2850, 4
        %v2852 = vadd.f32 %v2850, %v2851
        %v2853 = vrot.slane %v2852, 2
        %v2854 = vadd.f32 %v2852, %v2853
        %v2855 = vrot.slane %v2854, 1
        %v2856 = vadd.f32 %v2854, %v2855
        %v2857 = vsel %vm695, %v2735, 0.0
        %v2858 = vrot.slane %v2857, 4
        %v2859 = vadd.f32 %v2857, %v2858
        %v2860 = vrot.slane %v2859, 2
        %v2861 = vadd.f32 %v2859, %v2860
        %v2862 = vrot.slane %v2861, 1
        %v2863 = vadd.f32 %v2861, %v2862
        %v2864 = vsel %vm695, %v2736, 0.0
        %v2865 = vrot.slane %v2864, 4
        %v2866 = vadd.f32 %v2864, %v2865
        %v2867 = vrot.slane %v2866, 2
        %v2868 = vadd.f32 %v2866, %v2867
        %v2869 = vrot.slane %v2868, 1
        %v2870 = vadd.f32 %v2868, %v2869
        %v2871 = vsel %vm695, %v2737, 0.0
        %v2872 = vrot.slane %v2871, 4
        %v2873 = vadd.f32 %v2871, %v2872
        %v2874 = vrot.slane %v2873, 2
        %v2875 = vadd.f32 %v2873, %v2874
        %v2876 = vrot.slane %v2875, 1
        %v2877 = vadd.f32 %v2875, %v2876
        %v2878 = vsel %vm695, %v2738, 0.0
        %v2879 = vrot.slane %v2878, 4
        %v2880 = vadd.f32 %v2878, %v2879
        %v2881 = vrot.slane %v2880, 2
        %v2882 = vadd.f32 %v2880, %v2881
        %v2883 = vrot.slane %v2882, 1
        %v2884 = vadd.f32 %v2882, %v2883
        %v2885 = vsel %vm695, %v2739, 0.0
        %v2886 = vrot.slane %v2885, 4
        %v2887 = vadd.f32 %v2885, %v2886
        %v2888 = vrot.slane %v2887, 2
        %v2889 = vadd.f32 %v2887, %v2888
        %v2890 = vrot.slane %v2889, 1
        %v2891 = vadd.f32 %v2889, %v2890
        %v2892 = vsel %vm695, %v2740, 0.0
        %v2893 = vrot.slane %v2892, 4
        %v2894 = vadd.f32 %v2892, %v2893
        %v2895 = vrot.slane %v2894, 2
        %v2896 = vadd.f32 %v2894, %v2895
        %v2897 = vrot.slane %v2896, 1
        %v2898 = vadd.f32 %v2896, %v2897
        %v2899 = vsel %vm695, %v2741, 0.0
        %v2900 = vrot.slane %v2899, 4
        %v2901 = vadd.f32 %v2899, %v2900
        %v2902 = vrot.slane %v2901, 2
        %v2903 = vadd.f32 %v2901, %v2902
        %v2904 = vrot.slane %v2903, 1
        %v2905 = vadd.f32 %v2903, %v2904
        %v2906 = vsel %vm695, %v2742, 0.0
        %v2907 = vrot.slane %v2906, 4
        %v2908 = vadd.f32 %v2906, %v2907
        %v2909 = vrot.slane %v2908, 2
        %v2910 = vadd.f32 %v2908, %v2909
        %v2911 = vrot.slane %v2910, 1
        %v2912 = vadd.f32 %v2910, %v2911
        %v2913 = vsel %vm695, %v2743, 0.0
        %v2914 = vrot.slane %v2913, 4
        %v2915 = vadd.f32 %v2913, %v2914
        %v2916 = vrot.slane %v2915, 2
        %v2917 = vadd.f32 %v2915, %v2916
        %v2918 = vrot.slane %v2917, 1
        %v2919 = vadd.f32 %v2917, %v2918
        %v2920 = vsel %vm695, %v2744, 0.0
        %v2921 = vrot.slane %v2920, 4
        %v2922 = vadd.f32 %v2920, %v2921
        %v2923 = vrot.slane %v2922, 2
        %v2924 = vadd.f32 %v2922, %v2923
        %v2925 = vrot.slane %v2924, 1
        %v2926 = vadd.f32 %v2924, %v2925
        %v2927 = vsel %vm695, %v2745, 0.0
        %v2928 = vrot.slane %v2927, 4
        %v2929 = vadd.f32 %v2927, %v2928
        %v2930 = vrot.slane %v2929, 2
        %v2931 = vadd.f32 %v2929, %v2930
        %v2932 = vrot.slane %v2931, 1
        %v2933 = vadd.f32 %v2931, %v2932
        %v2934 = vsel %vm695, %v2746, 0.0
        %v2935 = vrot.slane %v2934, 4
        %v2936 = vadd.f32 %v2934, %v2935
        %v2937 = vrot.slane %v2936, 2
        %v2938 = vadd.f32 %v2936, %v2937
        %v2939 = vrot.slane %v2938, 1
        %v2940 = vadd.f32 %v2938, %v2939
        %v2941 = vsel %vm695, %v2747, 0.0
        %v2942 = vrot.slane %v2941, 4
        %v2943 = vadd.f32 %v2941, %v2942
        %v2944 = vrot.slane %v2943, 2
        %v2945 = vadd.f32 %v2943, %v2944
        %v2946 = vrot.slane %v2945, 1
        %v2947 = vadd.f32 %v2945, %v2946
        %v2948 = vsel %vm695, %v2748, 0.0
        %v2949 = vrot.slane %v2948, 4
        %v2950 = vadd.f32 %v2948, %v2949
        %v2951 = vrot.slane %v2950, 2
        %v2952 = vadd.f32 %v2950, %v2951
        %v2953 = vrot.slane %v2952, 1
        %v2954 = vadd.f32 %v2952, %v2953
        %v2955 = vsel %vm695, %v2749, 0.0
        %v2956 = vrot.slane %v2955, 4
        %v2957 = vadd.f32 %v2955, %v2956
        %v2958 = vrot.slane %v2957, 2
        %v2959 = vadd.f32 %v2957, %v2958
        %v2960 = vrot.slane %v2959, 1
        %v2961 = vadd.f32 %v2959, %v2960
        %v2962 = vsel %vm695, %v2750, 0.0
        %v2963 = vrot.slane %v2962, 4
        %v2964 = vadd.f32 %v2962, %v2963
        %v2965 = vrot.slane %v2964, 2
        %v2966 = vadd.f32 %v2964, %v2965
        %v2967 = vrot.slane %v2966, 1
        %v2968 = vadd.f32 %v2966, %v2967
        %v2969 = vsel %vm695, %v2751, 0.0
        %v2970 = vrot.slane %v2969, 4
        %v2971 = vadd.f32 %v2969, %v2970
        %v2972 = vrot.slane %v2971, 2
        %v2973 = vadd.f32 %v2971, %v2972
        %v2974 = vrot.slane %v2973, 1
        %v2975 = vadd.f32 %v2973, %v2974
        %v2976 = vmul.f32 %v2758, %v2400
        %v2977 = vmul.f32 %v2765, %v2401
        %v2978 = vmul.f32 %v2772, %v2402
        %v2979 = vmul.f32 %v2779, %v2403
        %v2980 = vmul.f32 %v2786, %v2404
        %v2981 = vmul.f32 %v2793, %v2405
        %v2982 = vmul.f32 %v2800, %v2406
        %v2983 = vmul.f32 %v2807, %v2407
        %v2984 = vmul.f32 %v2814, %v2408
        %v2985 = vmul.f32 %v2821, %v2409
        %v2986 = vmul.f32 %v2828, %v2410
        %v2987 = vmul.f32 %v2835, %v2411
        %v2988 = vmul.f32 %v2842, %v2412
        %v2989 = vmul.f32 %v2849, %v2413
        %v2990 = vmul.f32 %v2856, %v2414
        %v2991 = vmul.f32 %v2863, %v2415
        %v2992 = vmul.f32 %v2870, %v2416
        %v2993 = vmul.f32 %v2877, %v2417
        %v2994 = vmul.f32 %v2884, %v2418
        %v2995 = vmul.f32 %v2891, %v2419
        %v2996 = vmul.f32 %v2898, %v2420
        %v2997 = vmul.f32 %v2905, %v2421
        %v2998 = vmul.f32 %v2912, %v2422
        %v2999 = vmul.f32 %v2919, %v2423
        %v3000 = vmul.f32 %v2926, %v2424
        %v3001 = vmul.f32 %v2933, %v2425
        %v3002 = vmul.f32 %v2940, %v2426
        %v3003 = vmul.f32 %v2947, %v2427
        %v3004 = vmul.f32 %v2954, %v2428
        %v3005 = vmul.f32 %v2961, %v2429
        %v3006 = vmul.f32 %v2968, %v2430
        %v3007 = vmul.f32 %v2975, %v2431
        %v3008 = vpack.c.bf16 %v2688, %v2688
        %v3009 = vpack.c.bf16 %v2689, %v2689
        %v3010 = vpack.c.bf16 %v2690, %v2690
        %v3011 = vpack.c.bf16 %v2691, %v2691
        %v3012 = vpack.c.bf16 %v2692, %v2692
        %v3013 = vpack.c.bf16 %v2693, %v2693
        %v3014 = vpack.c.bf16 %v2694, %v2694
        %v3015 = vpack.c.bf16 %v2695, %v2695
        %v3016 = vpack.c.bf16 %v2696, %v2696
        %v3017 = vpack.c.bf16 %v2697, %v2697
        %v3018 = vpack.c.bf16 %v2698, %v2698
        %v3019 = vpack.c.bf16 %v2699, %v2699
        %v3020 = vpack.c.bf16 %v2700, %v2700
        %v3021 = vpack.c.bf16 %v2701, %v2701
        %v3022 = vpack.c.bf16 %v2702, %v2702
        %v3023 = vpack.c.bf16 %v2703, %v2703
        %v3024 = vpack.c.bf16 %v2704, %v2704
        %v3025 = vpack.c.bf16 %v2705, %v2705
        %v3026 = vpack.c.bf16 %v2706, %v2706
        %v3027 = vpack.c.bf16 %v2707, %v2707
        %v3028 = vpack.c.bf16 %v2708, %v2708
        %v3029 = vpack.c.bf16 %v2709, %v2709
        %v3030 = vpack.c.bf16 %v2710, %v2710
        %v3031 = vpack.c.bf16 %v2711, %v2711
        %v3032 = vpack.c.bf16 %v2712, %v2712
        %v3033 = vpack.c.bf16 %v2713, %v2713
        %v3034 = vpack.c.bf16 %v2714, %v2714
        %v3035 = vpack.c.bf16 %v2715, %v2715
        %v3036 = vpack.c.bf16 %v2716, %v2716
        %v3037 = vpack.c.bf16 %v2717, %v2717
        %v3038 = vpack.c.bf16 %v2718, %v2718
        %v3039 = vpack.c.bf16 %v2719, %v2719
        %v3040 = vld [vmem:[%s5] sm:$0xf]
        %v3041 = vld [vmem:[%s5 + $0x4] sm:$0xf]
        %v3042 = vld [vmem:[%s5 + $0x8] sm:$0xf]
        %v3043 = vld [vmem:[%s5 + $0xc] sm:$0xf]
        %v3044 = vpack.c.bf16 %v2976, %v2976
        %v3045 = vpack.c.bf16 %v2977, %v2977
        %v3046 = vpack.c.bf16 %v2978, %v2978
        %v3047 = vpack.c.bf16 %v2979, %v2979
        %v3048 = vpack.c.bf16 %v2980, %v2980
        %v3049 = vpack.c.bf16 %v2981, %v2981
        %v3050 = vpack.c.bf16 %v2982, %v2982
        %v3051 = vpack.c.bf16 %v2983, %v2983
        %v3052 = vpack.c.bf16 %v2984, %v2984
        %v3053 = vpack.c.bf16 %v2985, %v2985
        %v3054 = vpack.c.bf16 %v2986, %v2986
        %v3055 = vpack.c.bf16 %v2987, %v2987
        %v3056 = vpack.c.bf16 %v2988, %v2988
        %v3057 = vpack.c.bf16 %v2989, %v2989
        %v3058 = vpack.c.bf16 %v2990, %v2990
        %v3059 = vpack.c.bf16 %v2991, %v2991
        %v3060 = vpack.c.bf16 %v2992, %v2992
        %v3061 = vpack.c.bf16 %v2993, %v2993
        %v3062 = vpack.c.bf16 %v2994, %v2994
        %v3063 = vpack.c.bf16 %v2995, %v2995
        %v3064 = vpack.c.bf16 %v2996, %v2996
        %v3065 = vpack.c.bf16 %v2997, %v2997
        %v3066 = vpack.c.bf16 %v2998, %v2998
        %v3067 = vpack.c.bf16 %v2999, %v2999
        %v3068 = vpack.c.bf16 %v3000, %v3000
        %v3069 = vpack.c.bf16 %v3001, %v3001
        %v3070 = vpack.c.bf16 %v3002, %v3002
        %v3071 = vpack.c.bf16 %v3003, %v3003
        %v3072 = vpack.c.bf16 %v3004, %v3004
        %v3073 = vpack.c.bf16 %v3005, %v3005
        %v3074 = vpack.c.bf16 %v3006, %v3006
        %v3075 = vpack.c.bf16 %v3007, %v3007
        %v3076 = vld [vmem:[%s6] sm:$0xf]
        %v3077 = vld [vmem:[%s6 + $0x4] sm:$0xf]
        %v3078 = vld [vmem:[%s6 + $0x8] sm:$0xf]
        %v3079 = vld [vmem:[%s6 + $0xc] sm:$0xf]
        %v3112 = vunpack.c.l.b16 %v3044
        %v3113 = vunpack.c.l.b16 %v3045
        %v3114 = vunpack.c.l.b16 %v3046
        %v3115 = vunpack.c.l.b16 %v3047
        %v3116 = vunpack.c.l.b16 %v3048
        %v3117 = vunpack.c.l.b16 %v3049
        %v3118 = vunpack.c.l.b16 %v3050
        %v3119 = vunpack.c.l.b16 %v3051
        %v3120 = vunpack.c.l.b16 %v3052
        %v3121 = vunpack.c.l.b16 %v3053
        %v3122 = vunpack.c.l.b16 %v3054
        %v3123 = vunpack.c.l.b16 %v3055
        %v3124 = vunpack.c.l.b16 %v3056
        %v3125 = vunpack.c.l.b16 %v3057
        %v3126 = vunpack.c.l.b16 %v3058
        %v3127 = vunpack.c.l.b16 %v3059
        %v3128 = vunpack.c.l.b16 %v3060
        %v3129 = vunpack.c.l.b16 %v3061
        %v3130 = vunpack.c.l.b16 %v3062
        %v3131 = vunpack.c.l.b16 %v3063
        %v3132 = vunpack.c.l.b16 %v3064
        %v3133 = vunpack.c.l.b16 %v3065
        %v3134 = vunpack.c.l.b16 %v3066
        %v3135 = vunpack.c.l.b16 %v3067
        %v3136 = vunpack.c.l.b16 %v3068
        %v3137 = vunpack.c.l.b16 %v3069
        %v3138 = vunpack.c.l.b16 %v3070
        %v3139 = vunpack.c.l.b16 %v3071
        %v3140 = vunpack.c.l.b16 %v3072
        %v3141 = vunpack.c.l.b16 %v3073
        %v3142 = vunpack.c.l.b16 %v3074
        %v3143 = vunpack.c.l.b16 %v3075
        %vm3144 = vcmask 1041409
        %v3145 = vsel %vm3144, %v3113, %v3112
        %vm3146 = vcmask 1042434
        %v3147 = vsel %vm3146, %v3114, %v3145
        %vm3148 = vcmask 1043459
        %v3149 = vsel %vm3148, %v3115, %v3147
        %vm3150 = vcmask 1044484
        %v3151 = vsel %vm3150, %v3116, %v3149
        %vm3152 = vcmask 1045509
        %v3153 = vsel %vm3152, %v3117, %v3151
        %vm3154 = vcmask 1046534
        %v3155 = vsel %vm3154, %v3118, %v3153
        %vm3156 = vcmask 1047559
        %v3157 = vsel %vm3156, %v3119, %v3155
        %v3158 = vsel %vm3144, %v3121, %v3120
        %v3159 = vsel %vm3146, %v3122, %v3158
        %v3160 = vsel %vm3148, %v3123, %v3159
        %v3161 = vsel %vm3150, %v3124, %v3160
        %v3162 = vsel %vm3152, %v3125, %v3161
        %v3163 = vsel %vm3154, %v3126, %v3162
        %v3164 = vsel %vm3156, %v3127, %v3163
        %v3165 = vsel %vm3144, %v3129, %v3128
        %v3166 = vsel %vm3146, %v3130, %v3165
        %v3167 = vsel %vm3148, %v3131, %v3166
        %v3168 = vsel %vm3150, %v3132, %v3167
        %v3169 = vsel %vm3152, %v3133, %v3168
        %v3170 = vsel %vm3154, %v3134, %v3169
        %v3171 = vsel %vm3156, %v3135, %v3170
        %v3172 = vsel %vm3144, %v3137, %v3136
        %v3173 = vsel %vm3146, %v3138, %v3172
        %v3174 = vsel %vm3148, %v3139, %v3173
        %v3175 = vsel %vm3150, %v3140, %v3174
        %v3176 = vsel %vm3152, %v3141, %v3175
        %v3177 = vsel %vm3154, %v3142, %v3176
        %v3178 = vsel %vm3156, %v3143, %v3177
        %v3179 = vpack.c.b16 %v3164, %v3157
        %v3180 = vpack.c.b16 %v3178, %v3171
        %v3185 = vunpack.c.l.b16 %v3076
        %v3186 = vunpack.c.l.b16 %v3077
        %v3187 = vunpack.c.l.b16 %v3078
        %v3188 = vunpack.c.l.b16 %v3079
        %v3189 = vpack.c.b16 %v3186, %v3185
        %v3190 = vpack.c.b16 %v3188, %v3187
        %v3194 = vsel %vm695, %v3179, 0
        %v3197 = vsel %vm695, %v3180, 0
        %3199 = vmatprep.subr.bf16.mxu0 0
        %3200 = vmatpush1.bf16.msra.mxu0 %v3189
        %3201 = vmatprep.subr.bf16.mxu0 0
        %3202 = vmatpush1.bf16.msra.mxu0 %v3190
        %3203 = vmatprep.subr.bf16.mxu0 0
        %3204 = vmatpush1.bf16.msra.mxu0 0
        %3205 = vmatprep.subr.bf16.mxu0 0
        %3206 = vmatpush1.bf16.msra.mxu0 0
        %3207 = vmatprep.subr.bf16.mxu0 0
        %3208 = vmatpush1.bf16.msra.mxu0 0
        %3209 = vmatprep.subr.bf16.mxu0 0
        %3210 = vmatpush1.bf16.msra.mxu0 0
        %3211 = vmatprep.subr.bf16.mxu0 0
        %3212 = vmatpush1.bf16.msra.mxu0 0
        %3213 = vmatprep.subr.bf16.mxu0 0
        %3214 = vmatpush1.bf16.msra.mxu0 0
        %3215 = vmatprep.subr.bf16.mxu0 0
        %3216 = vmatpush1.bf16.msra.mxu0 0
        %3217 = vmatprep.subr.bf16.mxu0 0
        %3218 = vmatpush1.bf16.msra.mxu0 0
        %3219 = vmatprep.subr.bf16.mxu0 0
        %3220 = vmatpush1.bf16.msra.mxu0 0
        %3221 = vmatprep.subr.bf16.mxu0 0
        %3222 = vmatpush1.bf16.msra.mxu0 0
        %3223 = vmatprep.subr.bf16.mxu0 0
        %3224 = vmatpush1.bf16.msra.mxu0 0
        %3225 = vmatprep.subr.bf16.mxu0 0
        %3226 = vmatpush1.bf16.msra.mxu0 0
        %3227 = vmatprep.subr.bf16.mxu0 0
        %3228 = vmatpush1.bf16.msra.mxu0 0
        %3229 = vmatprep.subr.bf16.mxu0 0
        %3230 = vmatpush1.bf16.msra.mxu0 0
        %3231 = vmatprep.mubr.bf16.mxu0 0
        %3232 = vmatmul.mubr.bf16.gmra.mrb[0].mxu0 %v3194
        %v3233 = vpop.f32.mrb[0].mxu0
        %v3234 = vadd.f32 0.0, %v3233
        %v3235 = vpop.f32.mrb[0].mxu0
        %v3236 = vpop.f32.mrb[0].mxu0
        %v3237 = vadd.f32 0.0, %v3236
        %v3238 = vpop.f32.mrb[0].mxu0
        %3239 = vmatprep.mubr.bf16.mxu0 0
        %3240 = vmatmul.mubr.bf16.gmra.mrb[0].mxu0 %v3197
        %v3241 = vpop.f32.mrb[0].mxu0
        %v3242 = vadd.f32 0.0, %v3241
        %v3243 = vpop.f32.mrb[0].mxu0
        %v3244 = vpop.f32.mrb[0].mxu0
        %v3245 = vadd.f32 0.0, %v3244
        %v3246 = vpop.f32.mrb[0].mxu0
        %3247 = vdwg.mxu0
        %v3280 = vunpack.c.l.b16 %v3008
        %v3281 = vunpack.c.l.b16 %v3009
        %v3282 = vunpack.c.l.b16 %v3010
        %v3283 = vunpack.c.l.b16 %v3011
        %v3284 = vunpack.c.l.b16 %v3012
        %v3285 = vunpack.c.l.b16 %v3013
        %v3286 = vunpack.c.l.b16 %v3014
        %v3287 = vunpack.c.l.b16 %v3015
        %v3288 = vunpack.c.l.b16 %v3016
        %v3289 = vunpack.c.l.b16 %v3017
        %v3290 = vunpack.c.l.b16 %v3018
        %v3291 = vunpack.c.l.b16 %v3019
        %v3292 = vunpack.c.l.b16 %v3020
        %v3293 = vunpack.c.l.b16 %v3021
        %v3294 = vunpack.c.l.b16 %v3022
        %v3295 = vunpack.c.l.b16 %v3023
        %v3296 = vunpack.c.l.b16 %v3024
        %v3297 = vunpack.c.l.b16 %v3025
        %v3298 = vunpack.c.l.b16 %v3026
        %v3299 = vunpack.c.l.b16 %v3027
        %v3300 = vunpack.c.l.b16 %v3028
        %v3301 = vunpack.c.l.b16 %v3029
        %v3302 = vunpack.c.l.b16 %v3030
        %v3303 = vunpack.c.l.b16 %v3031
        %v3304 = vunpack.c.l.b16 %v3032
        %v3305 = vunpack.c.l.b16 %v3033
        %v3306 = vunpack.c.l.b16 %v3034
        %v3307 = vunpack.c.l.b16 %v3035
        %v3308 = vunpack.c.l.b16 %v3036
        %v3309 = vunpack.c.l.b16 %v3037
        %v3310 = vunpack.c.l.b16 %v3038
        %v3311 = vunpack.c.l.b16 %v3039
        %v3312 = vsel %vm3144, %v3281, %v3280
        %v3313 = vsel %vm3146, %v3282, %v3312
        %v3314 = vsel %vm3148, %v3283, %v3313
        %v3315 = vsel %vm3150, %v3284, %v3314
        %v3316 = vsel %vm3152, %v3285, %v3315
        %v3317 = vsel %vm3154, %v3286, %v3316
        %v3318 = vsel %vm3156, %v3287, %v3317
        %v3319 = vsel %vm3144, %v3289, %v3288
        %v3320 = vsel %vm3146, %v3290, %v3319
        %v3321 = vsel %vm3148, %v3291, %v3320
        %v3322 = vsel %vm3150, %v3292, %v3321
        %v3323 = vsel %vm3152, %v3293, %v3322
        %v3324 = vsel %vm3154, %v3294, %v3323
        %v3325 = vsel %vm3156, %v3295, %v3324
        %v3326 = vsel %vm3144, %v3297, %v3296
        %v3327 = vsel %vm3146, %v3298, %v3326
        %v3328 = vsel %vm3148, %v3299, %v3327
        %v3329 = vsel %vm3150, %v3300, %v3328
        %v3330 = vsel %vm3152, %v3301, %v3329
        %v3331 = vsel %vm3154, %v3302, %v3330
        %v3332 = vsel %vm3156, %v3303, %v3331
        %v3333 = vsel %vm3144, %v3305, %v3304
        %v3334 = vsel %vm3146, %v3306, %v3333
        %v3335 = vsel %vm3148, %v3307, %v3334
        %v3336 = vsel %vm3150, %v3308, %v3335
        %v3337 = vsel %vm3152, %v3309, %v3336
        %v3338 = vsel %vm3154, %v3310, %v3337
        %v3339 = vsel %vm3156, %v3311, %v3338
        %v3340 = vpack.c.b16 %v3325, %v3318
        %v3341 = vpack.c.b16 %v3339, %v3332
        %v3346 = vunpack.c.l.b16 %v3040
        %v3347 = vunpack.c.l.b16 %v3041
        %v3348 = vunpack.c.l.b16 %v3042
        %v3349 = vunpack.c.l.b16 %v3043
        %v3350 = vpack.c.b16 %v3347, %v3346
        %v3351 = vpack.c.b16 %v3349, %v3348
        %v3355 = vsel %vm695, %v3340, 0
        %v3358 = vsel %vm695, %v3341, 0
        %3360 = vmatprep.subr.bf16.mxu0 0
        %3361 = vmatpush1.bf16.msra.mxu0 %v3350
        %3362 = vmatprep.subr.bf16.mxu0 0
        %3363 = vmatpush1.bf16.msra.mxu0 %v3351
        %3364 = vmatprep.subr.bf16.mxu0 0
        %3365 = vmatpush1.bf16.msra.mxu0 0
        %3366 = vmatprep.subr.bf16.mxu0 0
        %3367 = vmatpush1.bf16.msra.mxu0 0
        %3368 = vmatprep.subr.bf16.mxu0 0
        %3369 = vmatpush1.bf16.msra.mxu0 0
        %3370 = vmatprep.subr.bf16.mxu0 0
        %3371 = vmatpush1.bf16.msra.mxu0 0
        %3372 = vmatprep.subr.bf16.mxu0 0
        %3373 = vmatpush1.bf16.msra.mxu0 0
        %3374 = vmatprep.subr.bf16.mxu0 0
        %3375 = vmatpush1.bf16.msra.mxu0 0
        %3376 = vmatprep.subr.bf16.mxu0 0
        %3377 = vmatpush1.bf16.msra.mxu0 0
        %3378 = vmatprep.subr.bf16.mxu0 0
        %3379 = vmatpush1.bf16.msra.mxu0 0
        %3380 = vmatprep.subr.bf16.mxu0 0
        %3381 = vmatpush1.bf16.msra.mxu0 0
        %3382 = vmatprep.subr.bf16.mxu0 0
        %3383 = vmatpush1.bf16.msra.mxu0 0
        %3384 = vmatprep.subr.bf16.mxu0 0
        %3385 = vmatpush1.bf16.msra.mxu0 0
        %3386 = vmatprep.subr.bf16.mxu0 0
        %3387 = vmatpush1.bf16.msra.mxu0 0
        %3388 = vmatprep.subr.bf16.mxu0 0
        %3389 = vmatpush1.bf16.msra.mxu0 0
        %3390 = vmatprep.subr.bf16.mxu0 0
        %3391 = vmatpush1.bf16.msra.mxu0 0
        %3392 = vmatprep.mubr.bf16.mxu0 0
        %3393 = vmatmul.mubr.bf16.gmra.mrb[0].mxu0 %v3355
        %v3394 = vpop.f32.mrb[0].mxu0
        %v3395 = vadd.f32 %v3234, %v3394
        %v3396 = vpop.f32.mrb[0].mxu0
        %v3397 = vpop.f32.mrb[0].mxu0
        %v3398 = vadd.f32 %v3237, %v3397
        %v3399 = vpop.f32.mrb[0].mxu0
        %3400 = vmatprep.mubr.bf16.mxu0 0
        %3401 = vmatmul.mubr.bf16.gmra.mrb[0].mxu0 %v3358
        %v3402 = vpop.f32.mrb[0].mxu0
        %v3403 = vadd.f32 %v3242, %v3402
        %v3404 = vpop.f32.mrb[0].mxu0
        %v3405 = vpop.f32.mrb[0].mxu0
        %v3406 = vadd.f32 %v3245, %v3405
        %v3407 = vpop.f32.mrb[0].mxu0
        %3408 = vdwg.mxu0
        %v3409 = vld [vmem:[%s7] sm:$0x1]
        %v3411 = vlaneseq
        %v3412 = vshrl.u32 %v3411, 7
        %v3413 = vsub.s32 0, %v3412
        %v3414 = vrot.slane %v3409, %v3413
        %v3416 = vadd.f32 %v3395, %v3414
        %v3417 = vadd.f32 %v3398, %v3414
        %v3418 = vadd.f32 %v3403, %v3414
        %v3419 = vadd.f32 %v3406, %v3414
        %v3420 = vmax.f32 %v3416, 0.0
        %v3421 = vmax.f32 %v3417, 0.0
        %v3422 = vmax.f32 %v3418, 0.0
        %v3423 = vmax.f32 %v3419, 0.0
        %v3424 = vpack.c.bf16 %v3421, %v3420
        %v3425 = vpack.c.bf16 %v3423, %v3422
        %v3426 = vld [vmem:[%s8] sm:$0xf]
        %v3427 = vld [vmem:[%s8 + $0x4] sm:$0xf]
        %v3428 = vld [vmem:[%s8 + $0x8] sm:$0xf]
        %v3429 = vld [vmem:[%s8 + $0xc] sm:$0xf]
        %v3430 = vld [vmem:[%s9] sm:$0x1]
        %v3432 = vlaneseq
        %v3433 = vshrl.u32 %v3432, 7
        %v3434 = vsub.s32 0, %v3433
        %v3435 = vrot.slane %v3430, %v3434
        %v3441 = vunpack.c.l.b16 %v3426
        %v3442 = vunpack.c.l.b16 %v3427
        %v3443 = vunpack.c.l.b16 %v3428
        %v3444 = vunpack.c.l.b16 %v3429
        %v3445 = vpack.c.b16 %v3442, %v3441
        %v3446 = vpack.c.b16 %v3444, %v3443
        %v3450 = vsel %vm695, %v3424, 0
        %v3453 = vsel %vm695, %v3425, 0
        %3455 = vmatprep.subr.bf16.mxu0 0
        %3456 = vmatpush1.bf16.msra.mxu0 %v3445
        %3457 = vmatprep.subr.bf16.mxu0 0
        %3458 = vmatpush1.bf16.msra.mxu0 %v3446
        %3459 = vmatprep.subr.bf16.mxu0 0
        %3460 = vmatpush1.bf16.msra.mxu0 0
        %3461 = vmatprep.subr.bf16.mxu0 0
        %3462 = vmatpush1.bf16.msra.mxu0 0
        %3463 = vmatprep.subr.bf16.mxu0 0
        %3464 = vmatpush1.bf16.msra.mxu0 0
        %3465 = vmatprep.subr.bf16.mxu0 0
        %3466 = vmatpush1.bf16.msra.mxu0 0
        %3467 = vmatprep.subr.bf16.mxu0 0
        %3468 = vmatpush1.bf16.msra.mxu0 0
        %3469 = vmatprep.subr.bf16.mxu0 0
        %3470 = vmatpush1.bf16.msra.mxu0 0
        %3471 = vmatprep.subr.bf16.mxu0 0
        %3472 = vmatpush1.bf16.msra.mxu0 0
        %3473 = vmatprep.subr.bf16.mxu0 0
        %3474 = vmatpush1.bf16.msra.mxu0 0
        %3475 = vmatprep.subr.bf16.mxu0 0
        %3476 = vmatpush1.bf16.msra.mxu0 0
        %3477 = vmatprep.subr.bf16.mxu0 0
        %3478 = vmatpush1.bf16.msra.mxu0 0
        %3479 = vmatprep.subr.bf16.mxu0 0
        %3480 = vmatpush1.bf16.msra.mxu0 0
        %3481 = vmatprep.subr.bf16.mxu0 0
        %3482 = vmatpush1.bf16.msra.mxu0 0
        %3483 = vmatprep.subr.bf16.mxu0 0
        %3484 = vmatpush1.bf16.msra.mxu0 0
        %3485 = vmatprep.subr.bf16.mxu0 0
        %3486 = vmatpush1.bf16.msra.mxu0 0
        %3487 = vmatprep.mubr.bf16.mxu0 0
        %3488 = vmatmul.mubr.bf16.gmra.mrb[0].mxu0 %v3450
        %v3489 = vpop.f32.mrb[0].mxu0
        %v3490 = vadd.f32 %v3435, %v3489
        %v3491 = vpop.f32.mrb[0].mxu0
        %v3492 = vpop.f32.mrb[0].mxu0
        %v3493 = vadd.f32 %v3435, %v3492
        %v3494 = vpop.f32.mrb[0].mxu0
        %3495 = vmatprep.mubr.bf16.mxu0 0
        %3496 = vmatmul.mubr.bf16.gmra.mrb[0].mxu0 %v3453
        %v3497 = vpop.f32.mrb[0].mxu0
        %v3498 = vadd.f32 %v3435, %v3497
        %v3499 = vpop.f32.mrb[0].mxu0
        %v3500 = vpop.f32.mrb[0].mxu0
        %v3501 = vadd.f32 %v3435, %v3500
        %v3502 = vpop.f32.mrb[0].mxu0
        %3503 = vdwg.mxu0
        %3504 = vmax.xlane.f32.xlu0 %v3490
        %v3505 = vpop.xlane.xlu0 %3504
        %3506 = vmax.xlane.f32.xlu0 %v3493
        %v3507 = vpop.xlane.xlu0 %3506
        %3508 = vmax.xlane.f32.xlu0 %v3498
        %v3509 = vpop.xlane.xlu0 %3508
        %3510 = vmax.xlane.f32.xlu0 %v3501
        %v3511 = vpop.xlane.xlu0 %3510
        %v3512 = vsub.f32 %v3490, %v3505
        %v3513 = vsub.f32 %v3493, %v3507
        %v3514 = vsub.f32 %v3498, %v3509
        %v3515 = vsub.f32 %v3501, %v3511
        %v3516 = vmul.f32 %v3512, 1.442695
        %v3517 = vpow.pop %v3516
        %v3518 = vmul.f32 %v3513, 1.442695
        %v3519 = vpow.pop %v3518
        %v3520 = vmul.f32 %v3514, 1.442695
        %v3521 = vpow.pop %v3520
        %v3522 = vmul.f32 %v3515, 1.442695
        %v3523 = vpow.pop %v3522
        %3524 = vadd.xlane.f32.xlu0 %v3517
        %v3525 = vpop.xlane.xlu0 %3524
        %3526 = vadd.xlane.f32.xlu0 %v3519
        %v3527 = vpop.xlane.xlu0 %3526
        %3528 = vadd.xlane.f32.xlu0 %v3521
        %v3529 = vpop.xlane.xlu0 %3528
        %3530 = vadd.xlane.f32.xlu0 %v3523
        %v3531 = vpop.xlane.xlu0 %3530
        %v3532 = vlog2.pop %v3525
        %v3533 = vmul.f32 %v3532, 0.6931472
        %v3534 = vlog2.pop %v3527
        %v3535 = vmul.f32 %v3534, 0.6931472
        %v3536 = vlog2.pop %v3529
        %v3537 = vmul.f32 %v3536, 0.6931472
        %v3538 = vlog2.pop %v3531
        %v3539 = vmul.f32 %v3538, 0.6931472
        %v3540 = vsub.f32 %v3512, %v3533
        %v3541 = vsub.f32 %v3513, %v3535
        %v3542 = vsub.f32 %v3514, %v3537
        %v3543 = vsub.f32 %v3515, %v3539
        %3544 = vst [vmem:[%s369] sm:$0xff] %v3540
        %3545 = vst [vmem:[%s369 + $0x8] sm:$0xff] %v3541
        %3546 = vst [vmem:[%s369 + $0x10] sm:$0xff] %v3542
        %3547 = vst [vmem:[%s369 + $0x18] sm:$0xff] %v3543
        %s3548 = sand.u32 %s252, 1
        %s3549 = scalar_lea.sflag [#allocation3], %s3548
        %s3550 = sand.u32 %s252, 1
        %s3551 = smul.addr %s3550, 32
        %s3552 = scalar_lea.vmem [#allocation2], %s3551
        // Predicated region
        $region61: #{tpu_custom_call.1} parent=59 // pred_check
          %p3553 = pneg %p262
        $region62: #{tpu_custom_call.1} parent=59 // pred_check_branch
          %3555 = sbr.rel (%p3553) target = $region64
        $region63: #{tpu_custom_call.1} parent=59 // pred_region
          %s3556 = smul.u32 4, %s24
          %s3558 = ssub.s32 512, 512
          %3559 = vsyncadd %s3549, %s3558
          %s3560 = smul.addr %s3556, 128
          %s3561 = scalar_lea.hbm %s10, %s3560
          %s3562 = sshll.u32 %s3552, 4
          %s3563 = int_to_ptr.vmem [resolvable:$true] %s3562
          %3568 = dma.vmem_to_hbm [thread:$0]  %s3563, 512, %s3561, %s3549, 128, 128, 8
        $region64: #{tpu_custom_call.1} parent=59 // pred_fallthru
          _
      $region60: #{tpu_custom_call.1} parent=5 // pred_fallthru
        _
      %p3569 = scmp.le.s32.totalorder 2, %s19
      // Predicated region
      $region65: #{tpu_custom_call.1} parent=5 // pred_check
        %p3570 = pneg %p3569
      $region66: #{tpu_custom_call.1} parent=5 // pred_check_branch
        %3572 = sbr.rel (%p3570) target = $region68
      $region67: #{tpu_custom_call.1} parent=5 // pred_region
        %s3573 = ssub.s32 %s19, 2
        // Predicated region
        $region69: #{tpu_custom_call.1} parent=67 // pred_check
          %p3574 = pneg %p268
        $region70: #{tpu_custom_call.1} parent=67 // pred_check_branch
          %3576 = sbr.rel (%p3574) target = $region72
        $region71: #{tpu_custom_call.1} parent=67 // pred_region
          %s3577 = sand.u32 %s253, 1
          %s3578 = scalar_lea.sflag [#allocation3], %s3577
          %s3579 = sand.u32 %s253, 1
          %s3580 = smul.addr %s3579, 32
          %s3581 = scalar_lea.vmem [#allocation2], %s3580
          %3582 = dma.done %s3578, 512
        $region72: #{tpu_custom_call.1} parent=67 // pred_fallthru
          _
      $region68: #{tpu_custom_call.1} parent=5 // pred_fallthru
        _
    $region6: #{tpu_custom_call.1} parent=1 // loop_footer
      %s23 = sadd.s32 1, %s19
    $region7: #{tpu_custom_call.1} parent=1 // loop_footer_branch
      %18 = sbr.rel target = $region3
    $region8: #{tpu_custom_call.1} parent=1 // loop_exit
      _
    %3583 = vsyncpa [#allocation3], 1
    %s3584 = scalar_lea.sflag [#allocation3], 1
    %3585 = vsyncpa %s3584, 1

</llo_original>
